<compile_context>
chip_gen: v7x
topology: tpu7x:2x2x1
jax: 0.10.0
libtpu: 0.0.40
codegen_flags: <defaults>
</compile_context>

<pallas_src>
import functools

import jax
import jax.numpy as jnp
from jax import lax
from jax.experimental import pallas as pl
from jax.experimental.pallas import tpu as pltpu


LANE = 128


def _round_up(v, m):
    return (v + m - 1) // m * m


def _pad2(a, rows, cols):
    out = jnp.zeros((rows, cols), a.dtype)
    return out.at[: a.shape[0], : a.shape[1]].set(a)


def _silu(v):
    return v * jax.nn.sigmoid(v)


def _mm(a, b):
    """bf16 MXU matmul with f32 accumulation."""
    return jnp.dot(a.astype(jnp.bfloat16), b.astype(jnp.bfloat16),
                   preferred_element_type=jnp.float32)


# ---------------------------------------------------------------------------
# Fused EGNN kernel.  Grid = (layer, edge_tile).
# ---------------------------------------------------------------------------
def _egnn_kernel(
    # data
    h_in_ref, x_in_ref, row_ref, col_ref, inv_deg_ref, pool_ref, inv_cnt_ref,
    # per-layer weights (layer dim selected by grid axis 0, squeezed away)
    w_e1_ref, w_er_ref, b_e1_ref, w_e2_ref, b_e2_ref, w_att_ref, b_att_ref,
    w_c1_ref, b_c1_ref, w_c2_ref, w_n1_ref, b_n1_ref, w_n2_ref, b_n2_ref,
    # global weights
    emb_in_w_ref, emb_in_b_ref, emb_out_w_ref, emb_out_b_ref,
    m1_w_ref, m1_b_ref, m2_w_ref, m2_b_ref,
    # output
    out_ref,
    # scratch (persist across the whole grid)
    h_ref, hb_ref, x_ref, aggh_ref, aggx_ref,
    *, hp,
):
    layer = pl.program_id(0)
    et = pl.program_id(1)
    n_layers = pl.num_programs(0)
    n_et = pl.num_programs(1)

    # ---- embedding_in: once, at the very first grid step --------------------
    @pl.when(jnp.logical_and(layer == 0, et == 0))
    def _init():
        h0 = _mm(h_in_ref[...], emb_in_w_ref[...]) + emb_in_b_ref[...]
        h_ref[...] = h0
        hb_ref[...] = h0.astype(jnp.bfloat16)
        x_ref[...] = x_in_ref[...]

    # int8 one-hot edge tiles -> exact f32 view (coords) and bf16 view (feats)
    row_f = row_ref[...].astype(jnp.float32)
    col_f = col_ref[...].astype(jnp.float32)
    row_b = row_f.astype(jnp.bfloat16)
    col_b = col_f.astype(jnp.bfloat16)

    # Gather node features (bf16 MXU) and coordinates (exact f32 matmul).
    hb = hb_ref[...]
    source = jnp.dot(row_b, hb, preferred_element_type=jnp.float32)
    target = jnp.dot(col_b, hb, preferred_element_type=jnp.float32)
    x_row = jnp.dot(row_f, x_ref[...], preferred_element_type=jnp.float32)
    x_col = jnp.dot(col_f, x_ref[...], preferred_element_type=jnp.float32)

    coord_diff = x_row - x_col
    radial = jnp.sum(coord_diff * coord_diff, axis=1, keepdims=True)    # (TE,1)

    # edge_mlp: Linear(2H+1, H) -> SiLU -> Linear(H, H) -> SiLU
    # (single K=2*hp matmul on the lane-concatenated [source|target] operand)
    st = jnp.concatenate([source, target], axis=1).astype(jnp.bfloat16)
    e1 = _silu(jnp.dot(st, w_e1_ref[...], preferred_element_type=jnp.float32)
               + radial * w_er_ref[...] + b_e1_ref[...])
    edge_feat = _silu(_mm(e1, w_e2_ref[...]) + b_e2_ref[...])

    # attention gate: Linear(H,1)+Sigmoid as a VPU reduce (no (H,1) MXU op)
    att = jax.nn.sigmoid(
        jnp.sum(edge_feat * w_att_ref[...], axis=1, keepdims=True)
        + b_att_ref[...][:1, :1])
    edge_feat = edge_feat * att

    # coord_mlp: Linear(H,H) -> SiLU -> Linear(H,1,bias=False) as VPU reduce
    c1 = _silu(_mm(edge_feat, w_c1_ref[...]) + b_c1_ref[...])
    phi = jnp.sum(c1 * w_c2_ref[...], axis=1, keepdims=True)            # (TE,1)
    trans = coord_diff * phi                                            # f32

    # Scatter-add via transposed matmuls (contraction over the edge-tile axis),
    # reusing the row one-hot block.  Feature scatter bf16, coord scatter f32.
    # TODO(synk): check the MLIR for XLU transposes; if present, stream a
    # pre-transposed (N, TE) one-hot block for the scatter instead.
    aggh_new = lax.dot_general(row_b, edge_feat.astype(jnp.bfloat16),
                               (((0,), (0,)), ((), ())),
                               preferred_element_type=jnp.float32)
    aggx_new = lax.dot_general(row_f, trans, (((0,), (0,)), ((), ())),
                               preferred_element_type=jnp.float32)

    # Fold the accumulator zeroing into the first edge tile of each layer.
    @pl.when(et == 0)
    def _store_first():
        aggh_ref[...] = aggh_new
        aggx_ref[...] = aggx_new

    @pl.when(et > 0)
    def _accumulate():
        aggh_ref[...] += aggh_new
        aggx_ref[...] += aggx_new

    # ---- node / coord update at the last edge tile of the layer -------------
    @pl.when(et == n_et - 1)
    def _node_update():
        h = h_ref[...]
        x_new = x_ref[...] + aggx_ref[...] * inv_deg_ref[...]          # mean
        hn = jnp.concatenate([h, aggh_ref[...]], axis=1).astype(jnp.bfloat16)
        n1 = _silu(jnp.dot(hn, w_n1_ref[...], preferred_element_type=jnp.float32)
                   + b_n1_ref[...])
        h_new = h + _mm(n1, w_n2_ref[...]) + b_n2_ref[...]             # residual
        h_ref[...] = h_new
        hb_ref[...] = h_new.astype(jnp.bfloat16)
        x_ref[...] = x_new

        # ---- embedding_out + scatter_mean pool + head MLP at the very end ---
        @pl.when(layer == n_layers - 1)
        def _head():
            h_out = _mm(h_new, emb_out_w_ref[...]) + emb_out_b_ref[...]
            h_pool = jnp.dot(pool_ref[...], h_out,
                             preferred_element_type=jnp.float32) * inv_cnt_ref[...]
            z = jnp.maximum(_mm(h_pool, m1_w_ref[...]) + m1_b_ref[...], 0.0)
            out_ref[...] = _mm(z, m2_w_ref[...]) + m2_b_ref[...]


# ---------------------------------------------------------------------------
# Parameter init (deterministic; padded to 128-lane multiples, zero padding).
# ---------------------------------------------------------------------------
def init_params(key, in_node_nf, hidden_nf, out_node_nf, n_layers):
    hp = _round_up(hidden_nf, LANE)
    inp = _round_up(in_node_nf, LANE)
    outp = _round_up(out_node_nf, LANE)
    h = hidden_nf

    keys = jax.random.split(key, 4 + 8 * n_layers)
    it = iter(range(len(keys)))

    def dense(fi, fo, scale=None):
        k = keys[next(it)]
        if scale is None:
            scale = 1.0 / float(fi) ** 0.5
        return scale * jax.random.normal(k, (fi, fo), jnp.float32)

    def mm_pad(w, rows, cols):
        return _pad2(w, rows, cols).astype(jnp.bfloat16)

    def row_pad(w):
        return _pad2(w, 1, hp)

    def split_pad(w):
        # (2H, H) -> (2HP, HP) with the two halves placed at rows [0:H], [HP:HP+H].
        out = jnp.zeros((2 * hp, hp), jnp.float32)
        out = out.at[:h, :h].set(w[:h])
        out = out.at[hp:hp + h, :h].set(w[h:])
        return out.astype(jnp.bfloat16)

    params = {
        "emb_in_w": mm_pad(dense(in_node_nf, h), inp, hp),
        "emb_in_b": jnp.zeros((1, hp), jnp.float32),
        "emb_out_w": mm_pad(dense(h, h), hp, hp),
        "emb_out_b": jnp.zeros((1, hp), jnp.float32),
        "m1_w": mm_pad(dense(h, h), hp, hp),
        "m1_b": jnp.zeros((1, hp), jnp.float32),
        "m2_w": mm_pad(dense(h, out_node_nf), hp, outp),
        "m2_b": jnp.zeros((1, outp), jnp.float32),
    }

    names = ["w_e1", "w_er", "b_e1", "w_e2", "b_e2", "w_att", "b_att",
             "w_c1", "b_c1", "w_c2", "w_n1", "b_n1", "w_n2", "b_n2"]
    per_layer = {k: [] for k in names}
    zero_row = jnp.zeros((1, hp), jnp.float32)
    for _ in range(n_layers):
        per_layer["w_e1"].append(split_pad(dense(2 * h, h)))
        per_layer["w_er"].append(row_pad(dense(1, h)))
        per_layer["b_e1"].append(zero_row)
        per_layer["w_e2"].append(mm_pad(dense(h, h), hp, hp))
        per_layer["b_e2"].append(zero_row)
        per_layer["w_att"].append(row_pad(dense(h, 1).T))
        per_layer["b_att"].append(zero_row)
        per_layer["w_c1"].append(mm_pad(dense(h, h), hp, hp))
        per_layer["b_c1"].append(zero_row)
        per_layer["w_c2"].append(row_pad(dense(h, 1, scale=0.001).T))
        per_layer["w_n1"].append(split_pad(dense(2 * h, h)))
        per_layer["b_n1"].append(zero_row)
        per_layer["w_n2"].append(mm_pad(dense(h, h), hp, hp))
        per_layer["b_n2"].append(zero_row)

    for k, v in per_layer.items():
        params[k] = jnp.stack(v)
    return params


def _vmem_limit_bytes():
    cap = None
    try:
        cap = getattr(pltpu.get_tpu_info(), "vmem_capacity_bytes", None)
    except Exception:
        cap = None
    if not cap:
        cap = 64 * 1024 * 1024
    return min(int(cap * 0.85), 112 * 1024 * 1024)


# ---------------------------------------------------------------------------
# Full forward pass wrapper.
# ---------------------------------------------------------------------------
def egnn_for_residue_identity(h, x, edges, batch, params, *, n_graphs,
                              out_node_nf, edge_tile=256):
    row, col = edges
    n = h.shape[0]
    n_pad = _round_up(n, 8)
    inp = params["emb_in_w"].shape[0]
    hp = params["emb_out_w"].shape[0]
    outp = params["m2_w"].shape[1]
    n_layers = params["w_e1"].shape[0]
    xp = LANE                               # coords padded to 128 lanes, not hp
    e = row.shape[0]
    edge_tile = _round_up(edge_tile, 32)    # int8 sublane packing
    e_pad = _round_up(max(e, edge_tile), edge_tile)
    n_et = e_pad // edge_tile
    b = n_graphs

    h_in = _pad2(h.astype(jnp.float32), n_pad, inp)
    x_in = _pad2(x.astype(jnp.float32), n_pad, xp)

    # int8 one-hot gather/scatter operands (half the HBM bytes of bf16).
    eidx = jnp.arange(e)
    row_oh = jnp.zeros((e_pad, n_pad), jnp.int8).at[eidx, row].set(1)
    col_oh = jnp.zeros((e_pad, n_pad), jnp.int8).at[eidx, col].set(1)

    # node degree / graph-size normalizers, precomputed once (layer-invariant)
    deg = jnp.zeros((n_pad,), jnp.float32).at[row].add(1.0)
    inv_deg = (1.0 / jnp.maximum(deg, 1.0)).reshape(n_pad, 1)
    pool_oh = jnp.zeros((b, n_pad), jnp.float32).at[batch, jnp.arange(n)].set(1.0)
    cnt = jnp.zeros((b,), jnp.float32).at[batch].add(1.0)
    inv_cnt = (1.0 / jnp.maximum(cnt, 1.0)).reshape(b, 1)

    def const_spec(arr):
        nz = arr.ndim
        return pl.BlockSpec(arr.shape, lambda l, t, _n=nz: (0,) * _n)

    def layer_spec(arr):
        blk = (pl.Squeezed(),) + arr.shape[1:]
        nz = arr.ndim - 1
        return pl.BlockSpec(blk, lambda l, t, _n=nz: (l,) + (0,) * _n)

    edge_spec = pl.BlockSpec((edge_tile, n_pad), lambda l, t: (t, 0))

    data = [
        (h_in, const_spec(h_in)),
        (x_in, const_spec(x_in)),
        (row_oh, edge_spec),
        (col_oh, edge_spec),
        (inv_deg, const_spec(inv_deg)),
        (pool_oh, const_spec(pool_oh)),
        (inv_cnt, const_spec(inv_cnt)),
    ]
    for name in ("w_e1", "w_er", "b_e1", "w_e2", "b_e2", "w_att", "b_att",
                 "w_c1", "b_c1", "w_c2", "w_n1", "b_n1", "w_n2", "b_n2"):
        data.append((params[name], layer_spec(params[name])))
    for name in ("emb_in_w", "emb_in_b", "emb_out_w", "emb_out_b",
                 "m1_w", "m1_b", "m2_w", "m2_b"):
        data.append((params[name], const_spec(params[name])))

    arrays = [a for a, _ in data]
    in_specs = [s for _, s in data]

    out = pl.pallas_call(
        functools.partial(_egnn_kernel, hp=hp),
        out_shape=jax.ShapeDtypeStruct((b, outp), jnp.float32),
        grid_spec=pltpu.PrefetchScalarGridSpec(
            num_scalar_prefetch=0,
            grid=(n_layers, n_et),
            in_specs=in_specs,
            out_specs=pl.BlockSpec((b, outp), lambda l, t: (0, 0)),
            scratch_shapes=[
                pltpu.VMEM((n_pad, hp), jnp.float32),    # h (f32 node state)
                pltpu.VMEM((n_pad, hp), jnp.bfloat16),   # cached bf16 h
                pltpu.VMEM((n_pad, xp), jnp.float32),    # coords (f32)
                pltpu.VMEM((n_pad, hp), jnp.float32),    # edge-feat scatter acc
                pltpu.VMEM((n_pad, xp), jnp.float32),    # coord scatter acc
            ],
        ),
        compiler_params=pltpu.CompilerParams(
            dimension_semantics=("arbitrary", "arbitrary"),
            vmem_limit_bytes=_vmem_limit_bytes(),
        ),
    )(*arrays)
    return out[:, :out_node_nf]


if __name__ == "__main__":
    # Small synthetic problem: 2 graphs x 12 nodes, fully connected per graph
    # (E = 264 -> e_pad = 512 -> 2 edge tiles of 256, exercising accumulation).
    in_node_nf, hidden_nf, out_node_nf, n_layers = 16, 32, 8, 2
    nodes_per_graph, n_graphs = 12, 2
    N = nodes_per_graph * n_graphs

    key = jax.random.PRNGKey(0)
    k_h, k_x, k_p = jax.random.split(key, 3)
    h = jax.random.normal(k_h, (N, in_node_nf), jnp.float32)
    x = jax.random.normal(k_x, (N, 3), jnp.float32)

    rows, cols, batch = [], [], []
    for g in range(n_graphs):
        base = g * nodes_per_graph
        for i in range(nodes_per_graph):
            batch.append(g)
            for j in range(nodes_per_graph):
                if i != j:
                    rows.append(base + i)
                    cols.append(base + j)
    row = jnp.asarray(rows, jnp.int32)
    col = jnp.asarray(cols, jnp.int32)
    batch_vec = jnp.asarray(batch, jnp.int32)

    params = init_params(k_p, in_node_nf, hidden_nf, out_node_nf, n_layers)

    out = egnn_for_residue_identity(
        h, x, (row, col), batch_vec, params,
        n_graphs=n_graphs, out_node_nf=out_node_nf, edge_tile=256)
    out = jax.block_until_ready(out)
    assert out.shape == (n_graphs, out_node_nf)
    assert bool(jnp.all(jnp.isfinite(out)))
    print("KERNEL_OK")
</pallas_src>

<mosaic_0001>
module attributes {stable_mosaic.version = 11 : i64} {
  func.func @_egnn_kernel(%arg0: i32, %arg1: i32, %arg2: memref<24x128xf32, #tpu.memory_space<vmem>>, %arg3: memref<24x128xf32, #tpu.memory_space<vmem>>, %arg4: memref<256x24xi8, #tpu.memory_space<vmem>>, %arg5: memref<256x24xi8, #tpu.memory_space<vmem>>, %arg6: memref<24x1xf32, #tpu.memory_space<vmem>>, %arg7: memref<2x24xf32, #tpu.memory_space<vmem>>, %arg8: memref<2x1xf32, #tpu.memory_space<vmem>>, %arg9: memref<1x256x128xbf16, #tpu.memory_space<vmem>>, %arg10: memref<1x1x128xf32, #tpu.memory_space<vmem>>, %arg11: memref<1x1x128xf32, #tpu.memory_space<vmem>>, %arg12: memref<1x128x128xbf16, #tpu.memory_space<vmem>>, %arg13: memref<1x1x128xf32, #tpu.memory_space<vmem>>, %arg14: memref<1x1x128xf32, #tpu.memory_space<vmem>>, %arg15: memref<1x1x128xf32, #tpu.memory_space<vmem>>, %arg16: memref<1x128x128xbf16, #tpu.memory_space<vmem>>, %arg17: memref<1x1x128xf32, #tpu.memory_space<vmem>>, %arg18: memref<1x1x128xf32, #tpu.memory_space<vmem>>, %arg19: memref<1x256x128xbf16, #tpu.memory_space<vmem>>, %arg20: memref<1x1x128xf32, #tpu.memory_space<vmem>>, %arg21: memref<1x128x128xbf16, #tpu.memory_space<vmem>>, %arg22: memref<1x1x128xf32, #tpu.memory_space<vmem>>, %arg23: memref<128x128xbf16, #tpu.memory_space<vmem>>, %arg24: memref<1x128xf32, #tpu.memory_space<vmem>>, %arg25: memref<128x128xbf16, #tpu.memory_space<vmem>>, %arg26: memref<1x128xf32, #tpu.memory_space<vmem>>, %arg27: memref<128x128xbf16, #tpu.memory_space<vmem>>, %arg28: memref<1x128xf32, #tpu.memory_space<vmem>>, %arg29: memref<128x128xbf16, #tpu.memory_space<vmem>>, %arg30: memref<1x128xf32, #tpu.memory_space<vmem>>, %arg31: memref<2x128xf32, #tpu.memory_space<vmem>>, %arg32: memref<24x128xf32, #tpu.memory_space<vmem>>, %arg33: memref<24x128xbf16, #tpu.memory_space<vmem>>, %arg34: memref<24x128xf32, #tpu.memory_space<vmem>>, %arg35: memref<24x128xf32, #tpu.memory_space<vmem>>, %arg36: memref<24x128xf32, #tpu.memory_space<vmem>>) attributes {dimension_semantics = [#tpu.dimension_semantics<arbitrary>, #tpu.dimension_semantics<arbitrary>], iteration_bounds = array<i64: 2, 2>, scalar_prefetch = 0 : i64, scratch_operands = 5 : i64, tpu.core_type = #tpu.core_type<tc>, window_params = [{pipeline_mode = #tpu.pipeline_mode<synchronous>, transform_indices = @transform_0, window_bounds = array<i64: 24, 128>}, {pipeline_mode = #tpu.pipeline_mode<synchronous>, transform_indices = @transform_1, window_bounds = array<i64: 24, 128>}, {transform_indices = @transform_2, window_bounds = array<i64: 256, 24>}, {transform_indices = @transform_3, window_bounds = array<i64: 256, 24>}, {pipeline_mode = #tpu.pipeline_mode<synchronous>, transform_indices = @transform_4, window_bounds = array<i64: 24, 1>}, {pipeline_mode = #tpu.pipeline_mode<synchronous>, transform_indices = @transform_5, window_bounds = array<i64: 2, 24>}, {pipeline_mode = #tpu.pipeline_mode<synchronous>, transform_indices = @transform_6, window_bounds = array<i64: 2, 1>}, {transform_indices = @transform_7, window_bounds = array<i64: 1, 256, 128>}, {transform_indices = @transform_8, window_bounds = array<i64: 1, 1, 128>}, {transform_indices = @transform_9, window_bounds = array<i64: 1, 1, 128>}, {transform_indices = @transform_10, window_bounds = array<i64: 1, 128, 128>}, {transform_indices = @transform_11, window_bounds = array<i64: 1, 1, 128>}, {transform_indices = @transform_12, window_bounds = array<i64: 1, 1, 128>}, {transform_indices = @transform_13, window_bounds = array<i64: 1, 1, 128>}, {transform_indices = @transform_14, window_bounds = array<i64: 1, 128, 128>}, {transform_indices = @transform_15, window_bounds = array<i64: 1, 1, 128>}, {transform_indices = @transform_16, window_bounds = array<i64: 1, 1, 128>}, {transform_indices = @transform_17, window_bounds = array<i64: 1, 256, 128>}, {transform_indices = @transform_18, window_bounds = array<i64: 1, 1, 128>}, {transform_indices = @transform_19, window_bounds = array<i64: 1, 128, 128>}, {transform_indices = @transform_20, window_bounds = array<i64: 1, 1, 128>}, {pipeline_mode = #tpu.pipeline_mode<synchronous>, transform_indices = @transform_21, window_bounds = array<i64: 128, 128>}, {pipeline_mode = #tpu.pipeline_mode<synchronous>, transform_indices = @transform_22, window_bounds = array<i64: 1, 128>}, {pipeline_mode = #tpu.pipeline_mode<synchronous>, transform_indices = @transform_23, window_bounds = array<i64: 128, 128>}, {pipeline_mode = #tpu.pipeline_mode<synchronous>, transform_indices = @transform_24, window_bounds = array<i64: 1, 128>}, {pipeline_mode = #tpu.pipeline_mode<synchronous>, transform_indices = @transform_25, window_bounds = array<i64: 128, 128>}, {pipeline_mode = #tpu.pipeline_mode<synchronous>, transform_indices = @transform_26, window_bounds = array<i64: 1, 128>}, {pipeline_mode = #tpu.pipeline_mode<synchronous>, transform_indices = @transform_27, window_bounds = array<i64: 128, 128>}, {pipeline_mode = #tpu.pipeline_mode<synchronous>, transform_indices = @transform_28, window_bounds = array<i64: 1, 128>}, {pipeline_mode = #tpu.pipeline_mode<synchronous>, transform_indices = @transform_29, window_bounds = array<i64: 2, 128>}]} {
    %c0_i32 = arith.constant 0 : i32
    %0 = arith.cmpi eq, %arg0, %c0_i32 : i32
    %c0_i32_0 = arith.constant 0 : i32
    %1 = arith.cmpi eq, %arg1, %c0_i32_0 : i32
    %2 = arith.andi %0, %1 : i1
    %3 = arith.extui %2 : i1 to i32
    %c0_i32_1 = arith.constant 0 : i32
    %4 = arith.cmpi ne, %3, %c0_i32_1 : i32
    scf.if %4 {
      %c0_61 = arith.constant 0 : index
      %c0_62 = arith.constant 0 : index
      %109 = vector.load %arg2[%c0_61, %c0_62] : memref<24x128xf32, #tpu.memory_space<vmem>>, vector<24x128xf32>
      %c0_63 = arith.constant 0 : index
      %c0_64 = arith.constant 0 : index
      %110 = vector.load %arg23[%c0_63, %c0_64] : memref<128x128xbf16, #tpu.memory_space<vmem>>, vector<128x128xbf16>
      %111 = arith.truncf %109 : vector<24x128xf32> to vector<24x128xbf16>
      %cst_65 = arith.constant dense<0.000000e+00> : vector<24x128xf32>
      %112 = tpu.matmul %111, %110, %cst_65 {dimension_numbers = #tpu.dot_dimension_numbers<[1], [0], [0], [1], [0, 0, 1, 1], [], []>} : vector<24x128xbf16>, vector<128x128xbf16>, vector<24x128xf32> -> vector<24x128xf32>
      %c0_66 = arith.constant 0 : index
      %c0_67 = arith.constant 0 : index
      %113 = vector.load %arg24[%c0_66, %c0_67] : memref<1x128xf32, #tpu.memory_space<vmem>>, vector<1x128xf32>
      %114 = vector.broadcast %113 : vector<1x128xf32> to vector<24x128xf32>
      %115 = arith.addf %112, %114 : vector<24x128xf32>
      %c0_68 = arith.constant 0 : index
      %c0_69 = arith.constant 0 : index
      %116 = vector.load %arg32[%c0_68, %c0_69] : memref<24x128xf32, #tpu.memory_space<vmem>>, vector<24x128xf32>
      tpu.vector_store %arg32[%c0_68, %c0_69], %115 {strides = array<i32>} : memref<24x128xf32, #tpu.memory_space<vmem>>, vector<24x128xf32>,
      %117 = arith.truncf %115 : vector<24x128xf32> to vector<24x128xbf16>
      %c0_70 = arith.constant 0 : index
      %c0_71 = arith.constant 0 : index
      %118 = vector.load %arg33[%c0_70, %c0_71] : memref<24x128xbf16, #tpu.memory_space<vmem>>, vector<24x128xbf16>
      tpu.vector_store %arg33[%c0_70, %c0_71], %117 {strides = array<i32>} : memref<24x128xbf16, #tpu.memory_space<vmem>>, vector<24x128xbf16>,
      %c0_72 = arith.constant 0 : index
      %c0_73 = arith.constant 0 : index
      %119 = vector.load %arg3[%c0_72, %c0_73] : memref<24x128xf32, #tpu.memory_space<vmem>>, vector<24x128xf32>
      %c0_74 = arith.constant 0 : index
      %c0_75 = arith.constant 0 : index
      %120 = vector.load %arg34[%c0_74, %c0_75] : memref<24x128xf32, #tpu.memory_space<vmem>>, vector<24x128xf32>
      tpu.vector_store %arg34[%c0_74, %c0_75], %119 {strides = array<i32>} : memref<24x128xf32, #tpu.memory_space<vmem>>, vector<24x128xf32>,
    } else {
    }
    %c0 = arith.constant 0 : index
    %c0_2 = arith.constant 0 : index
    %5 = vector.load %arg4[%c0, %c0_2] : memref<256x24xi8, #tpu.memory_space<vmem>>, vector<256x24xi8>
    %6 = arith.sitofp %5 : vector<256x24xi8> to vector<256x24xf32>
    %c0_3 = arith.constant 0 : index
    %c0_4 = arith.constant 0 : index
    %7 = vector.load %arg5[%c0_3, %c0_4] : memref<256x24xi8, #tpu.memory_space<vmem>>, vector<256x24xi8>
    %8 = arith.sitofp %7 : vector<256x24xi8> to vector<256x24xf32>
    %9 = arith.truncf %6 : vector<256x24xf32> to vector<256x24xbf16>
    %10 = arith.truncf %8 : vector<256x24xf32> to vector<256x24xbf16>
    %c0_5 = arith.constant 0 : index
    %c0_6 = arith.constant 0 : index
    %11 = vector.load %arg33[%c0_5, %c0_6] : memref<24x128xbf16, #tpu.memory_space<vmem>>, vector<24x128xbf16>
    %cst = arith.constant dense<0.000000e+00> : vector<256x128xf32>
    %12 = tpu.matmul %9, %11, %cst {dimension_numbers = #tpu.dot_dimension_numbers<[1], [0], [0], [1], [0, 0, 1, 1], [], []>} : vector<256x24xbf16>, vector<24x128xbf16>, vector<256x128xf32> -> vector<256x128xf32>
    %cst_7 = arith.constant dense<0.000000e+00> : vector<256x128xf32>
    %13 = tpu.matmul %10, %11, %cst_7 {dimension_numbers = #tpu.dot_dimension_numbers<[1], [0], [0], [1], [0, 0, 1, 1], [], []>} : vector<256x24xbf16>, vector<24x128xbf16>, vector<256x128xf32> -> vector<256x128xf32>
    %c0_8 = arith.constant 0 : index
    %c0_9 = arith.constant 0 : index
    %14 = vector.load %arg34[%c0_8, %c0_9] : memref<24x128xf32, #tpu.memory_space<vmem>>, vector<24x128xf32>
    %cst_10 = arith.constant dense<0.000000e+00> : vector<256x128xf32>
    %15 = tpu.matmul %6, %14, %cst_10 {dimension_numbers = #tpu.dot_dimension_numbers<[1], [0], [0], [1], [0, 0, 1, 1], [], []>} : vector<256x24xf32>, vector<24x128xf32>, vector<256x128xf32> -> vector<256x128xf32>
    %c0_11 = arith.constant 0 : index
    %c0_12 = arith.constant 0 : index
    %16 = vector.load %arg34[%c0_11, %c0_12] : memref<24x128xf32, #tpu.memory_space<vmem>>, vector<24x128xf32>
    %cst_13 = arith.constant dense<0.000000e+00> : vector<256x128xf32>
    %17 = tpu.matmul %8, %16, %cst_13 {dimension_numbers = #tpu.dot_dimension_numbers<[1], [0], [0], [1], [0, 0, 1, 1], [], []>} : vector<256x24xf32>, vector<24x128xf32>, vector<256x128xf32> -> vector<256x128xf32>
    %18 = arith.subf %15, %17 : vector<256x128xf32>
    %19 = arith.mulf %18, %18 : vector<256x128xf32>
    %cst_14 = arith.constant dense<0.000000e+00> : vector<256xf32>
    %20 = vector.multi_reduction <add>, %19, %cst_14 [1] : vector<256x128xf32> to vector<256xf32>
    %21 = vector.shape_cast %20 : vector<256xf32> to vector<256x1xf32>
    %22 = tpu.concatenate %12, %13 in 1 : vector<256x128xf32>, vector<256x128xf32> -> vector<256x256xf32>
    %23 = arith.truncf %22 : vector<256x256xf32> to vector<256x256xbf16>
    %c0_15 = arith.constant 0 : index
    %c0_16 = arith.constant 0 : index
    %c0_17 = arith.constant 0 : index
    %24 = vector.load %arg9[%c0_15, %c0_16, %c0_17] : memref<1x256x128xbf16, #tpu.memory_space<vmem>>, vector<1x256x128xbf16>
    %25 = vector.shape_cast %24 : vector<1x256x128xbf16> to vector<256x128xbf16>
    %cst_18 = arith.constant dense<0.000000e+00> : vector<256x128xf32>
    %26 = tpu.matmul %23, %25, %cst_18 {dimension_numbers = #tpu.dot_dimension_numbers<[1], [0], [0], [1], [0, 0, 1, 1], [], []>} : vector<256x256xbf16>, vector<256x128xbf16>, vector<256x128xf32> -> vector<256x128xf32>
    %c0_19 = arith.constant 0 : index
    %c0_20 = arith.constant 0 : index
    %c0_21 = arith.constant 0 : index
    %27 = vector.load %arg10[%c0_19, %c0_20, %c0_21] : memref<1x1x128xf32, #tpu.memory_space<vmem>>, vector<1x1x128xf32>
    %28 = vector.shape_cast %27 : vector<1x1x128xf32> to vector<1x128xf32>
    %29 = vector.broadcast %21 : vector<256x1xf32> to vector<256x128xf32>
    %30 = vector.broadcast %28 : vector<1x128xf32> to vector<256x128xf32>
    %31 = arith.mulf %29, %30 : vector<256x128xf32>
    %32 = arith.addf %26, %31 : vector<256x128xf32>
    %c0_22 = arith.constant 0 : index
    %c0_23 = arith.constant 0 : index
    %c0_24 = arith.constant 0 : index
    %33 = vector.load %arg11[%c0_22, %c0_23, %c0_24] : memref<1x1x128xf32, #tpu.memory_space<vmem>>, vector<1x1x128xf32>
    %34 = vector.shape_cast %33 : vector<1x1x128xf32> to vector<1x128xf32>
    %35 = vector.broadcast %34 : vector<1x128xf32> to vector<256x128xf32>
    %36 = arith.addf %32, %35 : vector<256x128xf32>
    %37 = arith.negf %36 : vector<256x128xf32>
    %38 = math.exp %37 : vector<256x128xf32>
    %cst_25 = arith.constant 1.000000e+00 : f32
    %39 = vector.broadcast %cst_25 : f32 to vector<256x128xf32>
    %40 = arith.addf %39, %38 : vector<256x128xf32>
    %41 = arith.divf %39, %40 : vector<256x128xf32>
    %42 = arith.mulf %36, %41 : vector<256x128xf32>
    %c0_26 = arith.constant 0 : index
    %c0_27 = arith.constant 0 : index
    %c0_28 = arith.constant 0 : index
    %43 = vector.load %arg12[%c0_26, %c0_27, %c0_28] : memref<1x128x128xbf16, #tpu.memory_space<vmem>>, vector<1x128x128xbf16>
    %44 = vector.shape_cast %43 : vector<1x128x128xbf16> to vector<128x128xbf16>
    %45 = arith.truncf %42 : vector<256x128xf32> to vector<256x128xbf16>
    %cst_29 = arith.constant dense<0.000000e+00> : vector<256x128xf32>
    %46 = tpu.matmul %45, %44, %cst_29 {dimension_numbers = #tpu.dot_dimension_numbers<[1], [0], [0], [1], [0, 0, 1, 1], [], []>} : vector<256x128xbf16>, vector<128x128xbf16>, vector<256x128xf32> -> vector<256x128xf32>
    %c0_30 = arith.constant 0 : index
    %c0_31 = arith.constant 0 : index
    %c0_32 = arith.constant 0 : index
    %47 = vector.load %arg13[%c0_30, %c0_31, %c0_32] : memref<1x1x128xf32, #tpu.memory_space<vmem>>, vector<1x1x128xf32>
    %48 = vector.shape_cast %47 : vector<1x1x128xf32> to vector<1x128xf32>
    %49 = vector.broadcast %48 : vector<1x128xf32> to vector<256x128xf32>
    %50 = arith.addf %46, %49 : vector<256x128xf32>
    %51 = arith.negf %50 : vector<256x128xf32>
    %52 = math.exp %51 : vector<256x128xf32>
    %cst_33 = arith.constant 1.000000e+00 : f32
    %53 = vector.broadcast %cst_33 : f32 to vector<256x128xf32>
    %54 = arith.addf %53, %52 : vector<256x128xf32>
    %55 = arith.divf %53, %54 : vector<256x128xf32>
    %56 = arith.mulf %50, %55 : vector<256x128xf32>
    %c0_34 = arith.constant 0 : index
    %c0_35 = arith.constant 0 : index
    %c0_36 = arith.constant 0 : index
    %57 = vector.load %arg14[%c0_34, %c0_35, %c0_36] : memref<1x1x128xf32, #tpu.memory_space<vmem>>, vector<1x1x128xf32>
    %58 = vector.shape_cast %57 : vector<1x1x128xf32> to vector<1x128xf32>
    %59 = vector.broadcast %58 : vector<1x128xf32> to vector<256x128xf32>
    %60 = arith.mulf %56, %59 : vector<256x128xf32>
    %cst_37 = arith.constant dense<0.000000e+00> : vector<256xf32>
    %61 = vector.multi_reduction <add>, %60, %cst_37 [1] : vector<256x128xf32> to vector<256xf32>
    %62 = vector.shape_cast %61 : vector<256xf32> to vector<256x1xf32>
    %c0_38 = arith.constant 0 : index
    %c0_39 = arith.constant 0 : index
    %c0_40 = arith.constant 0 : index
    %63 = vector.load %arg15[%c0_38, %c0_39, %c0_40] : memref<1x1x128xf32, #tpu.memory_space<vmem>>, vector<1x1x128xf32>
    %64 = vector.shape_cast %63 : vector<1x1x128xf32> to vector<1x128xf32>
    %65 = vector.extract_strided_slice %64 {offsets = [0, 0], sizes = [1, 1], strides = [1, 1]} : vector<1x128xf32> to vector<1x1xf32>
    %66 = vector.broadcast %65 : vector<1x1xf32> to vector<256x1xf32>
    %67 = arith.addf %62, %66 : vector<256x1xf32>
    %68 = arith.negf %67 : vector<256x1xf32>
    %69 = math.exp %68 : vector<256x1xf32>
    %cst_41 = arith.constant 1.000000e+00 : f32
    %70 = vector.broadcast %cst_41 : f32 to vector<256x1xf32>
    %71 = arith.addf %70, %69 : vector<256x1xf32>
    %72 = arith.divf %70, %71 : vector<256x1xf32>
    %73 = vector.broadcast %72 : vector<256x1xf32> to vector<256x128xf32>
    %74 = arith.mulf %56, %73 : vector<256x128xf32>
    %c0_42 = arith.constant 0 : index
    %c0_43 = arith.constant 0 : index
    %c0_44 = arith.constant 0 : index
    %75 = vector.load %arg16[%c0_42, %c0_43, %c0_44] : memref<1x128x128xbf16, #tpu.memory_space<vmem>>, vector<1x128x128xbf16>
    %76 = vector.shape_cast %75 : vector<1x128x128xbf16> to vector<128x128xbf16>
    %77 = arith.truncf %74 : vector<256x128xf32> to vector<256x128xbf16>
    %cst_45 = arith.constant dense<0.000000e+00> : vector<256x128xf32>
    %78 = tpu.matmul %77, %76, %cst_45 {dimension_numbers = #tpu.dot_dimension_numbers<[1], [0], [0], [1], [0, 0, 1, 1], [], []>} : vector<256x128xbf16>, vector<128x128xbf16>, vector<256x128xf32> -> vector<256x128xf32>
    %c0_46 = arith.constant 0 : index
    %c0_47 = arith.constant 0 : index
    %c0_48 = arith.constant 0 : index
    %79 = vector.load %arg17[%c0_46, %c0_47, %c0_48] : memref<1x1x128xf32, #tpu.memory_space<vmem>>, vector<1x1x128xf32>
    %80 = vector.shape_cast %79 : vector<1x1x128xf32> to vector<1x128xf32>
    %81 = vector.broadcast %80 : vector<1x128xf32> to vector<256x128xf32>
    %82 = arith.addf %78, %81 : vector<256x128xf32>
    %83 = arith.negf %82 : vector<256x128xf32>
    %84 = math.exp %83 : vector<256x128xf32>
    %cst_49 = arith.constant 1.000000e+00 : f32
    %85 = vector.broadcast %cst_49 : f32 to vector<256x128xf32>
    %86 = arith.addf %85, %84 : vector<256x128xf32>
    %87 = arith.divf %85, %86 : vector<256x128xf32>
    %88 = arith.mulf %82, %87 : vector<256x128xf32>
    %c0_50 = arith.constant 0 : index
    %c0_51 = arith.constant 0 : index
    %c0_52 = arith.constant 0 : index
    %89 = vector.load %arg18[%c0_50, %c0_51, %c0_52] : memref<1x1x128xf32, #tpu.memory_space<vmem>>, vector<1x1x128xf32>
    %90 = vector.shape_cast %89 : vector<1x1x128xf32> to vector<1x128xf32>
    %91 = vector.broadcast %90 : vector<1x128xf32> to vector<256x128xf32>
    %92 = arith.mulf %88, %91 : vector<256x128xf32>
    %cst_53 = arith.constant dense<0.000000e+00> : vector<256xf32>
    %93 = vector.multi_reduction <add>, %92, %cst_53 [1] : vector<256x128xf32> to vector<256xf32>
    %94 = vector.shape_cast %93 : vector<256xf32> to vector<256x1xf32>
    %95 = vector.broadcast %94 : vector<256x1xf32> to vector<256x128xf32>
    %96 = arith.mulf %18, %95 : vector<256x128xf32>
    %97 = arith.truncf %74 : vector<256x128xf32> to vector<256x128xbf16>
    %cst_54 = arith.constant dense<0.000000e+00> : vector<24x128xf32>
    %98 = tpu.matmul %9, %97, %cst_54 {dimension_numbers = #tpu.dot_dimension_numbers<[0], [0], [1], [1], [0, 1, 1, 1], [], []>} : vector<256x24xbf16>, vector<256x128xbf16>, vector<24x128xf32> -> vector<24x128xf32>
    %cst_55 = arith.constant dense<0.000000e+00> : vector<24x128xf32>
    %99 = tpu.matmul %6, %96, %cst_55 {dimension_numbers = #tpu.dot_dimension_numbers<[0], [0], [1], [1], [0, 1, 1, 1], [], []>} : vector<256x24xf32>, vector<256x128xf32>, vector<24x128xf32> -> vector<24x128xf32>
    %c0_i32_56 = arith.constant 0 : i32
    %100 = arith.cmpi eq, %arg1, %c0_i32_56 : i32
    %101 = arith.extui %100 : i1 to i32
    %c0_i32_57 = arith.constant 0 : i32
    %102 = arith.cmpi ne, %101, %c0_i32_57 : i32
    scf.if %102 {
      %c0_61 = arith.constant 0 : index
      %c0_62 = arith.constant 0 : index
      %109 = vector.load %arg35[%c0_61, %c0_62] : memref<24x128xf32, #tpu.memory_space<vmem>>, vector<24x128xf32>
      tpu.vector_store %arg35[%c0_61, %c0_62], %98 {strides = array<i32>} : memref<24x128xf32, #tpu.memory_space<vmem>>, vector<24x128xf32>,
      %c0_63 = arith.constant 0 : index
      %c0_64 = arith.constant 0 : index
      %110 = vector.load %arg36[%c0_63, %c0_64] : memref<24x128xf32, #tpu.memory_space<vmem>>, vector<24x128xf32>
      tpu.vector_store %arg36[%c0_63, %c0_64], %99 {strides = array<i32>} : memref<24x128xf32, #tpu.memory_space<vmem>>, vector<24x128xf32>,
    } else {
    }
    %c0_i32_58 = arith.constant 0 : i32
    %103 = arith.cmpi sgt, %arg1, %c0_i32_58 : i32
    %104 = arith.extui %103 : i1 to i32
    %c0_i32_59 = arith.constant 0 : i32
    %105 = arith.cmpi ne, %104, %c0_i32_59 : i32
    scf.if %105 {
      %c0_61 = arith.constant 0 : index
      %c0_62 = arith.constant 0 : index
      %109 = vector.load %arg35[%c0_61, %c0_62] : memref<24x128xf32, #tpu.memory_space<vmem>>, vector<24x128xf32>
      %110 = arith.addf %109, %98 : vector<24x128xf32>
      %c0_63 = arith.constant 0 : index
      %c0_64 = arith.constant 0 : index
      %111 = vector.load %arg35[%c0_63, %c0_64] : memref<24x128xf32, #tpu.memory_space<vmem>>, vector<24x128xf32>
      tpu.vector_store %arg35[%c0_63, %c0_64], %110 {strides = array<i32>} : memref<24x128xf32, #tpu.memory_space<vmem>>, vector<24x128xf32>,
      %c0_65 = arith.constant 0 : index
      %c0_66 = arith.constant 0 : index
      %112 = vector.load %arg36[%c0_65, %c0_66] : memref<24x128xf32, #tpu.memory_space<vmem>>, vector<24x128xf32>
      %113 = arith.addf %112, %99 : vector<24x128xf32>
      %c0_67 = arith.constant 0 : index
      %c0_68 = arith.constant 0 : index
      %114 = vector.load %arg36[%c0_67, %c0_68] : memref<24x128xf32, #tpu.memory_space<vmem>>, vector<24x128xf32>
      tpu.vector_store %arg36[%c0_67, %c0_68], %113 {strides = array<i32>} : memref<24x128xf32, #tpu.memory_space<vmem>>, vector<24x128xf32>,
    } else {
    }
    %c1_i32 = arith.constant 1 : i32
    %106 = arith.cmpi eq, %arg1, %c1_i32 : i32
    %107 = arith.extui %106 : i1 to i32
    %c0_i32_60 = arith.constant 0 : i32
    %108 = arith.cmpi ne, %107, %c0_i32_60 : i32
    scf.if %108 {
      %c0_61 = arith.constant 0 : index
      %c0_62 = arith.constant 0 : index
      %109 = vector.load %arg32[%c0_61, %c0_62] : memref<24x128xf32, #tpu.memory_space<vmem>>, vector<24x128xf32>
      %c0_63 = arith.constant 0 : index
      %c0_64 = arith.constant 0 : index
      %110 = vector.load %arg34[%c0_63, %c0_64] : memref<24x128xf32, #tpu.memory_space<vmem>>, vector<24x128xf32>
      %c0_65 = arith.constant 0 : index
      %c0_66 = arith.constant 0 : index
      %111 = vector.load %arg36[%c0_65, %c0_66] : memref<24x128xf32, #tpu.memory_space<vmem>>, vector<24x128xf32>
      %c0_67 = arith.constant 0 : index
      %c0_68 = arith.constant 0 : index
      %112 = vector.load %arg6[%c0_67, %c0_68] : memref<24x1xf32, #tpu.memory_space<vmem>>, vector<24x1xf32>
      %113 = vector.broadcast %112 : vector<24x1xf32> to vector<24x128xf32>
      %114 = arith.mulf %111, %113 : vector<24x128xf32>
      %115 = arith.addf %110, %114 : vector<24x128xf32>
      %c0_69 = arith.constant 0 : index
      %c0_70 = arith.constant 0 : index
      %116 = vector.load %arg35[%c0_69, %c0_70] : memref<24x128xf32, #tpu.memory_space<vmem>>, vector<24x128xf32>
      %117 = tpu.concatenate %109, %116 in 1 : vector<24x128xf32>, vector<24x128xf32> -> vector<24x256xf32>
      %118 = arith.truncf %117 : vector<24x256xf32> to vector<24x256xbf16>
      %c0_71 = arith.constant 0 : index
      %c0_72 = arith.constant 0 : index
      %c0_73 = arith.constant 0 : index
      %119 = vector.load %arg19[%c0_71, %c0_72, %c0_73] : memref<1x256x128xbf16, #tpu.memory_space<vmem>>, vector<1x256x128xbf16>
      %120 = vector.shape_cast %119 : vector<1x256x128xbf16> to vector<256x128xbf16>
      %cst_74 = arith.constant dense<0.000000e+00> : vector<24x128xf32>
      %121 = tpu.matmul %118, %120, %cst_74 {dimension_numbers = #tpu.dot_dimension_numbers<[1], [0], [0], [1], [0, 0, 1, 1], [], []>} : vector<24x256xbf16>, vector<256x128xbf16>, vector<24x128xf32> -> vector<24x128xf32>
      %c0_75 = arith.constant 0 : index
      %c0_76 = arith.constant 0 : index
      %c0_77 = arith.constant 0 : index
      %122 = vector.load %arg20[%c0_75, %c0_76, %c0_77] : memref<1x1x128xf32, #tpu.memory_space<vmem>>, vector<1x1x128xf32>
      %123 = vector.shape_cast %122 : vector<1x1x128xf32> to vector<1x128xf32>
      %124 = vector.broadcast %123 : vector<1x128xf32> to vector<24x128xf32>
      %125 = arith.addf %121, %124 : vector<24x128xf32>
      %126 = arith.negf %125 : vector<24x128xf32>
      %127 = math.exp %126 : vector<24x128xf32>
      %cst_78 = arith.constant 1.000000e+00 : f32
      %128 = vector.broadcast %cst_78 : f32 to vector<24x128xf32>
      %129 = arith.addf %128, %127 : vector<24x128xf32>
      %130 = arith.divf %128, %129 : vector<24x128xf32>
      %131 = arith.mulf %125, %130 : vector<24x128xf32>
      %c0_79 = arith.constant 0 : index
      %c0_80 = arith.constant 0 : index
      %c0_81 = arith.constant 0 : index
      %132 = vector.load %arg21[%c0_79, %c0_80, %c0_81] : memref<1x128x128xbf16, #tpu.memory_space<vmem>>, vector<1x128x128xbf16>
      %133 = vector.shape_cast %132 : vector<1x128x128xbf16> to vector<128x128xbf16>
      %134 = arith.truncf %131 : vector<24x128xf32> to vector<24x128xbf16>
      %cst_82 = arith.constant dense<0.000000e+00> : vector<24x128xf32>
      %135 = tpu.matmul %134, %133, %cst_82 {dimension_numbers = #tpu.dot_dimension_numbers<[1], [0], [0], [1], [0, 0, 1, 1], [], []>} : vector<24x128xbf16>, vector<128x128xbf16>, vector<24x128xf32> -> vector<24x128xf32>
      %136 = arith.addf %109, %135 : vector<24x128xf32>
      %c0_83 = arith.constant 0 : index
      %c0_84 = arith.constant 0 : index
      %c0_85 = arith.constant 0 : index
      %137 = vector.load %arg22[%c0_83, %c0_84, %c0_85] : memref<1x1x128xf32, #tpu.memory_space<vmem>>, vector<1x1x128xf32>
      %138 = vector.shape_cast %137 : vector<1x1x128xf32> to vector<1x128xf32>
      %139 = vector.broadcast %138 : vector<1x128xf32> to vector<24x128xf32>
      %140 = arith.addf %136, %139 : vector<24x128xf32>
      %c0_86 = arith.constant 0 : index
      %c0_87 = arith.constant 0 : index
      %141 = vector.load %arg32[%c0_86, %c0_87] : memref<24x128xf32, #tpu.memory_space<vmem>>, vector<24x128xf32>
      tpu.vector_store %arg32[%c0_86, %c0_87], %140 {strides = array<i32>} : memref<24x128xf32, #tpu.memory_space<vmem>>, vector<24x128xf32>,
      %142 = arith.truncf %140 : vector<24x128xf32> to vector<24x128xbf16>
      %c0_88 = arith.constant 0 : index
      %c0_89 = arith.constant 0 : index
      %143 = vector.load %arg33[%c0_88, %c0_89] : memref<24x128xbf16, #tpu.memory_space<vmem>>, vector<24x128xbf16>
      tpu.vector_store %arg33[%c0_88, %c0_89], %142 {strides = array<i32>} : memref<24x128xbf16, #tpu.memory_space<vmem>>, vector<24x128xbf16>,
      %c0_90 = arith.constant 0 : index
      %c0_91 = arith.constant 0 : index
      %144 = vector.load %arg34[%c0_90, %c0_91] : memref<24x128xf32, #tpu.memory_space<vmem>>, vector<24x128xf32>
      tpu.vector_store %arg34[%c0_90, %c0_91], %115 {strides = array<i32>} : memref<24x128xf32, #tpu.memory_space<vmem>>, vector<24x128xf32>,
      %c1_i32_92 = arith.constant 1 : i32
      %145 = arith.cmpi eq, %arg0, %c1_i32_92 : i32
      %146 = arith.extui %145 : i1 to i32
      %c0_i32_93 = arith.constant 0 : i32
      %147 = arith.cmpi ne, %146, %c0_i32_93 : i32
      scf.if %147 {
        %c0_94 = arith.constant 0 : index
        %c0_95 = arith.constant 0 : index
        %148 = vector.load %arg25[%c0_94, %c0_95] : memref<128x128xbf16, #tpu.memory_space<vmem>>, vector<128x128xbf16>
        %149 = arith.truncf %140 : vector<24x128xf32> to vector<24x128xbf16>
        %cst_96 = arith.constant dense<0.000000e+00> : vector<24x128xf32>
        %150 = tpu.matmul %149, %148, %cst_96 {dimension_numbers = #tpu.dot_dimension_numbers<[1], [0], [0], [1], [0, 0, 1, 1], [], []>} : vector<24x128xbf16>, vector<128x128xbf16>, vector<24x128xf32> -> vector<24x128xf32>
        %c0_97 = arith.constant 0 : index
        %c0_98 = arith.constant 0 : index
        %151 = vector.load %arg26[%c0_97, %c0_98] : memref<1x128xf32, #tpu.memory_space<vmem>>, vector<1x128xf32>
        %152 = vector.broadcast %151 : vector<1x128xf32> to vector<24x128xf32>
        %153 = arith.addf %150, %152 : vector<24x128xf32>
        %c0_99 = arith.constant 0 : index
        %c0_100 = arith.constant 0 : index
        %154 = vector.load %arg7[%c0_99, %c0_100] : memref<2x24xf32, #tpu.memory_space<vmem>>, vector<2x24xf32>
        %cst_101 = arith.constant dense<0.000000e+00> : vector<2x128xf32>
        %155 = tpu.matmul %154, %153, %cst_101 {dimension_numbers = #tpu.dot_dimension_numbers<[1], [0], [0], [1], [0, 0, 1, 1], [], []>} : vector<2x24xf32>, vector<24x128xf32>, vector<2x128xf32> -> vector<2x128xf32>
        %c0_102 = arith.constant 0 : index
        %c0_103 = arith.constant 0 : index
        %156 = vector.load %arg8[%c0_102, %c0_103] : memref<2x1xf32, #tpu.memory_space<vmem>>, vector<2x1xf32>
        %157 = vector.broadcast %156 : vector<2x1xf32> to vector<2x128xf32>
        %158 = arith.mulf %155, %157 : vector<2x128xf32>
        %c0_104 = arith.constant 0 : index
        %c0_105 = arith.constant 0 : index
        %159 = vector.load %arg27[%c0_104, %c0_105] : memref<128x128xbf16, #tpu.memory_space<vmem>>, vector<128x128xbf16>
        %160 = arith.truncf %158 : vector<2x128xf32> to vector<2x128xbf16>
        %cst_106 = arith.constant dense<0.000000e+00> : vector<2x128xf32>
        %161 = tpu.matmul %160, %159, %cst_106 {dimension_numbers = #tpu.dot_dimension_numbers<[1], [0], [0], [1], [0, 0, 1, 1], [], []>} : vector<2x128xbf16>, vector<128x128xbf16>, vector<2x128xf32> -> vector<2x128xf32>
        %c0_107 = arith.constant 0 : index
        %c0_108 = arith.constant 0 : index
        %162 = vector.load %arg28[%c0_107, %c0_108] : memref<1x128xf32, #tpu.memory_space<vmem>>, vector<1x128xf32>
        %163 = vector.broadcast %162 : vector<1x128xf32> to vector<2x128xf32>
        %164 = arith.addf %161, %163 : vector<2x128xf32>
        %cst_109 = arith.constant 0.000000e+00 : f32
        %165 = vector.broadcast %cst_109 : f32 to vector<2x128xf32>
        %166 = arith.maximumf %164, %165 : vector<2x128xf32>
        %c0_110 = arith.constant 0 : index
        %c0_111 = arith.constant 0 : index
        %167 = vector.load %arg29[%c0_110, %c0_111] : memref<128x128xbf16, #tpu.memory_space<vmem>>, vector<128x128xbf16>
        %168 = arith.truncf %166 : vector<2x128xf32> to vector<2x128xbf16>
        %cst_112 = arith.constant dense<0.000000e+00> : vector<2x128xf32>
        %169 = tpu.matmul %168, %167, %cst_112 {dimension_numbers = #tpu.dot_dimension_numbers<[1], [0], [0], [1], [0, 0, 1, 1], [], []>} : vector<2x128xbf16>, vector<128x128xbf16>, vector<2x128xf32> -> vector<2x128xf32>
        %c0_113 = arith.constant 0 : index
        %c0_114 = arith.constant 0 : index
        %170 = vector.load %arg30[%c0_113, %c0_114] : memref<1x128xf32, #tpu.memory_space<vmem>>, vector<1x128xf32>
        %171 = vector.broadcast %170 : vector<1x128xf32> to vector<2x128xf32>
        %172 = arith.addf %169, %171 : vector<2x128xf32>
        %c0_115 = arith.constant 0 : index
        %c0_116 = arith.constant 0 : index
        %173 = vector.load %arg31[%c0_115, %c0_116] : memref<2x128xf32, #tpu.memory_space<vmem>>, vector<2x128xf32>
        tpu.vector_store %arg31[%c0_115, %c0_116], %172 {strides = array<i32>} : memref<2x128xf32, #tpu.memory_space<vmem>>, vector<2x128xf32>,
      } else {
      }
    } else {
    }
    return
  }
  func.func @transform_0(%arg0: i32, %arg1: i32) -> (i32, i32) {
    %c0_i32 = arith.constant 0 : i32
    %c0_i32_0 = arith.constant 0 : i32
    %c0_i32_1 = arith.constant 0 : i32
    return %c0_i32, %c0_i32_0 : i32, i32
  }
  func.func @transform_1(%arg0: i32, %arg1: i32) -> (i32, i32) {
    %c0_i32 = arith.constant 0 : i32
    %c0_i32_0 = arith.constant 0 : i32
    %c0_i32_1 = arith.constant 0 : i32
    return %c0_i32, %c0_i32_0 : i32, i32
  }
  func.func @transform_2(%arg0: i32, %arg1: i32) -> (i32, i32) {
    %c0_i32 = arith.constant 0 : i32
    %c0_i32_0 = arith.constant 0 : i32
    return %arg1, %c0_i32 : i32, i32
  }
  func.func @transform_3(%arg0: i32, %arg1: i32) -> (i32, i32) {
    %c0_i32 = arith.constant 0 : i32
    %c0_i32_0 = arith.constant 0 : i32
    return %arg1, %c0_i32 : i32, i32
  }
  func.func @transform_4(%arg0: i32, %arg1: i32) -> (i32, i32) {
    %c0_i32 = arith.constant 0 : i32
    %c0_i32_0 = arith.constant 0 : i32
    %c0_i32_1 = arith.constant 0 : i32
    return %c0_i32, %c0_i32_0 : i32, i32
  }
  func.func @transform_5(%arg0: i32, %arg1: i32) -> (i32, i32) {
    %c0_i32 = arith.constant 0 : i32
    %c0_i32_0 = arith.constant 0 : i32
    %c0_i32_1 = arith.constant 0 : i32
    return %c0_i32, %c0_i32_0 : i32, i32
  }
  func.func @transform_6(%arg0: i32, %arg1: i32) -> (i32, i32) {
    %c0_i32 = arith.constant 0 : i32
    %c0_i32_0 = arith.constant 0 : i32
    %c0_i32_1 = arith.constant 0 : i32
    return %c0_i32, %c0_i32_0 : i32, i32
  }
  func.func @transform_7(%arg0: i32, %arg1: i32) -> (i32, i32, i32) {
    %c0_i32 = arith.constant 0 : i32
    %c0_i32_0 = arith.constant 0 : i32
    %c0_i32_1 = arith.constant 0 : i32
    return %arg0, %c0_i32, %c0_i32_0 : i32, i32, i32
  }
  func.func @transform_8(%arg0: i32, %arg1: i32) -> (i32, i32, i32) {
    %c0_i32 = arith.constant 0 : i32
    %c0_i32_0 = arith.constant 0 : i32
    %c0_i32_1 = arith.constant 0 : i32
    return %arg0, %c0_i32, %c0_i32_0 : i32, i32, i32
  }
  func.func @transform_9(%arg0: i32, %arg1: i32) -> (i32, i32, i32) {
    %c0_i32 = arith.constant 0 : i32
    %c0_i32_0 = arith.constant 0 : i32
    %c0_i32_1 = arith.constant 0 : i32
    return %arg0, %c0_i32, %c0_i32_0 : i32, i32, i32
  }
  func.func @transform_10(%arg0: i32, %arg1: i32) -> (i32, i32, i32) {
    %c0_i32 = arith.constant 0 : i32
    %c0_i32_0 = arith.constant 0 : i32
    %c0_i32_1 = arith.constant 0 : i32
    return %arg0, %c0_i32, %c0_i32_0 : i32, i32, i32
  }
  func.func @transform_11(%arg0: i32, %arg1: i32) -> (i32, i32, i32) {
    %c0_i32 = arith.constant 0 : i32
    %c0_i32_0 = arith.constant 0 : i32
    %c0_i32_1 = arith.constant 0 : i32
    return %arg0, %c0_i32, %c0_i32_0 : i32, i32, i32
  }
  func.func @transform_12(%arg0: i32, %arg1: i32) -> (i32, i32, i32) {
    %c0_i32 = arith.constant 0 : i32
    %c0_i32_0 = arith.constant 0 : i32
    %c0_i32_1 = arith.constant 0 : i32
    return %arg0, %c0_i32, %c0_i32_0 : i32, i32, i32
  }
  func.func @transform_13(%arg0: i32, %arg1: i32) -> (i32, i32, i32) {
    %c0_i32 = arith.constant 0 : i32
    %c0_i32_0 = arith.constant 0 : i32
    %c0_i32_1 = arith.constant 0 : i32
    return %arg0, %c0_i32, %c0_i32_0 : i32, i32, i32
  }
  func.func @transform_14(%arg0: i32, %arg1: i32) -> (i32, i32, i32) {
    %c0_i32 = arith.constant 0 : i32
    %c0_i32_0 = arith.constant 0 : i32
    %c0_i32_1 = arith.constant 0 : i32
    return %arg0, %c0_i32, %c0_i32_0 : i32, i32, i32
  }
  func.func @transform_15(%arg0: i32, %arg1: i32) -> (i32, i32, i32) {
    %c0_i32 = arith.constant 0 : i32
    %c0_i32_0 = arith.constant 0 : i32
    %c0_i32_1 = arith.constant 0 : i32
    return %arg0, %c0_i32, %c0_i32_0 : i32, i32, i32
  }
  func.func @transform_16(%arg0: i32, %arg1: i32) -> (i32, i32, i32) {
    %c0_i32 = arith.constant 0 : i32
    %c0_i32_0 = arith.constant 0 : i32
    %c0_i32_1 = arith.constant 0 : i32
    return %arg0, %c0_i32, %c0_i32_0 : i32, i32, i32
  }
  func.func @transform_17(%arg0: i32, %arg1: i32) -> (i32, i32, i32) {
    %c0_i32 = arith.constant 0 : i32
    %c0_i32_0 = arith.constant 0 : i32
    %c0_i32_1 = arith.constant 0 : i32
    return %arg0, %c0_i32, %c0_i32_0 : i32, i32, i32
  }
  func.func @transform_18(%arg0: i32, %arg1: i32) -> (i32, i32, i32) {
    %c0_i32 = arith.constant 0 : i32
    %c0_i32_0 = arith.constant 0 : i32
    %c0_i32_1 = arith.constant 0 : i32
    return %arg0, %c0_i32, %c0_i32_0 : i32, i32, i32
  }
  func.func @transform_19(%arg0: i32, %arg1: i32) -> (i32, i32, i32) {
    %c0_i32 = arith.constant 0 : i32
    %c0_i32_0 = arith.constant 0 : i32
    %c0_i32_1 = arith.constant 0 : i32
    return %arg0, %c0_i32, %c0_i32_0 : i32, i32, i32
  }
  func.func @transform_20(%arg0: i32, %arg1: i32) -> (i32, i32, i32) {
    %c0_i32 = arith.constant 0 : i32
    %c0_i32_0 = arith.constant 0 : i32
    %c0_i32_1 = arith.constant 0 : i32
    return %arg0, %c0_i32, %c0_i32_0 : i32, i32, i32
  }
  func.func @transform_21(%arg0: i32, %arg1: i32) -> (i32, i32) {
    %c0_i32 = arith.constant 0 : i32
    %c0_i32_0 = arith.constant 0 : i32
    %c0_i32_1 = arith.constant 0 : i32
    return %c0_i32, %c0_i32_0 : i32, i32
  }
  func.func @transform_22(%arg0: i32, %arg1: i32) -> (i32, i32) {
    %c0_i32 = arith.constant 0 : i32
    %c0_i32_0 = arith.constant 0 : i32
    %c0_i32_1 = arith.constant 0 : i32
    return %c0_i32, %c0_i32_0 : i32, i32
  }
  func.func @transform_23(%arg0: i32, %arg1: i32) -> (i32, i32) {
    %c0_i32 = arith.constant 0 : i32
    %c0_i32_0 = arith.constant 0 : i32
    %c0_i32_1 = arith.constant 0 : i32
    return %c0_i32, %c0_i32_0 : i32, i32
  }
  func.func @transform_24(%arg0: i32, %arg1: i32) -> (i32, i32) {
    %c0_i32 = arith.constant 0 : i32
    %c0_i32_0 = arith.constant 0 : i32
    %c0_i32_1 = arith.constant 0 : i32
    return %c0_i32, %c0_i32_0 : i32, i32
  }
  func.func @transform_25(%arg0: i32, %arg1: i32) -> (i32, i32) {
    %c0_i32 = arith.constant 0 : i32
    %c0_i32_0 = arith.constant 0 : i32
    %c0_i32_1 = arith.constant 0 : i32
    return %c0_i32, %c0_i32_0 : i32, i32
  }
  func.func @transform_26(%arg0: i32, %arg1: i32) -> (i32, i32) {
    %c0_i32 = arith.constant 0 : i32
    %c0_i32_0 = arith.constant 0 : i32
    %c0_i32_1 = arith.constant 0 : i32
    return %c0_i32, %c0_i32_0 : i32, i32
  }
  func.func @transform_27(%arg0: i32, %arg1: i32) -> (i32, i32) {
    %c0_i32 = arith.constant 0 : i32
    %c0_i32_0 = arith.constant 0 : i32
    %c0_i32_1 = arith.constant 0 : i32
    return %c0_i32, %c0_i32_0 : i32, i32
  }
  func.func @transform_28(%arg0: i32, %arg1: i32) -> (i32, i32) {
    %c0_i32 = arith.constant 0 : i32
    %c0_i32_0 = arith.constant 0 : i32
    %c0_i32_1 = arith.constant 0 : i32
    return %c0_i32, %c0_i32_0 : i32, i32
  }
  func.func @transform_29(%arg0: i32, %arg1: i32) -> (i32, i32) {
    %c0_i32 = arith.constant 0 : i32
    %c0_i32_0 = arith.constant 0 : i32
    %c0_i32_1 = arith.constant 0 : i32
    return %c0_i32, %c0_i32_0 : i32, i32
  }
}

</mosaic_0001>

<llo_original>
// kernel: tpu_custom_call.1
$region0: #{tpu_custom_call.1}
  #allocation0 [shape = 'u32[]', space=smem, size = 0x4, offset = 0x4, fixed_abs, tag = 'smem constant byte address 0x4 - core index']
  #allocation1 [shape = 'u32[144,128]{1,0:T(1,128)}', space=vmem, size = 0x12000, scoped, tag = 'internal scratch']
  #allocation2 [shape = 'f32[24,128]{1,0:T(8,128)}', space=vmem, size = 0x3000, scoped, tag = 'scratch operand']
  #allocation3 [shape = 'bf16[24,128]{1,0:T(8,128)(2,1)}', space=vmem, size = 0x1800, scoped, tag = 'scratch operand']
  #allocation4 [shape = 'f32[24,128]{1,0:T(8,128)}', space=vmem, size = 0x3000, scoped, tag = 'scratch operand']
  #allocation5 [shape = 'f32[24,128]{1,0:T(8,128)}', space=vmem, size = 0x3000, scoped, tag = 'scratch operand']
  #allocation6 [shape = 'f32[24,128]{1,0:T(8,128)}', space=vmem, size = 0x3000, scoped, tag = 'scratch operand']
  %s0 = inlined_call_operand.smem [shape: u32[30], index: -1, kind: input, shape index: {}]
  %s1 = sld [smem:[%s0]]
  %s2 = scalar_lea.smem %s0, 1
  %s3 = sld [smem:[%s2]]
  %s4 = scalar_lea.smem %s0, 2
  %s5 = sld [smem:[%s4]]
  %s6 = scalar_lea.smem %s0, 3
  %s7 = sld [smem:[%s6]]
  %s8 = scalar_lea.smem %s0, 4
  %s9 = sld [smem:[%s8]]
  %s10 = scalar_lea.smem %s0, 5
  %s11 = sld [smem:[%s10]]
  %s12 = scalar_lea.smem %s0, 6
  %s13 = sld [smem:[%s12]]
  %s14 = scalar_lea.smem %s0, 7
  %s15 = sld [smem:[%s14]]
  %s16 = scalar_lea.smem %s0, 8
  %s17 = sld [smem:[%s16]]
  %s18 = scalar_lea.smem %s0, 9
  %s19 = sld [smem:[%s18]]
  %s20 = scalar_lea.smem %s0, 10
  %s21 = sld [smem:[%s20]]
  %s22 = scalar_lea.smem %s0, 11
  %s23 = sld [smem:[%s22]]
  %s24 = scalar_lea.smem %s0, 12
  %s25 = sld [smem:[%s24]]
  %s26 = scalar_lea.smem %s0, 13
  %s27 = sld [smem:[%s26]]
  %s28 = scalar_lea.smem %s0, 14
  %s29 = sld [smem:[%s28]]
  %s30 = scalar_lea.smem %s0, 15
  %s31 = sld [smem:[%s30]]
  %s32 = scalar_lea.smem %s0, 16
  %s33 = sld [smem:[%s32]]
  %s34 = scalar_lea.smem %s0, 17
  %s35 = sld [smem:[%s34]]
  %s36 = scalar_lea.smem %s0, 18
  %s37 = sld [smem:[%s36]]
  %s38 = scalar_lea.smem %s0, 19
  %s39 = sld [smem:[%s38]]
  %s40 = scalar_lea.smem %s0, 20
  %s41 = sld [smem:[%s40]]
  %s42 = scalar_lea.smem %s0, 21
  %s43 = sld [smem:[%s42]]
  %s44 = scalar_lea.smem %s0, 22
  %s45 = sld [smem:[%s44]]
  %s46 = scalar_lea.smem %s0, 23
  %s47 = sld [smem:[%s46]]
  %s48 = scalar_lea.smem %s0, 24
  %s49 = sld [smem:[%s48]]
  %s50 = scalar_lea.smem %s0, 25
  %s51 = sld [smem:[%s50]]
  %s52 = scalar_lea.smem %s0, 26
  %s53 = sld [smem:[%s52]]
  %s54 = scalar_lea.smem %s0, 27
  %s55 = sld [smem:[%s54]]
  %s56 = scalar_lea.smem %s0, 28
  %s57 = sld [smem:[%s56]]
  %s58 = scalar_lea.smem %s0, 29
  %s59 = sld [smem:[%s58]]
  %s60 = sld [smem:[#allocation0]]
  $region229: #{tpu_custom_call.1} parent=0
    _
  %s62 = ssub.s32 1, %s60
  %s63 = scalar_select 0, %s62, %s60
  $region1: #{tpu_custom_call.1} parent=0
    #allocation7 [shape = 'u8[12288]{0}', space=vmem, size = 0x3000, scoped, tag = 'input window, operand 0, single buffered']
    #allocation8 [shape = 's32[2]{0}', space=sflag, size = 0x8, scoped, tag = 'scoped memory for tpu_custom_call.1']
    #allocation9 [shape = 's32[2]{0}', space=sflag, size = 0x8, scoped, tag = 'scoped memory for tpu_custom_call.1']
    #allocation10 [shape = 'u8[12288]{0}', space=vmem, size = 0x3000, scoped, tag = 'input window, operand 1, single buffered']
    #allocation11 [shape = 's32[1]{0}', space=sflag, size = 0x4, scoped, tag = 'scoped memory for tpu_custom_call.1']
    #allocation12 [shape = 'u8[1024]{0}', space=vmem, size = 0x400, scoped, tag = 'input window, operand 9']
    #allocation13 [shape = 'u8[65536]{0}', space=vmem, size = 0x10000, scoped, tag = 'input window, operand 10']
    #allocation14 [shape = 'u8[1024]{0}', space=vmem, size = 0x400, scoped, tag = 'input window, operand 11']
    #allocation15 [shape = 'u8[1024]{0}', space=vmem, size = 0x400, scoped, tag = 'input window, operand 12']
    #allocation16 [shape = 'u8[1024]{0}', space=vmem, size = 0x400, scoped, tag = 'input window, operand 13']
    #allocation17 [shape = 'u8[65536]{0}', space=vmem, size = 0x10000, scoped, tag = 'input window, operand 14']
    #allocation18 [shape = 'u8[1024]{0}', space=vmem, size = 0x400, scoped, tag = 'input window, operand 15']
    #allocation19 [shape = 'u8[1024]{0}', space=vmem, size = 0x400, scoped, tag = 'input window, operand 16']
    #allocation20 [shape = 'u8[131072]{0}', space=vmem, size = 0x20000, scoped, tag = 'input window, operand 17']
    #allocation21 [shape = 'u8[32768]{0}', space=vmem, size = 0x8000, scoped, tag = 'input window, operand 21, single buffered']
    #allocation22 [shape = 'u8[32768]{0}', space=vmem, size = 0x8000, scoped, tag = 'input window, operand 23, single buffered']
    #allocation23 [shape = 's32[1]{0}', space=sflag, size = 0x4, scoped, tag = 'scoped memory for tpu_custom_call.1']
    #allocation24 [shape = 'u8[32768]{0}', space=vmem, size = 0x8000, scoped, tag = 'input window, operand 25, single buffered']
    #allocation25 [shape = 'u8[32768]{0}', space=vmem, size = 0x8000, scoped, tag = 'input window, operand 27, single buffered']
    #allocation26 [shape = 's32[1]{0}', space=sflag, size = 0x4, scoped, tag = 'scoped memory for tpu_custom_call.1']
    #allocation27 [shape = 'u8[1024]{0}', space=vmem, size = 0x400, scoped, tag = 'output window, operand 0, single buffered']
    %64 = vsyncpa [#allocation8], 0
    %65 = vsyncpa [#allocation11], 0
    %66 = vsyncpa [#allocation23], 0
    %67 = vsyncpa [#allocation26], 0
    %68 = vsyncpa [#allocation9], 0
    loop: start=0, step=1, limit=6
    $region2: #{tpu_custom_call.1} parent=1 // loop_pre_header
      _
    $region3: #{tpu_custom_call.1} parent=1 // loop_header
      %s70 = sphi 0, %s74
      %p71 = scmp.ge.s32.totalorder %s70, 6
      %s77 = sphi 0, %s89
      %s78 = sphi 0, %s85
      %s79 = sphi 0, %s77
      %s80 = sphi 0, %s78
      %s81 = sphi 0, %s79
      %s82 = sphi 0, %s80
      %s90 = sphi 0, %s90
      %s92 = sphi 0, %s90
      %s93 = sphi 0, %s92
      %s107 = sphi 0, %s93
      %s111 = sphi 0, %s111
      %s113 = sphi 0, %s111
      %s114 = sphi 0, %s113
      %s128 = sphi 0, %s114
      %s134 = sphi 0, %s136
      %s137 = sphi 0, %s134
      %s138 = sphi 0, %s137
      %s154 = sphi 0, %s138
      %s160 = sphi 0, %s162
      %s163 = sphi 0, %s160
      %s164 = sphi 0, %s163
      %s180 = sphi 0, %s164
      %s184 = sphi 0, %s184
      %s186 = sphi 0, %s184
      %s187 = sphi 0, %s186
      %s201 = sphi 0, %s187
      %s205 = sphi 0, %s205
      %s207 = sphi 0, %s205
      %s208 = sphi 0, %s207
      %s222 = sphi 0, %s208
      %s226 = sphi 0, %s226
      %s228 = sphi 0, %s226
      %s229 = sphi 0, %s228
      %s243 = sphi 0, %s229
      %s249 = sphi 0, %s251
      %s252 = sphi 0, %s249
      %s253 = sphi 0, %s252
      %s269 = sphi 0, %s253
      %s275 = sphi 0, %s277
      %s278 = sphi 0, %s275
      %s279 = sphi 0, %s278
      %s295 = sphi 0, %s279
      %s301 = sphi 0, %s303
      %s304 = sphi 0, %s301
      %s305 = sphi 0, %s304
      %s321 = sphi 0, %s305
      %s327 = sphi 0, %s329
      %s330 = sphi 0, %s327
      %s331 = sphi 0, %s330
      %s347 = sphi 0, %s331
      %s353 = sphi 0, %s355
      %s356 = sphi 0, %s353
      %s357 = sphi 0, %s356
      %s373 = sphi 0, %s357
      %s379 = sphi 0, %s381
      %s382 = sphi 0, %s379
      %s383 = sphi 0, %s382
      %s399 = sphi 0, %s383
      %s405 = sphi 0, %s407
      %s408 = sphi 0, %s405
      %s409 = sphi 0, %s408
      %s425 = sphi 0, %s409
      %s431 = sphi 0, %s433
      %s434 = sphi 0, %s431
      %s435 = sphi 0, %s434
      %s451 = sphi 0, %s435
      %s457 = sphi 0, %s459
      %s460 = sphi 0, %s457
      %s461 = sphi 0, %s460
      %s477 = sphi 0, %s461
      %s483 = sphi 0, %s485
      %s486 = sphi 0, %s483
      %s487 = sphi 0, %s486
      %s503 = sphi 0, %s487
      %s509 = sphi 0, %s511
      %s512 = sphi 0, %s509
      %s513 = sphi 0, %s512
      %s529 = sphi 0, %s513
      %s535 = sphi 0, %s537
      %s538 = sphi 0, %s535
      %s539 = sphi 0, %s538
      %s555 = sphi 0, %s539
      %s561 = sphi 0, %s563
      %s564 = sphi 0, %s561
      %s565 = sphi 0, %s564
      %s581 = sphi 0, %s565
      %s587 = sphi 0, %s589
      %s590 = sphi 0, %s587
      %s591 = sphi 0, %s590
      %s607 = sphi 0, %s591
      %s611 = sphi 0, %s611
      %s613 = sphi 0, %s611
      %s614 = sphi 0, %s613
      %s628 = sphi 0, %s614
      %s632 = sphi 0, %s632
      %s634 = sphi 0, %s632
      %s635 = sphi 0, %s634
      %s649 = sphi 0, %s635
      %s653 = sphi 0, %s653
      %s655 = sphi 0, %s653
      %s656 = sphi 0, %s655
      %s670 = sphi 0, %s656
      %s674 = sphi 0, %s674
      %s676 = sphi 0, %s674
      %s677 = sphi 0, %s676
      %s691 = sphi 0, %s677
      %s695 = sphi 0, %s695
      %s697 = sphi 0, %s695
      %s698 = sphi 0, %s697
      %s712 = sphi 0, %s698
      %s716 = sphi 0, %s716
      %s718 = sphi 0, %s716
      %s719 = sphi 0, %s718
      %s733 = sphi 0, %s719
      %s737 = sphi 0, %s737
      %s739 = sphi 0, %s737
      %s740 = sphi 0, %s739
      %s754 = sphi 0, %s740
      %s758 = sphi 0, %s758
      %s760 = sphi 0, %s758
      %s761 = sphi 0, %s760
      %s775 = sphi 0, %s761
      %s779 = sphi 0, %s779
      %s781 = sphi 0, %s779
      %s782 = sphi 0, %s781
      %s796 = sphi 0, %s782
    $region4: #{tpu_custom_call.1} parent=1 // loop_header_branch
      %73 = sbr.rel (%p71) target = $region8
    $region5: #{tpu_custom_call.1} parent=1 // loop_body
      %s75 = ssub.s32 %s70, 1
      %s76 = ssub.s32 %s70, 2
      %s83 = sadd.s32 1, %s78
      %p84 = scmp.ge.s32.totalorder %s83, 2
      %s85 = scalar_select %p84, 0, %s83
      %s86 = sadd.s32 1, %s77
      %s87 = scalar_select %p84, %s86, %s77
      %p88 = scmp.ge.s32.totalorder %s87, 2
      %s89 = scalar_select %p88, 0, %s87
      %s91 = sadd.s32 %s90, 1
      %p94 = scmp.eq.s32.totalorder %s70, 3
      %p95 = scmp.ne.s32.totalorder %s90, %s92
      %p96 = scmp.eq.s32.totalorder %s70, 0
      %p97 = por %p95, %p96
      %p98 = scmp.ne.s32.totalorder %s90, %s92
      %p99 = scmp.eq.s32.totalorder %s75, 3
      %p100 = por %p98, %p99
      %p101 = scmp.ne.s32.totalorder %s92, %s93
      %p102 = scmp.eq.s32.totalorder %s75, 0
      %p103 = por %p101, %p102
      %p104 = scmp.ne.s32.totalorder %s92, %s93
      %p105 = scmp.eq.s32.totalorder %s76, 3
      %p106 = por %p104, %p105
      %p108 = scmp.ne.s32.totalorder %s93, %s107
      %p109 = scmp.eq.s32.totalorder %s76, 0
      %p110 = por %p108, %p109
      %s112 = sadd.s32 %s111, 1
      %p115 = scmp.eq.s32.totalorder %s70, 3
      %p116 = scmp.ne.s32.totalorder %s111, %s113
      %p117 = scmp.eq.s32.totalorder %s70, 0
      %p118 = por %p116, %p117
      %p119 = scmp.ne.s32.totalorder %s111, %s113
      %p120 = scmp.eq.s32.totalorder %s75, 3
      %p121 = por %p119, %p120
      %p122 = scmp.ne.s32.totalorder %s113, %s114
      %p123 = scmp.eq.s32.totalorder %s75, 0
      %p124 = por %p122, %p123
      %p125 = scmp.ne.s32.totalorder %s113, %s114
      %p126 = scmp.eq.s32.totalorder %s76, 3
      %p127 = por %p125, %p126
      %p129 = scmp.ne.s32.totalorder %s114, %s128
      %p130 = scmp.eq.s32.totalorder %s76, 0
      %p131 = por %p129, %p130
      %s132 = ssub.s32 %s78, %s85
      %p133 = scmp.eq.s32.totalorder %s132, 0
      %s135 = sadd.s32 %s134, 1
      %s136 = scalar_select %p133, %s134, %s135
      %p139 = pneg %p133
      %p140 = scmp.eq.s32.totalorder %s70, 3
      %p141 = por %p139, %p140
      %p142 = scmp.ne.s32.totalorder %s134, %s137
      %p143 = scmp.eq.s32.totalorder %s70, 0
      %p144 = por %p142, %p143
      %p145 = scmp.ne.s32.totalorder %s134, %s137
      %p146 = scmp.eq.s32.totalorder %s75, 3
      %p147 = por %p145, %p146
      %p148 = scmp.ne.s32.totalorder %s137, %s138
      %p149 = scmp.eq.s32.totalorder %s75, 0
      %p150 = por %p148, %p149
      %p151 = scmp.ne.s32.totalorder %s137, %s138
      %p152 = scmp.eq.s32.totalorder %s76, 3
      %p153 = por %p151, %p152
      %p155 = scmp.ne.s32.totalorder %s138, %s154
      %p156 = scmp.eq.s32.totalorder %s76, 0
      %p157 = por %p155, %p156
      %s158 = ssub.s32 %s78, %s85
      %p159 = scmp.eq.s32.totalorder %s158, 0
      %s161 = sadd.s32 %s160, 1
      %s162 = scalar_select %p159, %s160, %s161
      %p165 = pneg %p159
      %p166 = scmp.eq.s32.totalorder %s70, 3
      %p167 = por %p165, %p166
      %p168 = scmp.ne.s32.totalorder %s160, %s163
      %p169 = scmp.eq.s32.totalorder %s70, 0
      %p170 = por %p168, %p169
      %p171 = scmp.ne.s32.totalorder %s160, %s163
      %p172 = scmp.eq.s32.totalorder %s75, 3
      %p173 = por %p171, %p172
      %p174 = scmp.ne.s32.totalorder %s163, %s164
      %p175 = scmp.eq.s32.totalorder %s75, 0
      %p176 = por %p174, %p175
      %p177 = scmp.ne.s32.totalorder %s163, %s164
      %p178 = scmp.eq.s32.totalorder %s76, 3
      %p179 = por %p177, %p178
      %p181 = scmp.ne.s32.totalorder %s164, %s180
      %p182 = scmp.eq.s32.totalorder %s76, 0
      %p183 = por %p181, %p182
      %s185 = sadd.s32 %s184, 1
      %p188 = scmp.eq.s32.totalorder %s70, 3
      %p189 = scmp.ne.s32.totalorder %s184, %s186
      %p190 = scmp.eq.s32.totalorder %s70, 0
      %p191 = por %p189, %p190
      %p192 = scmp.ne.s32.totalorder %s184, %s186
      %p193 = scmp.eq.s32.totalorder %s75, 3
      %p194 = por %p192, %p193
      %p195 = scmp.ne.s32.totalorder %s186, %s187
      %p196 = scmp.eq.s32.totalorder %s75, 0
      %p197 = por %p195, %p196
      %p198 = scmp.ne.s32.totalorder %s186, %s187
      %p199 = scmp.eq.s32.totalorder %s76, 3
      %p200 = por %p198, %p199
      %p202 = scmp.ne.s32.totalorder %s187, %s201
      %p203 = scmp.eq.s32.totalorder %s76, 0
      %p204 = por %p202, %p203
      %s206 = sadd.s32 %s205, 1
      %p209 = scmp.eq.s32.totalorder %s70, 3
      %p210 = scmp.ne.s32.totalorder %s205, %s207
      %p211 = scmp.eq.s32.totalorder %s70, 0
      %p212 = por %p210, %p211
      %p213 = scmp.ne.s32.totalorder %s205, %s207
      %p214 = scmp.eq.s32.totalorder %s75, 3
      %p215 = por %p213, %p214
      %p216 = scmp.ne.s32.totalorder %s207, %s208
      %p217 = scmp.eq.s32.totalorder %s75, 0
      %p218 = por %p216, %p217
      %p219 = scmp.ne.s32.totalorder %s207, %s208
      %p220 = scmp.eq.s32.totalorder %s76, 3
      %p221 = por %p219, %p220
      %p223 = scmp.ne.s32.totalorder %s208, %s222
      %p224 = scmp.eq.s32.totalorder %s76, 0
      %p225 = por %p223, %p224
      %s227 = sadd.s32 %s226, 1
      %p230 = scmp.eq.s32.totalorder %s70, 3
      %p231 = scmp.ne.s32.totalorder %s226, %s228
      %p232 = scmp.eq.s32.totalorder %s70, 0
      %p233 = por %p231, %p232
      %p234 = scmp.ne.s32.totalorder %s226, %s228
      %p235 = scmp.eq.s32.totalorder %s75, 3
      %p236 = por %p234, %p235
      %p237 = scmp.ne.s32.totalorder %s228, %s229
      %p238 = scmp.eq.s32.totalorder %s75, 0
      %p239 = por %p237, %p238
      %p240 = scmp.ne.s32.totalorder %s228, %s229
      %p241 = scmp.eq.s32.totalorder %s76, 3
      %p242 = por %p240, %p241
      %p244 = scmp.ne.s32.totalorder %s229, %s243
      %p245 = scmp.eq.s32.totalorder %s76, 0
      %p246 = por %p244, %p245
      %s247 = ssub.s32 %s77, %s89
      %p248 = scmp.eq.s32.totalorder %s247, 0
      %s250 = sadd.s32 %s249, 1
      %s251 = scalar_select %p248, %s249, %s250
      %p254 = pneg %p248
      %p255 = scmp.eq.s32.totalorder %s70, 3
      %p256 = por %p254, %p255
      %p257 = scmp.ne.s32.totalorder %s249, %s252
      %p258 = scmp.eq.s32.totalorder %s70, 0
      %p259 = por %p257, %p258
      %p260 = scmp.ne.s32.totalorder %s249, %s252
      %p261 = scmp.eq.s32.totalorder %s75, 3
      %p262 = por %p260, %p261
      %p263 = scmp.ne.s32.totalorder %s252, %s253
      %p264 = scmp.eq.s32.totalorder %s75, 0
      %p265 = por %p263, %p264
      %p266 = scmp.ne.s32.totalorder %s252, %s253
      %p267 = scmp.eq.s32.totalorder %s76, 3
      %p268 = por %p266, %p267
      %p270 = scmp.ne.s32.totalorder %s253, %s269
      %p271 = scmp.eq.s32.totalorder %s76, 0
      %p272 = por %p270, %p271
      %s273 = ssub.s32 %s77, %s89
      %p274 = scmp.eq.s32.totalorder %s273, 0
      %s276 = sadd.s32 %s275, 1
      %s277 = scalar_select %p274, %s275, %s276
      %p280 = pneg %p274
      %p281 = scmp.eq.s32.totalorder %s70, 3
      %p282 = por %p280, %p281
      %p283 = scmp.ne.s32.totalorder %s275, %s278
      %p284 = scmp.eq.s32.totalorder %s70, 0
      %p285 = por %p283, %p284
      %p286 = scmp.ne.s32.totalorder %s275, %s278
      %p287 = scmp.eq.s32.totalorder %s75, 3
      %p288 = por %p286, %p287
      %p289 = scmp.ne.s32.totalorder %s278, %s279
      %p290 = scmp.eq.s32.totalorder %s75, 0
      %p291 = por %p289, %p290
      %p292 = scmp.ne.s32.totalorder %s278, %s279
      %p293 = scmp.eq.s32.totalorder %s76, 3
      %p294 = por %p292, %p293
      %p296 = scmp.ne.s32.totalorder %s279, %s295
      %p297 = scmp.eq.s32.totalorder %s76, 0
      %p298 = por %p296, %p297
      %s299 = ssub.s32 %s77, %s89
      %p300 = scmp.eq.s32.totalorder %s299, 0
      %s302 = sadd.s32 %s301, 1
      %s303 = scalar_select %p300, %s301, %s302
      %p306 = pneg %p300
      %p307 = scmp.eq.s32.totalorder %s70, 3
      %p308 = por %p306, %p307
      %p309 = scmp.ne.s32.totalorder %s301, %s304
      %p310 = scmp.eq.s32.totalorder %s70, 0
      %p311 = por %p309, %p310
      %p312 = scmp.ne.s32.totalorder %s301, %s304
      %p313 = scmp.eq.s32.totalorder %s75, 3
      %p314 = por %p312, %p313
      %p315 = scmp.ne.s32.totalorder %s304, %s305
      %p316 = scmp.eq.s32.totalorder %s75, 0
      %p317 = por %p315, %p316
      %p318 = scmp.ne.s32.totalorder %s304, %s305
      %p319 = scmp.eq.s32.totalorder %s76, 3
      %p320 = por %p318, %p319
      %p322 = scmp.ne.s32.totalorder %s305, %s321
      %p323 = scmp.eq.s32.totalorder %s76, 0
      %p324 = por %p322, %p323
      %s325 = ssub.s32 %s77, %s89
      %p326 = scmp.eq.s32.totalorder %s325, 0
      %s328 = sadd.s32 %s327, 1
      %s329 = scalar_select %p326, %s327, %s328
      %p332 = pneg %p326
      %p333 = scmp.eq.s32.totalorder %s70, 3
      %p334 = por %p332, %p333
      %p335 = scmp.ne.s32.totalorder %s327, %s330
      %p336 = scmp.eq.s32.totalorder %s70, 0
      %p337 = por %p335, %p336
      %p338 = scmp.ne.s32.totalorder %s327, %s330
      %p339 = scmp.eq.s32.totalorder %s75, 3
      %p340 = por %p338, %p339
      %p341 = scmp.ne.s32.totalorder %s330, %s331
      %p342 = scmp.eq.s32.totalorder %s75, 0
      %p343 = por %p341, %p342
      %p344 = scmp.ne.s32.totalorder %s330, %s331
      %p345 = scmp.eq.s32.totalorder %s76, 3
      %p346 = por %p344, %p345
      %p348 = scmp.ne.s32.totalorder %s331, %s347
      %p349 = scmp.eq.s32.totalorder %s76, 0
      %p350 = por %p348, %p349
      %s351 = ssub.s32 %s77, %s89
      %p352 = scmp.eq.s32.totalorder %s351, 0
      %s354 = sadd.s32 %s353, 1
      %s355 = scalar_select %p352, %s353, %s354
      %p358 = pneg %p352
      %p359 = scmp.eq.s32.totalorder %s70, 3
      %p360 = por %p358, %p359
      %p361 = scmp.ne.s32.totalorder %s353, %s356
      %p362 = scmp.eq.s32.totalorder %s70, 0
      %p363 = por %p361, %p362
      %p364 = scmp.ne.s32.totalorder %s353, %s356
      %p365 = scmp.eq.s32.totalorder %s75, 3
      %p366 = por %p364, %p365
      %p367 = scmp.ne.s32.totalorder %s356, %s357
      %p368 = scmp.eq.s32.totalorder %s75, 0
      %p369 = por %p367, %p368
      %p370 = scmp.ne.s32.totalorder %s356, %s357
      %p371 = scmp.eq.s32.totalorder %s76, 3
      %p372 = por %p370, %p371
      %p374 = scmp.ne.s32.totalorder %s357, %s373
      %p375 = scmp.eq.s32.totalorder %s76, 0
      %p376 = por %p374, %p375
      %s377 = ssub.s32 %s77, %s89
      %p378 = scmp.eq.s32.totalorder %s377, 0
      %s380 = sadd.s32 %s379, 1
      %s381 = scalar_select %p378, %s379, %s380
      %p384 = pneg %p378
      %p385 = scmp.eq.s32.totalorder %s70, 3
      %p386 = por %p384, %p385
      %p387 = scmp.ne.s32.totalorder %s379, %s382
      %p388 = scmp.eq.s32.totalorder %s70, 0
      %p389 = por %p387, %p388
      %p390 = scmp.ne.s32.totalorder %s379, %s382
      %p391 = scmp.eq.s32.totalorder %s75, 3
      %p392 = por %p390, %p391
      %p393 = scmp.ne.s32.totalorder %s382, %s383
      %p394 = scmp.eq.s32.totalorder %s75, 0
      %p395 = por %p393, %p394
      %p396 = scmp.ne.s32.totalorder %s382, %s383
      %p397 = scmp.eq.s32.totalorder %s76, 3
      %p398 = por %p396, %p397
      %p400 = scmp.ne.s32.totalorder %s383, %s399
      %p401 = scmp.eq.s32.totalorder %s76, 0
      %p402 = por %p400, %p401
      %s403 = ssub.s32 %s77, %s89
      %p404 = scmp.eq.s32.totalorder %s403, 0
      %s406 = sadd.s32 %s405, 1
      %s407 = scalar_select %p404, %s405, %s406
      %p410 = pneg %p404
      %p411 = scmp.eq.s32.totalorder %s70, 3
      %p412 = por %p410, %p411
      %p413 = scmp.ne.s32.totalorder %s405, %s408
      %p414 = scmp.eq.s32.totalorder %s70, 0
      %p415 = por %p413, %p414
      %p416 = scmp.ne.s32.totalorder %s405, %s408
      %p417 = scmp.eq.s32.totalorder %s75, 3
      %p418 = por %p416, %p417
      %p419 = scmp.ne.s32.totalorder %s408, %s409
      %p420 = scmp.eq.s32.totalorder %s75, 0
      %p421 = por %p419, %p420
      %p422 = scmp.ne.s32.totalorder %s408, %s409
      %p423 = scmp.eq.s32.totalorder %s76, 3
      %p424 = por %p422, %p423
      %p426 = scmp.ne.s32.totalorder %s409, %s425
      %p427 = scmp.eq.s32.totalorder %s76, 0
      %p428 = por %p426, %p427
      %s429 = ssub.s32 %s77, %s89
      %p430 = scmp.eq.s32.totalorder %s429, 0
      %s432 = sadd.s32 %s431, 1
      %s433 = scalar_select %p430, %s431, %s432
      %p436 = pneg %p430
      %p437 = scmp.eq.s32.totalorder %s70, 3
      %p438 = por %p436, %p437
      %p439 = scmp.ne.s32.totalorder %s431, %s434
      %p440 = scmp.eq.s32.totalorder %s70, 0
      %p441 = por %p439, %p440
      %p442 = scmp.ne.s32.totalorder %s431, %s434
      %p443 = scmp.eq.s32.totalorder %s75, 3
      %p444 = por %p442, %p443
      %p445 = scmp.ne.s32.totalorder %s434, %s435
      %p446 = scmp.eq.s32.totalorder %s75, 0
      %p447 = por %p445, %p446
      %p448 = scmp.ne.s32.totalorder %s434, %s435
      %p449 = scmp.eq.s32.totalorder %s76, 3
      %p450 = por %p448, %p449
      %p452 = scmp.ne.s32.totalorder %s435, %s451
      %p453 = scmp.eq.s32.totalorder %s76, 0
      %p454 = por %p452, %p453
      %s455 = ssub.s32 %s77, %s89
      %p456 = scmp.eq.s32.totalorder %s455, 0
      %s458 = sadd.s32 %s457, 1
      %s459 = scalar_select %p456, %s457, %s458
      %p462 = pneg %p456
      %p463 = scmp.eq.s32.totalorder %s70, 3
      %p464 = por %p462, %p463
      %p465 = scmp.ne.s32.totalorder %s457, %s460
      %p466 = scmp.eq.s32.totalorder %s70, 0
      %p467 = por %p465, %p466
      %p468 = scmp.ne.s32.totalorder %s457, %s460
      %p469 = scmp.eq.s32.totalorder %s75, 3
      %p470 = por %p468, %p469
      %p471 = scmp.ne.s32.totalorder %s460, %s461
      %p472 = scmp.eq.s32.totalorder %s75, 0
      %p473 = por %p471, %p472
      %p474 = scmp.ne.s32.totalorder %s460, %s461
      %p475 = scmp.eq.s32.totalorder %s76, 3
      %p476 = por %p474, %p475
      %p478 = scmp.ne.s32.totalorder %s461, %s477
      %p479 = scmp.eq.s32.totalorder %s76, 0
      %p480 = por %p478, %p479
      %s481 = ssub.s32 %s77, %s89
      %p482 = scmp.eq.s32.totalorder %s481, 0
      %s484 = sadd.s32 %s483, 1
      %s485 = scalar_select %p482, %s483, %s484
      %p488 = pneg %p482
      %p489 = scmp.eq.s32.totalorder %s70, 3
      %p490 = por %p488, %p489
      %p491 = scmp.ne.s32.totalorder %s483, %s486
      %p492 = scmp.eq.s32.totalorder %s70, 0
      %p493 = por %p491, %p492
      %p494 = scmp.ne.s32.totalorder %s483, %s486
      %p495 = scmp.eq.s32.totalorder %s75, 3
      %p496 = por %p494, %p495
      %p497 = scmp.ne.s32.totalorder %s486, %s487
      %p498 = scmp.eq.s32.totalorder %s75, 0
      %p499 = por %p497, %p498
      %p500 = scmp.ne.s32.totalorder %s486, %s487
      %p501 = scmp.eq.s32.totalorder %s76, 3
      %p502 = por %p500, %p501
      %p504 = scmp.ne.s32.totalorder %s487, %s503
      %p505 = scmp.eq.s32.totalorder %s76, 0
      %p506 = por %p504, %p505
      %s507 = ssub.s32 %s77, %s89
      %p508 = scmp.eq.s32.totalorder %s507, 0
      %s510 = sadd.s32 %s509, 1
      %s511 = scalar_select %p508, %s509, %s510
      %p514 = pneg %p508
      %p515 = scmp.eq.s32.totalorder %s70, 3
      %p516 = por %p514, %p515
      %p517 = scmp.ne.s32.totalorder %s509, %s512
      %p518 = scmp.eq.s32.totalorder %s70, 0
      %p519 = por %p517, %p518
      %p520 = scmp.ne.s32.totalorder %s509, %s512
      %p521 = scmp.eq.s32.totalorder %s75, 3
      %p522 = por %p520, %p521
      %p523 = scmp.ne.s32.totalorder %s512, %s513
      %p524 = scmp.eq.s32.totalorder %s75, 0
      %p525 = por %p523, %p524
      %p526 = scmp.ne.s32.totalorder %s512, %s513
      %p527 = scmp.eq.s32.totalorder %s76, 3
      %p528 = por %p526, %p527
      %p530 = scmp.ne.s32.totalorder %s513, %s529
      %p531 = scmp.eq.s32.totalorder %s76, 0
      %p532 = por %p530, %p531
      %s533 = ssub.s32 %s77, %s89
      %p534 = scmp.eq.s32.totalorder %s533, 0
      %s536 = sadd.s32 %s535, 1
      %s537 = scalar_select %p534, %s535, %s536
      %p540 = pneg %p534
      %p541 = scmp.eq.s32.totalorder %s70, 3
      %p542 = por %p540, %p541
      %p543 = scmp.ne.s32.totalorder %s535, %s538
      %p544 = scmp.eq.s32.totalorder %s70, 0
      %p545 = por %p543, %p544
      %p546 = scmp.ne.s32.totalorder %s535, %s538
      %p547 = scmp.eq.s32.totalorder %s75, 3
      %p548 = por %p546, %p547
      %p549 = scmp.ne.s32.totalorder %s538, %s539
      %p550 = scmp.eq.s32.totalorder %s75, 0
      %p551 = por %p549, %p550
      %p552 = scmp.ne.s32.totalorder %s538, %s539
      %p553 = scmp.eq.s32.totalorder %s76, 3
      %p554 = por %p552, %p553
      %p556 = scmp.ne.s32.totalorder %s539, %s555
      %p557 = scmp.eq.s32.totalorder %s76, 0
      %p558 = por %p556, %p557
      %s559 = ssub.s32 %s77, %s89
      %p560 = scmp.eq.s32.totalorder %s559, 0
      %s562 = sadd.s32 %s561, 1
      %s563 = scalar_select %p560, %s561, %s562
      %p566 = pneg %p560
      %p567 = scmp.eq.s32.totalorder %s70, 3
      %p568 = por %p566, %p567
      %p569 = scmp.ne.s32.totalorder %s561, %s564
      %p570 = scmp.eq.s32.totalorder %s70, 0
      %p571 = por %p569, %p570
      %p572 = scmp.ne.s32.totalorder %s561, %s564
      %p573 = scmp.eq.s32.totalorder %s75, 3
      %p574 = por %p572, %p573
      %p575 = scmp.ne.s32.totalorder %s564, %s565
      %p576 = scmp.eq.s32.totalorder %s75, 0
      %p577 = por %p575, %p576
      %p578 = scmp.ne.s32.totalorder %s564, %s565
      %p579 = scmp.eq.s32.totalorder %s76, 3
      %p580 = por %p578, %p579
      %p582 = scmp.ne.s32.totalorder %s565, %s581
      %p583 = scmp.eq.s32.totalorder %s76, 0
      %p584 = por %p582, %p583
      %s585 = ssub.s32 %s77, %s89
      %p586 = scmp.eq.s32.totalorder %s585, 0
      %s588 = sadd.s32 %s587, 1
      %s589 = scalar_select %p586, %s587, %s588
      %p592 = pneg %p586
      %p593 = scmp.eq.s32.totalorder %s70, 3
      %p594 = por %p592, %p593
      %p595 = scmp.ne.s32.totalorder %s587, %s590
      %p596 = scmp.eq.s32.totalorder %s70, 0
      %p597 = por %p595, %p596
      %p598 = scmp.ne.s32.totalorder %s587, %s590
      %p599 = scmp.eq.s32.totalorder %s75, 3
      %p600 = por %p598, %p599
      %p601 = scmp.ne.s32.totalorder %s590, %s591
      %p602 = scmp.eq.s32.totalorder %s75, 0
      %p603 = por %p601, %p602
      %p604 = scmp.ne.s32.totalorder %s590, %s591
      %p605 = scmp.eq.s32.totalorder %s76, 3
      %p606 = por %p604, %p605
      %p608 = scmp.ne.s32.totalorder %s591, %s607
      %p609 = scmp.eq.s32.totalorder %s76, 0
      %p610 = por %p608, %p609
      %s612 = sadd.s32 %s611, 1
      %p615 = scmp.eq.s32.totalorder %s70, 3
      %p616 = scmp.ne.s32.totalorder %s611, %s613
      %p617 = scmp.eq.s32.totalorder %s70, 0
      %p618 = por %p616, %p617
      %p619 = scmp.ne.s32.totalorder %s611, %s613
      %p620 = scmp.eq.s32.totalorder %s75, 3
      %p621 = por %p619, %p620
      %p622 = scmp.ne.s32.totalorder %s613, %s614
      %p623 = scmp.eq.s32.totalorder %s75, 0
      %p624 = por %p622, %p623
      %p625 = scmp.ne.s32.totalorder %s613, %s614
      %p626 = scmp.eq.s32.totalorder %s76, 3
      %p627 = por %p625, %p626
      %p629 = scmp.ne.s32.totalorder %s614, %s628
      %p630 = scmp.eq.s32.totalorder %s76, 0
      %p631 = por %p629, %p630
      %s633 = sadd.s32 %s632, 1
      %p636 = scmp.eq.s32.totalorder %s70, 3
      %p637 = scmp.ne.s32.totalorder %s632, %s634
      %p638 = scmp.eq.s32.totalorder %s70, 0
      %p639 = por %p637, %p638
      %p640 = scmp.ne.s32.totalorder %s632, %s634
      %p641 = scmp.eq.s32.totalorder %s75, 3
      %p642 = por %p640, %p641
      %p643 = scmp.ne.s32.totalorder %s634, %s635
      %p644 = scmp.eq.s32.totalorder %s75, 0
      %p645 = por %p643, %p644
      %p646 = scmp.ne.s32.totalorder %s634, %s635
      %p647 = scmp.eq.s32.totalorder %s76, 3
      %p648 = por %p646, %p647
      %p650 = scmp.ne.s32.totalorder %s635, %s649
      %p651 = scmp.eq.s32.totalorder %s76, 0
      %p652 = por %p650, %p651
      %s654 = sadd.s32 %s653, 1
      %p657 = scmp.eq.s32.totalorder %s70, 3
      %p658 = scmp.ne.s32.totalorder %s653, %s655
      %p659 = scmp.eq.s32.totalorder %s70, 0
      %p660 = por %p658, %p659
      %p661 = scmp.ne.s32.totalorder %s653, %s655
      %p662 = scmp.eq.s32.totalorder %s75, 3
      %p663 = por %p661, %p662
      %p664 = scmp.ne.s32.totalorder %s655, %s656
      %p665 = scmp.eq.s32.totalorder %s75, 0
      %p666 = por %p664, %p665
      %p667 = scmp.ne.s32.totalorder %s655, %s656
      %p668 = scmp.eq.s32.totalorder %s76, 3
      %p669 = por %p667, %p668
      %p671 = scmp.ne.s32.totalorder %s656, %s670
      %p672 = scmp.eq.s32.totalorder %s76, 0
      %p673 = por %p671, %p672
      %s675 = sadd.s32 %s674, 1
      %p678 = scmp.eq.s32.totalorder %s70, 3
      %p679 = scmp.ne.s32.totalorder %s674, %s676
      %p680 = scmp.eq.s32.totalorder %s70, 0
      %p681 = por %p679, %p680
      %p682 = scmp.ne.s32.totalorder %s674, %s676
      %p683 = scmp.eq.s32.totalorder %s75, 3
      %p684 = por %p682, %p683
      %p685 = scmp.ne.s32.totalorder %s676, %s677
      %p686 = scmp.eq.s32.totalorder %s75, 0
      %p687 = por %p685, %p686
      %p688 = scmp.ne.s32.totalorder %s676, %s677
      %p689 = scmp.eq.s32.totalorder %s76, 3
      %p690 = por %p688, %p689
      %p692 = scmp.ne.s32.totalorder %s677, %s691
      %p693 = scmp.eq.s32.totalorder %s76, 0
      %p694 = por %p692, %p693
      %s696 = sadd.s32 %s695, 1
      %p699 = scmp.eq.s32.totalorder %s70, 3
      %p700 = scmp.ne.s32.totalorder %s695, %s697
      %p701 = scmp.eq.s32.totalorder %s70, 0
      %p702 = por %p700, %p701
      %p703 = scmp.ne.s32.totalorder %s695, %s697
      %p704 = scmp.eq.s32.totalorder %s75, 3
      %p705 = por %p703, %p704
      %p706 = scmp.ne.s32.totalorder %s697, %s698
      %p707 = scmp.eq.s32.totalorder %s75, 0
      %p708 = por %p706, %p707
      %p709 = scmp.ne.s32.totalorder %s697, %s698
      %p710 = scmp.eq.s32.totalorder %s76, 3
      %p711 = por %p709, %p710
      %p713 = scmp.ne.s32.totalorder %s698, %s712
      %p714 = scmp.eq.s32.totalorder %s76, 0
      %p715 = por %p713, %p714
      %s717 = sadd.s32 %s716, 1
      %p720 = scmp.eq.s32.totalorder %s70, 3
      %p721 = scmp.ne.s32.totalorder %s716, %s718
      %p722 = scmp.eq.s32.totalorder %s70, 0
      %p723 = por %p721, %p722
      %p724 = scmp.ne.s32.totalorder %s716, %s718
      %p725 = scmp.eq.s32.totalorder %s75, 3
      %p726 = por %p724, %p725
      %p727 = scmp.ne.s32.totalorder %s718, %s719
      %p728 = scmp.eq.s32.totalorder %s75, 0
      %p729 = por %p727, %p728
      %p730 = scmp.ne.s32.totalorder %s718, %s719
      %p731 = scmp.eq.s32.totalorder %s76, 3
      %p732 = por %p730, %p731
      %p734 = scmp.ne.s32.totalorder %s719, %s733
      %p735 = scmp.eq.s32.totalorder %s76, 0
      %p736 = por %p734, %p735
      %s738 = sadd.s32 %s737, 1
      %p741 = scmp.eq.s32.totalorder %s70, 3
      %p742 = scmp.ne.s32.totalorder %s737, %s739
      %p743 = scmp.eq.s32.totalorder %s70, 0
      %p744 = por %p742, %p743
      %p745 = scmp.ne.s32.totalorder %s737, %s739
      %p746 = scmp.eq.s32.totalorder %s75, 3
      %p747 = por %p745, %p746
      %p748 = scmp.ne.s32.totalorder %s739, %s740
      %p749 = scmp.eq.s32.totalorder %s75, 0
      %p750 = por %p748, %p749
      %p751 = scmp.ne.s32.totalorder %s739, %s740
      %p752 = scmp.eq.s32.totalorder %s76, 3
      %p753 = por %p751, %p752
      %p755 = scmp.ne.s32.totalorder %s740, %s754
      %p756 = scmp.eq.s32.totalorder %s76, 0
      %p757 = por %p755, %p756
      %s759 = sadd.s32 %s758, 1
      %p762 = scmp.eq.s32.totalorder %s70, 3
      %p763 = scmp.ne.s32.totalorder %s758, %s760
      %p764 = scmp.eq.s32.totalorder %s70, 0
      %p765 = por %p763, %p764
      %p766 = scmp.ne.s32.totalorder %s758, %s760
      %p767 = scmp.eq.s32.totalorder %s75, 3
      %p768 = por %p766, %p767
      %p769 = scmp.ne.s32.totalorder %s760, %s761
      %p770 = scmp.eq.s32.totalorder %s75, 0
      %p771 = por %p769, %p770
      %p772 = scmp.ne.s32.totalorder %s760, %s761
      %p773 = scmp.eq.s32.totalorder %s76, 3
      %p774 = por %p772, %p773
      %p776 = scmp.ne.s32.totalorder %s761, %s775
      %p777 = scmp.eq.s32.totalorder %s76, 0
      %p778 = por %p776, %p777
      %s780 = sadd.s32 %s779, 1
      %p783 = scmp.eq.s32.totalorder %s70, 3
      %p784 = scmp.ne.s32.totalorder %s779, %s781
      %p785 = scmp.eq.s32.totalorder %s70, 0
      %p786 = por %p784, %p785
      %p787 = scmp.ne.s32.totalorder %s779, %s781
      %p788 = scmp.eq.s32.totalorder %s75, 3
      %p789 = por %p787, %p788
      %p790 = scmp.ne.s32.totalorder %s781, %s782
      %p791 = scmp.eq.s32.totalorder %s75, 0
      %p792 = por %p790, %p791
      %p793 = scmp.ne.s32.totalorder %s781, %s782
      %p794 = scmp.eq.s32.totalorder %s76, 3
      %p795 = por %p793, %p794
      %p797 = scmp.ne.s32.totalorder %s782, %s796
      %p798 = scmp.eq.s32.totalorder %s76, 0
      %p799 = por %p797, %p798
      %p800 = scmp.le.s32.totalorder 1, %s70
      %p801 = scmp.lt.s32.totalorder %s70, 5
      %p802 = pnand %p800, %p801
      %p803 = pneg %p802
      // Predicated region
      $region9: #{tpu_custom_call.1} parent=5 // pred_check
        _
      $region10: #{tpu_custom_call.1} parent=5 // pred_check_branch
        %805 = sbr.rel (%p802) target = $region12
      $region11: #{tpu_custom_call.1} parent=5 // pred_region
        %s806 = ssub.s32 %s70, 1
        // Predicated region
        $region13: #{tpu_custom_call.1} parent=11 // pred_check
          %p807 = pneg %p103
        $region14: #{tpu_custom_call.1} parent=11 // pred_check_branch
          %809 = sbr.rel (%p807) target = $region16
        $region15: #{tpu_custom_call.1} parent=11 // pred_region
          %s811 = ssub.s32 384, 384
          %812 = vsyncadd [#allocation8], %s811
          %s813 = sshll.u32 [#allocation7], 4
          %s814 = int_to_ptr.vmem [resolvable:$true] %s813
          %819 = dma.hbm_to_vmem [thread:$0]  %s1, 384, %s814, [#allocation8], 128, 128, 8
        $region16: #{tpu_custom_call.1} parent=11 // pred_fallthru
          _
        // Predicated region
        $region17: #{tpu_custom_call.1} parent=11 // pred_check
          %p820 = pneg %p124
        $region18: #{tpu_custom_call.1} parent=11 // pred_check_branch
          %822 = sbr.rel (%p820) target = $region20
        $region19: #{tpu_custom_call.1} parent=11 // pred_region
          %s824 = ssub.s32 384, 384
          %825 = vsyncadd [#allocation11], %s824
          %s826 = sshll.u32 [#allocation10], 4
          %s827 = int_to_ptr.vmem [resolvable:$true] %s826
          %832 = dma.hbm_to_vmem [thread:$0]  %s3, 384, %s827, [#allocation11], 128, 128, 8
        $region20: #{tpu_custom_call.1} parent=11 // pred_fallthru
          _
        // Predicated region
        $region21: #{tpu_custom_call.1} parent=11 // pred_check
          %p833 = pneg %p197
        $region22: #{tpu_custom_call.1} parent=11 // pred_check_branch
          %835 = sbr.rel (%p833) target = $region24
        $region23: #{tpu_custom_call.1} parent=11 // pred_region
          _
        $region24: #{tpu_custom_call.1} parent=11 // pred_fallthru
          _
        // Predicated region
        $region25: #{tpu_custom_call.1} parent=11 // pred_check
          %p836 = pneg %p218
        $region26: #{tpu_custom_call.1} parent=11 // pred_check_branch
          %838 = sbr.rel (%p836) target = $region28
        $region27: #{tpu_custom_call.1} parent=11 // pred_region
          _
        $region28: #{tpu_custom_call.1} parent=11 // pred_fallthru
          _
        // Predicated region
        $region29: #{tpu_custom_call.1} parent=11 // pred_check
          %p839 = pneg %p239
        $region30: #{tpu_custom_call.1} parent=11 // pred_check_branch
          %841 = sbr.rel (%p839) target = $region32
        $region31: #{tpu_custom_call.1} parent=11 // pred_region
          _
        $region32: #{tpu_custom_call.1} parent=11 // pred_fallthru
          _
        // Predicated region
        $region33: #{tpu_custom_call.1} parent=11 // pred_check
          %p842 = pneg %p624
        $region34: #{tpu_custom_call.1} parent=11 // pred_check_branch
          %844 = sbr.rel (%p842) target = $region36
        $region35: #{tpu_custom_call.1} parent=11 // pred_region
          %s846 = ssub.s32 1024, 1024
          %847 = vsyncadd [#allocation11], %s846
          %s848 = sshll.u32 [#allocation21], 4
          %s849 = int_to_ptr.vmem [resolvable:$true] %s848
          %854 = dma.hbm_to_vmem [thread:$0]  %s43, 1024, %s849, [#allocation11], 64, 64, 4
        $region36: #{tpu_custom_call.1} parent=11 // pred_fallthru
          _
        // Predicated region
        $region37: #{tpu_custom_call.1} parent=11 // pred_check
          %p855 = pneg %p645
        $region38: #{tpu_custom_call.1} parent=11 // pred_check_branch
          %857 = sbr.rel (%p855) target = $region40
        $region39: #{tpu_custom_call.1} parent=11 // pred_region
          _
        $region40: #{tpu_custom_call.1} parent=11 // pred_fallthru
          _
        // Predicated region
        $region41: #{tpu_custom_call.1} parent=11 // pred_check
          %p858 = pneg %p666
        $region42: #{tpu_custom_call.1} parent=11 // pred_check_branch
          %860 = sbr.rel (%p858) target = $region44
        $region43: #{tpu_custom_call.1} parent=11 // pred_region
          %s862 = ssub.s32 1024, 1024
          %863 = vsyncadd [#allocation23], %s862
          %s864 = sshll.u32 [#allocation22], 4
          %s865 = int_to_ptr.vmem [resolvable:$true] %s864
          %870 = dma.hbm_to_vmem [thread:$0]  %s47, 1024, %s865, [#allocation23], 64, 64, 4
        $region44: #{tpu_custom_call.1} parent=11 // pred_fallthru
          _
        // Predicated region
        $region45: #{tpu_custom_call.1} parent=11 // pred_check
          %p871 = pneg %p687
        $region46: #{tpu_custom_call.1} parent=11 // pred_check_branch
          %873 = sbr.rel (%p871) target = $region48
        $region47: #{tpu_custom_call.1} parent=11 // pred_region
          _
        $region48: #{tpu_custom_call.1} parent=11 // pred_fallthru
          _
        // Predicated region
        $region49: #{tpu_custom_call.1} parent=11 // pred_check
          %p874 = pneg %p708
        $region50: #{tpu_custom_call.1} parent=11 // pred_check_branch
          %876 = sbr.rel (%p874) target = $region52
        $region51: #{tpu_custom_call.1} parent=11 // pred_region
          %s878 = ssub.s32 1024, 1024
          %879 = vsyncadd [#allocation23], %s878
          %s880 = sshll.u32 [#allocation24], 4
          %s881 = int_to_ptr.vmem [resolvable:$true] %s880
          %886 = dma.hbm_to_vmem [thread:$0]  %s51, 1024, %s881, [#allocation23], 64, 64, 4
        $region52: #{tpu_custom_call.1} parent=11 // pred_fallthru
          _
        // Predicated region
        $region53: #{tpu_custom_call.1} parent=11 // pred_check
          %p887 = pneg %p729
        $region54: #{tpu_custom_call.1} parent=11 // pred_check_branch
          %889 = sbr.rel (%p887) target = $region56
        $region55: #{tpu_custom_call.1} parent=11 // pred_region
          _
        $region56: #{tpu_custom_call.1} parent=11 // pred_fallthru
          _
        // Predicated region
        $region57: #{tpu_custom_call.1} parent=11 // pred_check
          %p890 = pneg %p750
        $region58: #{tpu_custom_call.1} parent=11 // pred_check_branch
          %892 = sbr.rel (%p890) target = $region60
        $region59: #{tpu_custom_call.1} parent=11 // pred_region
          %s894 = ssub.s32 1024, 1024
          %895 = vsyncadd [#allocation26], %s894
          %s896 = sshll.u32 [#allocation25], 4
          %s897 = int_to_ptr.vmem [resolvable:$true] %s896
          %902 = dma.hbm_to_vmem [thread:$0]  %s55, 1024, %s897, [#allocation26], 64, 64, 4
        $region60: #{tpu_custom_call.1} parent=11 // pred_fallthru
          _
        // Predicated region
        $region61: #{tpu_custom_call.1} parent=11 // pred_check
          %p903 = pneg %p771
        $region62: #{tpu_custom_call.1} parent=11 // pred_check_branch
          %905 = sbr.rel (%p903) target = $region64
        $region63: #{tpu_custom_call.1} parent=11 // pred_region
          _
        $region64: #{tpu_custom_call.1} parent=11 // pred_fallthru
          _
      $region12: #{tpu_custom_call.1} parent=5 // pred_fallthru
        _
      %p906 = scmp.lt.s32.totalorder %s70, 4
      // Predicated region
      $region65: #{tpu_custom_call.1} parent=5 // pred_check
        %p907 = pneg %p906
      $region66: #{tpu_custom_call.1} parent=5 // pred_check_branch
        %909 = sbr.rel (%p907) target = $region68
      $region67: #{tpu_custom_call.1} parent=5 // pred_region
        // Predicated region
        $region69: #{tpu_custom_call.1} parent=67 // pred_check
          %p910 = pneg %p144
        $region70: #{tpu_custom_call.1} parent=67 // pred_check_branch
          %912 = sbr.rel (%p910) target = $region72
        $region71: #{tpu_custom_call.1} parent=67 // pred_region
          %s913 = smul.u32 8, %s78
          %p914 = scmp.lt.s32.totalorder %s913, 15
          %s915 = scalar_select %p914, %s913, 15
          %s916 = smul.addr %s915, 8
          %s917 = scalar_lea.vmem %s5, %s916
          %s918 = smul.u32 8, %s78
        $region72: #{tpu_custom_call.1} parent=67 // pred_fallthru
          _
        // Predicated region
        $region73: #{tpu_custom_call.1} parent=67 // pred_check
          %p919 = pneg %p170
        $region74: #{tpu_custom_call.1} parent=67 // pred_check_branch
          %921 = sbr.rel (%p919) target = $region76
        $region75: #{tpu_custom_call.1} parent=67 // pred_region
          %s922 = smul.u32 8, %s78
          %p923 = scmp.lt.s32.totalorder %s922, 15
          %s924 = scalar_select %p923, %s922, 15
          %s925 = smul.addr %s924, 8
          %s926 = scalar_lea.vmem %s7, %s925
          %s927 = smul.u32 8, %s78
        $region76: #{tpu_custom_call.1} parent=67 // pred_fallthru
          _
        // Predicated region
        $region77: #{tpu_custom_call.1} parent=67 // pred_check
          %p928 = pneg %p259
        $region78: #{tpu_custom_call.1} parent=67 // pred_check_branch
          %930 = sbr.rel (%p928) target = $region80
        $region79: #{tpu_custom_call.1} parent=67 // pred_region
          %p931 = scmp.lt.s32.totalorder %s77, 1
          %s932 = scalar_select %p931, %s77, 1
          %s933 = smul.addr %s932, 32
          %s934 = smul.addr %s933, 4
          %s935 = scalar_lea.vmem %s15, %s934
        $region80: #{tpu_custom_call.1} parent=67 // pred_fallthru
          _
        // Predicated region
        $region81: #{tpu_custom_call.1} parent=67 // pred_check
          %p936 = pneg %p285
        $region82: #{tpu_custom_call.1} parent=67 // pred_check_branch
          %938 = sbr.rel (%p936) target = $region84
        $region83: #{tpu_custom_call.1} parent=67 // pred_region
          %p939 = scmp.lt.s32.totalorder %s77, 1
          %s940 = scalar_select %p939, %s77, 1
          %s941 = scalar_lea.vmem %s17, %s940
        $region84: #{tpu_custom_call.1} parent=67 // pred_fallthru
          _
        // Predicated region
        $region85: #{tpu_custom_call.1} parent=67 // pred_check
          %p942 = pneg %p311
        $region86: #{tpu_custom_call.1} parent=67 // pred_check_branch
          %944 = sbr.rel (%p942) target = $region88
        $region87: #{tpu_custom_call.1} parent=67 // pred_region
          %s945 = sand.u32 %s70, 1
          %s946 = scalar_lea.sflag [#allocation8], %s945
          %s947 = sand.u32 %s301, 1
          %s948 = scalar_lea.vmem [#allocation12], %s947
          %s950 = ssub.s32 16, 16
          %951 = vsyncadd %s946, %s950
          %s952 = smul.addr %s77, 16
          %s953 = scalar_lea.hbm %s19, %s952
          %s955 = sshll.u32 %s948, 4
          %s956 = int_to_ptr.vmem [resolvable:$true] %s955
          %958 = dma.hbm_to_vmem [thread:$0]  %s953, 16, %s956, %s946
        $region88: #{tpu_custom_call.1} parent=67 // pred_fallthru
          _
        // Predicated region
        $region89: #{tpu_custom_call.1} parent=67 // pred_check
          %p959 = pneg %p337
        $region90: #{tpu_custom_call.1} parent=67 // pred_check_branch
          %961 = sbr.rel (%p959) target = $region92
        $region91: #{tpu_custom_call.1} parent=67 // pred_region
          %s962 = sand.u32 %s70, 1
          %s963 = scalar_lea.sflag [#allocation8], %s962
          %s964 = sand.u32 %s327, 1
          %s965 = smul.addr %s964, 64
          %s966 = scalar_lea.vmem [#allocation13], %s965
          %s968 = ssub.s32 1024, 1024
          %969 = vsyncadd %s963, %s968
          %s970 = smul.addr %s77, 16
          %s971 = smul.addr %s970, 64
          %s972 = scalar_lea.hbm %s21, %s971
          %s973 = sshll.u32 %s966, 4
          %s974 = int_to_ptr.vmem [resolvable:$true] %s973
          %979 = dma.hbm_to_vmem [thread:$0]  %s972, 1024, %s974, %s963, 64, 64, 4
        $region92: #{tpu_custom_call.1} parent=67 // pred_fallthru
          _
        // Predicated region
        $region93: #{tpu_custom_call.1} parent=67 // pred_check
          %p980 = pneg %p363
        $region94: #{tpu_custom_call.1} parent=67 // pred_check_branch
          %982 = sbr.rel (%p980) target = $region96
        $region95: #{tpu_custom_call.1} parent=67 // pred_region
          %s983 = sand.u32 %s70, 1
          %s984 = scalar_lea.sflag [#allocation8], %s983
          %s985 = sand.u32 %s353, 1
          %s986 = scalar_lea.vmem [#allocation14], %s985
          %s988 = ssub.s32 16, 16
          %989 = vsyncadd %s984, %s988
          %s990 = smul.addr %s77, 16
          %s991 = scalar_lea.hbm %s23, %s990
          %s993 = sshll.u32 %s986, 4
          %s994 = int_to_ptr.vmem [resolvable:$true] %s993
          %996 = dma.hbm_to_vmem [thread:$0]  %s991, 16, %s994, %s984
        $region96: #{tpu_custom_call.1} parent=67 // pred_fallthru
          _
        // Predicated region
        $region97: #{tpu_custom_call.1} parent=67 // pred_check
          %p997 = pneg %p389
        $region98: #{tpu_custom_call.1} parent=67 // pred_check_branch
          %999 = sbr.rel (%p997) target = $region100
        $region99: #{tpu_custom_call.1} parent=67 // pred_region
          %s1000 = sand.u32 %s70, 1
          %s1001 = scalar_lea.sflag [#allocation8], %s1000
          %s1002 = sand.u32 %s379, 1
          %s1003 = scalar_lea.vmem [#allocation15], %s1002
          %s1005 = ssub.s32 16, 16
          %1006 = vsyncadd %s1001, %s1005
          %s1007 = smul.addr %s77, 16
          %s1008 = scalar_lea.hbm %s25, %s1007
          %s1010 = sshll.u32 %s1003, 4
          %s1011 = int_to_ptr.vmem [resolvable:$true] %s1010
          %1013 = dma.hbm_to_vmem [thread:$0]  %s1008, 16, %s1011, %s1001
        $region100: #{tpu_custom_call.1} parent=67 // pred_fallthru
          _
        // Predicated region
        $region101: #{tpu_custom_call.1} parent=67 // pred_check
          %p1014 = pneg %p415
        $region102: #{tpu_custom_call.1} parent=67 // pred_check_branch
          %1016 = sbr.rel (%p1014) target = $region104
        $region103: #{tpu_custom_call.1} parent=67 // pred_region
          %s1017 = sand.u32 %s70, 1
          %s1018 = scalar_lea.sflag [#allocation8], %s1017
          %s1019 = sand.u32 %s405, 1
          %s1020 = scalar_lea.vmem [#allocation16], %s1019
          %s1022 = ssub.s32 16, 16
          %1023 = vsyncadd %s1018, %s1022
          %s1024 = smul.addr %s77, 16
          %s1025 = scalar_lea.hbm %s27, %s1024
          %s1027 = sshll.u32 %s1020, 4
          %s1028 = int_to_ptr.vmem [resolvable:$true] %s1027
          %1030 = dma.hbm_to_vmem [thread:$0]  %s1025, 16, %s1028, %s1018
        $region104: #{tpu_custom_call.1} parent=67 // pred_fallthru
          _
        // Predicated region
        $region105: #{tpu_custom_call.1} parent=67 // pred_check
          %p1031 = pneg %p441
        $region106: #{tpu_custom_call.1} parent=67 // pred_check_branch
          %1033 = sbr.rel (%p1031) target = $region108
        $region107: #{tpu_custom_call.1} parent=67 // pred_region
          %s1034 = sand.u32 %s70, 1
          %s1035 = scalar_lea.sflag [#allocation8], %s1034
          %s1036 = sand.u32 %s431, 1
          %s1037 = smul.addr %s1036, 64
          %s1038 = scalar_lea.vmem [#allocation17], %s1037
          %s1040 = ssub.s32 1024, 1024
          %1041 = vsyncadd %s1035, %s1040
          %s1042 = smul.addr %s77, 16
          %s1043 = smul.addr %s1042, 64
          %s1044 = scalar_lea.hbm %s29, %s1043
          %s1045 = sshll.u32 %s1038, 4
          %s1046 = int_to_ptr.vmem [resolvable:$true] %s1045
          %1051 = dma.hbm_to_vmem [thread:$0]  %s1044, 1024, %s1046, %s1035, 64, 64, 4
        $region108: #{tpu_custom_call.1} parent=67 // pred_fallthru
          _
        // Predicated region
        $region109: #{tpu_custom_call.1} parent=67 // pred_check
          %p1052 = pneg %p467
        $region110: #{tpu_custom_call.1} parent=67 // pred_check_branch
          %1054 = sbr.rel (%p1052) target = $region112
        $region111: #{tpu_custom_call.1} parent=67 // pred_region
          %s1055 = sand.u32 %s70, 1
          %s1056 = scalar_lea.sflag [#allocation8], %s1055
          %s1057 = sand.u32 %s457, 1
          %s1058 = scalar_lea.vmem [#allocation18], %s1057
          %s1060 = ssub.s32 16, 16
          %1061 = vsyncadd %s1056, %s1060
          %s1062 = smul.addr %s77, 16
          %s1063 = scalar_lea.hbm %s31, %s1062
          %s1065 = sshll.u32 %s1058, 4
          %s1066 = int_to_ptr.vmem [resolvable:$true] %s1065
          %1068 = dma.hbm_to_vmem [thread:$0]  %s1063, 16, %s1066, %s1056
        $region112: #{tpu_custom_call.1} parent=67 // pred_fallthru
          _
        // Predicated region
        $region113: #{tpu_custom_call.1} parent=67 // pred_check
          %p1069 = pneg %p493
        $region114: #{tpu_custom_call.1} parent=67 // pred_check_branch
          %1071 = sbr.rel (%p1069) target = $region116
        $region115: #{tpu_custom_call.1} parent=67 // pred_region
          %s1072 = sand.u32 %s70, 1
          %s1073 = scalar_lea.sflag [#allocation8], %s1072
          %s1074 = sand.u32 %s483, 1
          %s1075 = scalar_lea.vmem [#allocation19], %s1074
          %s1077 = ssub.s32 16, 16
          %1078 = vsyncadd %s1073, %s1077
          %s1079 = smul.addr %s77, 16
          %s1080 = scalar_lea.hbm %s33, %s1079
          %s1082 = sshll.u32 %s1075, 4
          %s1083 = int_to_ptr.vmem [resolvable:$true] %s1082
          %1085 = dma.hbm_to_vmem [thread:$0]  %s1080, 16, %s1083, %s1073
        $region116: #{tpu_custom_call.1} parent=67 // pred_fallthru
          _
        // Predicated region
        $region117: #{tpu_custom_call.1} parent=67 // pred_check
          %p1086 = pneg %p519
        $region118: #{tpu_custom_call.1} parent=67 // pred_check_branch
          %1088 = sbr.rel (%p1086) target = $region120
        $region119: #{tpu_custom_call.1} parent=67 // pred_region
          %s1089 = sand.u32 %s70, 1
          %s1090 = scalar_lea.sflag [#allocation8], %s1089
          %s1091 = sand.u32 %s509, 1
          %s1092 = smul.addr %s1091, 128
          %s1093 = scalar_lea.vmem [#allocation20], %s1092
          %s1095 = ssub.s32 2048, 2048
          %1096 = vsyncadd %s1090, %s1095
          %s1097 = smul.addr %s77, 32
          %s1098 = smul.addr %s1097, 64
          %s1099 = scalar_lea.hbm %s35, %s1098
          %s1100 = sshll.u32 %s1093, 4
          %s1101 = int_to_ptr.vmem [resolvable:$true] %s1100
          %1106 = dma.hbm_to_vmem [thread:$0]  %s1099, 2048, %s1101, %s1090, 64, 64, 4
        $region120: #{tpu_custom_call.1} parent=67 // pred_fallthru
          _
        // Predicated region
        $region121: #{tpu_custom_call.1} parent=67 // pred_check
          %p1107 = pneg %p545
        $region122: #{tpu_custom_call.1} parent=67 // pred_check_branch
          %1109 = sbr.rel (%p1107) target = $region124
        $region123: #{tpu_custom_call.1} parent=67 // pred_region
          %p1110 = scmp.lt.s32.totalorder %s77, 1
          %s1111 = scalar_select %p1110, %s77, 1
          %s1112 = scalar_lea.vmem %s37, %s1111
        $region124: #{tpu_custom_call.1} parent=67 // pred_fallthru
          _
        // Predicated region
        $region125: #{tpu_custom_call.1} parent=67 // pred_check
          %p1113 = pneg %p571
        $region126: #{tpu_custom_call.1} parent=67 // pred_check_branch
          %1115 = sbr.rel (%p1113) target = $region128
        $region127: #{tpu_custom_call.1} parent=67 // pred_region
          %p1116 = scmp.lt.s32.totalorder %s77, 1
          %s1117 = scalar_select %p1116, %s77, 1
          %s1118 = smul.addr %s1117, 16
          %s1119 = smul.addr %s1118, 4
          %s1120 = scalar_lea.vmem %s39, %s1119
        $region128: #{tpu_custom_call.1} parent=67 // pred_fallthru
          _
        // Predicated region
        $region129: #{tpu_custom_call.1} parent=67 // pred_check
          %p1121 = pneg %p597
        $region130: #{tpu_custom_call.1} parent=67 // pred_check_branch
          %1123 = sbr.rel (%p1121) target = $region132
        $region131: #{tpu_custom_call.1} parent=67 // pred_region
          %p1124 = scmp.lt.s32.totalorder %s77, 1
          %s1125 = scalar_select %p1124, %s77, 1
          %s1126 = scalar_lea.vmem %s41, %s1125
        $region132: #{tpu_custom_call.1} parent=67 // pred_fallthru
          _
      $region68: #{tpu_custom_call.1} parent=5 // pred_fallthru
        _
      %p1127 = scmp.le.s32.totalorder 1, %s70
      %p1128 = scmp.lt.s32.totalorder %s70, 5
      %p1129 = pnand %p1127, %p1128
      %p1130 = pneg %p1129
      // Predicated region
      $region133: #{tpu_custom_call.1} parent=5 // pred_check
        _
      $region134: #{tpu_custom_call.1} parent=5 // pred_check_branch
        %1132 = sbr.rel (%p1129) target = $region136
      $region135: #{tpu_custom_call.1} parent=5 // pred_region
        %s1133 = ssub.s32 %s70, 1
        // Predicated region
        $region137: #{tpu_custom_call.1} parent=135 // pred_check
          %p1134 = pneg %p103
        $region138: #{tpu_custom_call.1} parent=135 // pred_check_branch
          %1136 = sbr.rel (%p1134) target = $region140
        $region139: #{tpu_custom_call.1} parent=135 // pred_region
          %1137 = dma.done [#allocation8], 384
        $region140: #{tpu_custom_call.1} parent=135 // pred_fallthru
          _
        // Predicated region
        $region141: #{tpu_custom_call.1} parent=135 // pred_check
          %p1138 = pneg %p124
        $region142: #{tpu_custom_call.1} parent=135 // pred_check_branch
          %1140 = sbr.rel (%p1138) target = $region144
        $region143: #{tpu_custom_call.1} parent=135 // pred_region
          %1141 = dma.done [#allocation11], 384
        $region144: #{tpu_custom_call.1} parent=135 // pred_fallthru
          _
        %s1142 = sand.u32 %s75, 1
        %s1143 = scalar_lea.sflag [#allocation8], %s1142
        %s1144 = sand.u32 %s304, 1
        %s1145 = scalar_lea.vmem [#allocation12], %s1144
        // Predicated region
        $region145: #{tpu_custom_call.1} parent=135 // pred_check
          %p1146 = pneg %p317
        $region146: #{tpu_custom_call.1} parent=135 // pred_check_branch
          %1148 = sbr.rel (%p1146) target = $region148
        $region147: #{tpu_custom_call.1} parent=135 // pred_region
          %1149 = dma.done %s1143, 16
        $region148: #{tpu_custom_call.1} parent=135 // pred_fallthru
          _
        %s1150 = sand.u32 %s75, 1
        %s1151 = scalar_lea.sflag [#allocation8], %s1150
        %s1152 = sand.u32 %s330, 1
        %s1153 = smul.addr %s1152, 64
        %s1154 = scalar_lea.vmem [#allocation13], %s1153
        // Predicated region
        $region149: #{tpu_custom_call.1} parent=135 // pred_check
          %p1155 = pneg %p343
        $region150: #{tpu_custom_call.1} parent=135 // pred_check_branch
          %1157 = sbr.rel (%p1155) target = $region152
        $region151: #{tpu_custom_call.1} parent=135 // pred_region
          %1158 = dma.done %s1151, 1024
        $region152: #{tpu_custom_call.1} parent=135 // pred_fallthru
          _
        %s1159 = sand.u32 %s75, 1
        %s1160 = scalar_lea.sflag [#allocation8], %s1159
        %s1161 = sand.u32 %s356, 1
        %s1162 = scalar_lea.vmem [#allocation14], %s1161
        // Predicated region
        $region153: #{tpu_custom_call.1} parent=135 // pred_check
          %p1163 = pneg %p369
        $region154: #{tpu_custom_call.1} parent=135 // pred_check_branch
          %1165 = sbr.rel (%p1163) target = $region156
        $region155: #{tpu_custom_call.1} parent=135 // pred_region
          %1166 = dma.done %s1160, 16
        $region156: #{tpu_custom_call.1} parent=135 // pred_fallthru
          _
        %s1167 = sand.u32 %s75, 1
        %s1168 = scalar_lea.sflag [#allocation8], %s1167
        %s1169 = sand.u32 %s382, 1
        %s1170 = scalar_lea.vmem [#allocation15], %s1169
        // Predicated region
        $region157: #{tpu_custom_call.1} parent=135 // pred_check
          %p1171 = pneg %p395
        $region158: #{tpu_custom_call.1} parent=135 // pred_check_branch
          %1173 = sbr.rel (%p1171) target = $region160
        $region159: #{tpu_custom_call.1} parent=135 // pred_region
          %1174 = dma.done %s1168, 16
        $region160: #{tpu_custom_call.1} parent=135 // pred_fallthru
          _
        %s1175 = sand.u32 %s75, 1
        %s1176 = scalar_lea.sflag [#allocation8], %s1175
        %s1177 = sand.u32 %s408, 1
        %s1178 = scalar_lea.vmem [#allocation16], %s1177
        // Predicated region
        $region161: #{tpu_custom_call.1} parent=135 // pred_check
          %p1179 = pneg %p421
        $region162: #{tpu_custom_call.1} parent=135 // pred_check_branch
          %1181 = sbr.rel (%p1179) target = $region164
        $region163: #{tpu_custom_call.1} parent=135 // pred_region
          %1182 = dma.done %s1176, 16
        $region164: #{tpu_custom_call.1} parent=135 // pred_fallthru
          _
        %s1183 = sand.u32 %s75, 1
        %s1184 = scalar_lea.sflag [#allocation8], %s1183
        %s1185 = sand.u32 %s434, 1
        %s1186 = smul.addr %s1185, 64
        %s1187 = scalar_lea.vmem [#allocation17], %s1186
        // Predicated region
        $region165: #{tpu_custom_call.1} parent=135 // pred_check
          %p1188 = pneg %p447
        $region166: #{tpu_custom_call.1} parent=135 // pred_check_branch
          %1190 = sbr.rel (%p1188) target = $region168
        $region167: #{tpu_custom_call.1} parent=135 // pred_region
          %1191 = dma.done %s1184, 1024
        $region168: #{tpu_custom_call.1} parent=135 // pred_fallthru
          _
        %s1192 = sand.u32 %s75, 1
        %s1193 = scalar_lea.sflag [#allocation8], %s1192
        %s1194 = sand.u32 %s460, 1
        %s1195 = scalar_lea.vmem [#allocation18], %s1194
        // Predicated region
        $region169: #{tpu_custom_call.1} parent=135 // pred_check
          %p1196 = pneg %p473
        $region170: #{tpu_custom_call.1} parent=135 // pred_check_branch
          %1198 = sbr.rel (%p1196) target = $region172
        $region171: #{tpu_custom_call.1} parent=135 // pred_region
          %1199 = dma.done %s1193, 16
        $region172: #{tpu_custom_call.1} parent=135 // pred_fallthru
          _
        %s1200 = sand.u32 %s75, 1
        %s1201 = scalar_lea.sflag [#allocation8], %s1200
        %s1202 = sand.u32 %s486, 1
        %s1203 = scalar_lea.vmem [#allocation19], %s1202
        // Predicated region
        $region173: #{tpu_custom_call.1} parent=135 // pred_check
          %p1204 = pneg %p499
        $region174: #{tpu_custom_call.1} parent=135 // pred_check_branch
          %1206 = sbr.rel (%p1204) target = $region176
        $region175: #{tpu_custom_call.1} parent=135 // pred_region
          %1207 = dma.done %s1201, 16
        $region176: #{tpu_custom_call.1} parent=135 // pred_fallthru
          _
        %s1208 = sand.u32 %s75, 1
        %s1209 = scalar_lea.sflag [#allocation8], %s1208
        %s1210 = sand.u32 %s512, 1
        %s1211 = smul.addr %s1210, 128
        %s1212 = scalar_lea.vmem [#allocation20], %s1211
        // Predicated region
        $region177: #{tpu_custom_call.1} parent=135 // pred_check
          %p1213 = pneg %p525
        $region178: #{tpu_custom_call.1} parent=135 // pred_check_branch
          %1215 = sbr.rel (%p1213) target = $region180
        $region179: #{tpu_custom_call.1} parent=135 // pred_region
          %1216 = dma.done %s1209, 2048
        $region180: #{tpu_custom_call.1} parent=135 // pred_fallthru
          _
        // Predicated region
        $region181: #{tpu_custom_call.1} parent=135 // pred_check
          %p1217 = pneg %p624
        $region182: #{tpu_custom_call.1} parent=135 // pred_check_branch
          %1219 = sbr.rel (%p1217) target = $region184
        $region183: #{tpu_custom_call.1} parent=135 // pred_region
          %1220 = dma.done [#allocation11], 1024
        $region184: #{tpu_custom_call.1} parent=135 // pred_fallthru
          _
        // Predicated region
        $region185: #{tpu_custom_call.1} parent=135 // pred_check
          %p1221 = pneg %p666
        $region186: #{tpu_custom_call.1} parent=135 // pred_check_branch
          %1223 = sbr.rel (%p1221) target = $region188
        $region187: #{tpu_custom_call.1} parent=135 // pred_region
          %1224 = dma.done [#allocation23], 1024
        $region188: #{tpu_custom_call.1} parent=135 // pred_fallthru
          _
        // Predicated region
        $region189: #{tpu_custom_call.1} parent=135 // pred_check
          %p1225 = pneg %p708
        $region190: #{tpu_custom_call.1} parent=135 // pred_check_branch
          %1227 = sbr.rel (%p1225) target = $region192
        $region191: #{tpu_custom_call.1} parent=135 // pred_region
          %1228 = dma.done [#allocation23], 1024
        $region192: #{tpu_custom_call.1} parent=135 // pred_fallthru
          _
        // Predicated region
        $region193: #{tpu_custom_call.1} parent=135 // pred_check
          %p1229 = pneg %p750
        $region194: #{tpu_custom_call.1} parent=135 // pred_check_branch
          %1231 = sbr.rel (%p1229) target = $region196
        $region195: #{tpu_custom_call.1} parent=135 // pred_region
          %1232 = dma.done [#allocation26], 1024
        $region196: #{tpu_custom_call.1} parent=135 // pred_fallthru
          _
        %p1233 = pneg %p103
        %p1234 = pneg %p100
        %p1235 = pneg %p124
        %p1236 = pneg %p121
        %s1237 = smul.u32 8, %s80
        %p1238 = scmp.lt.s32.totalorder %s1237, 15
        %s1239 = scalar_select %p1238, %s1237, 15
        %s1240 = smul.addr %s1239, 8
        %s1241 = scalar_lea.vmem %s5, %s1240
        %p1242 = pneg %p150
        %p1243 = pneg %p147
        %s1244 = smul.u32 8, %s80
        %p1245 = scmp.lt.s32.totalorder %s1244, 15
        %s1246 = scalar_select %p1245, %s1244, 15
        %s1247 = smul.addr %s1246, 8
        %s1248 = scalar_lea.vmem %s7, %s1247
        %p1249 = pneg %p176
        %p1250 = pneg %p173
        %p1251 = pneg %p197
        %p1252 = pneg %p194
        %p1253 = pneg %p218
        %p1254 = pneg %p215
        %p1255 = pneg %p239
        %p1256 = pneg %p236
        %p1257 = scmp.lt.s32.totalorder %s79, 1
        %s1258 = scalar_select %p1257, %s79, 1
        %s1259 = smul.addr %s1258, 32
        %s1260 = smul.addr %s1259, 4
        %s1261 = scalar_lea.vmem %s15, %s1260
        %p1262 = pneg %p265
        %p1263 = pneg %p262
        %p1264 = scmp.lt.s32.totalorder %s79, 1
        %s1265 = scalar_select %p1264, %s79, 1
        %s1266 = scalar_lea.vmem %s17, %s1265
        %p1267 = pneg %p291
        %p1268 = pneg %p288
        %s1269 = sand.u32 %s75, 1
        %s1270 = scalar_lea.sflag [#allocation8], %s1269
        %s1271 = sand.u32 %s304, 1
        %s1272 = scalar_lea.vmem [#allocation12], %s1271
        %p1273 = pneg %p317
        %p1274 = pneg %p314
        %s1275 = sand.u32 %s75, 1
        %s1276 = scalar_lea.sflag [#allocation8], %s1275
        %s1277 = sand.u32 %s330, 1
        %s1278 = smul.addr %s1277, 64
        %s1279 = scalar_lea.vmem [#allocation13], %s1278
        %p1280 = pneg %p343
        %p1281 = pneg %p340
        %s1282 = sand.u32 %s75, 1
        %s1283 = scalar_lea.sflag [#allocation8], %s1282
        %s1284 = sand.u32 %s356, 1
        %s1285 = scalar_lea.vmem [#allocation14], %s1284
        %p1286 = pneg %p369
        %p1287 = pneg %p366
        %s1288 = sand.u32 %s75, 1
        %s1289 = scalar_lea.sflag [#allocation8], %s1288
        %s1290 = sand.u32 %s382, 1
        %s1291 = scalar_lea.vmem [#allocation15], %s1290
        %p1292 = pneg %p395
        %p1293 = pneg %p392
        %s1294 = sand.u32 %s75, 1
        %s1295 = scalar_lea.sflag [#allocation8], %s1294
        %s1296 = sand.u32 %s408, 1
        %s1297 = scalar_lea.vmem [#allocation16], %s1296
        %p1298 = pneg %p421
        %p1299 = pneg %p418
        %s1300 = sand.u32 %s75, 1
        %s1301 = scalar_lea.sflag [#allocation8], %s1300
        %s1302 = sand.u32 %s434, 1
        %s1303 = smul.addr %s1302, 64
        %s1304 = scalar_lea.vmem [#allocation17], %s1303
        %p1305 = pneg %p447
        %p1306 = pneg %p444
        %s1307 = sand.u32 %s75, 1
        %s1308 = scalar_lea.sflag [#allocation8], %s1307
        %s1309 = sand.u32 %s460, 1
        %s1310 = scalar_lea.vmem [#allocation18], %s1309
        %p1311 = pneg %p473
        %p1312 = pneg %p470
        %s1313 = sand.u32 %s75, 1
        %s1314 = scalar_lea.sflag [#allocation8], %s1313
        %s1315 = sand.u32 %s486, 1
        %s1316 = scalar_lea.vmem [#allocation19], %s1315
        %p1317 = pneg %p499
        %p1318 = pneg %p496
        %s1319 = sand.u32 %s75, 1
        %s1320 = scalar_lea.sflag [#allocation8], %s1319
        %s1321 = sand.u32 %s512, 1
        %s1322 = smul.addr %s1321, 128
        %s1323 = scalar_lea.vmem [#allocation20], %s1322
        %p1324 = pneg %p525
        %p1325 = pneg %p522
        %p1326 = scmp.lt.s32.totalorder %s79, 1
        %s1327 = scalar_select %p1326, %s79, 1
        %s1328 = scalar_lea.vmem %s37, %s1327
        %p1329 = pneg %p551
        %p1330 = pneg %p548
        %p1331 = scmp.lt.s32.totalorder %s79, 1
        %s1332 = scalar_select %p1331, %s79, 1
        %s1333 = smul.addr %s1332, 16
        %s1334 = smul.addr %s1333, 4
        %s1335 = scalar_lea.vmem %s39, %s1334
        %p1336 = pneg %p577
        %p1337 = pneg %p574
        %p1338 = scmp.lt.s32.totalorder %s79, 1
        %s1339 = scalar_select %p1338, %s79, 1
        %s1340 = scalar_lea.vmem %s41, %s1339
        %p1341 = pneg %p603
        %p1342 = pneg %p600
        %p1343 = pneg %p624
        %p1344 = pneg %p621
        %p1345 = pneg %p645
        %p1346 = pneg %p642
        %p1347 = pneg %p666
        %p1348 = pneg %p663
        %p1349 = pneg %p687
        %p1350 = pneg %p684
        %p1351 = pneg %p708
        %p1352 = pneg %p705
        %p1353 = pneg %p729
        %p1354 = pneg %p726
        %p1355 = pneg %p750
        %p1356 = pneg %p747
        %p1357 = pneg %p771
        %p1358 = pneg %p768
        %p1359 = pneg %p792
        %p1360 = pneg %p789
        %s1361 = smul.u32 8, %s80
        %p1362 = scmp.lt.s32.totalorder %s1361, 15
        %s1363 = scalar_select %p1362, %s1361, 15
        %s1364 = smul.addr %s1363, 8
        %s1365 = scalar_lea.vmem %s5, %s1364
        %s1366 = smul.u32 8, %s80
        %s1367 = smul.u32 8, %s80
        %p1368 = scmp.lt.s32.totalorder %s1367, 15
        %s1369 = scalar_select %p1368, %s1367, 15
        %s1370 = smul.addr %s1369, 8
        %s1371 = scalar_lea.vmem %s7, %s1370
        %s1372 = smul.u32 8, %s80
        %p1373 = scmp.lt.s32.totalorder %s79, 1
        %s1374 = scalar_select %p1373, %s79, 1
        %s1375 = smul.addr %s1374, 32
        %s1376 = smul.addr %s1375, 4
        %s1377 = scalar_lea.vmem %s15, %s1376
        %p1378 = scmp.lt.s32.totalorder %s79, 1
        %s1379 = scalar_select %p1378, %s79, 1
        %s1380 = scalar_lea.vmem %s17, %s1379
        %p1381 = scmp.lt.s32.totalorder %s79, 1
        %s1382 = scalar_select %p1381, %s79, 1
        %s1383 = scalar_lea.vmem %s37, %s1382
        %p1384 = scmp.lt.s32.totalorder %s79, 1
        %s1385 = scalar_select %p1384, %s79, 1
        %s1386 = smul.addr %s1385, 16
        %s1387 = smul.addr %s1386, 4
        %s1388 = scalar_lea.vmem %s39, %s1387
        %p1389 = scmp.lt.s32.totalorder %s79, 1
        %s1390 = scalar_select %p1389, %s79, 1
        %s1391 = scalar_lea.vmem %s41, %s1390
        %p1393 = scmp.eq.s32.totalorder %s79, 0
        %p1394 = scmp.eq.s32.totalorder %s80, 0
        %p1395 = pnand %p1393, %p1394
        %p1396 = pneg %p1395
        // Predicated region
        $region197: #{tpu_custom_call.1} parent=135 // pred_check
          _
        $region198: #{tpu_custom_call.1} parent=135 // pred_check_branch
          %1398 = sbr.rel (%p1395) target = $region200
        $region199: #{tpu_custom_call.1} parent=135 // pred_region
          %v1399 = vld [vmem:[#allocation7] sm:$0xff]
          %v1400 = vld [vmem:[#allocation7 + $0x8] sm:$0xff]
          %v1401 = vld [vmem:[#allocation7 + $0x10] sm:$0xff]
          %v1402 = vld [vmem:[#allocation21] sm:$0xf]
          %v1403 = vld [vmem:[#allocation21 + $0x4] sm:$0xf]
          %v1404 = vld [vmem:[#allocation21 + $0x8] sm:$0xf]
          %v1405 = vld [vmem:[#allocation21 + $0xc] sm:$0xf]
          %v1406 = vld [vmem:[#allocation21 + $0x10] sm:$0xf]
          %v1407 = vld [vmem:[#allocation21 + $0x14] sm:$0xf]
          %v1408 = vld [vmem:[#allocation21 + $0x18] sm:$0xf]
          %v1409 = vld [vmem:[#allocation21 + $0x1c] sm:$0xf]
          %v1410 = vld [vmem:[#allocation21 + $0x20] sm:$0xf]
          %v1411 = vld [vmem:[#allocation21 + $0x24] sm:$0xf]
          %v1412 = vld [vmem:[#allocation21 + $0x28] sm:$0xf]
          %v1413 = vld [vmem:[#allocation21 + $0x2c] sm:$0xf]
          %v1414 = vld [vmem:[#allocation21 + $0x30] sm:$0xf]
          %v1415 = vld [vmem:[#allocation21 + $0x34] sm:$0xf]
          %v1416 = vld [vmem:[#allocation21 + $0x38] sm:$0xf]
          %v1417 = vld [vmem:[#allocation21 + $0x3c] sm:$0xf]
          %v1418 = vpack.c.bf16 %v1400, %v1399
          %v1419 = vpack.c.bf16 %v1401, %v1401
          %v1420 = vld [vmem:[%s45] sm:$0x1]
          %v1422 = vlaneseq
          %v1423 = vshrl.u32 %v1422, 7
          %v1424 = vsub.s32 0, %v1423
          %v1425 = vrot.slane %v1420, %v1424
          %v1443 = vunpack.c.l.b16 %v1402
          %v1444 = vunpack.c.l.b16 %v1403
          %v1445 = vunpack.c.l.b16 %v1404
          %v1446 = vunpack.c.l.b16 %v1405
          %v1447 = vunpack.c.l.b16 %v1406
          %v1448 = vunpack.c.l.b16 %v1407
          %v1449 = vunpack.c.l.b16 %v1408
          %v1450 = vunpack.c.l.b16 %v1409
          %v1451 = vunpack.c.l.b16 %v1410
          %v1452 = vunpack.c.l.b16 %v1411
          %v1453 = vunpack.c.l.b16 %v1412
          %v1454 = vunpack.c.l.b16 %v1413
          %v1455 = vunpack.c.l.b16 %v1414
          %v1456 = vunpack.c.l.b16 %v1415
          %v1457 = vunpack.c.l.b16 %v1416
          %v1458 = vunpack.c.l.b16 %v1417
          %v1459 = vpack.c.b16 %v1444, %v1443
          %v1460 = vpack.c.b16 %v1446, %v1445
          %v1461 = vpack.c.b16 %v1448, %v1447
          %v1462 = vpack.c.b16 %v1450, %v1449
          %v1463 = vpack.c.b16 %v1452, %v1451
          %v1464 = vpack.c.b16 %v1454, %v1453
          %v1465 = vpack.c.b16 %v1456, %v1455
          %v1466 = vpack.c.b16 %v1458, %v1457
          %1475 = vmatprep.subr.bf16.mxu0 0
          %1476 = vmatpush1.bf16.msra.mxu0 %v1459
          %1477 = vmatprep.subr.bf16.mxu0 0
          %1478 = vmatpush1.bf16.msra.mxu0 %v1460
          %1479 = vmatprep.subr.bf16.mxu0 0
          %1480 = vmatpush1.bf16.msra.mxu0 %v1461
          %1481 = vmatprep.subr.bf16.mxu0 0
          %1482 = vmatpush1.bf16.msra.mxu0 %v1462
          %1483 = vmatprep.subr.bf16.mxu0 0
          %1484 = vmatpush1.bf16.msra.mxu0 %v1463
          %1485 = vmatprep.subr.bf16.mxu0 0
          %1486 = vmatpush1.bf16.msra.mxu0 %v1464
          %1487 = vmatprep.subr.bf16.mxu0 0
          %1488 = vmatpush1.bf16.msra.mxu0 %v1465
          %1489 = vmatprep.subr.bf16.mxu0 0
          %1490 = vmatpush1.bf16.msra.mxu0 %v1466
          %1491 = vmatprep.subr.bf16.mxu0 0
          %1492 = vmatpush1.bf16.msra.mxu0 0
          %1493 = vmatprep.subr.bf16.mxu0 0
          %1494 = vmatpush1.bf16.msra.mxu0 0
          %1495 = vmatprep.subr.bf16.mxu0 0
          %1496 = vmatpush1.bf16.msra.mxu0 0
          %1497 = vmatprep.subr.bf16.mxu0 0
          %1498 = vmatpush1.bf16.msra.mxu0 0
          %1499 = vmatprep.subr.bf16.mxu0 0
          %1500 = vmatpush1.bf16.msra.mxu0 0
          %1501 = vmatprep.subr.bf16.mxu0 0
          %1502 = vmatpush1.bf16.msra.mxu0 0
          %1503 = vmatprep.subr.bf16.mxu0 0
          %1504 = vmatpush1.bf16.msra.mxu0 0
          %1505 = vmatprep.subr.bf16.mxu0 0
          %1506 = vmatpush1.bf16.msra.mxu0 0
          %1507 = vmatprep.mubr.bf16.mxu0 0
          %1508 = vmatmul.mubr.bf16.gmra.mrb[0].mxu0 %v1418
          %v1509 = vpop.f32.mrb[0].mxu0
          %v1510 = vadd.f32 %v1425, %v1509
          %v1511 = vpop.f32.mrb[0].mxu0
          %v1512 = vpop.f32.mrb[0].mxu0
          %v1513 = vadd.f32 %v1425, %v1512
          %v1514 = vpop.f32.mrb[0].mxu0
          %1515 = vmatprep.mubr.bf16.mxu0 0
          %1516 = vmatmul.mubr.bf16.gmra.mrb[0].mxu0 %v1419
          %v1517 = vpop.f32.mrb[0].mxu0
          %v1518 = vadd.f32 %v1425, %v1517
          %v1519 = vpop.f32.mrb[0].mxu0
          %v1520 = vpop.f32.mrb[0].mxu0
          %v1521 = vpop.f32.mrb[0].mxu0
          %1522 = vdwg.mxu0
          %1523 = vst [vmem:[#allocation2] sm:$0xff] %v1510
          %1524 = vst [vmem:[#allocation2 + $0x8] sm:$0xff] %v1513
          %1525 = vst [vmem:[#allocation2 + $0x10] sm:$0xff] %v1518
          %v1526 = vpack.c.bf16 %v1513, %v1510
          %v1527 = vpack.c.bf16 %v1518, %v1518
          %v1530 = vunpack.c.l.b16 %v1526
          %v1531 = vunpack.c.h.b16 %v1526
          %v1532 = vunpack.c.l.b16 %v1527
          %v1533 = vpack.c.b16 %v1530, %v1530
          %v1534 = vpack.c.b16 %v1531, %v1531
          %v1535 = vpack.c.b16 %v1532, %v1532
          %1539 = vst [vmem:[#allocation3] sm:$0xf] %v1533
          %1540 = vst [vmem:[#allocation3 + $0x4] sm:$0xf] %v1534
          %1541 = vst [vmem:[#allocation3 + $0x8] sm:$0xf] %v1535
          %v1542 = vld [vmem:[#allocation10] sm:$0xff]
          %v1543 = vld [vmem:[#allocation10 + $0x8] sm:$0xff]
          %v1544 = vld [vmem:[#allocation10 + $0x10] sm:$0xff]
          %1545 = vst [vmem:[#allocation4] sm:$0xff] %v1542
          %1546 = vst [vmem:[#allocation4 + $0x8] sm:$0xff] %v1543
          %1547 = vst [vmem:[#allocation4 + $0x10] sm:$0xff] %v1544
        $region200: #{tpu_custom_call.1} parent=135 // pred_fallthru
          _
        %v1548 = vld [vmem:[%s1365] sm:$0xff]
        %v1549 = vld [vmem:[%s1365 + $0x8] sm:$0xff]
        %v1550 = vld [vmem:[%s1365 + $0x10] sm:$0xff]
        %v1551 = vld [vmem:[%s1365 + $0x18] sm:$0xff]
        %v1552 = vld [vmem:[%s1365 + $0x20] sm:$0xff]
        %v1553 = vld [vmem:[%s1365 + $0x28] sm:$0xff]
        %v1554 = vld [vmem:[%s1365 + $0x30] sm:$0xff]
        %v1555 = vld [vmem:[%s1365 + $0x38] sm:$0xff]
        %v1556 = vunpack.c.0.s8 %v1548
        %v1557 = vunpack.c.1.s8 %v1548
        %v1558 = vunpack.c.2.s8 %v1548
        %v1559 = vunpack.c.3.s8 %v1548
        %v1560 = vunpack.c.0.s8 %v1549
        %v1561 = vunpack.c.1.s8 %v1549
        %v1562 = vunpack.c.2.s8 %v1549
        %v1563 = vunpack.c.3.s8 %v1549
        %v1564 = vunpack.c.0.s8 %v1550
        %v1565 = vunpack.c.1.s8 %v1550
        %v1566 = vunpack.c.2.s8 %v1550
        %v1567 = vunpack.c.3.s8 %v1550
        %v1568 = vunpack.c.0.s8 %v1551
        %v1569 = vunpack.c.1.s8 %v1551
        %v1570 = vunpack.c.2.s8 %v1551
        %v1571 = vunpack.c.3.s8 %v1551
        %v1572 = vunpack.c.0.s8 %v1552
        %v1573 = vunpack.c.1.s8 %v1552
        %v1574 = vunpack.c.2.s8 %v1552
        %v1575 = vunpack.c.3.s8 %v1552
        %v1576 = vunpack.c.0.s8 %v1553
        %v1577 = vunpack.c.1.s8 %v1553
        %v1578 = vunpack.c.2.s8 %v1553
        %v1579 = vunpack.c.3.s8 %v1553
        %v1580 = vunpack.c.0.s8 %v1554
        %v1581 = vunpack.c.1.s8 %v1554
        %v1582 = vunpack.c.2.s8 %v1554
        %v1583 = vunpack.c.3.s8 %v1554
        %v1584 = vunpack.c.0.s8 %v1555
        %v1585 = vunpack.c.1.s8 %v1555
        %v1586 = vunpack.c.2.s8 %v1555
        %v1587 = vunpack.c.3.s8 %v1555
        %v1588 = vcvt.s32.f32 %v1556
        %v1589 = vcvt.s32.f32 %v1557
        %v1590 = vcvt.s32.f32 %v1558
        %v1591 = vcvt.s32.f32 %v1559
        %v1592 = vcvt.s32.f32 %v1560
        %v1593 = vcvt.s32.f32 %v1561
        %v1594 = vcvt.s32.f32 %v1562
        %v1595 = vcvt.s32.f32 %v1563
        %v1596 = vcvt.s32.f32 %v1564
        %v1597 = vcvt.s32.f32 %v1565
        %v1598 = vcvt.s32.f32 %v1566
        %v1599 = vcvt.s32.f32 %v1567
        %v1600 = vcvt.s32.f32 %v1568
        %v1601 = vcvt.s32.f32 %v1569
        %v1602 = vcvt.s32.f32 %v1570
        %v1603 = vcvt.s32.f32 %v1571
        %v1604 = vcvt.s32.f32 %v1572
        %v1605 = vcvt.s32.f32 %v1573
        %v1606 = vcvt.s32.f32 %v1574
        %v1607 = vcvt.s32.f32 %v1575
        %v1608 = vcvt.s32.f32 %v1576
        %v1609 = vcvt.s32.f32 %v1577
        %v1610 = vcvt.s32.f32 %v1578
        %v1611 = vcvt.s32.f32 %v1579
        %v1612 = vcvt.s32.f32 %v1580
        %v1613 = vcvt.s32.f32 %v1581
        %v1614 = vcvt.s32.f32 %v1582
        %v1615 = vcvt.s32.f32 %v1583
        %v1616 = vcvt.s32.f32 %v1584
        %v1617 = vcvt.s32.f32 %v1585
        %v1618 = vcvt.s32.f32 %v1586
        %v1619 = vcvt.s32.f32 %v1587
        %v1620 = vld [vmem:[%s1371] sm:$0xff]
        %v1621 = vld [vmem:[%s1371 + $0x8] sm:$0xff]
        %v1622 = vld [vmem:[%s1371 + $0x10] sm:$0xff]
        %v1623 = vld [vmem:[%s1371 + $0x18] sm:$0xff]
        %v1624 = vld [vmem:[%s1371 + $0x20] sm:$0xff]
        %v1625 = vld [vmem:[%s1371 + $0x28] sm:$0xff]
        %v1626 = vld [vmem:[%s1371 + $0x30] sm:$0xff]
        %v1627 = vld [vmem:[%s1371 + $0x38] sm:$0xff]
        %v1628 = vunpack.c.0.s8 %v1620
        %v1629 = vunpack.c.1.s8 %v1620
        %v1630 = vunpack.c.2.s8 %v1620
        %v1631 = vunpack.c.3.s8 %v1620
        %v1632 = vunpack.c.0.s8 %v1621
        %v1633 = vunpack.c.1.s8 %v1621
        %v1634 = vunpack.c.2.s8 %v1621
        %v1635 = vunpack.c.3.s8 %v1621
        %v1636 = vunpack.c.0.s8 %v1622
        %v1637 = vunpack.c.1.s8 %v1622
        %v1638 = vunpack.c.2.s8 %v1622
        %v1639 = vunpack.c.3.s8 %v1622
        %v1640 = vunpack.c.0.s8 %v1623
        %v1641 = vunpack.c.1.s8 %v1623
        %v1642 = vunpack.c.2.s8 %v1623
        %v1643 = vunpack.c.3.s8 %v1623
        %v1644 = vunpack.c.0.s8 %v1624
        %v1645 = vunpack.c.1.s8 %v1624
        %v1646 = vunpack.c.2.s8 %v1624
        %v1647 = vunpack.c.3.s8 %v1624
        %v1648 = vunpack.c.0.s8 %v1625
        %v1649 = vunpack.c.1.s8 %v1625
        %v1650 = vunpack.c.2.s8 %v1625
        %v1651 = vunpack.c.3.s8 %v1625
        %v1652 = vunpack.c.0.s8 %v1626
        %v1653 = vunpack.c.1.s8 %v1626
        %v1654 = vunpack.c.2.s8 %v1626
        %v1655 = vunpack.c.3.s8 %v1626
        %v1656 = vunpack.c.0.s8 %v1627
        %v1657 = vunpack.c.1.s8 %v1627
        %v1658 = vunpack.c.2.s8 %v1627
        %v1659 = vunpack.c.3.s8 %v1627
        %v1660 = vcvt.s32.f32 %v1628
        %v1661 = vcvt.s32.f32 %v1629
        %v1662 = vcvt.s32.f32 %v1630
        %v1663 = vcvt.s32.f32 %v1631
        %v1664 = vcvt.s32.f32 %v1632
        %v1665 = vcvt.s32.f32 %v1633
        %v1666 = vcvt.s32.f32 %v1634
        %v1667 = vcvt.s32.f32 %v1635
        %v1668 = vcvt.s32.f32 %v1636
        %v1669 = vcvt.s32.f32 %v1637
        %v1670 = vcvt.s32.f32 %v1638
        %v1671 = vcvt.s32.f32 %v1639
        %v1672 = vcvt.s32.f32 %v1640
        %v1673 = vcvt.s32.f32 %v1641
        %v1674 = vcvt.s32.f32 %v1642
        %v1675 = vcvt.s32.f32 %v1643
        %v1676 = vcvt.s32.f32 %v1644
        %v1677 = vcvt.s32.f32 %v1645
        %v1678 = vcvt.s32.f32 %v1646
        %v1679 = vcvt.s32.f32 %v1647
        %v1680 = vcvt.s32.f32 %v1648
        %v1681 = vcvt.s32.f32 %v1649
        %v1682 = vcvt.s32.f32 %v1650
        %v1683 = vcvt.s32.f32 %v1651
        %v1684 = vcvt.s32.f32 %v1652
        %v1685 = vcvt.s32.f32 %v1653
        %v1686 = vcvt.s32.f32 %v1654
        %v1687 = vcvt.s32.f32 %v1655
        %v1688 = vcvt.s32.f32 %v1656
        %v1689 = vcvt.s32.f32 %v1657
        %v1690 = vcvt.s32.f32 %v1658
        %v1691 = vcvt.s32.f32 %v1659
        %v1692 = vunpack.c.l.s8.bf16 %v1548
        %v1693 = vunpack.c.h.s8.bf16 %v1548
        %v1694 = vunpack.c.l.s8.bf16 %v1549
        %v1695 = vunpack.c.h.s8.bf16 %v1549
        %v1696 = vunpack.c.l.s8.bf16 %v1550
        %v1697 = vunpack.c.h.s8.bf16 %v1550
        %v1698 = vunpack.c.l.s8.bf16 %v1551
        %v1699 = vunpack.c.h.s8.bf16 %v1551
        %v1700 = vunpack.c.l.s8.bf16 %v1552
        %v1701 = vunpack.c.h.s8.bf16 %v1552
        %v1702 = vunpack.c.l.s8.bf16 %v1553
        %v1703 = vunpack.c.h.s8.bf16 %v1553
        %v1704 = vunpack.c.l.s8.bf16 %v1554
        %v1705 = vunpack.c.h.s8.bf16 %v1554
        %v1706 = vunpack.c.l.s8.bf16 %v1555
        %v1707 = vunpack.c.h.s8.bf16 %v1555
        %v1708 = vunpack.c.l.s8.bf16 %v1620
        %v1709 = vunpack.c.h.s8.bf16 %v1620
        %v1710 = vunpack.c.l.s8.bf16 %v1621
        %v1711 = vunpack.c.h.s8.bf16 %v1621
        %v1712 = vunpack.c.l.s8.bf16 %v1622
        %v1713 = vunpack.c.h.s8.bf16 %v1622
        %v1714 = vunpack.c.l.s8.bf16 %v1623
        %v1715 = vunpack.c.h.s8.bf16 %v1623
        %v1716 = vunpack.c.l.s8.bf16 %v1624
        %v1717 = vunpack.c.h.s8.bf16 %v1624
        %v1718 = vunpack.c.l.s8.bf16 %v1625
        %v1719 = vunpack.c.h.s8.bf16 %v1625
        %v1720 = vunpack.c.l.s8.bf16 %v1626
        %v1721 = vunpack.c.h.s8.bf16 %v1626
        %v1722 = vunpack.c.l.s8.bf16 %v1627
        %v1723 = vunpack.c.h.s8.bf16 %v1627
        %v1724 = vld [vmem:[#allocation3] sm:$0xf]
        %v1725 = vld [vmem:[#allocation3 + $0x4] sm:$0xf]
        %v1726 = vld [vmem:[#allocation3 + $0x8] sm:$0xf]
        %v1730 = vunpack.c.l.b16 %v1724
        %v1731 = vunpack.c.l.b16 %v1725
        %v1732 = vunpack.c.l.b16 %v1726
        %v1733 = vpack.c.b16 %v1731, %v1730
        %v1734 = vpack.c.b16 %v1732, %v1732
        %vm1736 = vcmask 195584
        %v1738 = vsel %vm1736, %v1692, 0
        %v1741 = vsel %vm1736, %v1693, 0
        %v1744 = vsel %vm1736, %v1694, 0
        %v1747 = vsel %vm1736, %v1695, 0
        %v1750 = vsel %vm1736, %v1696, 0
        %v1753 = vsel %vm1736, %v1697, 0
        %v1756 = vsel %vm1736, %v1698, 0
        %v1759 = vsel %vm1736, %v1699, 0
        %v1762 = vsel %vm1736, %v1700, 0
        %v1765 = vsel %vm1736, %v1701, 0
        %v1768 = vsel %vm1736, %v1702, 0
        %v1771 = vsel %vm1736, %v1703, 0
        %v1774 = vsel %vm1736, %v1704, 0
        %v1777 = vsel %vm1736, %v1705, 0
        %v1780 = vsel %vm1736, %v1706, 0
        %v1783 = vsel %vm1736, %v1707, 0
        %vm1785 = vcmask 1043456
        %v1787 = vsel %vm1785, %v1734, 0
        %1789 = vmatprep.subr.bf16.mxu0 0
        %1790 = vmatpush1.bf16.msra.mxu0 %v1733
        %1791 = vmatprep.subr.bf16.mxu0 0
        %1792 = vmatpush1.bf16.msra.mxu0 %v1787
        %1793 = vmatprep.subr.bf16.mxu0 0
        %1794 = vmatpush1.bf16.msra.mxu0 0
        %1795 = vmatprep.subr.bf16.mxu0 0
        %1796 = vmatpush1.bf16.msra.mxu0 0
        %1797 = vmatprep.subr.bf16.mxu0 0
        %1798 = vmatpush1.bf16.msra.mxu0 0
        %1799 = vmatprep.subr.bf16.mxu0 0
        %1800 = vmatpush1.bf16.msra.mxu0 0
        %1801 = vmatprep.subr.bf16.mxu0 0
        %1802 = vmatpush1.bf16.msra.mxu0 0
        %1803 = vmatprep.subr.bf16.mxu0 0
        %1804 = vmatpush1.bf16.msra.mxu0 0
        %1805 = vmatprep.subr.bf16.mxu0 0
        %1806 = vmatpush1.bf16.msra.mxu0 0
        %1807 = vmatprep.subr.bf16.mxu0 0
        %1808 = vmatpush1.bf16.msra.mxu0 0
        %1809 = vmatprep.subr.bf16.mxu0 0
        %1810 = vmatpush1.bf16.msra.mxu0 0
        %1811 = vmatprep.subr.bf16.mxu0 0
        %1812 = vmatpush1.bf16.msra.mxu0 0
        %1813 = vmatprep.subr.bf16.mxu0 0
        %1814 = vmatpush1.bf16.msra.mxu0 0
        %1815 = vmatprep.subr.bf16.mxu0 0
        %1816 = vmatpush1.bf16.msra.mxu0 0
        %1817 = vmatprep.subr.bf16.mxu0 0
        %1818 = vmatpush1.bf16.msra.mxu0 0
        %1819 = vmatprep.subr.bf16.mxu0 0
        %1820 = vmatpush1.bf16.msra.mxu0 0
        %1821 = vmatprep.mubr.bf16.mxu0 0
        %1822 = vmatmul.mubr.bf16.gmra.mrb[0].mxu0 %v1738
        %v1823 = vpop.f32.mrb[0].mxu0
        %v1824 = vadd.f32 0.0, %v1823
        %v1825 = vpop.f32.mrb[0].mxu0
        %v1826 = vpop.f32.mrb[0].mxu0
        %v1827 = vadd.f32 0.0, %v1826
        %v1828 = vpop.f32.mrb[0].mxu0
        %1829 = vmatprep.mubr.bf16.mxu0 0
        %1830 = vmatmul.mubr.bf16.gmra.mrb[0].mxu0 %v1741
        %v1831 = vpop.f32.mrb[0].mxu0
        %v1832 = vadd.f32 0.0, %v1831
        %v1833 = vpop.f32.mrb[0].mxu0
        %v1834 = vpop.f32.mrb[0].mxu0
        %v1835 = vadd.f32 0.0, %v1834
        %v1836 = vpop.f32.mrb[0].mxu0
        %1837 = vmatprep.mubr.bf16.mxu0 0
        %1838 = vmatmul.mubr.bf16.gmra.mrb[0].mxu0 %v1744
        %v1839 = vpop.f32.mrb[0].mxu0
        %v1840 = vadd.f32 0.0, %v1839
        %v1841 = vpop.f32.mrb[0].mxu0
        %v1842 = vpop.f32.mrb[0].mxu0
        %v1843 = vadd.f32 0.0, %v1842
        %v1844 = vpop.f32.mrb[0].mxu0
        %1845 = vmatprep.mubr.bf16.mxu0 0
        %1846 = vmatmul.mubr.bf16.gmra.mrb[0].mxu0 %v1747
        %v1847 = vpop.f32.mrb[0].mxu0
        %v1848 = vadd.f32 0.0, %v1847
        %v1849 = vpop.f32.mrb[0].mxu0
        %v1850 = vpop.f32.mrb[0].mxu0
        %v1851 = vadd.f32 0.0, %v1850
        %v1852 = vpop.f32.mrb[0].mxu0
        %1853 = vmatprep.mubr.bf16.mxu0 0
        %1854 = vmatmul.mubr.bf16.gmra.mrb[0].mxu0 %v1750
        %v1855 = vpop.f32.mrb[0].mxu0
        %v1856 = vadd.f32 0.0, %v1855
        %v1857 = vpop.f32.mrb[0].mxu0
        %v1858 = vpop.f32.mrb[0].mxu0
        %v1859 = vadd.f32 0.0, %v1858
        %v1860 = vpop.f32.mrb[0].mxu0
        %1861 = vmatprep.mubr.bf16.mxu0 0
        %1862 = vmatmul.mubr.bf16.gmra.mrb[0].mxu0 %v1753
        %v1863 = vpop.f32.mrb[0].mxu0
        %v1864 = vadd.f32 0.0, %v1863
        %v1865 = vpop.f32.mrb[0].mxu0
        %v1866 = vpop.f32.mrb[0].mxu0
        %v1867 = vadd.f32 0.0, %v1866
        %v1868 = vpop.f32.mrb[0].mxu0
        %1869 = vmatprep.mubr.bf16.mxu0 0
        %1870 = vmatmul.mubr.bf16.gmra.mrb[0].mxu0 %v1756
        %v1871 = vpop.f32.mrb[0].mxu0
        %v1872 = vadd.f32 0.0, %v1871
        %v1873 = vpop.f32.mrb[0].mxu0
        %v1874 = vpop.f32.mrb[0].mxu0
        %v1875 = vadd.f32 0.0, %v1874
        %v1876 = vpop.f32.mrb[0].mxu0
        %1877 = vmatprep.mubr.bf16.mxu0 0
        %1878 = vmatmul.mubr.bf16.gmra.mrb[0].mxu0 %v1759
        %v1879 = vpop.f32.mrb[0].mxu0
        %v1880 = vadd.f32 0.0, %v1879
        %v1881 = vpop.f32.mrb[0].mxu0
        %v1882 = vpop.f32.mrb[0].mxu0
        %v1883 = vadd.f32 0.0, %v1882
        %v1884 = vpop.f32.mrb[0].mxu0
        %1885 = vmatprep.mubr.bf16.mxu0 0
        %1886 = vmatmul.mubr.bf16.gmra.mrb[0].mxu0 %v1762
        %v1887 = vpop.f32.mrb[0].mxu0
        %v1888 = vadd.f32 0.0, %v1887
        %v1889 = vpop.f32.mrb[0].mxu0
        %v1890 = vpop.f32.mrb[0].mxu0
        %v1891 = vadd.f32 0.0, %v1890
        %v1892 = vpop.f32.mrb[0].mxu0
        %1893 = vmatprep.mubr.bf16.mxu0 0
        %1894 = vmatmul.mubr.bf16.gmra.mrb[0].mxu0 %v1765
        %v1895 = vpop.f32.mrb[0].mxu0
        %v1896 = vadd.f32 0.0, %v1895
        %v1897 = vpop.f32.mrb[0].mxu0
        %v1898 = vpop.f32.mrb[0].mxu0
        %v1899 = vadd.f32 0.0, %v1898
        %v1900 = vpop.f32.mrb[0].mxu0
        %1901 = vmatprep.mubr.bf16.mxu0 0
        %1902 = vmatmul.mubr.bf16.gmra.mrb[0].mxu0 %v1768
        %v1903 = vpop.f32.mrb[0].mxu0
        %v1904 = vadd.f32 0.0, %v1903
        %v1905 = vpop.f32.mrb[0].mxu0
        %v1906 = vpop.f32.mrb[0].mxu0
        %v1907 = vadd.f32 0.0, %v1906
        %v1908 = vpop.f32.mrb[0].mxu0
        %1909 = vmatprep.mubr.bf16.mxu0 0
        %1910 = vmatmul.mubr.bf16.gmra.mrb[0].mxu0 %v1771
        %v1911 = vpop.f32.mrb[0].mxu0
        %v1912 = vadd.f32 0.0, %v1911
        %v1913 = vpop.f32.mrb[0].mxu0
        %v1914 = vpop.f32.mrb[0].mxu0
        %v1915 = vadd.f32 0.0, %v1914
        %v1916 = vpop.f32.mrb[0].mxu0
        %1917 = vmatprep.mubr.bf16.mxu0 0
        %1918 = vmatmul.mubr.bf16.gmra.mrb[0].mxu0 %v1774
        %v1919 = vpop.f32.mrb[0].mxu0
        %v1920 = vadd.f32 0.0, %v1919
        %v1921 = vpop.f32.mrb[0].mxu0
        %v1922 = vpop.f32.mrb[0].mxu0
        %v1923 = vadd.f32 0.0, %v1922
        %v1924 = vpop.f32.mrb[0].mxu0
        %1925 = vmatprep.mubr.bf16.mxu0 0
        %1926 = vmatmul.mubr.bf16.gmra.mrb[0].mxu0 %v1777
        %v1927 = vpop.f32.mrb[0].mxu0
        %v1928 = vadd.f32 0.0, %v1927
        %v1929 = vpop.f32.mrb[0].mxu0
        %v1930 = vpop.f32.mrb[0].mxu0
        %v1931 = vadd.f32 0.0, %v1930
        %v1932 = vpop.f32.mrb[0].mxu0
        %1933 = vmatprep.mubr.bf16.mxu0 0
        %1934 = vmatmul.mubr.bf16.gmra.mrb[0].mxu0 %v1780
        %v1935 = vpop.f32.mrb[0].mxu0
        %v1936 = vadd.f32 0.0, %v1935
        %v1937 = vpop.f32.mrb[0].mxu0
        %v1938 = vpop.f32.mrb[0].mxu0
        %v1939 = vadd.f32 0.0, %v1938
        %v1940 = vpop.f32.mrb[0].mxu0
        %1941 = vmatprep.mubr.bf16.mxu0 0
        %1942 = vmatmul.mubr.bf16.gmra.mrb[0].mxu0 %v1783
        %v1943 = vpop.f32.mrb[0].mxu0
        %v1944 = vadd.f32 0.0, %v1943
        %v1945 = vpop.f32.mrb[0].mxu0
        %v1946 = vpop.f32.mrb[0].mxu0
        %v1947 = vadd.f32 0.0, %v1946
        %v1948 = vpop.f32.mrb[0].mxu0
        %1949 = vdwg.mxu0
        %v1951 = vsel %vm1736, %v1708, 0
        %v1954 = vsel %vm1736, %v1709, 0
        %v1957 = vsel %vm1736, %v1710, 0
        %v1960 = vsel %vm1736, %v1711, 0
        %v1963 = vsel %vm1736, %v1712, 0
        %v1966 = vsel %vm1736, %v1713, 0
        %v1969 = vsel %vm1736, %v1714, 0
        %v1972 = vsel %vm1736, %v1715, 0
        %v1975 = vsel %vm1736, %v1716, 0
        %v1978 = vsel %vm1736, %v1717, 0
        %v1981 = vsel %vm1736, %v1718, 0
        %v1984 = vsel %vm1736, %v1719, 0
        %v1987 = vsel %vm1736, %v1720, 0
        %v1990 = vsel %vm1736, %v1721, 0
        %v1993 = vsel %vm1736, %v1722, 0
        %v1996 = vsel %vm1736, %v1723, 0
        %1998 = vmatprep.subr.bf16.mxu0 0
        %1999 = vmatpush1.bf16.msra.mxu0 %v1733
        %2000 = vmatprep.subr.bf16.mxu0 0
        %2001 = vmatpush1.bf16.msra.mxu0 %v1787
        %2002 = vmatprep.subr.bf16.mxu0 0
        %2003 = vmatpush1.bf16.msra.mxu0 0
        %2004 = vmatprep.subr.bf16.mxu0 0
        %2005 = vmatpush1.bf16.msra.mxu0 0
        %2006 = vmatprep.subr.bf16.mxu0 0
        %2007 = vmatpush1.bf16.msra.mxu0 0
        %2008 = vmatprep.subr.bf16.mxu0 0
        %2009 = vmatpush1.bf16.msra.mxu0 0
        %2010 = vmatprep.subr.bf16.mxu0 0
        %2011 = vmatpush1.bf16.msra.mxu0 0
        %2012 = vmatprep.subr.bf16.mxu0 0
        %2013 = vmatpush1.bf16.msra.mxu0 0
        %2014 = vmatprep.subr.bf16.mxu0 0
        %2015 = vmatpush1.bf16.msra.mxu0 0
        %2016 = vmatprep.subr.bf16.mxu0 0
        %2017 = vmatpush1.bf16.msra.mxu0 0
        %2018 = vmatprep.subr.bf16.mxu0 0
        %2019 = vmatpush1.bf16.msra.mxu0 0
        %2020 = vmatprep.subr.bf16.mxu0 0
        %2021 = vmatpush1.bf16.msra.mxu0 0
        %2022 = vmatprep.subr.bf16.mxu0 0
        %2023 = vmatpush1.bf16.msra.mxu0 0
        %2024 = vmatprep.subr.bf16.mxu0 0
        %2025 = vmatpush1.bf16.msra.mxu0 0
        %2026 = vmatprep.subr.bf16.mxu0 0
        %2027 = vmatpush1.bf16.msra.mxu0 0
        %2028 = vmatprep.subr.bf16.mxu0 0
        %2029 = vmatpush1.bf16.msra.mxu0 0
        %2030 = vmatprep.mubr.bf16.mxu0 0
        %2031 = vmatmul.mubr.bf16.gmra.mrb[0].mxu0 %v1951
        %v2032 = vpop.f32.mrb[0].mxu0
        %v2033 = vadd.f32 0.0, %v2032
        %v2034 = vpop.f32.mrb[0].mxu0
        %v2035 = vpop.f32.mrb[0].mxu0
        %v2036 = vadd.f32 0.0, %v2035
        %v2037 = vpop.f32.mrb[0].mxu0
        %2038 = vmatprep.mubr.bf16.mxu0 0
        %2039 = vmatmul.mubr.bf16.gmra.mrb[0].mxu0 %v1954
        %v2040 = vpop.f32.mrb[0].mxu0
        %v2041 = vadd.f32 0.0, %v2040
        %v2042 = vpop.f32.mrb[0].mxu0
        %v2043 = vpop.f32.mrb[0].mxu0
        %v2044 = vadd.f32 0.0, %v2043
        %v2045 = vpop.f32.mrb[0].mxu0
        %2046 = vmatprep.mubr.bf16.mxu0 0
        %2047 = vmatmul.mubr.bf16.gmra.mrb[0].mxu0 %v1957
        %v2048 = vpop.f32.mrb[0].mxu0
        %v2049 = vadd.f32 0.0, %v2048
        %v2050 = vpop.f32.mrb[0].mxu0
        %v2051 = vpop.f32.mrb[0].mxu0
        %v2052 = vadd.f32 0.0, %v2051
        %v2053 = vpop.f32.mrb[0].mxu0
        %2054 = vmatprep.mubr.bf16.mxu0 0
        %2055 = vmatmul.mubr.bf16.gmra.mrb[0].mxu0 %v1960
        %v2056 = vpop.f32.mrb[0].mxu0
        %v2057 = vadd.f32 0.0, %v2056
        %v2058 = vpop.f32.mrb[0].mxu0
        %v2059 = vpop.f32.mrb[0].mxu0
        %v2060 = vadd.f32 0.0, %v2059
        %v2061 = vpop.f32.mrb[0].mxu0
        %2062 = vmatprep.mubr.bf16.mxu0 0
        %2063 = vmatmul.mubr.bf16.gmra.mrb[0].mxu0 %v1963
        %v2064 = vpop.f32.mrb[0].mxu0
        %v2065 = vadd.f32 0.0, %v2064
        %v2066 = vpop.f32.mrb[0].mxu0
        %v2067 = vpop.f32.mrb[0].mxu0
        %v2068 = vadd.f32 0.0, %v2067
        %v2069 = vpop.f32.mrb[0].mxu0
        %2070 = vmatprep.mubr.bf16.mxu0 0
        %2071 = vmatmul.mubr.bf16.gmra.mrb[0].mxu0 %v1966
        %v2072 = vpop.f32.mrb[0].mxu0
        %v2073 = vadd.f32 0.0, %v2072
        %v2074 = vpop.f32.mrb[0].mxu0
        %v2075 = vpop.f32.mrb[0].mxu0
        %v2076 = vadd.f32 0.0, %v2075
        %v2077 = vpop.f32.mrb[0].mxu0
        %2078 = vmatprep.mubr.bf16.mxu0 0
        %2079 = vmatmul.mubr.bf16.gmra.mrb[0].mxu0 %v1969
        %v2080 = vpop.f32.mrb[0].mxu0
        %v2081 = vadd.f32 0.0, %v2080
        %v2082 = vpop.f32.mrb[0].mxu0
        %v2083 = vpop.f32.mrb[0].mxu0
        %v2084 = vadd.f32 0.0, %v2083
        %v2085 = vpop.f32.mrb[0].mxu0
        %2086 = vmatprep.mubr.bf16.mxu0 0
        %2087 = vmatmul.mubr.bf16.gmra.mrb[0].mxu0 %v1972
        %v2088 = vpop.f32.mrb[0].mxu0
        %v2089 = vadd.f32 0.0, %v2088
        %v2090 = vpop.f32.mrb[0].mxu0
        %v2091 = vpop.f32.mrb[0].mxu0
        %v2092 = vadd.f32 0.0, %v2091
        %v2093 = vpop.f32.mrb[0].mxu0
        %2094 = vmatprep.mubr.bf16.mxu0 0
        %2095 = vmatmul.mubr.bf16.gmra.mrb[0].mxu0 %v1975
        %v2096 = vpop.f32.mrb[0].mxu0
        %v2097 = vadd.f32 0.0, %v2096
        %v2098 = vpop.f32.mrb[0].mxu0
        %v2099 = vpop.f32.mrb[0].mxu0
        %v2100 = vadd.f32 0.0, %v2099
        %v2101 = vpop.f32.mrb[0].mxu0
        %2102 = vmatprep.mubr.bf16.mxu0 0
        %2103 = vmatmul.mubr.bf16.gmra.mrb[0].mxu0 %v1978
        %v2104 = vpop.f32.mrb[0].mxu0
        %v2105 = vadd.f32 0.0, %v2104
        %v2106 = vpop.f32.mrb[0].mxu0
        %v2107 = vpop.f32.mrb[0].mxu0
        %v2108 = vadd.f32 0.0, %v2107
        %v2109 = vpop.f32.mrb[0].mxu0
        %2110 = vmatprep.mubr.bf16.mxu0 0
        %2111 = vmatmul.mubr.bf16.gmra.mrb[0].mxu0 %v1981
        %v2112 = vpop.f32.mrb[0].mxu0
        %v2113 = vadd.f32 0.0, %v2112
        %v2114 = vpop.f32.mrb[0].mxu0
        %v2115 = vpop.f32.mrb[0].mxu0
        %v2116 = vadd.f32 0.0, %v2115
        %v2117 = vpop.f32.mrb[0].mxu0
        %2118 = vmatprep.mubr.bf16.mxu0 0
        %2119 = vmatmul.mubr.bf16.gmra.mrb[0].mxu0 %v1984
        %v2120 = vpop.f32.mrb[0].mxu0
        %v2121 = vadd.f32 0.0, %v2120
        %v2122 = vpop.f32.mrb[0].mxu0
        %v2123 = vpop.f32.mrb[0].mxu0
        %v2124 = vadd.f32 0.0, %v2123
        %v2125 = vpop.f32.mrb[0].mxu0
        %2126 = vmatprep.mubr.bf16.mxu0 0
        %2127 = vmatmul.mubr.bf16.gmra.mrb[0].mxu0 %v1987
        %v2128 = vpop.f32.mrb[0].mxu0
        %v2129 = vadd.f32 0.0, %v2128
        %v2130 = vpop.f32.mrb[0].mxu0
        %v2131 = vpop.f32.mrb[0].mxu0
        %v2132 = vadd.f32 0.0, %v2131
        %v2133 = vpop.f32.mrb[0].mxu0
        %2134 = vmatprep.mubr.bf16.mxu0 0
        %2135 = vmatmul.mubr.bf16.gmra.mrb[0].mxu0 %v1990
        %v2136 = vpop.f32.mrb[0].mxu0
        %v2137 = vadd.f32 0.0, %v2136
        %v2138 = vpop.f32.mrb[0].mxu0
        %v2139 = vpop.f32.mrb[0].mxu0
        %v2140 = vadd.f32 0.0, %v2139
        %v2141 = vpop.f32.mrb[0].mxu0
        %2142 = vmatprep.mubr.bf16.mxu0 0
        %2143 = vmatmul.mubr.bf16.gmra.mrb[0].mxu0 %v1993
        %v2144 = vpop.f32.mrb[0].mxu0
        %v2145 = vadd.f32 0.0, %v2144
        %v2146 = vpop.f32.mrb[0].mxu0
        %v2147 = vpop.f32.mrb[0].mxu0
        %v2148 = vadd.f32 0.0, %v2147
        %v2149 = vpop.f32.mrb[0].mxu0
        %2150 = vmatprep.mubr.bf16.mxu0 0
        %2151 = vmatmul.mubr.bf16.gmra.mrb[0].mxu0 %v1996
        %v2152 = vpop.f32.mrb[0].mxu0
        %v2153 = vadd.f32 0.0, %v2152
        %v2154 = vpop.f32.mrb[0].mxu0
        %v2155 = vpop.f32.mrb[0].mxu0
        %v2156 = vadd.f32 0.0, %v2155
        %v2157 = vpop.f32.mrb[0].mxu0
        %2158 = vdwg.mxu0
        %v2159 = vld [vmem:[#allocation4] sm:$0xff]
        %v2160 = vld [vmem:[#allocation4 + $0x8] sm:$0xff]
        %v2161 = vld [vmem:[#allocation4 + $0x10] sm:$0xff]
        %v2163 = vsel %vm1736, %v1588, 0
        %v2166 = vsel %vm1736, %v1589, 0
        %v2169 = vsel %vm1736, %v1590, 0
        %v2172 = vsel %vm1736, %v1591, 0
        %v2175 = vsel %vm1736, %v1592, 0
        %v2178 = vsel %vm1736, %v1593, 0
        %v2181 = vsel %vm1736, %v1594, 0
        %v2184 = vsel %vm1736, %v1595, 0
        %v2187 = vsel %vm1736, %v1596, 0
        %v2190 = vsel %vm1736, %v1597, 0
        %v2193 = vsel %vm1736, %v1598, 0
        %v2196 = vsel %vm1736, %v1599, 0
        %v2199 = vsel %vm1736, %v1600, 0
        %v2202 = vsel %vm1736, %v1601, 0
        %v2205 = vsel %vm1736, %v1602, 0
        %v2208 = vsel %vm1736, %v1603, 0
        %v2211 = vsel %vm1736, %v1604, 0
        %v2214 = vsel %vm1736, %v1605, 0
        %v2217 = vsel %vm1736, %v1606, 0
        %v2220 = vsel %vm1736, %v1607, 0
        %v2223 = vsel %vm1736, %v1608, 0
        %v2226 = vsel %vm1736, %v1609, 0
        %v2229 = vsel %vm1736, %v1610, 0
        %v2232 = vsel %vm1736, %v1611, 0
        %v2235 = vsel %vm1736, %v1612, 0
        %v2238 = vsel %vm1736, %v1613, 0
        %v2241 = vsel %vm1736, %v1614, 0
        %v2244 = vsel %vm1736, %v1615, 0
        %v2247 = vsel %vm1736, %v1616, 0
        %v2250 = vsel %vm1736, %v1617, 0
        %v2253 = vsel %vm1736, %v1618, 0
        %v2256 = vsel %vm1736, %v1619, 0
        %2258 = vmatprep.subr.mxu0 0.0
        %2259 = vmatpush1.msra.mxu0 %v2159
        %2260 = vmatprep.subr.mxu0 0.0
        %2261 = vmatpush1.msra.mxu0 %v2160
        %2262 = vmatprep.subr.mxu0 0.0
        %2263 = vmatpush1.msra.mxu0 %v2161
        %2264 = vmatprep.subr.mxu0 0.0
        %2265 = vmatpush1.msra.mxu0 0.0
        %2266 = vmatprep.subr.mxu0 0.0
        %2267 = vmatpush1.msra.mxu0 0.0
        %2268 = vmatprep.subr.mxu0 0.0
        %2269 = vmatpush1.msra.mxu0 0.0
        %2270 = vmatprep.subr.mxu0 0.0
        %2271 = vmatpush1.msra.mxu0 0.0
        %2272 = vmatprep.subr.mxu0 0.0
        %2273 = vmatpush1.msra.mxu0 0.0
        %2274 = vmatprep.subr.mxu0 0.0
        %2275 = vmatpush1.msra.mxu0 0.0
        %2276 = vmatprep.subr.mxu0 0.0
        %2277 = vmatpush1.msra.mxu0 0.0
        %2278 = vmatprep.subr.mxu0 0.0
        %2279 = vmatpush1.msra.mxu0 0.0
        %2280 = vmatprep.subr.mxu0 0.0
        %2281 = vmatpush1.msra.mxu0 0.0
        %2282 = vmatprep.subr.mxu0 0.0
        %2283 = vmatpush1.msra.mxu0 0.0
        %2284 = vmatprep.subr.mxu0 0.0
        %2285 = vmatpush1.msra.mxu0 0.0
        %2286 = vmatprep.subr.mxu0 0.0
        %2287 = vmatpush1.msra.mxu0 0.0
        %2288 = vmatprep.subr.mxu0 0.0
        %2289 = vmatpush1.msra.mxu0 0.0
        %2290 = vmatprep.subr.mxu0 0.0
        %2291 = vmatpush1.msra.mxu0 0.0
        %2292 = vmatprep.subr.mxu0 0.0
        %2293 = vmatpush1.msra.mxu0 0.0
        %2294 = vmatprep.subr.mxu0 0.0
        %2295 = vmatpush1.msra.mxu0 0.0
        %2296 = vmatprep.subr.mxu0 0.0
        %2297 = vmatpush1.msra.mxu0 0.0
        %2298 = vmatprep.subr.mxu0 0.0
        %2299 = vmatpush1.msra.mxu0 0.0
        %2300 = vmatprep.subr.mxu0 0.0
        %2301 = vmatpush1.msra.mxu0 0.0
        %2302 = vmatprep.subr.mxu0 0.0
        %2303 = vmatpush1.msra.mxu0 0.0
        %2304 = vmatprep.subr.mxu0 0.0
        %2305 = vmatpush1.msra.mxu0 0.0
        %2306 = vmatprep.subr.mxu0 0.0
        %2307 = vmatpush1.msra.mxu0 0.0
        %2308 = vmatprep.subr.mxu0 0.0
        %2309 = vmatpush1.msra.mxu0 0.0
        %2310 = vmatprep.subr.mxu0 0.0
        %2311 = vmatpush1.msra.mxu0 0.0
        %2312 = vmatprep.subr.mxu0 0.0
        %2313 = vmatpush1.msra.mxu0 0.0
        %2314 = vmatprep.subr.mxu0 0.0
        %2315 = vmatpush1.msra.mxu0 0.0
        %2316 = vmatprep.subr.mxu0 0.0
        %2317 = vmatpush1.msra.mxu0 0.0
        %2318 = vmatprep.subr.mxu0 0.0
        %2319 = vmatpush1.msra.mxu0 0.0
        %2320 = vmatprep.subr.mxu0 0.0
        %2321 = vmatpush1.msra.mxu0 0.0
        %2322 = vmatprep.mubr.f32.mxu0 0.0
        %2323 = vmatmul.mubr.f32.gmra.mrb[0].mxu0 %v2163
        %v2324 = vpop.f32.mrb[0].mxu0
        %v2325 = vadd.f32 0.0, %v2324
        %v2326 = vpop.f32.mrb[0].mxu0
        %2327 = vmatprep.mubr.f32.mxu0 0.0
        %2328 = vmatmul.mubr.f32.gmra.mrb[0].mxu0 %v2166
        %v2329 = vpop.f32.mrb[0].mxu0
        %v2330 = vadd.f32 0.0, %v2329
        %v2331 = vpop.f32.mrb[0].mxu0
        %2332 = vmatprep.mubr.f32.mxu0 0.0
        %2333 = vmatmul.mubr.f32.gmra.mrb[0].mxu0 %v2169
        %v2334 = vpop.f32.mrb[0].mxu0
        %v2335 = vadd.f32 0.0, %v2334
        %v2336 = vpop.f32.mrb[0].mxu0
        %2337 = vmatprep.mubr.f32.mxu0 0.0
        %2338 = vmatmul.mubr.f32.gmra.mrb[0].mxu0 %v2172
        %v2339 = vpop.f32.mrb[0].mxu0
        %v2340 = vadd.f32 0.0, %v2339
        %v2341 = vpop.f32.mrb[0].mxu0
        %2342 = vmatprep.mubr.f32.mxu0 0.0
        %2343 = vmatmul.mubr.f32.gmra.mrb[0].mxu0 %v2175
        %v2344 = vpop.f32.mrb[0].mxu0
        %v2345 = vadd.f32 0.0, %v2344
        %v2346 = vpop.f32.mrb[0].mxu0
        %2347 = vmatprep.mubr.f32.mxu0 0.0
        %2348 = vmatmul.mubr.f32.gmra.mrb[0].mxu0 %v2178
        %v2349 = vpop.f32.mrb[0].mxu0
        %v2350 = vadd.f32 0.0, %v2349
        %v2351 = vpop.f32.mrb[0].mxu0
        %2352 = vmatprep.mubr.f32.mxu0 0.0
        %2353 = vmatmul.mubr.f32.gmra.mrb[0].mxu0 %v2181
        %v2354 = vpop.f32.mrb[0].mxu0
        %v2355 = vadd.f32 0.0, %v2354
        %v2356 = vpop.f32.mrb[0].mxu0
        %2357 = vmatprep.mubr.f32.mxu0 0.0
        %2358 = vmatmul.mubr.f32.gmra.mrb[0].mxu0 %v2184
        %v2359 = vpop.f32.mrb[0].mxu0
        %v2360 = vadd.f32 0.0, %v2359
        %v2361 = vpop.f32.mrb[0].mxu0
        %2362 = vmatprep.mubr.f32.mxu0 0.0
        %2363 = vmatmul.mubr.f32.gmra.mrb[0].mxu0 %v2187
        %v2364 = vpop.f32.mrb[0].mxu0
        %v2365 = vadd.f32 0.0, %v2364
        %v2366 = vpop.f32.mrb[0].mxu0
        %2367 = vmatprep.mubr.f32.mxu0 0.0
        %2368 = vmatmul.mubr.f32.gmra.mrb[0].mxu0 %v2190
        %v2369 = vpop.f32.mrb[0].mxu0
        %v2370 = vadd.f32 0.0, %v2369
        %v2371 = vpop.f32.mrb[0].mxu0
        %2372 = vmatprep.mubr.f32.mxu0 0.0
        %2373 = vmatmul.mubr.f32.gmra.mrb[0].mxu0 %v2193
        %v2374 = vpop.f32.mrb[0].mxu0
        %v2375 = vadd.f32 0.0, %v2374
        %v2376 = vpop.f32.mrb[0].mxu0
        %2377 = vmatprep.mubr.f32.mxu0 0.0
        %2378 = vmatmul.mubr.f32.gmra.mrb[0].mxu0 %v2196
        %v2379 = vpop.f32.mrb[0].mxu0
        %v2380 = vadd.f32 0.0, %v2379
        %v2381 = vpop.f32.mrb[0].mxu0
        %2382 = vmatprep.mubr.f32.mxu0 0.0
        %2383 = vmatmul.mubr.f32.gmra.mrb[0].mxu0 %v2199
        %v2384 = vpop.f32.mrb[0].mxu0
        %v2385 = vadd.f32 0.0, %v2384
        %v2386 = vpop.f32.mrb[0].mxu0
        %2387 = vmatprep.mubr.f32.mxu0 0.0
        %2388 = vmatmul.mubr.f32.gmra.mrb[0].mxu0 %v2202
        %v2389 = vpop.f32.mrb[0].mxu0
        %v2390 = vadd.f32 0.0, %v2389
        %v2391 = vpop.f32.mrb[0].mxu0
        %2392 = vmatprep.mubr.f32.mxu0 0.0
        %2393 = vmatmul.mubr.f32.gmra.mrb[0].mxu0 %v2205
        %v2394 = vpop.f32.mrb[0].mxu0
        %v2395 = vadd.f32 0.0, %v2394
        %v2396 = vpop.f32.mrb[0].mxu0
        %2397 = vmatprep.mubr.f32.mxu0 0.0
        %2398 = vmatmul.mubr.f32.gmra.mrb[0].mxu0 %v2208
        %v2399 = vpop.f32.mrb[0].mxu0
        %v2400 = vadd.f32 0.0, %v2399
        %v2401 = vpop.f32.mrb[0].mxu0
        %2402 = vmatprep.mubr.f32.mxu0 0.0
        %2403 = vmatmul.mubr.f32.gmra.mrb[0].mxu0 %v2211
        %v2404 = vpop.f32.mrb[0].mxu0
        %v2405 = vadd.f32 0.0, %v2404
        %v2406 = vpop.f32.mrb[0].mxu0
        %2407 = vmatprep.mubr.f32.mxu0 0.0
        %2408 = vmatmul.mubr.f32.gmra.mrb[0].mxu0 %v2214
        %v2409 = vpop.f32.mrb[0].mxu0
        %v2410 = vadd.f32 0.0, %v2409
        %v2411 = vpop.f32.mrb[0].mxu0
        %2412 = vmatprep.mubr.f32.mxu0 0.0
        %2413 = vmatmul.mubr.f32.gmra.mrb[0].mxu0 %v2217
        %v2414 = vpop.f32.mrb[0].mxu0
        %v2415 = vadd.f32 0.0, %v2414
        %v2416 = vpop.f32.mrb[0].mxu0
        %2417 = vmatprep.mubr.f32.mxu0 0.0
        %2418 = vmatmul.mubr.f32.gmra.mrb[0].mxu0 %v2220
        %v2419 = vpop.f32.mrb[0].mxu0
        %v2420 = vadd.f32 0.0, %v2419
        %v2421 = vpop.f32.mrb[0].mxu0
        %2422 = vmatprep.mubr.f32.mxu0 0.0
        %2423 = vmatmul.mubr.f32.gmra.mrb[0].mxu0 %v2223
        %v2424 = vpop.f32.mrb[0].mxu0
        %v2425 = vadd.f32 0.0, %v2424
        %v2426 = vpop.f32.mrb[0].mxu0
        %2427 = vmatprep.mubr.f32.mxu0 0.0
        %2428 = vmatmul.mubr.f32.gmra.mrb[0].mxu0 %v2226
        %v2429 = vpop.f32.mrb[0].mxu0
        %v2430 = vadd.f32 0.0, %v2429
        %v2431 = vpop.f32.mrb[0].mxu0
        %2432 = vmatprep.mubr.f32.mxu0 0.0
        %2433 = vmatmul.mubr.f32.gmra.mrb[0].mxu0 %v2229
        %v2434 = vpop.f32.mrb[0].mxu0
        %v2435 = vadd.f32 0.0, %v2434
        %v2436 = vpop.f32.mrb[0].mxu0
        %2437 = vmatprep.mubr.f32.mxu0 0.0
        %2438 = vmatmul.mubr.f32.gmra.mrb[0].mxu0 %v2232
        %v2439 = vpop.f32.mrb[0].mxu0
        %v2440 = vadd.f32 0.0, %v2439
        %v2441 = vpop.f32.mrb[0].mxu0
        %2442 = vmatprep.mubr.f32.mxu0 0.0
        %2443 = vmatmul.mubr.f32.gmra.mrb[0].mxu0 %v2235
        %v2444 = vpop.f32.mrb[0].mxu0
        %v2445 = vadd.f32 0.0, %v2444
        %v2446 = vpop.f32.mrb[0].mxu0
        %2447 = vmatprep.mubr.f32.mxu0 0.0
        %2448 = vmatmul.mubr.f32.gmra.mrb[0].mxu0 %v2238
        %v2449 = vpop.f32.mrb[0].mxu0
        %v2450 = vadd.f32 0.0, %v2449
        %v2451 = vpop.f32.mrb[0].mxu0
        %2452 = vmatprep.mubr.f32.mxu0 0.0
        %2453 = vmatmul.mubr.f32.gmra.mrb[0].mxu0 %v2241
        %v2454 = vpop.f32.mrb[0].mxu0
        %v2455 = vadd.f32 0.0, %v2454
        %v2456 = vpop.f32.mrb[0].mxu0
        %2457 = vmatprep.mubr.f32.mxu0 0.0
        %2458 = vmatmul.mubr.f32.gmra.mrb[0].mxu0 %v2244
        %v2459 = vpop.f32.mrb[0].mxu0
        %v2460 = vadd.f32 0.0, %v2459
        %v2461 = vpop.f32.mrb[0].mxu0
        %2462 = vmatprep.mubr.f32.mxu0 0.0
        %2463 = vmatmul.mubr.f32.gmra.mrb[0].mxu0 %v2247
        %v2464 = vpop.f32.mrb[0].mxu0
        %v2465 = vadd.f32 0.0, %v2464
        %v2466 = vpop.f32.mrb[0].mxu0
        %2467 = vmatprep.mubr.f32.mxu0 0.0
        %2468 = vmatmul.mubr.f32.gmra.mrb[0].mxu0 %v2250
        %v2469 = vpop.f32.mrb[0].mxu0
        %v2470 = vadd.f32 0.0, %v2469
        %v2471 = vpop.f32.mrb[0].mxu0
        %2472 = vmatprep.mubr.f32.mxu0 0.0
        %2473 = vmatmul.mubr.f32.gmra.mrb[0].mxu0 %v2253
        %v2474 = vpop.f32.mrb[0].mxu0
        %v2475 = vadd.f32 0.0, %v2474
        %v2476 = vpop.f32.mrb[0].mxu0
        %2477 = vmatprep.mubr.f32.mxu0 0.0
        %2478 = vmatmul.mubr.f32.gmra.mrb[0].mxu0 %v2256
        %v2479 = vpop.f32.mrb[0].mxu0
        %v2480 = vadd.f32 0.0, %v2479
        %v2481 = vpop.f32.mrb[0].mxu0
        %2482 = vdwg.mxu0
        %v2484 = vsel %vm1736, %v1660, 0
        %v2487 = vsel %vm1736, %v1661, 0
        %v2490 = vsel %vm1736, %v1662, 0
        %v2493 = vsel %vm1736, %v1663, 0
        %v2496 = vsel %vm1736, %v1664, 0
        %v2499 = vsel %vm1736, %v1665, 0
        %v2502 = vsel %vm1736, %v1666, 0
        %v2505 = vsel %vm1736, %v1667, 0
        %v2508 = vsel %vm1736, %v1668, 0
        %v2511 = vsel %vm1736, %v1669, 0
        %v2514 = vsel %vm1736, %v1670, 0
        %v2517 = vsel %vm1736, %v1671, 0
        %v2520 = vsel %vm1736, %v1672, 0
        %v2523 = vsel %vm1736, %v1673, 0
        %v2526 = vsel %vm1736, %v1674, 0
        %v2529 = vsel %vm1736, %v1675, 0
        %v2532 = vsel %vm1736, %v1676, 0
        %v2535 = vsel %vm1736, %v1677, 0
        %v2538 = vsel %vm1736, %v1678, 0
        %v2541 = vsel %vm1736, %v1679, 0
        %v2544 = vsel %vm1736, %v1680, 0
        %v2547 = vsel %vm1736, %v1681, 0
        %v2550 = vsel %vm1736, %v1682, 0
        %v2553 = vsel %vm1736, %v1683, 0
        %v2556 = vsel %vm1736, %v1684, 0
        %v2559 = vsel %vm1736, %v1685, 0
        %v2562 = vsel %vm1736, %v1686, 0
        %v2565 = vsel %vm1736, %v1687, 0
        %v2568 = vsel %vm1736, %v1688, 0
        %v2571 = vsel %vm1736, %v1689, 0
        %v2574 = vsel %vm1736, %v1690, 0
        %v2577 = vsel %vm1736, %v1691, 0
        %2579 = vmatprep.subr.mxu0 0.0
        %2580 = vmatpush1.msra.mxu0 %v2159
        %2581 = vmatprep.subr.mxu0 0.0
        %2582 = vmatpush1.msra.mxu0 %v2160
        %2583 = vmatprep.subr.mxu0 0.0
        %2584 = vmatpush1.msra.mxu0 %v2161
        %2585 = vmatprep.subr.mxu0 0.0
        %2586 = vmatpush1.msra.mxu0 0.0
        %2587 = vmatprep.subr.mxu0 0.0
        %2588 = vmatpush1.msra.mxu0 0.0
        %2589 = vmatprep.subr.mxu0 0.0
        %2590 = vmatpush1.msra.mxu0 0.0
        %2591 = vmatprep.subr.mxu0 0.0
        %2592 = vmatpush1.msra.mxu0 0.0
        %2593 = vmatprep.subr.mxu0 0.0
        %2594 = vmatpush1.msra.mxu0 0.0
        %2595 = vmatprep.subr.mxu0 0.0
        %2596 = vmatpush1.msra.mxu0 0.0
        %2597 = vmatprep.subr.mxu0 0.0
        %2598 = vmatpush1.msra.mxu0 0.0
        %2599 = vmatprep.subr.mxu0 0.0
        %2600 = vmatpush1.msra.mxu0 0.0
        %2601 = vmatprep.subr.mxu0 0.0
        %2602 = vmatpush1.msra.mxu0 0.0
        %2603 = vmatprep.subr.mxu0 0.0
        %2604 = vmatpush1.msra.mxu0 0.0
        %2605 = vmatprep.subr.mxu0 0.0
        %2606 = vmatpush1.msra.mxu0 0.0
        %2607 = vmatprep.subr.mxu0 0.0
        %2608 = vmatpush1.msra.mxu0 0.0
        %2609 = vmatprep.subr.mxu0 0.0
        %2610 = vmatpush1.msra.mxu0 0.0
        %2611 = vmatprep.subr.mxu0 0.0
        %2612 = vmatpush1.msra.mxu0 0.0
        %2613 = vmatprep.subr.mxu0 0.0
        %2614 = vmatpush1.msra.mxu0 0.0
        %2615 = vmatprep.subr.mxu0 0.0
        %2616 = vmatpush1.msra.mxu0 0.0
        %2617 = vmatprep.subr.mxu0 0.0
        %2618 = vmatpush1.msra.mxu0 0.0
        %2619 = vmatprep.subr.mxu0 0.0
        %2620 = vmatpush1.msra.mxu0 0.0
        %2621 = vmatprep.subr.mxu0 0.0
        %2622 = vmatpush1.msra.mxu0 0.0
        %2623 = vmatprep.subr.mxu0 0.0
        %2624 = vmatpush1.msra.mxu0 0.0
        %2625 = vmatprep.subr.mxu0 0.0
        %2626 = vmatpush1.msra.mxu0 0.0
        %2627 = vmatprep.subr.mxu0 0.0
        %2628 = vmatpush1.msra.mxu0 0.0
        %2629 = vmatprep.subr.mxu0 0.0
        %2630 = vmatpush1.msra.mxu0 0.0
        %2631 = vmatprep.subr.mxu0 0.0
        %2632 = vmatpush1.msra.mxu0 0.0
        %2633 = vmatprep.subr.mxu0 0.0
        %2634 = vmatpush1.msra.mxu0 0.0
        %2635 = vmatprep.subr.mxu0 0.0
        %2636 = vmatpush1.msra.mxu0 0.0
        %2637 = vmatprep.subr.mxu0 0.0
        %2638 = vmatpush1.msra.mxu0 0.0
        %2639 = vmatprep.subr.mxu0 0.0
        %2640 = vmatpush1.msra.mxu0 0.0
        %2641 = vmatprep.subr.mxu0 0.0
        %2642 = vmatpush1.msra.mxu0 0.0
        %2643 = vmatprep.mubr.f32.mxu0 0.0
        %2644 = vmatmul.mubr.f32.gmra.mrb[0].mxu0 %v2484
        %v2645 = vpop.f32.mrb[0].mxu0
        %v2646 = vadd.f32 0.0, %v2645
        %v2647 = vpop.f32.mrb[0].mxu0
        %2648 = vmatprep.mubr.f32.mxu0 0.0
        %2649 = vmatmul.mubr.f32.gmra.mrb[0].mxu0 %v2487
        %v2650 = vpop.f32.mrb[0].mxu0
        %v2651 = vadd.f32 0.0, %v2650
        %v2652 = vpop.f32.mrb[0].mxu0
        %2653 = vmatprep.mubr.f32.mxu0 0.0
        %2654 = vmatmul.mubr.f32.gmra.mrb[0].mxu0 %v2490
        %v2655 = vpop.f32.mrb[0].mxu0
        %v2656 = vadd.f32 0.0, %v2655
        %v2657 = vpop.f32.mrb[0].mxu0
        %2658 = vmatprep.mubr.f32.mxu0 0.0
        %2659 = vmatmul.mubr.f32.gmra.mrb[0].mxu0 %v2493
        %v2660 = vpop.f32.mrb[0].mxu0
        %v2661 = vadd.f32 0.0, %v2660
        %v2662 = vpop.f32.mrb[0].mxu0
        %2663 = vmatprep.mubr.f32.mxu0 0.0
        %2664 = vmatmul.mubr.f32.gmra.mrb[0].mxu0 %v2496
        %v2665 = vpop.f32.mrb[0].mxu0
        %v2666 = vadd.f32 0.0, %v2665
        %v2667 = vpop.f32.mrb[0].mxu0
        %2668 = vmatprep.mubr.f32.mxu0 0.0
        %2669 = vmatmul.mubr.f32.gmra.mrb[0].mxu0 %v2499
        %v2670 = vpop.f32.mrb[0].mxu0
        %v2671 = vadd.f32 0.0, %v2670
        %v2672 = vpop.f32.mrb[0].mxu0
        %2673 = vmatprep.mubr.f32.mxu0 0.0
        %2674 = vmatmul.mubr.f32.gmra.mrb[0].mxu0 %v2502
        %v2675 = vpop.f32.mrb[0].mxu0
        %v2676 = vadd.f32 0.0, %v2675
        %v2677 = vpop.f32.mrb[0].mxu0
        %2678 = vmatprep.mubr.f32.mxu0 0.0
        %2679 = vmatmul.mubr.f32.gmra.mrb[0].mxu0 %v2505
        %v2680 = vpop.f32.mrb[0].mxu0
        %v2681 = vadd.f32 0.0, %v2680
        %v2682 = vpop.f32.mrb[0].mxu0
        %2683 = vmatprep.mubr.f32.mxu0 0.0
        %2684 = vmatmul.mubr.f32.gmra.mrb[0].mxu0 %v2508
        %v2685 = vpop.f32.mrb[0].mxu0
        %v2686 = vadd.f32 0.0, %v2685
        %v2687 = vpop.f32.mrb[0].mxu0
        %2688 = vmatprep.mubr.f32.mxu0 0.0
        %2689 = vmatmul.mubr.f32.gmra.mrb[0].mxu0 %v2511
        %v2690 = vpop.f32.mrb[0].mxu0
        %v2691 = vadd.f32 0.0, %v2690
        %v2692 = vpop.f32.mrb[0].mxu0
        %2693 = vmatprep.mubr.f32.mxu0 0.0
        %2694 = vmatmul.mubr.f32.gmra.mrb[0].mxu0 %v2514
        %v2695 = vpop.f32.mrb[0].mxu0
        %v2696 = vadd.f32 0.0, %v2695
        %v2697 = vpop.f32.mrb[0].mxu0
        %2698 = vmatprep.mubr.f32.mxu0 0.0
        %2699 = vmatmul.mubr.f32.gmra.mrb[0].mxu0 %v2517
        %v2700 = vpop.f32.mrb[0].mxu0
        %v2701 = vadd.f32 0.0, %v2700
        %v2702 = vpop.f32.mrb[0].mxu0
        %2703 = vmatprep.mubr.f32.mxu0 0.0
        %2704 = vmatmul.mubr.f32.gmra.mrb[0].mxu0 %v2520
        %v2705 = vpop.f32.mrb[0].mxu0
        %v2706 = vadd.f32 0.0, %v2705
        %v2707 = vpop.f32.mrb[0].mxu0
        %2708 = vmatprep.mubr.f32.mxu0 0.0
        %2709 = vmatmul.mubr.f32.gmra.mrb[0].mxu0 %v2523
        %v2710 = vpop.f32.mrb[0].mxu0
        %v2711 = vadd.f32 0.0, %v2710
        %v2712 = vpop.f32.mrb[0].mxu0
        %2713 = vmatprep.mubr.f32.mxu0 0.0
        %2714 = vmatmul.mubr.f32.gmra.mrb[0].mxu0 %v2526
        %v2715 = vpop.f32.mrb[0].mxu0
        %v2716 = vadd.f32 0.0, %v2715
        %v2717 = vpop.f32.mrb[0].mxu0
        %2718 = vmatprep.mubr.f32.mxu0 0.0
        %2719 = vmatmul.mubr.f32.gmra.mrb[0].mxu0 %v2529
        %v2720 = vpop.f32.mrb[0].mxu0
        %v2721 = vadd.f32 0.0, %v2720
        %v2722 = vpop.f32.mrb[0].mxu0
        %2723 = vmatprep.mubr.f32.mxu0 0.0
        %2724 = vmatmul.mubr.f32.gmra.mrb[0].mxu0 %v2532
        %v2725 = vpop.f32.mrb[0].mxu0
        %v2726 = vadd.f32 0.0, %v2725
        %v2727 = vpop.f32.mrb[0].mxu0
        %2728 = vmatprep.mubr.f32.mxu0 0.0
        %2729 = vmatmul.mubr.f32.gmra.mrb[0].mxu0 %v2535
        %v2730 = vpop.f32.mrb[0].mxu0
        %v2731 = vadd.f32 0.0, %v2730
        %v2732 = vpop.f32.mrb[0].mxu0
        %2733 = vmatprep.mubr.f32.mxu0 0.0
        %2734 = vmatmul.mubr.f32.gmra.mrb[0].mxu0 %v2538
        %v2735 = vpop.f32.mrb[0].mxu0
        %v2736 = vadd.f32 0.0, %v2735
        %v2737 = vpop.f32.mrb[0].mxu0
        %2738 = vmatprep.mubr.f32.mxu0 0.0
        %2739 = vmatmul.mubr.f32.gmra.mrb[0].mxu0 %v2541
        %v2740 = vpop.f32.mrb[0].mxu0
        %v2741 = vadd.f32 0.0, %v2740
        %v2742 = vpop.f32.mrb[0].mxu0
        %2743 = vmatprep.mubr.f32.mxu0 0.0
        %2744 = vmatmul.mubr.f32.gmra.mrb[0].mxu0 %v2544
        %v2745 = vpop.f32.mrb[0].mxu0
        %v2746 = vadd.f32 0.0, %v2745
        %v2747 = vpop.f32.mrb[0].mxu0
        %2748 = vmatprep.mubr.f32.mxu0 0.0
        %2749 = vmatmul.mubr.f32.gmra.mrb[0].mxu0 %v2547
        %v2750 = vpop.f32.mrb[0].mxu0
        %v2751 = vadd.f32 0.0, %v2750
        %v2752 = vpop.f32.mrb[0].mxu0
        %2753 = vmatprep.mubr.f32.mxu0 0.0
        %2754 = vmatmul.mubr.f32.gmra.mrb[0].mxu0 %v2550
        %v2755 = vpop.f32.mrb[0].mxu0
        %v2756 = vadd.f32 0.0, %v2755
        %v2757 = vpop.f32.mrb[0].mxu0
        %2758 = vmatprep.mubr.f32.mxu0 0.0
        %2759 = vmatmul.mubr.f32.gmra.mrb[0].mxu0 %v2553
        %v2760 = vpop.f32.mrb[0].mxu0
        %v2761 = vadd.f32 0.0, %v2760
        %v2762 = vpop.f32.mrb[0].mxu0
        %2763 = vmatprep.mubr.f32.mxu0 0.0
        %2764 = vmatmul.mubr.f32.gmra.mrb[0].mxu0 %v2556
        %v2765 = vpop.f32.mrb[0].mxu0
        %v2766 = vadd.f32 0.0, %v2765
        %v2767 = vpop.f32.mrb[0].mxu0
        %2768 = vmatprep.mubr.f32.mxu0 0.0
        %2769 = vmatmul.mubr.f32.gmra.mrb[0].mxu0 %v2559
        %v2770 = vpop.f32.mrb[0].mxu0
        %v2771 = vadd.f32 0.0, %v2770
        %v2772 = vpop.f32.mrb[0].mxu0
        %2773 = vmatprep.mubr.f32.mxu0 0.0
        %2774 = vmatmul.mubr.f32.gmra.mrb[0].mxu0 %v2562
        %v2775 = vpop.f32.mrb[0].mxu0
        %v2776 = vadd.f32 0.0, %v2775
        %v2777 = vpop.f32.mrb[0].mxu0
        %2778 = vmatprep.mubr.f32.mxu0 0.0
        %2779 = vmatmul.mubr.f32.gmra.mrb[0].mxu0 %v2565
        %v2780 = vpop.f32.mrb[0].mxu0
        %v2781 = vadd.f32 0.0, %v2780
        %v2782 = vpop.f32.mrb[0].mxu0
        %2783 = vmatprep.mubr.f32.mxu0 0.0
        %2784 = vmatmul.mubr.f32.gmra.mrb[0].mxu0 %v2568
        %v2785 = vpop.f32.mrb[0].mxu0
        %v2786 = vadd.f32 0.0, %v2785
        %v2787 = vpop.f32.mrb[0].mxu0
        %2788 = vmatprep.mubr.f32.mxu0 0.0
        %2789 = vmatmul.mubr.f32.gmra.mrb[0].mxu0 %v2571
        %v2790 = vpop.f32.mrb[0].mxu0
        %v2791 = vadd.f32 0.0, %v2790
        %v2792 = vpop.f32.mrb[0].mxu0
        %2793 = vmatprep.mubr.f32.mxu0 0.0
        %2794 = vmatmul.mubr.f32.gmra.mrb[0].mxu0 %v2574
        %v2795 = vpop.f32.mrb[0].mxu0
        %v2796 = vadd.f32 0.0, %v2795
        %v2797 = vpop.f32.mrb[0].mxu0
        %2798 = vmatprep.mubr.f32.mxu0 0.0
        %2799 = vmatmul.mubr.f32.gmra.mrb[0].mxu0 %v2577
        %v2800 = vpop.f32.mrb[0].mxu0
        %v2801 = vadd.f32 0.0, %v2800
        %v2802 = vpop.f32.mrb[0].mxu0
        %2803 = vdwg.mxu0
        %v2804 = vsub.f32 %v2325, %v2646
        %v2805 = vsub.f32 %v2330, %v2651
        %v2806 = vsub.f32 %v2335, %v2656
        %v2807 = vsub.f32 %v2340, %v2661
        %v2808 = vsub.f32 %v2345, %v2666
        %v2809 = vsub.f32 %v2350, %v2671
        %v2810 = vsub.f32 %v2355, %v2676
        %v2811 = vsub.f32 %v2360, %v2681
        %v2812 = vsub.f32 %v2365, %v2686
        %v2813 = vsub.f32 %v2370, %v2691
        %v2814 = vsub.f32 %v2375, %v2696
        %v2815 = vsub.f32 %v2380, %v2701
        %v2816 = vsub.f32 %v2385, %v2706
        %v2817 = vsub.f32 %v2390, %v2711
        %v2818 = vsub.f32 %v2395, %v2716
        %v2819 = vsub.f32 %v2400, %v2721
        %v2820 = vsub.f32 %v2405, %v2726
        %v2821 = vsub.f32 %v2410, %v2731
        %v2822 = vsub.f32 %v2415, %v2736
        %v2823 = vsub.f32 %v2420, %v2741
        %v2824 = vsub.f32 %v2425, %v2746
        %v2825 = vsub.f32 %v2430, %v2751
        %v2826 = vsub.f32 %v2435, %v2756
        %v2827 = vsub.f32 %v2440, %v2761
        %v2828 = vsub.f32 %v2445, %v2766
        %v2829 = vsub.f32 %v2450, %v2771
        %v2830 = vsub.f32 %v2455, %v2776
        %v2831 = vsub.f32 %v2460, %v2781
        %v2832 = vsub.f32 %v2465, %v2786
        %v2833 = vsub.f32 %v2470, %v2791
        %v2834 = vsub.f32 %v2475, %v2796
        %v2835 = vsub.f32 %v2480, %v2801
        %v2836 = vmul.f32 %v2804, %v2804
        %v2837 = vmul.f32 %v2805, %v2805
        %v2838 = vmul.f32 %v2806, %v2806
        %v2839 = vmul.f32 %v2807, %v2807
        %v2840 = vmul.f32 %v2808, %v2808
        %v2841 = vmul.f32 %v2809, %v2809
        %v2842 = vmul.f32 %v2810, %v2810
        %v2843 = vmul.f32 %v2811, %v2811
        %v2844 = vmul.f32 %v2812, %v2812
        %v2845 = vmul.f32 %v2813, %v2813
        %v2846 = vmul.f32 %v2814, %v2814
        %v2847 = vmul.f32 %v2815, %v2815
        %v2848 = vmul.f32 %v2816, %v2816
        %v2849 = vmul.f32 %v2817, %v2817
        %v2850 = vmul.f32 %v2818, %v2818
        %v2851 = vmul.f32 %v2819, %v2819
        %v2852 = vmul.f32 %v2820, %v2820
        %v2853 = vmul.f32 %v2821, %v2821
        %v2854 = vmul.f32 %v2822, %v2822
        %v2855 = vmul.f32 %v2823, %v2823
        %v2856 = vmul.f32 %v2824, %v2824
        %v2857 = vmul.f32 %v2825, %v2825
        %v2858 = vmul.f32 %v2826, %v2826
        %v2859 = vmul.f32 %v2827, %v2827
        %v2860 = vmul.f32 %v2828, %v2828
        %v2861 = vmul.f32 %v2829, %v2829
        %v2862 = vmul.f32 %v2830, %v2830
        %v2863 = vmul.f32 %v2831, %v2831
        %v2864 = vmul.f32 %v2832, %v2832
        %v2865 = vmul.f32 %v2833, %v2833
        %v2866 = vmul.f32 %v2834, %v2834
        %v2867 = vmul.f32 %v2835, %v2835
        %2868 = vadd.xlane.f32.xlu0 %v2836
        %v2869 = vpop.xlane.xlu0 %2868
        %2870 = vadd.xlane.f32.xlu0 %v2837
        %v2871 = vpop.xlane.xlu0 %2870
        %2872 = vadd.xlane.f32.xlu0 %v2838
        %v2873 = vpop.xlane.xlu0 %2872
        %2874 = vadd.xlane.f32.xlu0 %v2839
        %v2875 = vpop.xlane.xlu0 %2874
        %2876 = vadd.xlane.f32.xlu0 %v2840
        %v2877 = vpop.xlane.xlu0 %2876
        %2878 = vadd.xlane.f32.xlu0 %v2841
        %v2879 = vpop.xlane.xlu0 %2878
        %2880 = vadd.xlane.f32.xlu0 %v2842
        %v2881 = vpop.xlane.xlu0 %2880
        %2882 = vadd.xlane.f32.xlu0 %v2843
        %v2883 = vpop.xlane.xlu0 %2882
        %2884 = vadd.xlane.f32.xlu0 %v2844
        %v2885 = vpop.xlane.xlu0 %2884
        %2886 = vadd.xlane.f32.xlu0 %v2845
        %v2887 = vpop.xlane.xlu0 %2886
        %2888 = vadd.xlane.f32.xlu0 %v2846
        %v2889 = vpop.xlane.xlu0 %2888
        %2890 = vadd.xlane.f32.xlu0 %v2847
        %v2891 = vpop.xlane.xlu0 %2890
        %2892 = vadd.xlane.f32.xlu0 %v2848
        %v2893 = vpop.xlane.xlu0 %2892
        %2894 = vadd.xlane.f32.xlu0 %v2849
        %v2895 = vpop.xlane.xlu0 %2894
        %2896 = vadd.xlane.f32.xlu0 %v2850
        %v2897 = vpop.xlane.xlu0 %2896
        %2898 = vadd.xlane.f32.xlu0 %v2851
        %v2899 = vpop.xlane.xlu0 %2898
        %2900 = vadd.xlane.f32.xlu0 %v2852
        %v2901 = vpop.xlane.xlu0 %2900
        %2902 = vadd.xlane.f32.xlu0 %v2853
        %v2903 = vpop.xlane.xlu0 %2902
        %2904 = vadd.xlane.f32.xlu0 %v2854
        %v2905 = vpop.xlane.xlu0 %2904
        %2906 = vadd.xlane.f32.xlu0 %v2855
        %v2907 = vpop.xlane.xlu0 %2906
        %2908 = vadd.xlane.f32.xlu0 %v2856
        %v2909 = vpop.xlane.xlu0 %2908
        %2910 = vadd.xlane.f32.xlu0 %v2857
        %v2911 = vpop.xlane.xlu0 %2910
        %2912 = vadd.xlane.f32.xlu0 %v2858
        %v2913 = vpop.xlane.xlu0 %2912
        %2914 = vadd.xlane.f32.xlu0 %v2859
        %v2915 = vpop.xlane.xlu0 %2914
        %2916 = vadd.xlane.f32.xlu0 %v2860
        %v2917 = vpop.xlane.xlu0 %2916
        %2918 = vadd.xlane.f32.xlu0 %v2861
        %v2919 = vpop.xlane.xlu0 %2918
        %2920 = vadd.xlane.f32.xlu0 %v2862
        %v2921 = vpop.xlane.xlu0 %2920
        %2922 = vadd.xlane.f32.xlu0 %v2863
        %v2923 = vpop.xlane.xlu0 %2922
        %2924 = vadd.xlane.f32.xlu0 %v2864
        %v2925 = vpop.xlane.xlu0 %2924
        %2926 = vadd.xlane.f32.xlu0 %v2865
        %v2927 = vpop.xlane.xlu0 %2926
        %2928 = vadd.xlane.f32.xlu0 %v2866
        %v2929 = vpop.xlane.xlu0 %2928
        %2930 = vadd.xlane.f32.xlu0 %v2867
        %v2931 = vpop.xlane.xlu0 %2930
        %v2932 = vpack.c.bf16 %v1827, %v1824
        %v2933 = vpack.c.bf16 %v2036, %v2033
        %v2934 = vpack.c.bf16 %v1835, %v1832
        %v2935 = vpack.c.bf16 %v2044, %v2041
        %v2936 = vpack.c.bf16 %v1843, %v1840
        %v2937 = vpack.c.bf16 %v2052, %v2049
        %v2938 = vpack.c.bf16 %v1851, %v1848
        %v2939 = vpack.c.bf16 %v2060, %v2057
        %v2940 = vpack.c.bf16 %v1859, %v1856
        %v2941 = vpack.c.bf16 %v2068, %v2065
        %v2942 = vpack.c.bf16 %v1867, %v1864
        %v2943 = vpack.c.bf16 %v2076, %v2073
        %v2944 = vpack.c.bf16 %v1875, %v1872
        %v2945 = vpack.c.bf16 %v2084, %v2081
        %v2946 = vpack.c.bf16 %v1883, %v1880
        %v2947 = vpack.c.bf16 %v2092, %v2089
        %v2948 = vpack.c.bf16 %v1891, %v1888
        %v2949 = vpack.c.bf16 %v2100, %v2097
        %v2950 = vpack.c.bf16 %v1899, %v1896
        %v2951 = vpack.c.bf16 %v2108, %v2105
        %v2952 = vpack.c.bf16 %v1907, %v1904
        %v2953 = vpack.c.bf16 %v2116, %v2113
        %v2954 = vpack.c.bf16 %v1915, %v1912
        %v2955 = vpack.c.bf16 %v2124, %v2121
        %v2956 = vpack.c.bf16 %v1923, %v1920
        %v2957 = vpack.c.bf16 %v2132, %v2129
        %v2958 = vpack.c.bf16 %v1931, %v1928
        %v2959 = vpack.c.bf16 %v2140, %v2137
        %v2960 = vpack.c.bf16 %v1939, %v1936
        %v2961 = vpack.c.bf16 %v2148, %v2145
        %v2962 = vpack.c.bf16 %v1947, %v1944
        %v2963 = vpack.c.bf16 %v2156, %v2153
        %v2964 = vld [vmem:[%s1377] sm:$0xf]
        %v2965 = vld [vmem:[%s1377 + $0x4] sm:$0xf]
        %v2966 = vld [vmem:[%s1377 + $0x8] sm:$0xf]
        %v2967 = vld [vmem:[%s1377 + $0xc] sm:$0xf]
        %v2968 = vld [vmem:[%s1377 + $0x10] sm:$0xf]
        %v2969 = vld [vmem:[%s1377 + $0x14] sm:$0xf]
        %v2970 = vld [vmem:[%s1377 + $0x18] sm:$0xf]
        %v2971 = vld [vmem:[%s1377 + $0x1c] sm:$0xf]
        %v2972 = vld [vmem:[%s1377 + $0x20] sm:$0xf]
        %v2973 = vld [vmem:[%s1377 + $0x24] sm:$0xf]
        %v2974 = vld [vmem:[%s1377 + $0x28] sm:$0xf]
        %v2975 = vld [vmem:[%s1377 + $0x2c] sm:$0xf]
        %v2976 = vld [vmem:[%s1377 + $0x30] sm:$0xf]
        %v2977 = vld [vmem:[%s1377 + $0x34] sm:$0xf]
        %v2978 = vld [vmem:[%s1377 + $0x38] sm:$0xf]
        %v2979 = vld [vmem:[%s1377 + $0x3c] sm:$0xf]
        %v2980 = vld [vmem:[%s1377 + $0x40] sm:$0xf]
        %v2981 = vld [vmem:[%s1377 + $0x44] sm:$0xf]
        %v2982 = vld [vmem:[%s1377 + $0x48] sm:$0xf]
        %v2983 = vld [vmem:[%s1377 + $0x4c] sm:$0xf]
        %v2984 = vld [vmem:[%s1377 + $0x50] sm:$0xf]
        %v2985 = vld [vmem:[%s1377 + $0x54] sm:$0xf]
        %v2986 = vld [vmem:[%s1377 + $0x58] sm:$0xf]
        %v2987 = vld [vmem:[%s1377 + $0x5c] sm:$0xf]
        %v2988 = vld [vmem:[%s1377 + $0x60] sm:$0xf]
        %v2989 = vld [vmem:[%s1377 + $0x64] sm:$0xf]
        %v2990 = vld [vmem:[%s1377 + $0x68] sm:$0xf]
        %v2991 = vld [vmem:[%s1377 + $0x6c] sm:$0xf]
        %v2992 = vld [vmem:[%s1377 + $0x70] sm:$0xf]
        %v2993 = vld [vmem:[%s1377 + $0x74] sm:$0xf]
        %v2994 = vld [vmem:[%s1377 + $0x78] sm:$0xf]
        %v2995 = vld [vmem:[%s1377 + $0x7c] sm:$0xf]
        %v2996 = vld [vmem:[%s1380] sm:$0x1]
        %v2998 = vlaneseq
        %v2999 = vshrl.u32 %v2998, 7
        %v3000 = vsub.s32 0, %v2999
        %v3001 = vrot.slane %v2996, %v3000
        %v3003 = vmul.f32 %v2869, %v3001
        %v3004 = vmul.f32 %v2871, %v3001
        %v3005 = vmul.f32 %v2873, %v3001
        %v3006 = vmul.f32 %v2875, %v3001
        %v3007 = vmul.f32 %v2877, %v3001
        %v3008 = vmul.f32 %v2879, %v3001
        %v3009 = vmul.f32 %v2881, %v3001
        %v3010 = vmul.f32 %v2883, %v3001
        %v3011 = vmul.f32 %v2885, %v3001
        %v3012 = vmul.f32 %v2887, %v3001
        %v3013 = vmul.f32 %v2889, %v3001
        %v3014 = vmul.f32 %v2891, %v3001
        %v3015 = vmul.f32 %v2893, %v3001
        %v3016 = vmul.f32 %v2895, %v3001
        %v3017 = vmul.f32 %v2897, %v3001
        %v3018 = vmul.f32 %v2899, %v3001
        %v3019 = vmul.f32 %v2901, %v3001
        %v3020 = vmul.f32 %v2903, %v3001
        %v3021 = vmul.f32 %v2905, %v3001
        %v3022 = vmul.f32 %v2907, %v3001
        %v3023 = vmul.f32 %v2909, %v3001
        %v3024 = vmul.f32 %v2911, %v3001
        %v3025 = vmul.f32 %v2913, %v3001
        %v3026 = vmul.f32 %v2915, %v3001
        %v3027 = vmul.f32 %v2917, %v3001
        %v3028 = vmul.f32 %v2919, %v3001
        %v3029 = vmul.f32 %v2921, %v3001
        %v3030 = vmul.f32 %v2923, %v3001
        %v3031 = vmul.f32 %v2925, %v3001
        %v3032 = vmul.f32 %v2927, %v3001
        %v3033 = vmul.f32 %v2929, %v3001
        %v3034 = vmul.f32 %v2931, %v3001
        %v3067 = vunpack.c.l.b16 %v2964
        %v3068 = vunpack.c.l.b16 %v2965
        %v3069 = vunpack.c.l.b16 %v2966
        %v3070 = vunpack.c.l.b16 %v2967
        %v3071 = vunpack.c.l.b16 %v2968
        %v3072 = vunpack.c.l.b16 %v2969
        %v3073 = vunpack.c.l.b16 %v2970
        %v3074 = vunpack.c.l.b16 %v2971
        %v3075 = vunpack.c.l.b16 %v2972
        %v3076 = vunpack.c.l.b16 %v2973
        %v3077 = vunpack.c.l.b16 %v2974
        %v3078 = vunpack.c.l.b16 %v2975
        %v3079 = vunpack.c.l.b16 %v2976
        %v3080 = vunpack.c.l.b16 %v2977
        %v3081 = vunpack.c.l.b16 %v2978
        %v3082 = vunpack.c.l.b16 %v2979
        %v3083 = vunpack.c.l.b16 %v2980
        %v3084 = vunpack.c.l.b16 %v2981
        %v3085 = vunpack.c.l.b16 %v2982
        %v3086 = vunpack.c.l.b16 %v2983
        %v3087 = vunpack.c.l.b16 %v2984
        %v3088 = vunpack.c.l.b16 %v2985
        %v3089 = vunpack.c.l.b16 %v2986
        %v3090 = vunpack.c.l.b16 %v2987
        %v3091 = vunpack.c.l.b16 %v2988
        %v3092 = vunpack.c.l.b16 %v2989
        %v3093 = vunpack.c.l.b16 %v2990
        %v3094 = vunpack.c.l.b16 %v2991
        %v3095 = vunpack.c.l.b16 %v2992
        %v3096 = vunpack.c.l.b16 %v2993
        %v3097 = vunpack.c.l.b16 %v2994
        %v3098 = vunpack.c.l.b16 %v2995
        %v3099 = vpack.c.b16 %v3068, %v3067
        %v3100 = vpack.c.b16 %v3070, %v3069
        %v3101 = vpack.c.b16 %v3072, %v3071
        %v3102 = vpack.c.b16 %v3074, %v3073
        %v3103 = vpack.c.b16 %v3076, %v3075
        %v3104 = vpack.c.b16 %v3078, %v3077
        %v3105 = vpack.c.b16 %v3080, %v3079
        %v3106 = vpack.c.b16 %v3082, %v3081
        %v3107 = vpack.c.b16 %v3084, %v3083
        %v3108 = vpack.c.b16 %v3086, %v3085
        %v3109 = vpack.c.b16 %v3088, %v3087
        %v3110 = vpack.c.b16 %v3090, %v3089
        %v3111 = vpack.c.b16 %v3092, %v3091
        %v3112 = vpack.c.b16 %v3094, %v3093
        %v3113 = vpack.c.b16 %v3096, %v3095
        %v3114 = vpack.c.b16 %v3098, %v3097
        %3131 = vmatprep.subr.bf16.mxu0 0
        %3132 = vmatpush1.bf16.msra.mxu0 %v3099
        %3133 = vmatprep.subr.bf16.mxu0 0
        %3134 = vmatpush1.bf16.msra.mxu0 %v3100
        %3135 = vmatprep.subr.bf16.mxu0 0
        %3136 = vmatpush1.bf16.msra.mxu0 %v3101
        %3137 = vmatprep.subr.bf16.mxu0 0
        %3138 = vmatpush1.bf16.msra.mxu0 %v3102
        %3139 = vmatprep.subr.bf16.mxu0 0
        %3140 = vmatpush1.bf16.msra.mxu0 %v3103
        %3141 = vmatprep.subr.bf16.mxu0 0
        %3142 = vmatpush1.bf16.msra.mxu0 %v3104
        %3143 = vmatprep.subr.bf16.mxu0 0
        %3144 = vmatpush1.bf16.msra.mxu0 %v3105
        %3145 = vmatprep.subr.bf16.mxu0 0
        %3146 = vmatpush1.bf16.msra.mxu0 %v3106
        %3147 = vmatprep.subr.bf16.mxu0 0
        %3148 = vmatpush1.bf16.msra.mxu0 %v3107
        %3149 = vmatprep.subr.bf16.mxu0 0
        %3150 = vmatpush1.bf16.msra.mxu0 %v3108
        %3151 = vmatprep.subr.bf16.mxu0 0
        %3152 = vmatpush1.bf16.msra.mxu0 %v3109
        %3153 = vmatprep.subr.bf16.mxu0 0
        %3154 = vmatpush1.bf16.msra.mxu0 %v3110
        %3155 = vmatprep.subr.bf16.mxu0 0
        %3156 = vmatpush1.bf16.msra.mxu0 %v3111
        %3157 = vmatprep.subr.bf16.mxu0 0
        %3158 = vmatpush1.bf16.msra.mxu0 %v3112
        %3159 = vmatprep.subr.bf16.mxu0 0
        %3160 = vmatpush1.bf16.msra.mxu0 %v3113
        %3161 = vmatprep.subr.bf16.mxu0 0
        %3162 = vmatpush1.bf16.msra.mxu0 %v3114
        %3163 = vmatprep.mubr.bf16.mxu0 %v2933
        %3164 = vmatmul.mubr.bf16.gmra.mrb[0].mxu0 %v2932
        %v3165 = vpop.f32.mrb[0].mxu0
        %v3166 = vadd.f32 %v3003, %v3165
        %v3167 = vpop.f32.mrb[0].mxu0
        %v3168 = vpop.f32.mrb[0].mxu0
        %v3169 = vadd.f32 %v3004, %v3168
        %v3170 = vpop.f32.mrb[0].mxu0
        %3171 = vmatprep.mubr.bf16.mxu0 %v2935
        %3172 = vmatmul.mubr.bf16.gmra.mrb[0].mxu0 %v2934
        %v3173 = vpop.f32.mrb[0].mxu0
        %v3174 = vadd.f32 %v3005, %v3173
        %v3175 = vpop.f32.mrb[0].mxu0
        %v3176 = vpop.f32.mrb[0].mxu0
        %v3177 = vadd.f32 %v3006, %v3176
        %v3178 = vpop.f32.mrb[0].mxu0
        %3179 = vmatprep.mubr.bf16.mxu0 %v2937
        %3180 = vmatmul.mubr.bf16.gmra.mrb[0].mxu0 %v2936
        %v3181 = vpop.f32.mrb[0].mxu0
        %v3182 = vadd.f32 %v3007, %v3181
        %v3183 = vpop.f32.mrb[0].mxu0
        %v3184 = vpop.f32.mrb[0].mxu0
        %v3185 = vadd.f32 %v3008, %v3184
        %v3186 = vpop.f32.mrb[0].mxu0
        %3187 = vmatprep.mubr.bf16.mxu0 %v2939
        %3188 = vmatmul.mubr.bf16.gmra.mrb[0].mxu0 %v2938
        %v3189 = vpop.f32.mrb[0].mxu0
        %v3190 = vadd.f32 %v3009, %v3189
        %v3191 = vpop.f32.mrb[0].mxu0
        %v3192 = vpop.f32.mrb[0].mxu0
        %v3193 = vadd.f32 %v3010, %v3192
        %v3194 = vpop.f32.mrb[0].mxu0
        %3195 = vmatprep.mubr.bf16.mxu0 %v2941
        %3196 = vmatmul.mubr.bf16.gmra.mrb[0].mxu0 %v2940
        %v3197 = vpop.f32.mrb[0].mxu0
        %v3198 = vadd.f32 %v3011, %v3197
        %v3199 = vpop.f32.mrb[0].mxu0
        %v3200 = vpop.f32.mrb[0].mxu0
        %v3201 = vadd.f32 %v3012, %v3200
        %v3202 = vpop.f32.mrb[0].mxu0
        %3203 = vmatprep.mubr.bf16.mxu0 %v2943
        %3204 = vmatmul.mubr.bf16.gmra.mrb[0].mxu0 %v2942
        %v3205 = vpop.f32.mrb[0].mxu0
        %v3206 = vadd.f32 %v3013, %v3205
        %v3207 = vpop.f32.mrb[0].mxu0
        %v3208 = vpop.f32.mrb[0].mxu0
        %v3209 = vadd.f32 %v3014, %v3208
        %v3210 = vpop.f32.mrb[0].mxu0
        %3211 = vmatprep.mubr.bf16.mxu0 %v2945
        %3212 = vmatmul.mubr.bf16.gmra.mrb[0].mxu0 %v2944
        %v3213 = vpop.f32.mrb[0].mxu0
        %v3214 = vadd.f32 %v3015, %v3213
        %v3215 = vpop.f32.mrb[0].mxu0
        %v3216 = vpop.f32.mrb[0].mxu0
        %v3217 = vadd.f32 %v3016, %v3216
        %v3218 = vpop.f32.mrb[0].mxu0
        %3219 = vmatprep.mubr.bf16.mxu0 %v2947
        %3220 = vmatmul.mubr.bf16.gmra.mrb[0].mxu0 %v2946
        %v3221 = vpop.f32.mrb[0].mxu0
        %v3222 = vadd.f32 %v3017, %v3221
        %v3223 = vpop.f32.mrb[0].mxu0
        %v3224 = vpop.f32.mrb[0].mxu0
        %v3225 = vadd.f32 %v3018, %v3224
        %v3226 = vpop.f32.mrb[0].mxu0
        %3227 = vmatprep.mubr.bf16.mxu0 %v2949
        %3228 = vmatmul.mubr.bf16.gmra.mrb[0].mxu0 %v2948
        %v3229 = vpop.f32.mrb[0].mxu0
        %v3230 = vadd.f32 %v3019, %v3229
        %v3231 = vpop.f32.mrb[0].mxu0
        %v3232 = vpop.f32.mrb[0].mxu0
        %v3233 = vadd.f32 %v3020, %v3232
        %v3234 = vpop.f32.mrb[0].mxu0
        %3235 = vmatprep.mubr.bf16.mxu0 %v2951
        %3236 = vmatmul.mubr.bf16.gmra.mrb[0].mxu0 %v2950
        %v3237 = vpop.f32.mrb[0].mxu0
        %v3238 = vadd.f32 %v3021, %v3237
        %v3239 = vpop.f32.mrb[0].mxu0
        %v3240 = vpop.f32.mrb[0].mxu0
        %v3241 = vadd.f32 %v3022, %v3240
        %v3242 = vpop.f32.mrb[0].mxu0
        %3243 = vmatprep.mubr.bf16.mxu0 %v2953
        %3244 = vmatmul.mubr.bf16.gmra.mrb[0].mxu0 %v2952
        %v3245 = vpop.f32.mrb[0].mxu0
        %v3246 = vadd.f32 %v3023, %v3245
        %v3247 = vpop.f32.mrb[0].mxu0
        %v3248 = vpop.f32.mrb[0].mxu0
        %v3249 = vadd.f32 %v3024, %v3248
        %v3250 = vpop.f32.mrb[0].mxu0
        %3251 = vmatprep.mubr.bf16.mxu0 %v2955
        %3252 = vmatmul.mubr.bf16.gmra.mrb[0].mxu0 %v2954
        %v3253 = vpop.f32.mrb[0].mxu0
        %v3254 = vadd.f32 %v3025, %v3253
        %v3255 = vpop.f32.mrb[0].mxu0
        %v3256 = vpop.f32.mrb[0].mxu0
        %v3257 = vadd.f32 %v3026, %v3256
        %v3258 = vpop.f32.mrb[0].mxu0
        %3259 = vmatprep.mubr.bf16.mxu0 %v2957
        %3260 = vmatmul.mubr.bf16.gmra.mrb[0].mxu0 %v2956
        %v3261 = vpop.f32.mrb[0].mxu0
        %v3262 = vadd.f32 %v3027, %v3261
        %v3263 = vpop.f32.mrb[0].mxu0
        %v3264 = vpop.f32.mrb[0].mxu0
        %v3265 = vadd.f32 %v3028, %v3264
        %v3266 = vpop.f32.mrb[0].mxu0
        %3267 = vmatprep.mubr.bf16.mxu0 %v2959
        %3268 = vmatmul.mubr.bf16.gmra.mrb[0].mxu0 %v2958
        %v3269 = vpop.f32.mrb[0].mxu0
        %v3270 = vadd.f32 %v3029, %v3269
        %v3271 = vpop.f32.mrb[0].mxu0
        %v3272 = vpop.f32.mrb[0].mxu0
        %v3273 = vadd.f32 %v3030, %v3272
        %v3274 = vpop.f32.mrb[0].mxu0
        %3275 = vmatprep.mubr.bf16.mxu0 %v2961
        %3276 = vmatmul.mubr.bf16.gmra.mrb[0].mxu0 %v2960
        %v3277 = vpop.f32.mrb[0].mxu0
        %v3278 = vadd.f32 %v3031, %v3277
        %v3279 = vpop.f32.mrb[0].mxu0
        %v3280 = vpop.f32.mrb[0].mxu0
        %v3281 = vadd.f32 %v3032, %v3280
        %v3282 = vpop.f32.mrb[0].mxu0
        %3283 = vmatprep.mubr.bf16.mxu0 %v2963
        %3284 = vmatmul.mubr.bf16.gmra.mrb[0].mxu0 %v2962
        %v3285 = vpop.f32.mrb[0].mxu0
        %v3286 = vadd.f32 %v3033, %v3285
        %v3287 = vpop.f32.mrb[0].mxu0
        %v3288 = vpop.f32.mrb[0].mxu0
        %v3289 = vadd.f32 %v3034, %v3288
        %v3290 = vpop.f32.mrb[0].mxu0
        %3291 = vdwg.mxu0
        %v3292 = vld [vmem:[%s1145] sm:$0x1]
        %v3294 = vlaneseq
        %v3295 = vshrl.u32 %v3294, 7
        %v3296 = vsub.s32 0, %v3295
        %v3297 = vrot.slane %v3292, %v3296
        %v3299 = vadd.f32 %v3166, %v3297
        %v3300 = vadd.f32 %v3169, %v3297
        %v3301 = vadd.f32 %v3174, %v3297
        %v3302 = vadd.f32 %v3177, %v3297
        %v3303 = vadd.f32 %v3182, %v3297
        %v3304 = vadd.f32 %v3185, %v3297
        %v3305 = vadd.f32 %v3190, %v3297
        %v3306 = vadd.f32 %v3193, %v3297
        %v3307 = vadd.f32 %v3198, %v3297
        %v3308 = vadd.f32 %v3201, %v3297
        %v3309 = vadd.f32 %v3206, %v3297
        %v3310 = vadd.f32 %v3209, %v3297
        %v3311 = vadd.f32 %v3214, %v3297
        %v3312 = vadd.f32 %v3217, %v3297
        %v3313 = vadd.f32 %v3222, %v3297
        %v3314 = vadd.f32 %v3225, %v3297
        %v3315 = vadd.f32 %v3230, %v3297
        %v3316 = vadd.f32 %v3233, %v3297
        %v3317 = vadd.f32 %v3238, %v3297
        %v3318 = vadd.f32 %v3241, %v3297
        %v3319 = vadd.f32 %v3246, %v3297
        %v3320 = vadd.f32 %v3249, %v3297
        %v3321 = vadd.f32 %v3254, %v3297
        %v3322 = vadd.f32 %v3257, %v3297
        %v3323 = vadd.f32 %v3262, %v3297
        %v3324 = vadd.f32 %v3265, %v3297
        %v3325 = vadd.f32 %v3270, %v3297
        %v3326 = vadd.f32 %v3273, %v3297
        %v3327 = vadd.f32 %v3278, %v3297
        %v3328 = vadd.f32 %v3281, %v3297
        %v3329 = vadd.f32 %v3286, %v3297
        %v3330 = vadd.f32 %v3289, %v3297
        %v3331 = vxor.u32 %v3299, 2147483648
        %v3332 = vxor.u32 %v3300, 2147483648
        %v3333 = vxor.u32 %v3301, 2147483648
        %v3334 = vxor.u32 %v3302, 2147483648
        %v3335 = vxor.u32 %v3303, 2147483648
        %v3336 = vxor.u32 %v3304, 2147483648
        %v3337 = vxor.u32 %v3305, 2147483648
        %v3338 = vxor.u32 %v3306, 2147483648
        %v3339 = vxor.u32 %v3307, 2147483648
        %v3340 = vxor.u32 %v3308, 2147483648
        %v3341 = vxor.u32 %v3309, 2147483648
        %v3342 = vxor.u32 %v3310, 2147483648
        %v3343 = vxor.u32 %v3311, 2147483648
        %v3344 = vxor.u32 %v3312, 2147483648
        %v3345 = vxor.u32 %v3313, 2147483648
        %v3346 = vxor.u32 %v3314, 2147483648
        %v3347 = vxor.u32 %v3315, 2147483648
        %v3348 = vxor.u32 %v3316, 2147483648
        %v3349 = vxor.u32 %v3317, 2147483648
        %v3350 = vxor.u32 %v3318, 2147483648
        %v3351 = vxor.u32 %v3319, 2147483648
        %v3352 = vxor.u32 %v3320, 2147483648
        %v3353 = vxor.u32 %v3321, 2147483648
        %v3354 = vxor.u32 %v3322, 2147483648
        %v3355 = vxor.u32 %v3323, 2147483648
        %v3356 = vxor.u32 %v3324, 2147483648
        %v3357 = vxor.u32 %v3325, 2147483648
        %v3358 = vxor.u32 %v3326, 2147483648
        %v3359 = vxor.u32 %v3327, 2147483648
        %v3360 = vxor.u32 %v3328, 2147483648
        %v3361 = vxor.u32 %v3329, 2147483648
        %v3362 = vxor.u32 %v3330, 2147483648
        %v3363 = vmul.f32 %v3331, 1.442695
        %v3364 = vpow.pop %v3363
        %v3365 = vmul.f32 %v3332, 1.442695
        %v3366 = vpow.pop %v3365
        %v3367 = vmul.f32 %v3333, 1.442695
        %v3368 = vpow.pop %v3367
        %v3369 = vmul.f32 %v3334, 1.442695
        %v3370 = vpow.pop %v3369
        %v3371 = vmul.f32 %v3335, 1.442695
        %v3372 = vpow.pop %v3371
        %v3373 = vmul.f32 %v3336, 1.442695
        %v3374 = vpow.pop %v3373
        %v3375 = vmul.f32 %v3337, 1.442695
        %v3376 = vpow.pop %v3375
        %v3377 = vmul.f32 %v3338, 1.442695
        %v3378 = vpow.pop %v3377
        %v3379 = vmul.f32 %v3339, 1.442695
        %v3380 = vpow.pop %v3379
        %v3381 = vmul.f32 %v3340, 1.442695
        %v3382 = vpow.pop %v3381
        %v3383 = vmul.f32 %v3341, 1.442695
        %v3384 = vpow.pop %v3383
        %v3385 = vmul.f32 %v3342, 1.442695
        %v3386 = vpow.pop %v3385
        %v3387 = vmul.f32 %v3343, 1.442695
        %v3388 = vpow.pop %v3387
        %v3389 = vmul.f32 %v3344, 1.442695
        %v3390 = vpow.pop %v3389
        %v3391 = vmul.f32 %v3345, 1.442695
        %v3392 = vpow.pop %v3391
        %v3393 = vmul.f32 %v3346, 1.442695
        %v3394 = vpow.pop %v3393
        %v3395 = vmul.f32 %v3347, 1.442695
        %v3396 = vpow.pop %v3395
        %v3397 = vmul.f32 %v3348, 1.442695
        %v3398 = vpow.pop %v3397
        %v3399 = vmul.f32 %v3349, 1.442695
        %v3400 = vpow.pop %v3399
        %v3401 = vmul.f32 %v3350, 1.442695
        %v3402 = vpow.pop %v3401
        %v3403 = vmul.f32 %v3351, 1.442695
        %v3404 = vpow.pop %v3403
        %v3405 = vmul.f32 %v3352, 1.442695
        %v3406 = vpow.pop %v3405
        %v3407 = vmul.f32 %v3353, 1.442695
        %v3408 = vpow.pop %v3407
        %v3409 = vmul.f32 %v3354, 1.442695
        %v3410 = vpow.pop %v3409
        %v3411 = vmul.f32 %v3355, 1.442695
        %v3412 = vpow.pop %v3411
        %v3413 = vmul.f32 %v3356, 1.442695
        %v3414 = vpow.pop %v3413
        %v3415 = vmul.f32 %v3357, 1.442695
        %v3416 = vpow.pop %v3415
        %v3417 = vmul.f32 %v3358, 1.442695
        %v3418 = vpow.pop %v3417
        %v3419 = vmul.f32 %v3359, 1.442695
        %v3420 = vpow.pop %v3419
        %v3421 = vmul.f32 %v3360, 1.442695
        %v3422 = vpow.pop %v3421
        %v3423 = vmul.f32 %v3361, 1.442695
        %v3424 = vpow.pop %v3423
        %v3425 = vmul.f32 %v3362, 1.442695
        %v3426 = vpow.pop %v3425
        %v3427 = vadd.f32 %v3364, 1.0
        %v3428 = vadd.f32 %v3366, 1.0
        %v3429 = vadd.f32 %v3368, 1.0
        %v3430 = vadd.f32 %v3370, 1.0
        %v3431 = vadd.f32 %v3372, 1.0
        %v3432 = vadd.f32 %v3374, 1.0
        %v3433 = vadd.f32 %v3376, 1.0
        %v3434 = vadd.f32 %v3378, 1.0
        %v3435 = vadd.f32 %v3380, 1.0
        %v3436 = vadd.f32 %v3382, 1.0
        %v3437 = vadd.f32 %v3384, 1.0
        %v3438 = vadd.f32 %v3386, 1.0
        %v3439 = vadd.f32 %v3388, 1.0
        %v3440 = vadd.f32 %v3390, 1.0
        %v3441 = vadd.f32 %v3392, 1.0
        %v3442 = vadd.f32 %v3394, 1.0
        %v3443 = vadd.f32 %v3396, 1.0
        %v3444 = vadd.f32 %v3398, 1.0
        %v3445 = vadd.f32 %v3400, 1.0
        %v3446 = vadd.f32 %v3402, 1.0
        %v3447 = vadd.f32 %v3404, 1.0
        %v3448 = vadd.f32 %v3406, 1.0
        %v3449 = vadd.f32 %v3408, 1.0
        %v3450 = vadd.f32 %v3410, 1.0
        %v3451 = vadd.f32 %v3412, 1.0
        %v3452 = vadd.f32 %v3414, 1.0
        %v3453 = vadd.f32 %v3416, 1.0
        %v3454 = vadd.f32 %v3418, 1.0
        %v3455 = vadd.f32 %v3420, 1.0
        %v3456 = vadd.f32 %v3422, 1.0
        %v3457 = vadd.f32 %v3424, 1.0
        %v3458 = vadd.f32 %v3426, 1.0
        %v3459 = vrcp.pop %v3427
        %v3460 = vmul.f32 1.0, %v3459
        %v3461 = vrcp.pop %v3428
        %v3462 = vmul.f32 1.0, %v3461
        %v3463 = vrcp.pop %v3429
        %v3464 = vmul.f32 1.0, %v3463
        %v3465 = vrcp.pop %v3430
        %v3466 = vmul.f32 1.0, %v3465
        %v3467 = vrcp.pop %v3431
        %v3468 = vmul.f32 1.0, %v3467
        %v3469 = vrcp.pop %v3432
        %v3470 = vmul.f32 1.0, %v3469
        %v3471 = vrcp.pop %v3433
        %v3472 = vmul.f32 1.0, %v3471
        %v3473 = vrcp.pop %v3434
        %v3474 = vmul.f32 1.0, %v3473
        %v3475 = vrcp.pop %v3435
        %v3476 = vmul.f32 1.0, %v3475
        %v3477 = vrcp.pop %v3436
        %v3478 = vmul.f32 1.0, %v3477
        %v3479 = vrcp.pop %v3437
        %v3480 = vmul.f32 1.0, %v3479
        %v3481 = vrcp.pop %v3438
        %v3482 = vmul.f32 1.0, %v3481
        %v3483 = vrcp.pop %v3439
        %v3484 = vmul.f32 1.0, %v3483
        %v3485 = vrcp.pop %v3440
        %v3486 = vmul.f32 1.0, %v3485
        %v3487 = vrcp.pop %v3441
        %v3488 = vmul.f32 1.0, %v3487
        %v3489 = vrcp.pop %v3442
        %v3490 = vmul.f32 1.0, %v3489
        %v3491 = vrcp.pop %v3443
        %v3492 = vmul.f32 1.0, %v3491
        %v3493 = vrcp.pop %v3444
        %v3494 = vmul.f32 1.0, %v3493
        %v3495 = vrcp.pop %v3445
        %v3496 = vmul.f32 1.0, %v3495
        %v3497 = vrcp.pop %v3446
        %v3498 = vmul.f32 1.0, %v3497
        %v3499 = vrcp.pop %v3447
        %v3500 = vmul.f32 1.0, %v3499
        %v3501 = vrcp.pop %v3448
        %v3502 = vmul.f32 1.0, %v3501
        %v3503 = vrcp.pop %v3449
        %v3504 = vmul.f32 1.0, %v3503
        %v3505 = vrcp.pop %v3450
        %v3506 = vmul.f32 1.0, %v3505
        %v3507 = vrcp.pop %v3451
        %v3508 = vmul.f32 1.0, %v3507
        %v3509 = vrcp.pop %v3452
        %v3510 = vmul.f32 1.0, %v3509
        %v3511 = vrcp.pop %v3453
        %v3512 = vmul.f32 1.0, %v3511
        %v3513 = vrcp.pop %v3454
        %v3514 = vmul.f32 1.0, %v3513
        %v3515 = vrcp.pop %v3455
        %v3516 = vmul.f32 1.0, %v3515
        %v3517 = vrcp.pop %v3456
        %v3518 = vmul.f32 1.0, %v3517
        %v3519 = vrcp.pop %v3457
        %v3520 = vmul.f32 1.0, %v3519
        %v3521 = vrcp.pop %v3458
        %v3522 = vmul.f32 1.0, %v3521
        %v3523 = vmul.f32 %v3299, %v3460
        %v3524 = vmul.f32 %v3300, %v3462
        %v3525 = vmul.f32 %v3301, %v3464
        %v3526 = vmul.f32 %v3302, %v3466
        %v3527 = vmul.f32 %v3303, %v3468
        %v3528 = vmul.f32 %v3304, %v3470
        %v3529 = vmul.f32 %v3305, %v3472
        %v3530 = vmul.f32 %v3306, %v3474
        %v3531 = vmul.f32 %v3307, %v3476
        %v3532 = vmul.f32 %v3308, %v3478
        %v3533 = vmul.f32 %v3309, %v3480
        %v3534 = vmul.f32 %v3310, %v3482
        %v3535 = vmul.f32 %v3311, %v3484
        %v3536 = vmul.f32 %v3312, %v3486
        %v3537 = vmul.f32 %v3313, %v3488
        %v3538 = vmul.f32 %v3314, %v3490
        %v3539 = vmul.f32 %v3315, %v3492
        %v3540 = vmul.f32 %v3316, %v3494
        %v3541 = vmul.f32 %v3317, %v3496
        %v3542 = vmul.f32 %v3318, %v3498
        %v3543 = vmul.f32 %v3319, %v3500
        %v3544 = vmul.f32 %v3320, %v3502
        %v3545 = vmul.f32 %v3321, %v3504
        %v3546 = vmul.f32 %v3322, %v3506
        %v3547 = vmul.f32 %v3323, %v3508
        %v3548 = vmul.f32 %v3324, %v3510
        %v3549 = vmul.f32 %v3325, %v3512
        %v3550 = vmul.f32 %v3326, %v3514
        %v3551 = vmul.f32 %v3327, %v3516
        %v3552 = vmul.f32 %v3328, %v3518
        %v3553 = vmul.f32 %v3329, %v3520
        %v3554 = vmul.f32 %v3330, %v3522
        %v3555 = vld [vmem:[%s1154] sm:$0xf]
        %v3556 = vld [vmem:[%s1154 + $0x4] sm:$0xf]
        %v3557 = vld [vmem:[%s1154 + $0x8] sm:$0xf]
        %v3558 = vld [vmem:[%s1154 + $0xc] sm:$0xf]
        %v3559 = vld [vmem:[%s1154 + $0x10] sm:$0xf]
        %v3560 = vld [vmem:[%s1154 + $0x14] sm:$0xf]
        %v3561 = vld [vmem:[%s1154 + $0x18] sm:$0xf]
        %v3562 = vld [vmem:[%s1154 + $0x1c] sm:$0xf]
        %v3563 = vld [vmem:[%s1154 + $0x20] sm:$0xf]
        %v3564 = vld [vmem:[%s1154 + $0x24] sm:$0xf]
        %v3565 = vld [vmem:[%s1154 + $0x28] sm:$0xf]
        %v3566 = vld [vmem:[%s1154 + $0x2c] sm:$0xf]
        %v3567 = vld [vmem:[%s1154 + $0x30] sm:$0xf]
        %v3568 = vld [vmem:[%s1154 + $0x34] sm:$0xf]
        %v3569 = vld [vmem:[%s1154 + $0x38] sm:$0xf]
        %v3570 = vld [vmem:[%s1154 + $0x3c] sm:$0xf]
        %v3571 = vpack.c.bf16 %v3524, %v3523
        %v3572 = vpack.c.bf16 %v3526, %v3525
        %v3573 = vpack.c.bf16 %v3528, %v3527
        %v3574 = vpack.c.bf16 %v3530, %v3529
        %v3575 = vpack.c.bf16 %v3532, %v3531
        %v3576 = vpack.c.bf16 %v3534, %v3533
        %v3577 = vpack.c.bf16 %v3536, %v3535
        %v3578 = vpack.c.bf16 %v3538, %v3537
        %v3579 = vpack.c.bf16 %v3540, %v3539
        %v3580 = vpack.c.bf16 %v3542, %v3541
        %v3581 = vpack.c.bf16 %v3544, %v3543
        %v3582 = vpack.c.bf16 %v3546, %v3545
        %v3583 = vpack.c.bf16 %v3548, %v3547
        %v3584 = vpack.c.bf16 %v3550, %v3549
        %v3585 = vpack.c.bf16 %v3552, %v3551
        %v3586 = vpack.c.bf16 %v3554, %v3553
        %v3587 = vld [vmem:[%s1162] sm:$0x1]
        %v3589 = vlaneseq
        %v3590 = vshrl.u32 %v3589, 7
        %v3591 = vsub.s32 0, %v3590
        %v3592 = vrot.slane %v3587, %v3591
        %v3610 = vunpack.c.l.b16 %v3555
        %v3611 = vunpack.c.l.b16 %v3556
        %v3612 = vunpack.c.l.b16 %v3557
        %v3613 = vunpack.c.l.b16 %v3558
        %v3614 = vunpack.c.l.b16 %v3559
        %v3615 = vunpack.c.l.b16 %v3560
        %v3616 = vunpack.c.l.b16 %v3561
        %v3617 = vunpack.c.l.b16 %v3562
        %v3618 = vunpack.c.l.b16 %v3563
        %v3619 = vunpack.c.l.b16 %v3564
        %v3620 = vunpack.c.l.b16 %v3565
        %v3621 = vunpack.c.l.b16 %v3566
        %v3622 = vunpack.c.l.b16 %v3567
        %v3623 = vunpack.c.l.b16 %v3568
        %v3624 = vunpack.c.l.b16 %v3569
        %v3625 = vunpack.c.l.b16 %v3570
        %v3626 = vpack.c.b16 %v3611, %v3610
        %v3627 = vpack.c.b16 %v3613, %v3612
        %v3628 = vpack.c.b16 %v3615, %v3614
        %v3629 = vpack.c.b16 %v3617, %v3616
        %v3630 = vpack.c.b16 %v3619, %v3618
        %v3631 = vpack.c.b16 %v3621, %v3620
        %v3632 = vpack.c.b16 %v3623, %v3622
        %v3633 = vpack.c.b16 %v3625, %v3624
        %3642 = vmatprep.subr.bf16.mxu0 0
        %3643 = vmatpush1.bf16.msra.mxu0 %v3626
        %3644 = vmatprep.subr.bf16.mxu0 0
        %3645 = vmatpush1.bf16.msra.mxu0 %v3627
        %3646 = vmatprep.subr.bf16.mxu0 0
        %3647 = vmatpush1.bf16.msra.mxu0 %v3628
        %3648 = vmatprep.subr.bf16.mxu0 0
        %3649 = vmatpush1.bf16.msra.mxu0 %v3629
        %3650 = vmatprep.subr.bf16.mxu0 0
        %3651 = vmatpush1.bf16.msra.mxu0 %v3630
        %3652 = vmatprep.subr.bf16.mxu0 0
        %3653 = vmatpush1.bf16.msra.mxu0 %v3631
        %3654 = vmatprep.subr.bf16.mxu0 0
        %3655 = vmatpush1.bf16.msra.mxu0 %v3632
        %3656 = vmatprep.subr.bf16.mxu0 0
        %3657 = vmatpush1.bf16.msra.mxu0 %v3633
        %3658 = vmatprep.subr.bf16.mxu0 0
        %3659 = vmatpush1.bf16.msra.mxu0 0
        %3660 = vmatprep.subr.bf16.mxu0 0
        %3661 = vmatpush1.bf16.msra.mxu0 0
        %3662 = vmatprep.subr.bf16.mxu0 0
        %3663 = vmatpush1.bf16.msra.mxu0 0
        %3664 = vmatprep.subr.bf16.mxu0 0
        %3665 = vmatpush1.bf16.msra.mxu0 0
        %3666 = vmatprep.subr.bf16.mxu0 0
        %3667 = vmatpush1.bf16.msra.mxu0 0
        %3668 = vmatprep.subr.bf16.mxu0 0
        %3669 = vmatpush1.bf16.msra.mxu0 0
        %3670 = vmatprep.subr.bf16.mxu0 0
        %3671 = vmatpush1.bf16.msra.mxu0 0
        %3672 = vmatprep.subr.bf16.mxu0 0
        %3673 = vmatpush1.bf16.msra.mxu0 0
        %3674 = vmatprep.mubr.bf16.mxu0 0
        %3675 = vmatmul.mubr.bf16.gmra.mrb[0].mxu0 %v3571
        %v3676 = vpop.f32.mrb[0].mxu0
        %v3677 = vadd.f32 %v3592, %v3676
        %v3678 = vpop.f32.mrb[0].mxu0
        %v3679 = vpop.f32.mrb[0].mxu0
        %v3680 = vadd.f32 %v3592, %v3679
        %v3681 = vpop.f32.mrb[0].mxu0
        %3682 = vmatprep.mubr.bf16.mxu0 0
        %3683 = vmatmul.mubr.bf16.gmra.mrb[0].mxu0 %v3572
        %v3684 = vpop.f32.mrb[0].mxu0
        %v3685 = vadd.f32 %v3592, %v3684
        %v3686 = vpop.f32.mrb[0].mxu0
        %v3687 = vpop.f32.mrb[0].mxu0
        %v3688 = vadd.f32 %v3592, %v3687
        %v3689 = vpop.f32.mrb[0].mxu0
        %3690 = vmatprep.mubr.bf16.mxu0 0
        %3691 = vmatmul.mubr.bf16.gmra.mrb[0].mxu0 %v3573
        %v3692 = vpop.f32.mrb[0].mxu0
        %v3693 = vadd.f32 %v3592, %v3692
        %v3694 = vpop.f32.mrb[0].mxu0
        %v3695 = vpop.f32.mrb[0].mxu0
        %v3696 = vadd.f32 %v3592, %v3695
        %v3697 = vpop.f32.mrb[0].mxu0
        %3698 = vmatprep.mubr.bf16.mxu0 0
        %3699 = vmatmul.mubr.bf16.gmra.mrb[0].mxu0 %v3574
        %v3700 = vpop.f32.mrb[0].mxu0
        %v3701 = vadd.f32 %v3592, %v3700
        %v3702 = vpop.f32.mrb[0].mxu0
        %v3703 = vpop.f32.mrb[0].mxu0
        %v3704 = vadd.f32 %v3592, %v3703
        %v3705 = vpop.f32.mrb[0].mxu0
        %3706 = vmatprep.mubr.bf16.mxu0 0
        %3707 = vmatmul.mubr.bf16.gmra.mrb[0].mxu0 %v3575
        %v3708 = vpop.f32.mrb[0].mxu0
        %v3709 = vadd.f32 %v3592, %v3708
        %v3710 = vpop.f32.mrb[0].mxu0
        %v3711 = vpop.f32.mrb[0].mxu0
        %v3712 = vadd.f32 %v3592, %v3711
        %v3713 = vpop.f32.mrb[0].mxu0
        %3714 = vmatprep.mubr.bf16.mxu0 0
        %3715 = vmatmul.mubr.bf16.gmra.mrb[0].mxu0 %v3576
        %v3716 = vpop.f32.mrb[0].mxu0
        %v3717 = vadd.f32 %v3592, %v3716
        %v3718 = vpop.f32.mrb[0].mxu0
        %v3719 = vpop.f32.mrb[0].mxu0
        %v3720 = vadd.f32 %v3592, %v3719
        %v3721 = vpop.f32.mrb[0].mxu0
        %3722 = vmatprep.mubr.bf16.mxu0 0
        %3723 = vmatmul.mubr.bf16.gmra.mrb[0].mxu0 %v3577
        %v3724 = vpop.f32.mrb[0].mxu0
        %v3725 = vadd.f32 %v3592, %v3724
        %v3726 = vpop.f32.mrb[0].mxu0
        %v3727 = vpop.f32.mrb[0].mxu0
        %v3728 = vadd.f32 %v3592, %v3727
        %v3729 = vpop.f32.mrb[0].mxu0
        %3730 = vmatprep.mubr.bf16.mxu0 0
        %3731 = vmatmul.mubr.bf16.gmra.mrb[0].mxu0 %v3578
        %v3732 = vpop.f32.mrb[0].mxu0
        %v3733 = vadd.f32 %v3592, %v3732
        %v3734 = vpop.f32.mrb[0].mxu0
        %v3735 = vpop.f32.mrb[0].mxu0
        %v3736 = vadd.f32 %v3592, %v3735
        %v3737 = vpop.f32.mrb[0].mxu0
        %3738 = vmatprep.mubr.bf16.mxu0 0
        %3739 = vmatmul.mubr.bf16.gmra.mrb[0].mxu0 %v3579
        %v3740 = vpop.f32.mrb[0].mxu0
        %v3741 = vadd.f32 %v3592, %v3740
        %v3742 = vpop.f32.mrb[0].mxu0
        %v3743 = vpop.f32.mrb[0].mxu0
        %v3744 = vadd.f32 %v3592, %v3743
        %v3745 = vpop.f32.mrb[0].mxu0
        %3746 = vmatprep.mubr.bf16.mxu0 0
        %3747 = vmatmul.mubr.bf16.gmra.mrb[0].mxu0 %v3580
        %v3748 = vpop.f32.mrb[0].mxu0
        %v3749 = vadd.f32 %v3592, %v3748
        %v3750 = vpop.f32.mrb[0].mxu0
        %v3751 = vpop.f32.mrb[0].mxu0
        %v3752 = vadd.f32 %v3592, %v3751
        %v3753 = vpop.f32.mrb[0].mxu0
        %3754 = vmatprep.mubr.bf16.mxu0 0
        %3755 = vmatmul.mubr.bf16.gmra.mrb[0].mxu0 %v3581
        %v3756 = vpop.f32.mrb[0].mxu0
        %v3757 = vadd.f32 %v3592, %v3756
        %v3758 = vpop.f32.mrb[0].mxu0
        %v3759 = vpop.f32.mrb[0].mxu0
        %v3760 = vadd.f32 %v3592, %v3759
        %v3761 = vpop.f32.mrb[0].mxu0
        %3762 = vmatprep.mubr.bf16.mxu0 0
        %3763 = vmatmul.mubr.bf16.gmra.mrb[0].mxu0 %v3582
        %v3764 = vpop.f32.mrb[0].mxu0
        %v3765 = vadd.f32 %v3592, %v3764
        %v3766 = vpop.f32.mrb[0].mxu0
        %v3767 = vpop.f32.mrb[0].mxu0
        %v3768 = vadd.f32 %v3592, %v3767
        %v3769 = vpop.f32.mrb[0].mxu0
        %3770 = vmatprep.mubr.bf16.mxu0 0
        %3771 = vmatmul.mubr.bf16.gmra.mrb[0].mxu0 %v3583
        %v3772 = vpop.f32.mrb[0].mxu0
        %v3773 = vadd.f32 %v3592, %v3772
        %v3774 = vpop.f32.mrb[0].mxu0
        %v3775 = vpop.f32.mrb[0].mxu0
        %v3776 = vadd.f32 %v3592, %v3775
        %v3777 = vpop.f32.mrb[0].mxu0
        %3778 = vmatprep.mubr.bf16.mxu0 0
        %3779 = vmatmul.mubr.bf16.gmra.mrb[0].mxu0 %v3584
        %v3780 = vpop.f32.mrb[0].mxu0
        %v3781 = vadd.f32 %v3592, %v3780
        %v3782 = vpop.f32.mrb[0].mxu0
        %v3783 = vpop.f32.mrb[0].mxu0
        %v3784 = vadd.f32 %v3592, %v3783
        %v3785 = vpop.f32.mrb[0].mxu0
        %3786 = vmatprep.mubr.bf16.mxu0 0
        %3787 = vmatmul.mubr.bf16.gmra.mrb[0].mxu0 %v3585
        %v3788 = vpop.f32.mrb[0].mxu0
        %v3789 = vadd.f32 %v3592, %v3788
        %v3790 = vpop.f32.mrb[0].mxu0
        %v3791 = vpop.f32.mrb[0].mxu0
        %v3792 = vadd.f32 %v3592, %v3791
        %v3793 = vpop.f32.mrb[0].mxu0
        %3794 = vmatprep.mubr.bf16.mxu0 0
        %3795 = vmatmul.mubr.bf16.gmra.mrb[0].mxu0 %v3586
        %v3796 = vpop.f32.mrb[0].mxu0
        %v3797 = vadd.f32 %v3592, %v3796
        %v3798 = vpop.f32.mrb[0].mxu0
        %v3799 = vpop.f32.mrb[0].mxu0
        %v3800 = vadd.f32 %v3592, %v3799
        %v3801 = vpop.f32.mrb[0].mxu0
        %3802 = vdwg.mxu0
        %v3803 = vxor.u32 %v3677, 2147483648
        %v3804 = vxor.u32 %v3680, 2147483648
        %v3805 = vxor.u32 %v3685, 2147483648
        %v3806 = vxor.u32 %v3688, 2147483648
        %v3807 = vxor.u32 %v3693, 2147483648
        %v3808 = vxor.u32 %v3696, 2147483648
        %v3809 = vxor.u32 %v3701, 2147483648
        %v3810 = vxor.u32 %v3704, 2147483648
        %v3811 = vxor.u32 %v3709, 2147483648
        %v3812 = vxor.u32 %v3712, 2147483648
        %v3813 = vxor.u32 %v3717, 2147483648
        %v3814 = vxor.u32 %v3720, 2147483648
        %v3815 = vxor.u32 %v3725, 2147483648
        %v3816 = vxor.u32 %v3728, 2147483648
        %v3817 = vxor.u32 %v3733, 2147483648
        %v3818 = vxor.u32 %v3736, 2147483648
        %v3819 = vxor.u32 %v3741, 2147483648
        %v3820 = vxor.u32 %v3744, 2147483648
        %v3821 = vxor.u32 %v3749, 2147483648
        %v3822 = vxor.u32 %v3752, 2147483648
        %v3823 = vxor.u32 %v3757, 2147483648
        %v3824 = vxor.u32 %v3760, 2147483648
        %v3825 = vxor.u32 %v3765, 2147483648
        %v3826 = vxor.u32 %v3768, 2147483648
        %v3827 = vxor.u32 %v3773, 2147483648
        %v3828 = vxor.u32 %v3776, 2147483648
        %v3829 = vxor.u32 %v3781, 2147483648
        %v3830 = vxor.u32 %v3784, 2147483648
        %v3831 = vxor.u32 %v3789, 2147483648
        %v3832 = vxor.u32 %v3792, 2147483648
        %v3833 = vxor.u32 %v3797, 2147483648
        %v3834 = vxor.u32 %v3800, 2147483648
        %v3835 = vmul.f32 %v3803, 1.442695
        %v3836 = vpow.pop %v3835
        %v3837 = vmul.f32 %v3804, 1.442695
        %v3838 = vpow.pop %v3837
        %v3839 = vmul.f32 %v3805, 1.442695
        %v3840 = vpow.pop %v3839
        %v3841 = vmul.f32 %v3806, 1.442695
        %v3842 = vpow.pop %v3841
        %v3843 = vmul.f32 %v3807, 1.442695
        %v3844 = vpow.pop %v3843
        %v3845 = vmul.f32 %v3808, 1.442695
        %v3846 = vpow.pop %v3845
        %v3847 = vmul.f32 %v3809, 1.442695
        %v3848 = vpow.pop %v3847
        %v3849 = vmul.f32 %v3810, 1.442695
        %v3850 = vpow.pop %v3849
        %v3851 = vmul.f32 %v3811, 1.442695
        %v3852 = vpow.pop %v3851
        %v3853 = vmul.f32 %v3812, 1.442695
        %v3854 = vpow.pop %v3853
        %v3855 = vmul.f32 %v3813, 1.442695
        %v3856 = vpow.pop %v3855
        %v3857 = vmul.f32 %v3814, 1.442695
        %v3858 = vpow.pop %v3857
        %v3859 = vmul.f32 %v3815, 1.442695
        %v3860 = vpow.pop %v3859
        %v3861 = vmul.f32 %v3816, 1.442695
        %v3862 = vpow.pop %v3861
        %v3863 = vmul.f32 %v3817, 1.442695
        %v3864 = vpow.pop %v3863
        %v3865 = vmul.f32 %v3818, 1.442695
        %v3866 = vpow.pop %v3865
        %v3867 = vmul.f32 %v3819, 1.442695
        %v3868 = vpow.pop %v3867
        %v3869 = vmul.f32 %v3820, 1.442695
        %v3870 = vpow.pop %v3869
        %v3871 = vmul.f32 %v3821, 1.442695
        %v3872 = vpow.pop %v3871
        %v3873 = vmul.f32 %v3822, 1.442695
        %v3874 = vpow.pop %v3873
        %v3875 = vmul.f32 %v3823, 1.442695
        %v3876 = vpow.pop %v3875
        %v3877 = vmul.f32 %v3824, 1.442695
        %v3878 = vpow.pop %v3877
        %v3879 = vmul.f32 %v3825, 1.442695
        %v3880 = vpow.pop %v3879
        %v3881 = vmul.f32 %v3826, 1.442695
        %v3882 = vpow.pop %v3881
        %v3883 = vmul.f32 %v3827, 1.442695
        %v3884 = vpow.pop %v3883
        %v3885 = vmul.f32 %v3828, 1.442695
        %v3886 = vpow.pop %v3885
        %v3887 = vmul.f32 %v3829, 1.442695
        %v3888 = vpow.pop %v3887
        %v3889 = vmul.f32 %v3830, 1.442695
        %v3890 = vpow.pop %v3889
        %v3891 = vmul.f32 %v3831, 1.442695
        %v3892 = vpow.pop %v3891
        %v3893 = vmul.f32 %v3832, 1.442695
        %v3894 = vpow.pop %v3893
        %v3895 = vmul.f32 %v3833, 1.442695
        %v3896 = vpow.pop %v3895
        %v3897 = vmul.f32 %v3834, 1.442695
        %v3898 = vpow.pop %v3897
        %v3899 = vadd.f32 %v3836, 1.0
        %v3900 = vadd.f32 %v3838, 1.0
        %v3901 = vadd.f32 %v3840, 1.0
        %v3902 = vadd.f32 %v3842, 1.0
        %v3903 = vadd.f32 %v3844, 1.0
        %v3904 = vadd.f32 %v3846, 1.0
        %v3905 = vadd.f32 %v3848, 1.0
        %v3906 = vadd.f32 %v3850, 1.0
        %v3907 = vadd.f32 %v3852, 1.0
        %v3908 = vadd.f32 %v3854, 1.0
        %v3909 = vadd.f32 %v3856, 1.0
        %v3910 = vadd.f32 %v3858, 1.0
        %v3911 = vadd.f32 %v3860, 1.0
        %v3912 = vadd.f32 %v3862, 1.0
        %v3913 = vadd.f32 %v3864, 1.0
        %v3914 = vadd.f32 %v3866, 1.0
        %v3915 = vadd.f32 %v3868, 1.0
        %v3916 = vadd.f32 %v3870, 1.0
        %v3917 = vadd.f32 %v3872, 1.0
        %v3918 = vadd.f32 %v3874, 1.0
        %v3919 = vadd.f32 %v3876, 1.0
        %v3920 = vadd.f32 %v3878, 1.0
        %v3921 = vadd.f32 %v3880, 1.0
        %v3922 = vadd.f32 %v3882, 1.0
        %v3923 = vadd.f32 %v3884, 1.0
        %v3924 = vadd.f32 %v3886, 1.0
        %v3925 = vadd.f32 %v3888, 1.0
        %v3926 = vadd.f32 %v3890, 1.0
        %v3927 = vadd.f32 %v3892, 1.0
        %v3928 = vadd.f32 %v3894, 1.0
        %v3929 = vadd.f32 %v3896, 1.0
        %v3930 = vadd.f32 %v3898, 1.0
        %v3931 = vrcp.pop %v3899
        %v3932 = vmul.f32 1.0, %v3931
        %v3933 = vrcp.pop %v3900
        %v3934 = vmul.f32 1.0, %v3933
        %v3935 = vrcp.pop %v3901
        %v3936 = vmul.f32 1.0, %v3935
        %v3937 = vrcp.pop %v3902
        %v3938 = vmul.f32 1.0, %v3937
        %v3939 = vrcp.pop %v3903
        %v3940 = vmul.f32 1.0, %v3939
        %v3941 = vrcp.pop %v3904
        %v3942 = vmul.f32 1.0, %v3941
        %v3943 = vrcp.pop %v3905
        %v3944 = vmul.f32 1.0, %v3943
        %v3945 = vrcp.pop %v3906
        %v3946 = vmul.f32 1.0, %v3945
        %v3947 = vrcp.pop %v3907
        %v3948 = vmul.f32 1.0, %v3947
        %v3949 = vrcp.pop %v3908
        %v3950 = vmul.f32 1.0, %v3949
        %v3951 = vrcp.pop %v3909
        %v3952 = vmul.f32 1.0, %v3951
        %v3953 = vrcp.pop %v3910
        %v3954 = vmul.f32 1.0, %v3953
        %v3955 = vrcp.pop %v3911
        %v3956 = vmul.f32 1.0, %v3955
        %v3957 = vrcp.pop %v3912
        %v3958 = vmul.f32 1.0, %v3957
        %v3959 = vrcp.pop %v3913
        %v3960 = vmul.f32 1.0, %v3959
        %v3961 = vrcp.pop %v3914
        %v3962 = vmul.f32 1.0, %v3961
        %v3963 = vrcp.pop %v3915
        %v3964 = vmul.f32 1.0, %v3963
        %v3965 = vrcp.pop %v3916
        %v3966 = vmul.f32 1.0, %v3965
        %v3967 = vrcp.pop %v3917
        %v3968 = vmul.f32 1.0, %v3967
        %v3969 = vrcp.pop %v3918
        %v3970 = vmul.f32 1.0, %v3969
        %v3971 = vrcp.pop %v3919
        %v3972 = vmul.f32 1.0, %v3971
        %v3973 = vrcp.pop %v3920
        %v3974 = vmul.f32 1.0, %v3973
        %v3975 = vrcp.pop %v3921
        %v3976 = vmul.f32 1.0, %v3975
        %v3977 = vrcp.pop %v3922
        %v3978 = vmul.f32 1.0, %v3977
        %v3979 = vrcp.pop %v3923
        %v3980 = vmul.f32 1.0, %v3979
        %v3981 = vrcp.pop %v3924
        %v3982 = vmul.f32 1.0, %v3981
        %v3983 = vrcp.pop %v3925
        %v3984 = vmul.f32 1.0, %v3983
        %v3985 = vrcp.pop %v3926
        %v3986 = vmul.f32 1.0, %v3985
        %v3987 = vrcp.pop %v3927
        %v3988 = vmul.f32 1.0, %v3987
        %v3989 = vrcp.pop %v3928
        %v3990 = vmul.f32 1.0, %v3989
        %v3991 = vrcp.pop %v3929
        %v3992 = vmul.f32 1.0, %v3991
        %v3993 = vrcp.pop %v3930
        %v3994 = vmul.f32 1.0, %v3993
        %v3995 = vmul.f32 %v3677, %v3932
        %v3996 = vmul.f32 %v3680, %v3934
        %v3997 = vmul.f32 %v3685, %v3936
        %v3998 = vmul.f32 %v3688, %v3938
        %v3999 = vmul.f32 %v3693, %v3940
        %v4000 = vmul.f32 %v3696, %v3942
        %v4001 = vmul.f32 %v3701, %v3944
        %v4002 = vmul.f32 %v3704, %v3946
        %v4003 = vmul.f32 %v3709, %v3948
        %v4004 = vmul.f32 %v3712, %v3950
        %v4005 = vmul.f32 %v3717, %v3952
        %v4006 = vmul.f32 %v3720, %v3954
        %v4007 = vmul.f32 %v3725, %v3956
        %v4008 = vmul.f32 %v3728, %v3958
        %v4009 = vmul.f32 %v3733, %v3960
        %v4010 = vmul.f32 %v3736, %v3962
        %v4011 = vmul.f32 %v3741, %v3964
        %v4012 = vmul.f32 %v3744, %v3966
        %v4013 = vmul.f32 %v3749, %v3968
        %v4014 = vmul.f32 %v3752, %v3970
        %v4015 = vmul.f32 %v3757, %v3972
        %v4016 = vmul.f32 %v3760, %v3974
        %v4017 = vmul.f32 %v3765, %v3976
        %v4018 = vmul.f32 %v3768, %v3978
        %v4019 = vmul.f32 %v3773, %v3980
        %v4020 = vmul.f32 %v3776, %v3982
        %v4021 = vmul.f32 %v3781, %v3984
        %v4022 = vmul.f32 %v3784, %v3986
        %v4023 = vmul.f32 %v3789, %v3988
        %v4024 = vmul.f32 %v3792, %v3990
        %v4025 = vmul.f32 %v3797, %v3992
        %v4026 = vmul.f32 %v3800, %v3994
        %v4027 = vld [vmem:[%s1170] sm:$0x1]
        %v4029 = vlaneseq
        %v4030 = vshrl.u32 %v4029, 7
        %v4031 = vsub.s32 0, %v4030
        %v4032 = vrot.slane %v4027, %v4031
        %v4034 = vmul.f32 %v3995, %v4032
        %v4035 = vmul.f32 %v3996, %v4032
        %v4036 = vmul.f32 %v3997, %v4032
        %v4037 = vmul.f32 %v3998, %v4032
        %v4038 = vmul.f32 %v3999, %v4032
        %v4039 = vmul.f32 %v4000, %v4032
        %v4040 = vmul.f32 %v4001, %v4032
        %v4041 = vmul.f32 %v4002, %v4032
        %v4042 = vmul.f32 %v4003, %v4032
        %v4043 = vmul.f32 %v4004, %v4032
        %v4044 = vmul.f32 %v4005, %v4032
        %v4045 = vmul.f32 %v4006, %v4032
        %v4046 = vmul.f32 %v4007, %v4032
        %v4047 = vmul.f32 %v4008, %v4032
        %v4048 = vmul.f32 %v4009, %v4032
        %v4049 = vmul.f32 %v4010, %v4032
        %v4050 = vmul.f32 %v4011, %v4032
        %v4051 = vmul.f32 %v4012, %v4032
        %v4052 = vmul.f32 %v4013, %v4032
        %v4053 = vmul.f32 %v4014, %v4032
        %v4054 = vmul.f32 %v4015, %v4032
        %v4055 = vmul.f32 %v4016, %v4032
        %v4056 = vmul.f32 %v4017, %v4032
        %v4057 = vmul.f32 %v4018, %v4032
        %v4058 = vmul.f32 %v4019, %v4032
        %v4059 = vmul.f32 %v4020, %v4032
        %v4060 = vmul.f32 %v4021, %v4032
        %v4061 = vmul.f32 %v4022, %v4032
        %v4062 = vmul.f32 %v4023, %v4032
        %v4063 = vmul.f32 %v4024, %v4032
        %v4064 = vmul.f32 %v4025, %v4032
        %v4065 = vmul.f32 %v4026, %v4032
        %4066 = vadd.xlane.f32.xlu0 %v4034
        %v4067 = vpop.xlane.xlu0 %4066
        %4068 = vadd.xlane.f32.xlu0 %v4035
        %v4069 = vpop.xlane.xlu0 %4068
        %4070 = vadd.xlane.f32.xlu0 %v4036
        %v4071 = vpop.xlane.xlu0 %4070
        %4072 = vadd.xlane.f32.xlu0 %v4037
        %v4073 = vpop.xlane.xlu0 %4072
        %4074 = vadd.xlane.f32.xlu0 %v4038
        %v4075 = vpop.xlane.xlu0 %4074
        %4076 = vadd.xlane.f32.xlu0 %v4039
        %v4077 = vpop.xlane.xlu0 %4076
        %4078 = vadd.xlane.f32.xlu0 %v4040
        %v4079 = vpop.xlane.xlu0 %4078
        %4080 = vadd.xlane.f32.xlu0 %v4041
        %v4081 = vpop.xlane.xlu0 %4080
        %4082 = vadd.xlane.f32.xlu0 %v4042
        %v4083 = vpop.xlane.xlu0 %4082
        %4084 = vadd.xlane.f32.xlu0 %v4043
        %v4085 = vpop.xlane.xlu0 %4084
        %4086 = vadd.xlane.f32.xlu0 %v4044
        %v4087 = vpop.xlane.xlu0 %4086
        %4088 = vadd.xlane.f32.xlu0 %v4045
        %v4089 = vpop.xlane.xlu0 %4088
        %4090 = vadd.xlane.f32.xlu0 %v4046
        %v4091 = vpop.xlane.xlu0 %4090
        %4092 = vadd.xlane.f32.xlu0 %v4047
        %v4093 = vpop.xlane.xlu0 %4092
        %4094 = vadd.xlane.f32.xlu0 %v4048
        %v4095 = vpop.xlane.xlu0 %4094
        %4096 = vadd.xlane.f32.xlu0 %v4049
        %v4097 = vpop.xlane.xlu0 %4096
        %4098 = vadd.xlane.f32.xlu0 %v4050
        %v4099 = vpop.xlane.xlu0 %4098
        %4100 = vadd.xlane.f32.xlu0 %v4051
        %v4101 = vpop.xlane.xlu0 %4100
        %4102 = vadd.xlane.f32.xlu0 %v4052
        %v4103 = vpop.xlane.xlu0 %4102
        %4104 = vadd.xlane.f32.xlu0 %v4053
        %v4105 = vpop.xlane.xlu0 %4104
        %4106 = vadd.xlane.f32.xlu0 %v4054
        %v4107 = vpop.xlane.xlu0 %4106
        %4108 = vadd.xlane.f32.xlu0 %v4055
        %v4109 = vpop.xlane.xlu0 %4108
        %4110 = vadd.xlane.f32.xlu0 %v4056
        %v4111 = vpop.xlane.xlu0 %4110
        %4112 = vadd.xlane.f32.xlu0 %v4057
        %v4113 = vpop.xlane.xlu0 %4112
        %4114 = vadd.xlane.f32.xlu0 %v4058
        %v4115 = vpop.xlane.xlu0 %4114
        %4116 = vadd.xlane.f32.xlu0 %v4059
        %v4117 = vpop.xlane.xlu0 %4116
        %4118 = vadd.xlane.f32.xlu0 %v4060
        %v4119 = vpop.xlane.xlu0 %4118
        %4120 = vadd.xlane.f32.xlu0 %v4061
        %v4121 = vpop.xlane.xlu0 %4120
        %4122 = vadd.xlane.f32.xlu0 %v4062
        %v4123 = vpop.xlane.xlu0 %4122
        %4124 = vadd.xlane.f32.xlu0 %v4063
        %v4125 = vpop.xlane.xlu0 %4124
        %4126 = vadd.xlane.f32.xlu0 %v4064
        %v4127 = vpop.xlane.xlu0 %4126
        %4128 = vadd.xlane.f32.xlu0 %v4065
        %v4129 = vpop.xlane.xlu0 %4128
        %v4130 = vld [vmem:[%s1178] sm:$0x1]
        %v4132 = vlaneseq
        %v4133 = vshrl.u32 %v4132, 7
        %v4134 = vsub.s32 0, %v4133
        %v4135 = vrot.slane %v4130, %v4134
        %v4137 = vadd.f32 %v4067, %v4135
        %v4138 = vadd.f32 %v4069, %v4135
        %v4139 = vadd.f32 %v4071, %v4135
        %v4140 = vadd.f32 %v4073, %v4135
        %v4141 = vadd.f32 %v4075, %v4135
        %v4142 = vadd.f32 %v4077, %v4135
        %v4143 = vadd.f32 %v4079, %v4135
        %v4144 = vadd.f32 %v4081, %v4135
        %v4145 = vadd.f32 %v4083, %v4135
        %v4146 = vadd.f32 %v4085, %v4135
        %v4147 = vadd.f32 %v4087, %v4135
        %v4148 = vadd.f32 %v4089, %v4135
        %v4149 = vadd.f32 %v4091, %v4135
        %v4150 = vadd.f32 %v4093, %v4135
        %v4151 = vadd.f32 %v4095, %v4135
        %v4152 = vadd.f32 %v4097, %v4135
        %v4153 = vadd.f32 %v4099, %v4135
        %v4154 = vadd.f32 %v4101, %v4135
        %v4155 = vadd.f32 %v4103, %v4135
        %v4156 = vadd.f32 %v4105, %v4135
        %v4157 = vadd.f32 %v4107, %v4135
        %v4158 = vadd.f32 %v4109, %v4135
        %v4159 = vadd.f32 %v4111, %v4135
        %v4160 = vadd.f32 %v4113, %v4135
        %v4161 = vadd.f32 %v4115, %v4135
        %v4162 = vadd.f32 %v4117, %v4135
        %v4163 = vadd.f32 %v4119, %v4135
        %v4164 = vadd.f32 %v4121, %v4135
        %v4165 = vadd.f32 %v4123, %v4135
        %v4166 = vadd.f32 %v4125, %v4135
        %v4167 = vadd.f32 %v4127, %v4135
        %v4168 = vadd.f32 %v4129, %v4135
        %v4169 = vxor.u32 %v4137, 2147483648
        %v4170 = vxor.u32 %v4138, 2147483648
        %v4171 = vxor.u32 %v4139, 2147483648
        %v4172 = vxor.u32 %v4140, 2147483648
        %v4173 = vxor.u32 %v4141, 2147483648
        %v4174 = vxor.u32 %v4142, 2147483648
        %v4175 = vxor.u32 %v4143, 2147483648
        %v4176 = vxor.u32 %v4144, 2147483648
        %v4177 = vxor.u32 %v4145, 2147483648
        %v4178 = vxor.u32 %v4146, 2147483648
        %v4179 = vxor.u32 %v4147, 2147483648
        %v4180 = vxor.u32 %v4148, 2147483648
        %v4181 = vxor.u32 %v4149, 2147483648
        %v4182 = vxor.u32 %v4150, 2147483648
        %v4183 = vxor.u32 %v4151, 2147483648
        %v4184 = vxor.u32 %v4152, 2147483648
        %v4185 = vxor.u32 %v4153, 2147483648
        %v4186 = vxor.u32 %v4154, 2147483648
        %v4187 = vxor.u32 %v4155, 2147483648
        %v4188 = vxor.u32 %v4156, 2147483648
        %v4189 = vxor.u32 %v4157, 2147483648
        %v4190 = vxor.u32 %v4158, 2147483648
        %v4191 = vxor.u32 %v4159, 2147483648
        %v4192 = vxor.u32 %v4160, 2147483648
        %v4193 = vxor.u32 %v4161, 2147483648
        %v4194 = vxor.u32 %v4162, 2147483648
        %v4195 = vxor.u32 %v4163, 2147483648
        %v4196 = vxor.u32 %v4164, 2147483648
        %v4197 = vxor.u32 %v4165, 2147483648
        %v4198 = vxor.u32 %v4166, 2147483648
        %v4199 = vxor.u32 %v4167, 2147483648
        %v4200 = vxor.u32 %v4168, 2147483648
        %v4201 = vmul.f32 %v4169, 1.442695
        %v4202 = vpow.pop %v4201
        %v4203 = vmul.f32 %v4170, 1.442695
        %v4204 = vpow.pop %v4203
        %v4205 = vmul.f32 %v4171, 1.442695
        %v4206 = vpow.pop %v4205
        %v4207 = vmul.f32 %v4172, 1.442695
        %v4208 = vpow.pop %v4207
        %v4209 = vmul.f32 %v4173, 1.442695
        %v4210 = vpow.pop %v4209
        %v4211 = vmul.f32 %v4174, 1.442695
        %v4212 = vpow.pop %v4211
        %v4213 = vmul.f32 %v4175, 1.442695
        %v4214 = vpow.pop %v4213
        %v4215 = vmul.f32 %v4176, 1.442695
        %v4216 = vpow.pop %v4215
        %v4217 = vmul.f32 %v4177, 1.442695
        %v4218 = vpow.pop %v4217
        %v4219 = vmul.f32 %v4178, 1.442695
        %v4220 = vpow.pop %v4219
        %v4221 = vmul.f32 %v4179, 1.442695
        %v4222 = vpow.pop %v4221
        %v4223 = vmul.f32 %v4180, 1.442695
        %v4224 = vpow.pop %v4223
        %v4225 = vmul.f32 %v4181, 1.442695
        %v4226 = vpow.pop %v4225
        %v4227 = vmul.f32 %v4182, 1.442695
        %v4228 = vpow.pop %v4227
        %v4229 = vmul.f32 %v4183, 1.442695
        %v4230 = vpow.pop %v4229
        %v4231 = vmul.f32 %v4184, 1.442695
        %v4232 = vpow.pop %v4231
        %v4233 = vmul.f32 %v4185, 1.442695
        %v4234 = vpow.pop %v4233
        %v4235 = vmul.f32 %v4186, 1.442695
        %v4236 = vpow.pop %v4235
        %v4237 = vmul.f32 %v4187, 1.442695
        %v4238 = vpow.pop %v4237
        %v4239 = vmul.f32 %v4188, 1.442695
        %v4240 = vpow.pop %v4239
        %v4241 = vmul.f32 %v4189, 1.442695
        %v4242 = vpow.pop %v4241
        %v4243 = vmul.f32 %v4190, 1.442695
        %v4244 = vpow.pop %v4243
        %v4245 = vmul.f32 %v4191, 1.442695
        %v4246 = vpow.pop %v4245
        %v4247 = vmul.f32 %v4192, 1.442695
        %v4248 = vpow.pop %v4247
        %v4249 = vmul.f32 %v4193, 1.442695
        %v4250 = vpow.pop %v4249
        %v4251 = vmul.f32 %v4194, 1.442695
        %v4252 = vpow.pop %v4251
        %v4253 = vmul.f32 %v4195, 1.442695
        %v4254 = vpow.pop %v4253
        %v4255 = vmul.f32 %v4196, 1.442695
        %v4256 = vpow.pop %v4255
        %v4257 = vmul.f32 %v4197, 1.442695
        %v4258 = vpow.pop %v4257
        %v4259 = vmul.f32 %v4198, 1.442695
        %v4260 = vpow.pop %v4259
        %v4261 = vmul.f32 %v4199, 1.442695
        %v4262 = vpow.pop %v4261
        %v4263 = vmul.f32 %v4200, 1.442695
        %v4264 = vpow.pop %v4263
        %v4265 = vadd.f32 %v4202, 1.0
        %v4266 = vadd.f32 %v4204, 1.0
        %v4267 = vadd.f32 %v4206, 1.0
        %v4268 = vadd.f32 %v4208, 1.0
        %v4269 = vadd.f32 %v4210, 1.0
        %v4270 = vadd.f32 %v4212, 1.0
        %v4271 = vadd.f32 %v4214, 1.0
        %v4272 = vadd.f32 %v4216, 1.0
        %v4273 = vadd.f32 %v4218, 1.0
        %v4274 = vadd.f32 %v4220, 1.0
        %v4275 = vadd.f32 %v4222, 1.0
        %v4276 = vadd.f32 %v4224, 1.0
        %v4277 = vadd.f32 %v4226, 1.0
        %v4278 = vadd.f32 %v4228, 1.0
        %v4279 = vadd.f32 %v4230, 1.0
        %v4280 = vadd.f32 %v4232, 1.0
        %v4281 = vadd.f32 %v4234, 1.0
        %v4282 = vadd.f32 %v4236, 1.0
        %v4283 = vadd.f32 %v4238, 1.0
        %v4284 = vadd.f32 %v4240, 1.0
        %v4285 = vadd.f32 %v4242, 1.0
        %v4286 = vadd.f32 %v4244, 1.0
        %v4287 = vadd.f32 %v4246, 1.0
        %v4288 = vadd.f32 %v4248, 1.0
        %v4289 = vadd.f32 %v4250, 1.0
        %v4290 = vadd.f32 %v4252, 1.0
        %v4291 = vadd.f32 %v4254, 1.0
        %v4292 = vadd.f32 %v4256, 1.0
        %v4293 = vadd.f32 %v4258, 1.0
        %v4294 = vadd.f32 %v4260, 1.0
        %v4295 = vadd.f32 %v4262, 1.0
        %v4296 = vadd.f32 %v4264, 1.0
        %v4297 = vrcp.pop %v4265
        %v4298 = vmul.f32 1.0, %v4297
        %v4299 = vrcp.pop %v4266
        %v4300 = vmul.f32 1.0, %v4299
        %v4301 = vrcp.pop %v4267
        %v4302 = vmul.f32 1.0, %v4301
        %v4303 = vrcp.pop %v4268
        %v4304 = vmul.f32 1.0, %v4303
        %v4305 = vrcp.pop %v4269
        %v4306 = vmul.f32 1.0, %v4305
        %v4307 = vrcp.pop %v4270
        %v4308 = vmul.f32 1.0, %v4307
        %v4309 = vrcp.pop %v4271
        %v4310 = vmul.f32 1.0, %v4309
        %v4311 = vrcp.pop %v4272
        %v4312 = vmul.f32 1.0, %v4311
        %v4313 = vrcp.pop %v4273
        %v4314 = vmul.f32 1.0, %v4313
        %v4315 = vrcp.pop %v4274
        %v4316 = vmul.f32 1.0, %v4315
        %v4317 = vrcp.pop %v4275
        %v4318 = vmul.f32 1.0, %v4317
        %v4319 = vrcp.pop %v4276
        %v4320 = vmul.f32 1.0, %v4319
        %v4321 = vrcp.pop %v4277
        %v4322 = vmul.f32 1.0, %v4321
        %v4323 = vrcp.pop %v4278
        %v4324 = vmul.f32 1.0, %v4323
        %v4325 = vrcp.pop %v4279
        %v4326 = vmul.f32 1.0, %v4325
        %v4327 = vrcp.pop %v4280
        %v4328 = vmul.f32 1.0, %v4327
        %v4329 = vrcp.pop %v4281
        %v4330 = vmul.f32 1.0, %v4329
        %v4331 = vrcp.pop %v4282
        %v4332 = vmul.f32 1.0, %v4331
        %v4333 = vrcp.pop %v4283
        %v4334 = vmul.f32 1.0, %v4333
        %v4335 = vrcp.pop %v4284
        %v4336 = vmul.f32 1.0, %v4335
        %v4337 = vrcp.pop %v4285
        %v4338 = vmul.f32 1.0, %v4337
        %v4339 = vrcp.pop %v4286
        %v4340 = vmul.f32 1.0, %v4339
        %v4341 = vrcp.pop %v4287
        %v4342 = vmul.f32 1.0, %v4341
        %v4343 = vrcp.pop %v4288
        %v4344 = vmul.f32 1.0, %v4343
        %v4345 = vrcp.pop %v4289
        %v4346 = vmul.f32 1.0, %v4345
        %v4347 = vrcp.pop %v4290
        %v4348 = vmul.f32 1.0, %v4347
        %v4349 = vrcp.pop %v4291
        %v4350 = vmul.f32 1.0, %v4349
        %v4351 = vrcp.pop %v4292
        %v4352 = vmul.f32 1.0, %v4351
        %v4353 = vrcp.pop %v4293
        %v4354 = vmul.f32 1.0, %v4353
        %v4355 = vrcp.pop %v4294
        %v4356 = vmul.f32 1.0, %v4355
        %v4357 = vrcp.pop %v4295
        %v4358 = vmul.f32 1.0, %v4357
        %v4359 = vrcp.pop %v4296
        %v4360 = vmul.f32 1.0, %v4359
        %4362 = vset.pattern.permute.xlu0 0
        %4363 = vperm.xlu0 %4362, %v4298
        %v4364 = vpop.permute.xlu0 %4363
        %4367 = vset.pattern.permute.xlu0 0
        %4368 = vperm.xlu0 %4367, %v4300
        %v4369 = vpop.permute.xlu0 %4368
        %4372 = vset.pattern.permute.xlu0 0
        %4373 = vperm.xlu0 %4372, %v4302
        %v4374 = vpop.permute.xlu0 %4373
        %4377 = vset.pattern.permute.xlu0 0
        %4378 = vperm.xlu0 %4377, %v4304
        %v4379 = vpop.permute.xlu0 %4378
        %4382 = vset.pattern.permute.xlu0 0
        %4383 = vperm.xlu0 %4382, %v4306
        %v4384 = vpop.permute.xlu0 %4383
        %4387 = vset.pattern.permute.xlu0 0
        %4388 = vperm.xlu0 %4387, %v4308
        %v4389 = vpop.permute.xlu0 %4388
        %4392 = vset.pattern.permute.xlu0 0
        %4393 = vperm.xlu0 %4392, %v4310
        %v4394 = vpop.permute.xlu0 %4393
        %4397 = vset.pattern.permute.xlu0 0
        %4398 = vperm.xlu0 %4397, %v4312
        %v4399 = vpop.permute.xlu0 %4398
        %4402 = vset.pattern.permute.xlu0 0
        %4403 = vperm.xlu0 %4402, %v4314
        %v4404 = vpop.permute.xlu0 %4403
        %4407 = vset.pattern.permute.xlu0 0
        %4408 = vperm.xlu0 %4407, %v4316
        %v4409 = vpop.permute.xlu0 %4408
        %4412 = vset.pattern.permute.xlu0 0
        %4413 = vperm.xlu0 %4412, %v4318
        %v4414 = vpop.permute.xlu0 %4413
        %4417 = vset.pattern.permute.xlu0 0
        %4418 = vperm.xlu0 %4417, %v4320
        %v4419 = vpop.permute.xlu0 %4418
        %4422 = vset.pattern.permute.xlu0 0
        %4423 = vperm.xlu0 %4422, %v4322
        %v4424 = vpop.permute.xlu0 %4423
        %4427 = vset.pattern.permute.xlu0 0
        %4428 = vperm.xlu0 %4427, %v4324
        %v4429 = vpop.permute.xlu0 %4428
        %4432 = vset.pattern.permute.xlu0 0
        %4433 = vperm.xlu0 %4432, %v4326
        %v4434 = vpop.permute.xlu0 %4433
        %4437 = vset.pattern.permute.xlu0 0
        %4438 = vperm.xlu0 %4437, %v4328
        %v4439 = vpop.permute.xlu0 %4438
        %4442 = vset.pattern.permute.xlu0 0
        %4443 = vperm.xlu0 %4442, %v4330
        %v4444 = vpop.permute.xlu0 %4443
        %4447 = vset.pattern.permute.xlu0 0
        %4448 = vperm.xlu0 %4447, %v4332
        %v4449 = vpop.permute.xlu0 %4448
        %4452 = vset.pattern.permute.xlu0 0
        %4453 = vperm.xlu0 %4452, %v4334
        %v4454 = vpop.permute.xlu0 %4453
        %4457 = vset.pattern.permute.xlu0 0
        %4458 = vperm.xlu0 %4457, %v4336
        %v4459 = vpop.permute.xlu0 %4458
        %4462 = vset.pattern.permute.xlu0 0
        %4463 = vperm.xlu0 %4462, %v4338
        %v4464 = vpop.permute.xlu0 %4463
        %4467 = vset.pattern.permute.xlu0 0
        %4468 = vperm.xlu0 %4467, %v4340
        %v4469 = vpop.permute.xlu0 %4468
        %4472 = vset.pattern.permute.xlu0 0
        %4473 = vperm.xlu0 %4472, %v4342
        %v4474 = vpop.permute.xlu0 %4473
        %4477 = vset.pattern.permute.xlu0 0
        %4478 = vperm.xlu0 %4477, %v4344
        %v4479 = vpop.permute.xlu0 %4478
        %4482 = vset.pattern.permute.xlu0 0
        %4483 = vperm.xlu0 %4482, %v4346
        %v4484 = vpop.permute.xlu0 %4483
        %4487 = vset.pattern.permute.xlu0 0
        %4488 = vperm.xlu0 %4487, %v4348
        %v4489 = vpop.permute.xlu0 %4488
        %4492 = vset.pattern.permute.xlu0 0
        %4493 = vperm.xlu0 %4492, %v4350
        %v4494 = vpop.permute.xlu0 %4493
        %4497 = vset.pattern.permute.xlu0 0
        %4498 = vperm.xlu0 %4497, %v4352
        %v4499 = vpop.permute.xlu0 %4498
        %4502 = vset.pattern.permute.xlu0 0
        %4503 = vperm.xlu0 %4502, %v4354
        %v4504 = vpop.permute.xlu0 %4503
        %4507 = vset.pattern.permute.xlu0 0
        %4508 = vperm.xlu0 %4507, %v4356
        %v4509 = vpop.permute.xlu0 %4508
        %4512 = vset.pattern.permute.xlu0 0
        %4513 = vperm.xlu0 %4512, %v4358
        %v4514 = vpop.permute.xlu0 %4513
        %4517 = vset.pattern.permute.xlu0 0
        %4518 = vperm.xlu0 %4517, %v4360
        %v4519 = vpop.permute.xlu0 %4518
        %v4521 = vmul.f32 %v3995, %v4364
        %v4522 = vmul.f32 %v3996, %v4369
        %v4523 = vmul.f32 %v3997, %v4374
        %v4524 = vmul.f32 %v3998, %v4379
        %v4525 = vmul.f32 %v3999, %v4384
        %v4526 = vmul.f32 %v4000, %v4389
        %v4527 = vmul.f32 %v4001, %v4394
        %v4528 = vmul.f32 %v4002, %v4399
        %v4529 = vmul.f32 %v4003, %v4404
        %v4530 = vmul.f32 %v4004, %v4409
        %v4531 = vmul.f32 %v4005, %v4414
        %v4532 = vmul.f32 %v4006, %v4419
        %v4533 = vmul.f32 %v4007, %v4424
        %v4534 = vmul.f32 %v4008, %v4429
        %v4535 = vmul.f32 %v4009, %v4434
        %v4536 = vmul.f32 %v4010, %v4439
        %v4537 = vmul.f32 %v4011, %v4444
        %v4538 = vmul.f32 %v4012, %v4449
        %v4539 = vmul.f32 %v4013, %v4454
        %v4540 = vmul.f32 %v4014, %v4459
        %v4541 = vmul.f32 %v4015, %v4464
        %v4542 = vmul.f32 %v4016, %v4469
        %v4543 = vmul.f32 %v4017, %v4474
        %v4544 = vmul.f32 %v4018, %v4479
        %v4545 = vmul.f32 %v4019, %v4484
        %v4546 = vmul.f32 %v4020, %v4489
        %v4547 = vmul.f32 %v4021, %v4494
        %v4548 = vmul.f32 %v4022, %v4499
        %v4549 = vmul.f32 %v4023, %v4504
        %v4550 = vmul.f32 %v4024, %v4509
        %v4551 = vmul.f32 %v4025, %v4514
        %v4552 = vmul.f32 %v4026, %v4519
        %v4553 = vld [vmem:[%s1187] sm:$0xf]
        %v4554 = vld [vmem:[%s1187 + $0x4] sm:$0xf]
        %v4555 = vld [vmem:[%s1187 + $0x8] sm:$0xf]
        %v4556 = vld [vmem:[%s1187 + $0xc] sm:$0xf]
        %v4557 = vld [vmem:[%s1187 + $0x10] sm:$0xf]
        %v4558 = vld [vmem:[%s1187 + $0x14] sm:$0xf]
        %v4559 = vld [vmem:[%s1187 + $0x18] sm:$0xf]
        %v4560 = vld [vmem:[%s1187 + $0x1c] sm:$0xf]
        %v4561 = vld [vmem:[%s1187 + $0x20] sm:$0xf]
        %v4562 = vld [vmem:[%s1187 + $0x24] sm:$0xf]
        %v4563 = vld [vmem:[%s1187 + $0x28] sm:$0xf]
        %v4564 = vld [vmem:[%s1187 + $0x2c] sm:$0xf]
        %v4565 = vld [vmem:[%s1187 + $0x30] sm:$0xf]
        %v4566 = vld [vmem:[%s1187 + $0x34] sm:$0xf]
        %v4567 = vld [vmem:[%s1187 + $0x38] sm:$0xf]
        %v4568 = vld [vmem:[%s1187 + $0x3c] sm:$0xf]
        %v4569 = vpack.c.bf16 %v4522, %v4521
        %v4570 = vpack.c.bf16 %v4524, %v4523
        %v4571 = vpack.c.bf16 %v4526, %v4525
        %v4572 = vpack.c.bf16 %v4528, %v4527
        %v4573 = vpack.c.bf16 %v4530, %v4529
        %v4574 = vpack.c.bf16 %v4532, %v4531
        %v4575 = vpack.c.bf16 %v4534, %v4533
        %v4576 = vpack.c.bf16 %v4536, %v4535
        %v4577 = vpack.c.bf16 %v4538, %v4537
        %v4578 = vpack.c.bf16 %v4540, %v4539
        %v4579 = vpack.c.bf16 %v4542, %v4541
        %v4580 = vpack.c.bf16 %v4544, %v4543
        %v4581 = vpack.c.bf16 %v4546, %v4545
        %v4582 = vpack.c.bf16 %v4548, %v4547
        %v4583 = vpack.c.bf16 %v4550, %v4549
        %v4584 = vpack.c.bf16 %v4552, %v4551
        %v4585 = vld [vmem:[%s1195] sm:$0x1]
        %v4587 = vlaneseq
        %v4588 = vshrl.u32 %v4587, 7
        %v4589 = vsub.s32 0, %v4588
        %v4590 = vrot.slane %v4585, %v4589
        %v4608 = vunpack.c.l.b16 %v4553
        %v4609 = vunpack.c.l.b16 %v4554
        %v4610 = vunpack.c.l.b16 %v4555
        %v4611 = vunpack.c.l.b16 %v4556
        %v4612 = vunpack.c.l.b16 %v4557
        %v4613 = vunpack.c.l.b16 %v4558
        %v4614 = vunpack.c.l.b16 %v4559
        %v4615 = vunpack.c.l.b16 %v4560
        %v4616 = vunpack.c.l.b16 %v4561
        %v4617 = vunpack.c.l.b16 %v4562
        %v4618 = vunpack.c.l.b16 %v4563
        %v4619 = vunpack.c.l.b16 %v4564
        %v4620 = vunpack.c.l.b16 %v4565
        %v4621 = vunpack.c.l.b16 %v4566
        %v4622 = vunpack.c.l.b16 %v4567
        %v4623 = vunpack.c.l.b16 %v4568
        %v4624 = vpack.c.b16 %v4609, %v4608
        %v4625 = vpack.c.b16 %v4611, %v4610
        %v4626 = vpack.c.b16 %v4613, %v4612
        %v4627 = vpack.c.b16 %v4615, %v4614
        %v4628 = vpack.c.b16 %v4617, %v4616
        %v4629 = vpack.c.b16 %v4619, %v4618
        %v4630 = vpack.c.b16 %v4621, %v4620
        %v4631 = vpack.c.b16 %v4623, %v4622
        %4640 = vmatprep.subr.bf16.mxu0 0
        %4641 = vmatpush1.bf16.msra.mxu0 %v4624
        %4642 = vmatprep.subr.bf16.mxu0 0
        %4643 = vmatpush1.bf16.msra.mxu0 %v4625
        %4644 = vmatprep.subr.bf16.mxu0 0
        %4645 = vmatpush1.bf16.msra.mxu0 %v4626
        %4646 = vmatprep.subr.bf16.mxu0 0
        %4647 = vmatpush1.bf16.msra.mxu0 %v4627
        %4648 = vmatprep.subr.bf16.mxu0 0
        %4649 = vmatpush1.bf16.msra.mxu0 %v4628
        %4650 = vmatprep.subr.bf16.mxu0 0
        %4651 = vmatpush1.bf16.msra.mxu0 %v4629
        %4652 = vmatprep.subr.bf16.mxu0 0
        %4653 = vmatpush1.bf16.msra.mxu0 %v4630
        %4654 = vmatprep.subr.bf16.mxu0 0
        %4655 = vmatpush1.bf16.msra.mxu0 %v4631
        %4656 = vmatprep.subr.bf16.mxu0 0
        %4657 = vmatpush1.bf16.msra.mxu0 0
        %4658 = vmatprep.subr.bf16.mxu0 0
        %4659 = vmatpush1.bf16.msra.mxu0 0
        %4660 = vmatprep.subr.bf16.mxu0 0
        %4661 = vmatpush1.bf16.msra.mxu0 0
        %4662 = vmatprep.subr.bf16.mxu0 0
        %4663 = vmatpush1.bf16.msra.mxu0 0
        %4664 = vmatprep.subr.bf16.mxu0 0
        %4665 = vmatpush1.bf16.msra.mxu0 0
        %4666 = vmatprep.subr.bf16.mxu0 0
        %4667 = vmatpush1.bf16.msra.mxu0 0
        %4668 = vmatprep.subr.bf16.mxu0 0
        %4669 = vmatpush1.bf16.msra.mxu0 0
        %4670 = vmatprep.subr.bf16.mxu0 0
        %4671 = vmatpush1.bf16.msra.mxu0 0
        %4672 = vmatprep.mubr.bf16.mxu0 0
        %4673 = vmatmul.mubr.bf16.gmra.mrb[0].mxu0 %v4569
        %v4674 = vpop.f32.mrb[0].mxu0
        %v4675 = vadd.f32 %v4590, %v4674
        %v4676 = vpop.f32.mrb[0].mxu0
        %v4677 = vpop.f32.mrb[0].mxu0
        %v4678 = vadd.f32 %v4590, %v4677
        %v4679 = vpop.f32.mrb[0].mxu0
        %4680 = vmatprep.mubr.bf16.mxu0 0
        %4681 = vmatmul.mubr.bf16.gmra.mrb[0].mxu0 %v4570
        %v4682 = vpop.f32.mrb[0].mxu0
        %v4683 = vadd.f32 %v4590, %v4682
        %v4684 = vpop.f32.mrb[0].mxu0
        %v4685 = vpop.f32.mrb[0].mxu0
        %v4686 = vadd.f32 %v4590, %v4685
        %v4687 = vpop.f32.mrb[0].mxu0
        %4688 = vmatprep.mubr.bf16.mxu0 0
        %4689 = vmatmul.mubr.bf16.gmra.mrb[0].mxu0 %v4571
        %v4690 = vpop.f32.mrb[0].mxu0
        %v4691 = vadd.f32 %v4590, %v4690
        %v4692 = vpop.f32.mrb[0].mxu0
        %v4693 = vpop.f32.mrb[0].mxu0
        %v4694 = vadd.f32 %v4590, %v4693
        %v4695 = vpop.f32.mrb[0].mxu0
        %4696 = vmatprep.mubr.bf16.mxu0 0
        %4697 = vmatmul.mubr.bf16.gmra.mrb[0].mxu0 %v4572
        %v4698 = vpop.f32.mrb[0].mxu0
        %v4699 = vadd.f32 %v4590, %v4698
        %v4700 = vpop.f32.mrb[0].mxu0
        %v4701 = vpop.f32.mrb[0].mxu0
        %v4702 = vadd.f32 %v4590, %v4701
        %v4703 = vpop.f32.mrb[0].mxu0
        %4704 = vmatprep.mubr.bf16.mxu0 0
        %4705 = vmatmul.mubr.bf16.gmra.mrb[0].mxu0 %v4573
        %v4706 = vpop.f32.mrb[0].mxu0
        %v4707 = vadd.f32 %v4590, %v4706
        %v4708 = vpop.f32.mrb[0].mxu0
        %v4709 = vpop.f32.mrb[0].mxu0
        %v4710 = vadd.f32 %v4590, %v4709
        %v4711 = vpop.f32.mrb[0].mxu0
        %4712 = vmatprep.mubr.bf16.mxu0 0
        %4713 = vmatmul.mubr.bf16.gmra.mrb[0].mxu0 %v4574
        %v4714 = vpop.f32.mrb[0].mxu0
        %v4715 = vadd.f32 %v4590, %v4714
        %v4716 = vpop.f32.mrb[0].mxu0
        %v4717 = vpop.f32.mrb[0].mxu0
        %v4718 = vadd.f32 %v4590, %v4717
        %v4719 = vpop.f32.mrb[0].mxu0
        %4720 = vmatprep.mubr.bf16.mxu0 0
        %4721 = vmatmul.mubr.bf16.gmra.mrb[0].mxu0 %v4575
        %v4722 = vpop.f32.mrb[0].mxu0
        %v4723 = vadd.f32 %v4590, %v4722
        %v4724 = vpop.f32.mrb[0].mxu0
        %v4725 = vpop.f32.mrb[0].mxu0
        %v4726 = vadd.f32 %v4590, %v4725
        %v4727 = vpop.f32.mrb[0].mxu0
        %4728 = vmatprep.mubr.bf16.mxu0 0
        %4729 = vmatmul.mubr.bf16.gmra.mrb[0].mxu0 %v4576
        %v4730 = vpop.f32.mrb[0].mxu0
        %v4731 = vadd.f32 %v4590, %v4730
        %v4732 = vpop.f32.mrb[0].mxu0
        %v4733 = vpop.f32.mrb[0].mxu0
        %v4734 = vadd.f32 %v4590, %v4733
        %v4735 = vpop.f32.mrb[0].mxu0
        %4736 = vmatprep.mubr.bf16.mxu0 0
        %4737 = vmatmul.mubr.bf16.gmra.mrb[0].mxu0 %v4577
        %v4738 = vpop.f32.mrb[0].mxu0
        %v4739 = vadd.f32 %v4590, %v4738
        %v4740 = vpop.f32.mrb[0].mxu0
        %v4741 = vpop.f32.mrb[0].mxu0
        %v4742 = vadd.f32 %v4590, %v4741
        %v4743 = vpop.f32.mrb[0].mxu0
        %4744 = vmatprep.mubr.bf16.mxu0 0
        %4745 = vmatmul.mubr.bf16.gmra.mrb[0].mxu0 %v4578
        %v4746 = vpop.f32.mrb[0].mxu0
        %v4747 = vadd.f32 %v4590, %v4746
        %v4748 = vpop.f32.mrb[0].mxu0
        %v4749 = vpop.f32.mrb[0].mxu0
        %v4750 = vadd.f32 %v4590, %v4749
        %v4751 = vpop.f32.mrb[0].mxu0
        %4752 = vmatprep.mubr.bf16.mxu0 0
        %4753 = vmatmul.mubr.bf16.gmra.mrb[0].mxu0 %v4579
        %v4754 = vpop.f32.mrb[0].mxu0
        %v4755 = vadd.f32 %v4590, %v4754
        %v4756 = vpop.f32.mrb[0].mxu0
        %v4757 = vpop.f32.mrb[0].mxu0
        %v4758 = vadd.f32 %v4590, %v4757
        %v4759 = vpop.f32.mrb[0].mxu0
        %4760 = vmatprep.mubr.bf16.mxu0 0
        %4761 = vmatmul.mubr.bf16.gmra.mrb[0].mxu0 %v4580
        %v4762 = vpop.f32.mrb[0].mxu0
        %v4763 = vadd.f32 %v4590, %v4762
        %v4764 = vpop.f32.mrb[0].mxu0
        %v4765 = vpop.f32.mrb[0].mxu0
        %v4766 = vadd.f32 %v4590, %v4765
        %v4767 = vpop.f32.mrb[0].mxu0
        %4768 = vmatprep.mubr.bf16.mxu0 0
        %4769 = vmatmul.mubr.bf16.gmra.mrb[0].mxu0 %v4581
        %v4770 = vpop.f32.mrb[0].mxu0
        %v4771 = vadd.f32 %v4590, %v4770
        %v4772 = vpop.f32.mrb[0].mxu0
        %v4773 = vpop.f32.mrb[0].mxu0
        %v4774 = vadd.f32 %v4590, %v4773
        %v4775 = vpop.f32.mrb[0].mxu0
        %4776 = vmatprep.mubr.bf16.mxu0 0
        %4777 = vmatmul.mubr.bf16.gmra.mrb[0].mxu0 %v4582
        %v4778 = vpop.f32.mrb[0].mxu0
        %v4779 = vadd.f32 %v4590, %v4778
        %v4780 = vpop.f32.mrb[0].mxu0
        %v4781 = vpop.f32.mrb[0].mxu0
        %v4782 = vadd.f32 %v4590, %v4781
        %v4783 = vpop.f32.mrb[0].mxu0
        %4784 = vmatprep.mubr.bf16.mxu0 0
        %4785 = vmatmul.mubr.bf16.gmra.mrb[0].mxu0 %v4583
        %v4786 = vpop.f32.mrb[0].mxu0
        %v4787 = vadd.f32 %v4590, %v4786
        %v4788 = vpop.f32.mrb[0].mxu0
        %v4789 = vpop.f32.mrb[0].mxu0
        %v4790 = vadd.f32 %v4590, %v4789
        %v4791 = vpop.f32.mrb[0].mxu0
        %4792 = vmatprep.mubr.bf16.mxu0 0
        %4793 = vmatmul.mubr.bf16.gmra.mrb[0].mxu0 %v4584
        %v4794 = vpop.f32.mrb[0].mxu0
        %v4795 = vadd.f32 %v4590, %v4794
        %v4796 = vpop.f32.mrb[0].mxu0
        %v4797 = vpop.f32.mrb[0].mxu0
        %v4798 = vadd.f32 %v4590, %v4797
        %v4799 = vpop.f32.mrb[0].mxu0
        %4800 = vdwg.mxu0
        %v4801 = vxor.u32 %v4675, 2147483648
        %v4802 = vxor.u32 %v4678, 2147483648
        %v4803 = vxor.u32 %v4683, 2147483648
        %v4804 = vxor.u32 %v4686, 2147483648
        %v4805 = vxor.u32 %v4691, 2147483648
        %v4806 = vxor.u32 %v4694, 2147483648
        %v4807 = vxor.u32 %v4699, 2147483648
        %v4808 = vxor.u32 %v4702, 2147483648
        %v4809 = vxor.u32 %v4707, 2147483648
        %v4810 = vxor.u32 %v4710, 2147483648
        %v4811 = vxor.u32 %v4715, 2147483648
        %v4812 = vxor.u32 %v4718, 2147483648
        %v4813 = vxor.u32 %v4723, 2147483648
        %v4814 = vxor.u32 %v4726, 2147483648
        %v4815 = vxor.u32 %v4731, 2147483648
        %v4816 = vxor.u32 %v4734, 2147483648
        %v4817 = vxor.u32 %v4739, 2147483648
        %v4818 = vxor.u32 %v4742, 2147483648
        %v4819 = vxor.u32 %v4747, 2147483648
        %v4820 = vxor.u32 %v4750, 2147483648
        %v4821 = vxor.u32 %v4755, 2147483648
        %v4822 = vxor.u32 %v4758, 2147483648
        %v4823 = vxor.u32 %v4763, 2147483648
        %v4824 = vxor.u32 %v4766, 2147483648
        %v4825 = vxor.u32 %v4771, 2147483648
        %v4826 = vxor.u32 %v4774, 2147483648
        %v4827 = vxor.u32 %v4779, 2147483648
        %v4828 = vxor.u32 %v4782, 2147483648
        %v4829 = vxor.u32 %v4787, 2147483648
        %v4830 = vxor.u32 %v4790, 2147483648
        %v4831 = vxor.u32 %v4795, 2147483648
        %v4832 = vxor.u32 %v4798, 2147483648
        %v4833 = vmul.f32 %v4801, 1.442695
        %v4834 = vpow.pop %v4833
        %v4835 = vmul.f32 %v4802, 1.442695
        %v4836 = vpow.pop %v4835
        %v4837 = vmul.f32 %v4803, 1.442695
        %v4838 = vpow.pop %v4837
        %v4839 = vmul.f32 %v4804, 1.442695
        %v4840 = vpow.pop %v4839
        %v4841 = vmul.f32 %v4805, 1.442695
        %v4842 = vpow.pop %v4841
        %v4843 = vmul.f32 %v4806, 1.442695
        %v4844 = vpow.pop %v4843
        %v4845 = vmul.f32 %v4807, 1.442695
        %v4846 = vpow.pop %v4845
        %v4847 = vmul.f32 %v4808, 1.442695
        %v4848 = vpow.pop %v4847
        %v4849 = vmul.f32 %v4809, 1.442695
        %v4850 = vpow.pop %v4849
        %v4851 = vmul.f32 %v4810, 1.442695
        %v4852 = vpow.pop %v4851
        %v4853 = vmul.f32 %v4811, 1.442695
        %v4854 = vpow.pop %v4853
        %v4855 = vmul.f32 %v4812, 1.442695
        %v4856 = vpow.pop %v4855
        %v4857 = vmul.f32 %v4813, 1.442695
        %v4858 = vpow.pop %v4857
        %v4859 = vmul.f32 %v4814, 1.442695
        %v4860 = vpow.pop %v4859
        %v4861 = vmul.f32 %v4815, 1.442695
        %v4862 = vpow.pop %v4861
        %v4863 = vmul.f32 %v4816, 1.442695
        %v4864 = vpow.pop %v4863
        %v4865 = vmul.f32 %v4817, 1.442695
        %v4866 = vpow.pop %v4865
        %v4867 = vmul.f32 %v4818, 1.442695
        %v4868 = vpow.pop %v4867
        %v4869 = vmul.f32 %v4819, 1.442695
        %v4870 = vpow.pop %v4869
        %v4871 = vmul.f32 %v4820, 1.442695
        %v4872 = vpow.pop %v4871
        %v4873 = vmul.f32 %v4821, 1.442695
        %v4874 = vpow.pop %v4873
        %v4875 = vmul.f32 %v4822, 1.442695
        %v4876 = vpow.pop %v4875
        %v4877 = vmul.f32 %v4823, 1.442695
        %v4878 = vpow.pop %v4877
        %v4879 = vmul.f32 %v4824, 1.442695
        %v4880 = vpow.pop %v4879
        %v4881 = vmul.f32 %v4825, 1.442695
        %v4882 = vpow.pop %v4881
        %v4883 = vmul.f32 %v4826, 1.442695
        %v4884 = vpow.pop %v4883
        %v4885 = vmul.f32 %v4827, 1.442695
        %v4886 = vpow.pop %v4885
        %v4887 = vmul.f32 %v4828, 1.442695
        %v4888 = vpow.pop %v4887
        %v4889 = vmul.f32 %v4829, 1.442695
        %v4890 = vpow.pop %v4889
        %v4891 = vmul.f32 %v4830, 1.442695
        %v4892 = vpow.pop %v4891
        %v4893 = vmul.f32 %v4831, 1.442695
        %v4894 = vpow.pop %v4893
        %v4895 = vmul.f32 %v4832, 1.442695
        %v4896 = vpow.pop %v4895
        %v4897 = vadd.f32 %v4834, 1.0
        %v4898 = vadd.f32 %v4836, 1.0
        %v4899 = vadd.f32 %v4838, 1.0
        %v4900 = vadd.f32 %v4840, 1.0
        %v4901 = vadd.f32 %v4842, 1.0
        %v4902 = vadd.f32 %v4844, 1.0
        %v4903 = vadd.f32 %v4846, 1.0
        %v4904 = vadd.f32 %v4848, 1.0
        %v4905 = vadd.f32 %v4850, 1.0
        %v4906 = vadd.f32 %v4852, 1.0
        %v4907 = vadd.f32 %v4854, 1.0
        %v4908 = vadd.f32 %v4856, 1.0
        %v4909 = vadd.f32 %v4858, 1.0
        %v4910 = vadd.f32 %v4860, 1.0
        %v4911 = vadd.f32 %v4862, 1.0
        %v4912 = vadd.f32 %v4864, 1.0
        %v4913 = vadd.f32 %v4866, 1.0
        %v4914 = vadd.f32 %v4868, 1.0
        %v4915 = vadd.f32 %v4870, 1.0
        %v4916 = vadd.f32 %v4872, 1.0
        %v4917 = vadd.f32 %v4874, 1.0
        %v4918 = vadd.f32 %v4876, 1.0
        %v4919 = vadd.f32 %v4878, 1.0
        %v4920 = vadd.f32 %v4880, 1.0
        %v4921 = vadd.f32 %v4882, 1.0
        %v4922 = vadd.f32 %v4884, 1.0
        %v4923 = vadd.f32 %v4886, 1.0
        %v4924 = vadd.f32 %v4888, 1.0
        %v4925 = vadd.f32 %v4890, 1.0
        %v4926 = vadd.f32 %v4892, 1.0
        %v4927 = vadd.f32 %v4894, 1.0
        %v4928 = vadd.f32 %v4896, 1.0
        %v4929 = vrcp.pop %v4897
        %v4930 = vmul.f32 1.0, %v4929
        %v4931 = vrcp.pop %v4898
        %v4932 = vmul.f32 1.0, %v4931
        %v4933 = vrcp.pop %v4899
        %v4934 = vmul.f32 1.0, %v4933
        %v4935 = vrcp.pop %v4900
        %v4936 = vmul.f32 1.0, %v4935
        %v4937 = vrcp.pop %v4901
        %v4938 = vmul.f32 1.0, %v4937
        %v4939 = vrcp.pop %v4902
        %v4940 = vmul.f32 1.0, %v4939
        %v4941 = vrcp.pop %v4903
        %v4942 = vmul.f32 1.0, %v4941
        %v4943 = vrcp.pop %v4904
        %v4944 = vmul.f32 1.0, %v4943
        %v4945 = vrcp.pop %v4905
        %v4946 = vmul.f32 1.0, %v4945
        %v4947 = vrcp.pop %v4906
        %v4948 = vmul.f32 1.0, %v4947
        %v4949 = vrcp.pop %v4907
        %v4950 = vmul.f32 1.0, %v4949
        %v4951 = vrcp.pop %v4908
        %v4952 = vmul.f32 1.0, %v4951
        %v4953 = vrcp.pop %v4909
        %v4954 = vmul.f32 1.0, %v4953
        %v4955 = vrcp.pop %v4910
        %v4956 = vmul.f32 1.0, %v4955
        %v4957 = vrcp.pop %v4911
        %v4958 = vmul.f32 1.0, %v4957
        %v4959 = vrcp.pop %v4912
        %v4960 = vmul.f32 1.0, %v4959
        %v4961 = vrcp.pop %v4913
        %v4962 = vmul.f32 1.0, %v4961
        %v4963 = vrcp.pop %v4914
        %v4964 = vmul.f32 1.0, %v4963
        %v4965 = vrcp.pop %v4915
        %v4966 = vmul.f32 1.0, %v4965
        %v4967 = vrcp.pop %v4916
        %v4968 = vmul.f32 1.0, %v4967
        %v4969 = vrcp.pop %v4917
        %v4970 = vmul.f32 1.0, %v4969
        %v4971 = vrcp.pop %v4918
        %v4972 = vmul.f32 1.0, %v4971
        %v4973 = vrcp.pop %v4919
        %v4974 = vmul.f32 1.0, %v4973
        %v4975 = vrcp.pop %v4920
        %v4976 = vmul.f32 1.0, %v4975
        %v4977 = vrcp.pop %v4921
        %v4978 = vmul.f32 1.0, %v4977
        %v4979 = vrcp.pop %v4922
        %v4980 = vmul.f32 1.0, %v4979
        %v4981 = vrcp.pop %v4923
        %v4982 = vmul.f32 1.0, %v4981
        %v4983 = vrcp.pop %v4924
        %v4984 = vmul.f32 1.0, %v4983
        %v4985 = vrcp.pop %v4925
        %v4986 = vmul.f32 1.0, %v4985
        %v4987 = vrcp.pop %v4926
        %v4988 = vmul.f32 1.0, %v4987
        %v4989 = vrcp.pop %v4927
        %v4990 = vmul.f32 1.0, %v4989
        %v4991 = vrcp.pop %v4928
        %v4992 = vmul.f32 1.0, %v4991
        %v4993 = vmul.f32 %v4675, %v4930
        %v4994 = vmul.f32 %v4678, %v4932
        %v4995 = vmul.f32 %v4683, %v4934
        %v4996 = vmul.f32 %v4686, %v4936
        %v4997 = vmul.f32 %v4691, %v4938
        %v4998 = vmul.f32 %v4694, %v4940
        %v4999 = vmul.f32 %v4699, %v4942
        %v5000 = vmul.f32 %v4702, %v4944
        %v5001 = vmul.f32 %v4707, %v4946
        %v5002 = vmul.f32 %v4710, %v4948
        %v5003 = vmul.f32 %v4715, %v4950
        %v5004 = vmul.f32 %v4718, %v4952
        %v5005 = vmul.f32 %v4723, %v4954
        %v5006 = vmul.f32 %v4726, %v4956
        %v5007 = vmul.f32 %v4731, %v4958
        %v5008 = vmul.f32 %v4734, %v4960
        %v5009 = vmul.f32 %v4739, %v4962
        %v5010 = vmul.f32 %v4742, %v4964
        %v5011 = vmul.f32 %v4747, %v4966
        %v5012 = vmul.f32 %v4750, %v4968
        %v5013 = vmul.f32 %v4755, %v4970
        %v5014 = vmul.f32 %v4758, %v4972
        %v5015 = vmul.f32 %v4763, %v4974
        %v5016 = vmul.f32 %v4766, %v4976
        %v5017 = vmul.f32 %v4771, %v4978
        %v5018 = vmul.f32 %v4774, %v4980
        %v5019 = vmul.f32 %v4779, %v4982
        %v5020 = vmul.f32 %v4782, %v4984
        %v5021 = vmul.f32 %v4787, %v4986
        %v5022 = vmul.f32 %v4790, %v4988
        %v5023 = vmul.f32 %v4795, %v4990
        %v5024 = vmul.f32 %v4798, %v4992
        %v5025 = vld [vmem:[%s1203] sm:$0x1]
        %v5027 = vlaneseq
        %v5028 = vshrl.u32 %v5027, 7
        %v5029 = vsub.s32 0, %v5028
        %v5030 = vrot.slane %v5025, %v5029
        %v5032 = vmul.f32 %v4993, %v5030
        %v5033 = vmul.f32 %v4994, %v5030
        %v5034 = vmul.f32 %v4995, %v5030
        %v5035 = vmul.f32 %v4996, %v5030
        %v5036 = vmul.f32 %v4997, %v5030
        %v5037 = vmul.f32 %v4998, %v5030
        %v5038 = vmul.f32 %v4999, %v5030
        %v5039 = vmul.f32 %v5000, %v5030
        %v5040 = vmul.f32 %v5001, %v5030
        %v5041 = vmul.f32 %v5002, %v5030
        %v5042 = vmul.f32 %v5003, %v5030
        %v5043 = vmul.f32 %v5004, %v5030
        %v5044 = vmul.f32 %v5005, %v5030
        %v5045 = vmul.f32 %v5006, %v5030
        %v5046 = vmul.f32 %v5007, %v5030
        %v5047 = vmul.f32 %v5008, %v5030
        %v5048 = vmul.f32 %v5009, %v5030
        %v5049 = vmul.f32 %v5010, %v5030
        %v5050 = vmul.f32 %v5011, %v5030
        %v5051 = vmul.f32 %v5012, %v5030
        %v5052 = vmul.f32 %v5013, %v5030
        %v5053 = vmul.f32 %v5014, %v5030
        %v5054 = vmul.f32 %v5015, %v5030
        %v5055 = vmul.f32 %v5016, %v5030
        %v5056 = vmul.f32 %v5017, %v5030
        %v5057 = vmul.f32 %v5018, %v5030
        %v5058 = vmul.f32 %v5019, %v5030
        %v5059 = vmul.f32 %v5020, %v5030
        %v5060 = vmul.f32 %v5021, %v5030
        %v5061 = vmul.f32 %v5022, %v5030
        %v5062 = vmul.f32 %v5023, %v5030
        %v5063 = vmul.f32 %v5024, %v5030
        %5064 = vadd.xlane.f32.xlu0 %v5032
        %v5065 = vpop.xlane.xlu0 %5064
        %5066 = vadd.xlane.f32.xlu0 %v5033
        %v5067 = vpop.xlane.xlu0 %5066
        %5068 = vadd.xlane.f32.xlu0 %v5034
        %v5069 = vpop.xlane.xlu0 %5068
        %5070 = vadd.xlane.f32.xlu0 %v5035
        %v5071 = vpop.xlane.xlu0 %5070
        %5072 = vadd.xlane.f32.xlu0 %v5036
        %v5073 = vpop.xlane.xlu0 %5072
        %5074 = vadd.xlane.f32.xlu0 %v5037
        %v5075 = vpop.xlane.xlu0 %5074
        %5076 = vadd.xlane.f32.xlu0 %v5038
        %v5077 = vpop.xlane.xlu0 %5076
        %5078 = vadd.xlane.f32.xlu0 %v5039
        %v5079 = vpop.xlane.xlu0 %5078
        %5080 = vadd.xlane.f32.xlu0 %v5040
        %v5081 = vpop.xlane.xlu0 %5080
        %5082 = vadd.xlane.f32.xlu0 %v5041
        %v5083 = vpop.xlane.xlu0 %5082
        %5084 = vadd.xlane.f32.xlu0 %v5042
        %v5085 = vpop.xlane.xlu0 %5084
        %5086 = vadd.xlane.f32.xlu0 %v5043
        %v5087 = vpop.xlane.xlu0 %5086
        %5088 = vadd.xlane.f32.xlu0 %v5044
        %v5089 = vpop.xlane.xlu0 %5088
        %5090 = vadd.xlane.f32.xlu0 %v5045
        %v5091 = vpop.xlane.xlu0 %5090
        %5092 = vadd.xlane.f32.xlu0 %v5046
        %v5093 = vpop.xlane.xlu0 %5092
        %5094 = vadd.xlane.f32.xlu0 %v5047
        %v5095 = vpop.xlane.xlu0 %5094
        %5096 = vadd.xlane.f32.xlu0 %v5048
        %v5097 = vpop.xlane.xlu0 %5096
        %5098 = vadd.xlane.f32.xlu0 %v5049
        %v5099 = vpop.xlane.xlu0 %5098
        %5100 = vadd.xlane.f32.xlu0 %v5050
        %v5101 = vpop.xlane.xlu0 %5100
        %5102 = vadd.xlane.f32.xlu0 %v5051
        %v5103 = vpop.xlane.xlu0 %5102
        %5104 = vadd.xlane.f32.xlu0 %v5052
        %v5105 = vpop.xlane.xlu0 %5104
        %5106 = vadd.xlane.f32.xlu0 %v5053
        %v5107 = vpop.xlane.xlu0 %5106
        %5108 = vadd.xlane.f32.xlu0 %v5054
        %v5109 = vpop.xlane.xlu0 %5108
        %5110 = vadd.xlane.f32.xlu0 %v5055
        %v5111 = vpop.xlane.xlu0 %5110
        %5112 = vadd.xlane.f32.xlu0 %v5056
        %v5113 = vpop.xlane.xlu0 %5112
        %5114 = vadd.xlane.f32.xlu0 %v5057
        %v5115 = vpop.xlane.xlu0 %5114
        %5116 = vadd.xlane.f32.xlu0 %v5058
        %v5117 = vpop.xlane.xlu0 %5116
        %5118 = vadd.xlane.f32.xlu0 %v5059
        %v5119 = vpop.xlane.xlu0 %5118
        %5120 = vadd.xlane.f32.xlu0 %v5060
        %v5121 = vpop.xlane.xlu0 %5120
        %5122 = vadd.xlane.f32.xlu0 %v5061
        %v5123 = vpop.xlane.xlu0 %5122
        %5124 = vadd.xlane.f32.xlu0 %v5062
        %v5125 = vpop.xlane.xlu0 %5124
        %5126 = vadd.xlane.f32.xlu0 %v5063
        %v5127 = vpop.xlane.xlu0 %5126
        %v5128 = vmul.f32 %v2804, %v5065
        %v5129 = vmul.f32 %v2805, %v5067
        %v5130 = vmul.f32 %v2806, %v5069
        %v5131 = vmul.f32 %v2807, %v5071
        %v5132 = vmul.f32 %v2808, %v5073
        %v5133 = vmul.f32 %v2809, %v5075
        %v5134 = vmul.f32 %v2810, %v5077
        %v5135 = vmul.f32 %v2811, %v5079
        %v5136 = vmul.f32 %v2812, %v5081
        %v5137 = vmul.f32 %v2813, %v5083
        %v5138 = vmul.f32 %v2814, %v5085
        %v5139 = vmul.f32 %v2815, %v5087
        %v5140 = vmul.f32 %v2816, %v5089
        %v5141 = vmul.f32 %v2817, %v5091
        %v5142 = vmul.f32 %v2818, %v5093
        %v5143 = vmul.f32 %v2819, %v5095
        %v5144 = vmul.f32 %v2820, %v5097
        %v5145 = vmul.f32 %v2821, %v5099
        %v5146 = vmul.f32 %v2822, %v5101
        %v5147 = vmul.f32 %v2823, %v5103
        %v5148 = vmul.f32 %v2824, %v5105
        %v5149 = vmul.f32 %v2825, %v5107
        %v5150 = vmul.f32 %v2826, %v5109
        %v5151 = vmul.f32 %v2827, %v5111
        %v5152 = vmul.f32 %v2828, %v5113
        %v5153 = vmul.f32 %v2829, %v5115
        %v5154 = vmul.f32 %v2830, %v5117
        %v5155 = vmul.f32 %v2831, %v5119
        %v5156 = vmul.f32 %v2832, %v5121
        %v5157 = vmul.f32 %v2833, %v5123
        %v5158 = vmul.f32 %v2834, %v5125
        %v5159 = vmul.f32 %v2835, %v5127
        %5160 = vxpose.xlu0.c.b16.start [1/8] %v1692, 128
        %5161 = vxpose.xlu0.c.b16.cont [2/8] %v1693, 128
        %5162 = vxpose.xlu0.c.b16.cont [3/8] %v1694, 128
        %5163 = vxpose.xlu0.c.b16.cont [4/8] %v1695, 128
        %5164 = vxpose.xlu0.c.b16.cont [5/8] %v1696, 128
        %5165 = vxpose.xlu0.c.b16.cont [6/8] %v1697, 128
        %5166 = vxpose.xlu0.c.b16.cont [7/8] %v1698, 128
        %5167 = vxpose.xlu0.c.b16.end [8/8] %v1699, 128
        %v5168 = vpop.trf.xlu0
        %v5169 = vpop.trf.xlu0
        %v5170 = vpop.trf.xlu0
        %v5171 = vpop.trf.xlu0
        %v5172 = vpop.trf.xlu0
        %v5173 = vpop.trf.xlu0
        %v5174 = vpop.trf.xlu0
        %v5175 = vpop.trf.xlu0
        %5176 = vxpose.xlu0.c.b16.start [1/8] %v1700, 128
        %5177 = vxpose.xlu0.c.b16.cont [2/8] %v1701, 128
        %5178 = vxpose.xlu0.c.b16.cont [3/8] %v1702, 128
        %5179 = vxpose.xlu0.c.b16.cont [4/8] %v1703, 128
        %5180 = vxpose.xlu0.c.b16.cont [5/8] %v1704, 128
        %5181 = vxpose.xlu0.c.b16.cont [6/8] %v1705, 128
        %5182 = vxpose.xlu0.c.b16.cont [7/8] %v1706, 128
        %5183 = vxpose.xlu0.c.b16.end [8/8] %v1707, 128
        %v5184 = vpop.trf.xlu0
        %v5185 = vpop.trf.xlu0
        %v5186 = vpop.trf.xlu0
        %v5187 = vpop.trf.xlu0
        %v5188 = vpop.trf.xlu0
        %v5189 = vpop.trf.xlu0
        %v5190 = vpop.trf.xlu0
        %v5191 = vpop.trf.xlu0
        %5192 = vmatprep.subr.bf16.mxu0 0
        %5193 = vmatpush1.bf16.msra.mxu0 %v4569
        %5194 = vmatprep.subr.bf16.mxu0 0
        %5195 = vmatpush1.bf16.msra.mxu0 %v4570
        %5196 = vmatprep.subr.bf16.mxu0 0
        %5197 = vmatpush1.bf16.msra.mxu0 %v4571
        %5198 = vmatprep.subr.bf16.mxu0 0
        %5199 = vmatpush1.bf16.msra.mxu0 %v4572
        %5200 = vmatprep.subr.bf16.mxu0 0
        %5201 = vmatpush1.bf16.msra.mxu0 %v4573
        %5202 = vmatprep.subr.bf16.mxu0 0
        %5203 = vmatpush1.bf16.msra.mxu0 %v4574
        %5204 = vmatprep.subr.bf16.mxu0 0
        %5205 = vmatpush1.bf16.msra.mxu0 %v4575
        %5206 = vmatprep.subr.bf16.mxu0 0
        %5207 = vmatpush1.bf16.msra.mxu0 %v4576
        %5208 = vmatprep.subr.bf16.mxu0 0
        %5209 = vmatpush1.bf16.msra.mxu0 %v4577
        %5210 = vmatprep.subr.bf16.mxu0 0
        %5211 = vmatpush1.bf16.msra.mxu0 %v4578
        %5212 = vmatprep.subr.bf16.mxu0 0
        %5213 = vmatpush1.bf16.msra.mxu0 %v4579
        %5214 = vmatprep.subr.bf16.mxu0 0
        %5215 = vmatpush1.bf16.msra.mxu0 %v4580
        %5216 = vmatprep.subr.bf16.mxu0 0
        %5217 = vmatpush1.bf16.msra.mxu0 %v4581
        %5218 = vmatprep.subr.bf16.mxu0 0
        %5219 = vmatpush1.bf16.msra.mxu0 %v4582
        %5220 = vmatprep.subr.bf16.mxu0 0
        %5221 = vmatpush1.bf16.msra.mxu0 %v4583
        %5222 = vmatprep.subr.bf16.mxu0 0
        %5223 = vmatpush1.bf16.msra.mxu0 %v4584
        %5224 = vmatprep.mubr.bf16.mxu0 %v5184
        %5225 = vmatmul.mubr.bf16.gmra.mrb[0].mxu0 %v5168
        %v5226 = vpop.f32.mrb[0].mxu0
        %v5227 = vadd.f32 0.0, %v5226
        %v5228 = vpop.f32.mrb[0].mxu0
        %v5229 = vpop.f32.mrb[0].mxu0
        %v5230 = vadd.f32 0.0, %v5229
        %v5231 = vpop.f32.mrb[0].mxu0
        %5232 = vmatprep.mubr.bf16.mxu0 %v5185
        %5233 = vmatmul.mubr.bf16.gmra.mrb[0].mxu0 %v5169
        %v5234 = vpop.f32.mrb[0].mxu0
        %v5235 = vadd.f32 0.0, %v5234
        %v5236 = vpop.f32.mrb[0].mxu0
        %v5237 = vpop.f32.mrb[0].mxu0
        %v5238 = vpop.f32.mrb[0].mxu0
        %5239 = vdwg.mxu0
        %5240 = vxpose.xlu0.b32.start [1/16] %v1588, 128
        %5241 = vxpose.xlu0.b32.cont [2/16] %v1589, 128
        %5242 = vxpose.xlu0.b32.cont [3/16] %v1590, 128
        %5243 = vxpose.xlu0.b32.cont [4/16] %v1591, 128
        %5244 = vxpose.xlu0.b32.cont [5/16] %v1592, 128
        %5245 = vxpose.xlu0.b32.cont [6/16] %v1593, 128
        %5246 = vxpose.xlu0.b32.cont [7/16] %v1594, 128
        %5247 = vxpose.xlu0.b32.cont [8/16] %v1595, 128
        %5248 = vxpose.xlu0.b32.cont [9/16] %v1596, 128
        %5249 = vxpose.xlu0.b32.cont [10/16] %v1597, 128
        %5250 = vxpose.xlu0.b32.cont [11/16] %v1598, 128
        %5251 = vxpose.xlu0.b32.cont [12/16] %v1599, 128
        %5252 = vxpose.xlu0.b32.cont [13/16] %v1600, 128
        %5253 = vxpose.xlu0.b32.cont [14/16] %v1601, 128
        %5254 = vxpose.xlu0.b32.cont [15/16] %v1602, 128
        %5255 = vxpose.xlu0.b32.end [16/16] %v1603, 128
        %v5256 = vpop.trf.xlu0
        %v5257 = vpop.trf.xlu0
        %v5258 = vpop.trf.xlu0
        %v5259 = vpop.trf.xlu0
        %v5260 = vpop.trf.xlu0
        %v5261 = vpop.trf.xlu0
        %v5262 = vpop.trf.xlu0
        %v5263 = vpop.trf.xlu0
        %v5264 = vpop.trf.xlu0
        %v5265 = vpop.trf.xlu0
        %v5266 = vpop.trf.xlu0
        %v5267 = vpop.trf.xlu0
        %v5268 = vpop.trf.xlu0
        %v5269 = vpop.trf.xlu0
        %v5270 = vpop.trf.xlu0
        %v5271 = vpop.trf.xlu0
        %5272 = vxpose.xlu0.b32.start [1/16] %v1604, 128
        %5273 = vxpose.xlu0.b32.cont [2/16] %v1605, 128
        %5274 = vxpose.xlu0.b32.cont [3/16] %v1606, 128
        %5275 = vxpose.xlu0.b32.cont [4/16] %v1607, 128
        %5276 = vxpose.xlu0.b32.cont [5/16] %v1608, 128
        %5277 = vxpose.xlu0.b32.cont [6/16] %v1609, 128
        %5278 = vxpose.xlu0.b32.cont [7/16] %v1610, 128
        %5279 = vxpose.xlu0.b32.cont [8/16] %v1611, 128
        %5280 = vxpose.xlu0.b32.cont [9/16] %v1612, 128
        %5281 = vxpose.xlu0.b32.cont [10/16] %v1613, 128
        %5282 = vxpose.xlu0.b32.cont [11/16] %v1614, 128
        %5283 = vxpose.xlu0.b32.cont [12/16] %v1615, 128
        %5284 = vxpose.xlu0.b32.cont [13/16] %v1616, 128
        %5285 = vxpose.xlu0.b32.cont [14/16] %v1617, 128
        %5286 = vxpose.xlu0.b32.cont [15/16] %v1618, 128
        %5287 = vxpose.xlu0.b32.end [16/16] %v1619, 128
        %v5288 = vpop.trf.xlu0
        %v5289 = vpop.trf.xlu0
        %v5290 = vpop.trf.xlu0
        %v5291 = vpop.trf.xlu0
        %v5292 = vpop.trf.xlu0
        %v5293 = vpop.trf.xlu0
        %v5294 = vpop.trf.xlu0
        %v5295 = vpop.trf.xlu0
        %v5296 = vpop.trf.xlu0
        %v5297 = vpop.trf.xlu0
        %v5298 = vpop.trf.xlu0
        %v5299 = vpop.trf.xlu0
        %v5300 = vpop.trf.xlu0
        %v5301 = vpop.trf.xlu0
        %v5302 = vpop.trf.xlu0
        %v5303 = vpop.trf.xlu0
        %5304 = vmatprep.subr.mxu0 0.0
        %5305 = vmatpush1.msra.mxu0 %v5128
        %5306 = vmatprep.subr.mxu0 0.0
        %5307 = vmatpush1.msra.mxu0 %v5129
        %5308 = vmatprep.subr.mxu0 0.0
        %5309 = vmatpush1.msra.mxu0 %v5130
        %5310 = vmatprep.subr.mxu0 0.0
        %5311 = vmatpush1.msra.mxu0 %v5131
        %5312 = vmatprep.subr.mxu0 0.0
        %5313 = vmatpush1.msra.mxu0 %v5132
        %5314 = vmatprep.subr.mxu0 0.0
        %5315 = vmatpush1.msra.mxu0 %v5133
        %5316 = vmatprep.subr.mxu0 0.0
        %5317 = vmatpush1.msra.mxu0 %v5134
        %5318 = vmatprep.subr.mxu0 0.0
        %5319 = vmatpush1.msra.mxu0 %v5135
        %5320 = vmatprep.subr.mxu0 0.0
        %5321 = vmatpush1.msra.mxu0 %v5136
        %5322 = vmatprep.subr.mxu0 0.0
        %5323 = vmatpush1.msra.mxu0 %v5137
        %5324 = vmatprep.subr.mxu0 0.0
        %5325 = vmatpush1.msra.mxu0 %v5138
        %5326 = vmatprep.subr.mxu0 0.0
        %5327 = vmatpush1.msra.mxu0 %v5139
        %5328 = vmatprep.subr.mxu0 0.0
        %5329 = vmatpush1.msra.mxu0 %v5140
        %5330 = vmatprep.subr.mxu0 0.0
        %5331 = vmatpush1.msra.mxu0 %v5141
        %5332 = vmatprep.subr.mxu0 0.0
        %5333 = vmatpush1.msra.mxu0 %v5142
        %5334 = vmatprep.subr.mxu0 0.0
        %5335 = vmatpush1.msra.mxu0 %v5143
        %5336 = vmatprep.subr.mxu0 0.0
        %5337 = vmatpush1.msra.mxu0 %v5144
        %5338 = vmatprep.subr.mxu0 0.0
        %5339 = vmatpush1.msra.mxu0 %v5145
        %5340 = vmatprep.subr.mxu0 0.0
        %5341 = vmatpush1.msra.mxu0 %v5146
        %5342 = vmatprep.subr.mxu0 0.0
        %5343 = vmatpush1.msra.mxu0 %v5147
        %5344 = vmatprep.subr.mxu0 0.0
        %5345 = vmatpush1.msra.mxu0 %v5148
        %5346 = vmatprep.subr.mxu0 0.0
        %5347 = vmatpush1.msra.mxu0 %v5149
        %5348 = vmatprep.subr.mxu0 0.0
        %5349 = vmatpush1.msra.mxu0 %v5150
        %5350 = vmatprep.subr.mxu0 0.0
        %5351 = vmatpush1.msra.mxu0 %v5151
        %5352 = vmatprep.subr.mxu0 0.0
        %5353 = vmatpush1.msra.mxu0 %v5152
        %5354 = vmatprep.subr.mxu0 0.0
        %5355 = vmatpush1.msra.mxu0 %v5153
        %5356 = vmatprep.subr.mxu0 0.0
        %5357 = vmatpush1.msra.mxu0 %v5154
        %5358 = vmatprep.subr.mxu0 0.0
        %5359 = vmatpush1.msra.mxu0 %v5155
        %5360 = vmatprep.subr.mxu0 0.0
        %5361 = vmatpush1.msra.mxu0 %v5156
        %5362 = vmatprep.subr.mxu0 0.0
        %5363 = vmatpush1.msra.mxu0 %v5157
        %5364 = vmatprep.subr.mxu0 0.0
        %5365 = vmatpush1.msra.mxu0 %v5158
        %5366 = vmatprep.subr.mxu0 0.0
        %5367 = vmatpush1.msra.mxu0 %v5159
        %5368 = vmatprep.mubr.f32.mxu0 %v5288
        %5369 = vmatmul.mubr.f32.gmra.mrb[0].mxu0 %v5256
        %v5370 = vpop.f32.mrb[0].mxu0
        %v5371 = vadd.f32 0.0, %v5370
        %v5372 = vpop.f32.mrb[0].mxu0
        %5373 = vmatprep.mubr.f32.mxu0 %v5289
        %5374 = vmatmul.mubr.f32.gmra.mrb[0].mxu0 %v5257
        %v5375 = vpop.f32.mrb[0].mxu0
        %v5376 = vadd.f32 0.0, %v5375
        %v5377 = vpop.f32.mrb[0].mxu0
        %5378 = vmatprep.mubr.f32.mxu0 %v5290
        %5379 = vmatmul.mubr.f32.gmra.mrb[0].mxu0 %v5258
        %v5380 = vpop.f32.mrb[0].mxu0
        %v5381 = vadd.f32 0.0, %v5380
        %v5382 = vpop.f32.mrb[0].mxu0
        %5383 = vdwg.mxu0
        // Predicated region
        $region201: #{tpu_custom_call.1} parent=135 // pred_check
          %p5384 = pneg %p1394
        $region202: #{tpu_custom_call.1} parent=135 // pred_check_branch
          %5386 = sbr.rel (%p5384) target = $region204
        $region203: #{tpu_custom_call.1} parent=135 // pred_region
          %5387 = vst [vmem:[#allocation5] sm:$0xff] %v5227
          %5388 = vst [vmem:[#allocation5 + $0x8] sm:$0xff] %v5230
          %5389 = vst [vmem:[#allocation5 + $0x10] sm:$0xff] %v5235
          %5390 = vst [vmem:[#allocation6] sm:$0xff] %v5371
          %5391 = vst [vmem:[#allocation6 + $0x8] sm:$0xff] %v5376
          %5392 = vst [vmem:[#allocation6 + $0x10] sm:$0xff] %v5381
        $region204: #{tpu_custom_call.1} parent=135 // pred_fallthru
          _
        %p5393 = scmp.gt.s32.totalorder %s80, 0
        // Predicated region
        $region205: #{tpu_custom_call.1} parent=135 // pred_check
          %p5394 = pneg %p5393
        $region206: #{tpu_custom_call.1} parent=135 // pred_check_branch
          %5396 = sbr.rel (%p5394) target = $region208
        $region207: #{tpu_custom_call.1} parent=135 // pred_region
          %v5397 = vld [vmem:[#allocation5] sm:$0xff]
          %v5398 = vld [vmem:[#allocation5 + $0x8] sm:$0xff]
          %v5399 = vld [vmem:[#allocation5 + $0x10] sm:$0xff]
          %v5400 = vadd.f32 %v5397, %v5227
          %v5401 = vadd.f32 %v5398, %v5230
          %v5402 = vadd.f32 %v5399, %v5235
          %5403 = vst [vmem:[#allocation5] sm:$0xff] %v5400
          %5404 = vst [vmem:[#allocation5 + $0x8] sm:$0xff] %v5401
          %5405 = vst [vmem:[#allocation5 + $0x10] sm:$0xff] %v5402
          %v5406 = vld [vmem:[#allocation6] sm:$0xff]
          %v5407 = vld [vmem:[#allocation6 + $0x8] sm:$0xff]
          %v5408 = vld [vmem:[#allocation6 + $0x10] sm:$0xff]
          %v5409 = vadd.f32 %v5406, %v5371
          %v5410 = vadd.f32 %v5407, %v5376
          %v5411 = vadd.f32 %v5408, %v5381
          %5412 = vst [vmem:[#allocation6] sm:$0xff] %v5409
          %5413 = vst [vmem:[#allocation6 + $0x8] sm:$0xff] %v5410
          %5414 = vst [vmem:[#allocation6 + $0x10] sm:$0xff] %v5411
        $region208: #{tpu_custom_call.1} parent=135 // pred_fallthru
          _
        %p5415 = scmp.eq.s32.totalorder %s80, 1
        // Predicated region
        $region209: #{tpu_custom_call.1} parent=135 // pred_check
          %p5416 = pneg %p5415
        $region210: #{tpu_custom_call.1} parent=135 // pred_check_branch
          %5418 = sbr.rel (%p5416) target = $region212
        $region211: #{tpu_custom_call.1} parent=135 // pred_region
          %v5419 = vld [vmem:[#allocation2] sm:$0xff]
          %v5420 = vld [vmem:[#allocation2 + $0x8] sm:$0xff]
          %v5421 = vld [vmem:[#allocation2 + $0x10] sm:$0xff]
          %v5422 = vld [vmem:[#allocation4] sm:$0xff]
          %v5423 = vld [vmem:[#allocation4 + $0x8] sm:$0xff]
          %v5424 = vld [vmem:[#allocation4 + $0x10] sm:$0xff]
          %v5425 = vld [vmem:[#allocation6] sm:$0xff]
          %v5426 = vld [vmem:[#allocation6 + $0x8] sm:$0xff]
          %v5427 = vld [vmem:[#allocation6 + $0x10] sm:$0xff]
          %v5428 = vld [vmem:[%s9] sm:$0xff]
          %v5429 = vld [vmem:[%s9 + $0x8] sm:$0xff]
          %v5430 = vld [vmem:[%s9 + $0x10] sm:$0xff]
          %5432 = vset.pattern.permute.xlu0 0
          %5433 = vperm.xlu0 %5432, %v5428
          %v5434 = vpop.permute.xlu0 %5433
          %5437 = vset.pattern.permute.xlu0 0
          %5438 = vperm.xlu0 %5437, %v5429
          %v5439 = vpop.permute.xlu0 %5438
          %5442 = vset.pattern.permute.xlu0 0
          %5443 = vperm.xlu0 %5442, %v5430
          %v5444 = vpop.permute.xlu0 %5443
          %v5446 = vmul.f32 %v5425, %v5434
          %v5447 = vmul.f32 %v5426, %v5439
          %v5448 = vmul.f32 %v5427, %v5444
          %v5449 = vadd.f32 %v5422, %v5446
          %v5450 = vadd.f32 %v5423, %v5447
          %v5451 = vadd.f32 %v5424, %v5448
          %v5452 = vld [vmem:[#allocation5] sm:$0xff]
          %v5453 = vld [vmem:[#allocation5 + $0x8] sm:$0xff]
          %v5454 = vld [vmem:[#allocation5 + $0x10] sm:$0xff]
          %v5455 = vpack.c.bf16 %v5420, %v5419
          %v5456 = vpack.c.bf16 %v5453, %v5452
          %v5457 = vpack.c.bf16 %v5421, %v5421
          %v5458 = vpack.c.bf16 %v5454, %v5454
          %v5459 = vld [vmem:[%s1212] sm:$0xf]
          %v5460 = vld [vmem:[%s1212 + $0x4] sm:$0xf]
          %v5461 = vld [vmem:[%s1212 + $0x8] sm:$0xf]
          %v5462 = vld [vmem:[%s1212 + $0xc] sm:$0xf]
          %v5463 = vld [vmem:[%s1212 + $0x10] sm:$0xf]
          %v5464 = vld [vmem:[%s1212 + $0x14] sm:$0xf]
          %v5465 = vld [vmem:[%s1212 + $0x18] sm:$0xf]
          %v5466 = vld [vmem:[%s1212 + $0x1c] sm:$0xf]
          %v5467 = vld [vmem:[%s1212 + $0x20] sm:$0xf]
          %v5468 = vld [vmem:[%s1212 + $0x24] sm:$0xf]
          %v5469 = vld [vmem:[%s1212 + $0x28] sm:$0xf]
          %v5470 = vld [vmem:[%s1212 + $0x2c] sm:$0xf]
          %v5471 = vld [vmem:[%s1212 + $0x30] sm:$0xf]
          %v5472 = vld [vmem:[%s1212 + $0x34] sm:$0xf]
          %v5473 = vld [vmem:[%s1212 + $0x38] sm:$0xf]
          %v5474 = vld [vmem:[%s1212 + $0x3c] sm:$0xf]
          %v5475 = vld [vmem:[%s1212 + $0x40] sm:$0xf]
          %v5476 = vld [vmem:[%s1212 + $0x44] sm:$0xf]
          %v5477 = vld [vmem:[%s1212 + $0x48] sm:$0xf]
          %v5478 = vld [vmem:[%s1212 + $0x4c] sm:$0xf]
          %v5479 = vld [vmem:[%s1212 + $0x50] sm:$0xf]
          %v5480 = vld [vmem:[%s1212 + $0x54] sm:$0xf]
          %v5481 = vld [vmem:[%s1212 + $0x58] sm:$0xf]
          %v5482 = vld [vmem:[%s1212 + $0x5c] sm:$0xf]
          %v5483 = vld [vmem:[%s1212 + $0x60] sm:$0xf]
          %v5484 = vld [vmem:[%s1212 + $0x64] sm:$0xf]
          %v5485 = vld [vmem:[%s1212 + $0x68] sm:$0xf]
          %v5486 = vld [vmem:[%s1212 + $0x6c] sm:$0xf]
          %v5487 = vld [vmem:[%s1212 + $0x70] sm:$0xf]
          %v5488 = vld [vmem:[%s1212 + $0x74] sm:$0xf]
          %v5489 = vld [vmem:[%s1212 + $0x78] sm:$0xf]
          %v5490 = vld [vmem:[%s1212 + $0x7c] sm:$0xf]
          %v5491 = vld [vmem:[%s1383] sm:$0x1]
          %v5493 = vlaneseq
          %v5494 = vshrl.u32 %v5493, 7
          %v5495 = vsub.s32 0, %v5494
          %v5496 = vrot.slane %v5491, %v5495
          %v5530 = vunpack.c.l.b16 %v5459
          %v5531 = vunpack.c.l.b16 %v5460
          %v5532 = vunpack.c.l.b16 %v5461
          %v5533 = vunpack.c.l.b16 %v5462
          %v5534 = vunpack.c.l.b16 %v5463
          %v5535 = vunpack.c.l.b16 %v5464
          %v5536 = vunpack.c.l.b16 %v5465
          %v5537 = vunpack.c.l.b16 %v5466
          %v5538 = vunpack.c.l.b16 %v5467
          %v5539 = vunpack.c.l.b16 %v5468
          %v5540 = vunpack.c.l.b16 %v5469
          %v5541 = vunpack.c.l.b16 %v5470
          %v5542 = vunpack.c.l.b16 %v5471
          %v5543 = vunpack.c.l.b16 %v5472
          %v5544 = vunpack.c.l.b16 %v5473
          %v5545 = vunpack.c.l.b16 %v5474
          %v5546 = vunpack.c.l.b16 %v5475
          %v5547 = vunpack.c.l.b16 %v5476
          %v5548 = vunpack.c.l.b16 %v5477
          %v5549 = vunpack.c.l.b16 %v5478
          %v5550 = vunpack.c.l.b16 %v5479
          %v5551 = vunpack.c.l.b16 %v5480
          %v5552 = vunpack.c.l.b16 %v5481
          %v5553 = vunpack.c.l.b16 %v5482
          %v5554 = vunpack.c.l.b16 %v5483
          %v5555 = vunpack.c.l.b16 %v5484
          %v5556 = vunpack.c.l.b16 %v5485
          %v5557 = vunpack.c.l.b16 %v5486
          %v5558 = vunpack.c.l.b16 %v5487
          %v5559 = vunpack.c.l.b16 %v5488
          %v5560 = vunpack.c.l.b16 %v5489
          %v5561 = vunpack.c.l.b16 %v5490
          %v5562 = vpack.c.b16 %v5531, %v5530
          %v5563 = vpack.c.b16 %v5533, %v5532
          %v5564 = vpack.c.b16 %v5535, %v5534
          %v5565 = vpack.c.b16 %v5537, %v5536
          %v5566 = vpack.c.b16 %v5539, %v5538
          %v5567 = vpack.c.b16 %v5541, %v5540
          %v5568 = vpack.c.b16 %v5543, %v5542
          %v5569 = vpack.c.b16 %v5545, %v5544
          %v5570 = vpack.c.b16 %v5547, %v5546
          %v5571 = vpack.c.b16 %v5549, %v5548
          %v5572 = vpack.c.b16 %v5551, %v5550
          %v5573 = vpack.c.b16 %v5553, %v5552
          %v5574 = vpack.c.b16 %v5555, %v5554
          %v5575 = vpack.c.b16 %v5557, %v5556
          %v5576 = vpack.c.b16 %v5559, %v5558
          %v5577 = vpack.c.b16 %v5561, %v5560
          %5594 = vmatprep.subr.bf16.mxu0 0
          %5595 = vmatpush1.bf16.msra.mxu0 %v5562
          %5596 = vmatprep.subr.bf16.mxu0 0
          %5597 = vmatpush1.bf16.msra.mxu0 %v5563
          %5598 = vmatprep.subr.bf16.mxu0 0
          %5599 = vmatpush1.bf16.msra.mxu0 %v5564
          %5600 = vmatprep.subr.bf16.mxu0 0
          %5601 = vmatpush1.bf16.msra.mxu0 %v5565
          %5602 = vmatprep.subr.bf16.mxu0 0
          %5603 = vmatpush1.bf16.msra.mxu0 %v5566
          %5604 = vmatprep.subr.bf16.mxu0 0
          %5605 = vmatpush1.bf16.msra.mxu0 %v5567
          %5606 = vmatprep.subr.bf16.mxu0 0
          %5607 = vmatpush1.bf16.msra.mxu0 %v5568
          %5608 = vmatprep.subr.bf16.mxu0 0
          %5609 = vmatpush1.bf16.msra.mxu0 %v5569
          %5610 = vmatprep.subr.bf16.mxu0 0
          %5611 = vmatpush1.bf16.msra.mxu0 %v5570
          %5612 = vmatprep.subr.bf16.mxu0 0
          %5613 = vmatpush1.bf16.msra.mxu0 %v5571
          %5614 = vmatprep.subr.bf16.mxu0 0
          %5615 = vmatpush1.bf16.msra.mxu0 %v5572
          %5616 = vmatprep.subr.bf16.mxu0 0
          %5617 = vmatpush1.bf16.msra.mxu0 %v5573
          %5618 = vmatprep.subr.bf16.mxu0 0
          %5619 = vmatpush1.bf16.msra.mxu0 %v5574
          %5620 = vmatprep.subr.bf16.mxu0 0
          %5621 = vmatpush1.bf16.msra.mxu0 %v5575
          %5622 = vmatprep.subr.bf16.mxu0 0
          %5623 = vmatpush1.bf16.msra.mxu0 %v5576
          %5624 = vmatprep.subr.bf16.mxu0 0
          %5625 = vmatpush1.bf16.msra.mxu0 %v5577
          %5626 = vmatprep.mubr.bf16.mxu0 %v5456
          %5627 = vmatmul.mubr.bf16.gmra.mrb[0].mxu0 %v5455
          %v5628 = vpop.f32.mrb[0].mxu0
          %v5629 = vadd.f32 %v5496, %v5628
          %v5630 = vpop.f32.mrb[0].mxu0
          %v5631 = vpop.f32.mrb[0].mxu0
          %v5632 = vadd.f32 %v5496, %v5631
          %v5633 = vpop.f32.mrb[0].mxu0
          %5634 = vmatprep.mubr.bf16.mxu0 %v5458
          %5635 = vmatmul.mubr.bf16.gmra.mrb[0].mxu0 %v5457
          %v5636 = vpop.f32.mrb[0].mxu0
          %v5637 = vadd.f32 %v5496, %v5636
          %v5638 = vpop.f32.mrb[0].mxu0
          %v5639 = vpop.f32.mrb[0].mxu0
          %v5640 = vpop.f32.mrb[0].mxu0
          %5641 = vdwg.mxu0
          %v5642 = vxor.u32 %v5629, 2147483648
          %v5643 = vxor.u32 %v5632, 2147483648
          %v5644 = vxor.u32 %v5637, 2147483648
          %v5645 = vmul.f32 %v5642, 1.442695
          %v5646 = vpow.pop %v5645
          %v5647 = vmul.f32 %v5643, 1.442695
          %v5648 = vpow.pop %v5647
          %v5649 = vmul.f32 %v5644, 1.442695
          %v5650 = vpow.pop %v5649
          %v5651 = vadd.f32 %v5646, 1.0
          %v5652 = vadd.f32 %v5648, 1.0
          %v5653 = vadd.f32 %v5650, 1.0
          %v5654 = vrcp.pop %v5651
          %v5655 = vmul.f32 1.0, %v5654
          %v5656 = vrcp.pop %v5652
          %v5657 = vmul.f32 1.0, %v5656
          %v5658 = vrcp.pop %v5653
          %v5659 = vmul.f32 1.0, %v5658
          %v5660 = vmul.f32 %v5629, %v5655
          %v5661 = vmul.f32 %v5632, %v5657
          %v5662 = vmul.f32 %v5637, %v5659
          %v5663 = vld [vmem:[%s1388] sm:$0xf]
          %v5664 = vld [vmem:[%s1388 + $0x4] sm:$0xf]
          %v5665 = vld [vmem:[%s1388 + $0x8] sm:$0xf]
          %v5666 = vld [vmem:[%s1388 + $0xc] sm:$0xf]
          %v5667 = vld [vmem:[%s1388 + $0x10] sm:$0xf]
          %v5668 = vld [vmem:[%s1388 + $0x14] sm:$0xf]
          %v5669 = vld [vmem:[%s1388 + $0x18] sm:$0xf]
          %v5670 = vld [vmem:[%s1388 + $0x1c] sm:$0xf]
          %v5671 = vld [vmem:[%s1388 + $0x20] sm:$0xf]
          %v5672 = vld [vmem:[%s1388 + $0x24] sm:$0xf]
          %v5673 = vld [vmem:[%s1388 + $0x28] sm:$0xf]
          %v5674 = vld [vmem:[%s1388 + $0x2c] sm:$0xf]
          %v5675 = vld [vmem:[%s1388 + $0x30] sm:$0xf]
          %v5676 = vld [vmem:[%s1388 + $0x34] sm:$0xf]
          %v5677 = vld [vmem:[%s1388 + $0x38] sm:$0xf]
          %v5678 = vld [vmem:[%s1388 + $0x3c] sm:$0xf]
          %v5679 = vpack.c.bf16 %v5661, %v5660
          %v5680 = vpack.c.bf16 %v5662, %v5662
          %v5697 = vunpack.c.l.b16 %v5663
          %v5698 = vunpack.c.l.b16 %v5664
          %v5699 = vunpack.c.l.b16 %v5665
          %v5700 = vunpack.c.l.b16 %v5666
          %v5701 = vunpack.c.l.b16 %v5667
          %v5702 = vunpack.c.l.b16 %v5668
          %v5703 = vunpack.c.l.b16 %v5669
          %v5704 = vunpack.c.l.b16 %v5670
          %v5705 = vunpack.c.l.b16 %v5671
          %v5706 = vunpack.c.l.b16 %v5672
          %v5707 = vunpack.c.l.b16 %v5673
          %v5708 = vunpack.c.l.b16 %v5674
          %v5709 = vunpack.c.l.b16 %v5675
          %v5710 = vunpack.c.l.b16 %v5676
          %v5711 = vunpack.c.l.b16 %v5677
          %v5712 = vunpack.c.l.b16 %v5678
          %v5713 = vpack.c.b16 %v5698, %v5697
          %v5714 = vpack.c.b16 %v5700, %v5699
          %v5715 = vpack.c.b16 %v5702, %v5701
          %v5716 = vpack.c.b16 %v5704, %v5703
          %v5717 = vpack.c.b16 %v5706, %v5705
          %v5718 = vpack.c.b16 %v5708, %v5707
          %v5719 = vpack.c.b16 %v5710, %v5709
          %v5720 = vpack.c.b16 %v5712, %v5711
          %5729 = vmatprep.subr.bf16.mxu0 0
          %5730 = vmatpush1.bf16.msra.mxu0 %v5713
          %5731 = vmatprep.subr.bf16.mxu0 0
          %5732 = vmatpush1.bf16.msra.mxu0 %v5714
          %5733 = vmatprep.subr.bf16.mxu0 0
          %5734 = vmatpush1.bf16.msra.mxu0 %v5715
          %5735 = vmatprep.subr.bf16.mxu0 0
          %5736 = vmatpush1.bf16.msra.mxu0 %v5716
          %5737 = vmatprep.subr.bf16.mxu0 0
          %5738 = vmatpush1.bf16.msra.mxu0 %v5717
          %5739 = vmatprep.subr.bf16.mxu0 0
          %5740 = vmatpush1.bf16.msra.mxu0 %v5718
          %5741 = vmatprep.subr.bf16.mxu0 0
          %5742 = vmatpush1.bf16.msra.mxu0 %v5719
          %5743 = vmatprep.subr.bf16.mxu0 0
          %5744 = vmatpush1.bf16.msra.mxu0 %v5720
          %5745 = vmatprep.subr.bf16.mxu0 0
          %5746 = vmatpush1.bf16.msra.mxu0 0
          %5747 = vmatprep.subr.bf16.mxu0 0
          %5748 = vmatpush1.bf16.msra.mxu0 0
          %5749 = vmatprep.subr.bf16.mxu0 0
          %5750 = vmatpush1.bf16.msra.mxu0 0
          %5751 = vmatprep.subr.bf16.mxu0 0
          %5752 = vmatpush1.bf16.msra.mxu0 0
          %5753 = vmatprep.subr.bf16.mxu0 0
          %5754 = vmatpush1.bf16.msra.mxu0 0
          %5755 = vmatprep.subr.bf16.mxu0 0
          %5756 = vmatpush1.bf16.msra.mxu0 0
          %5757 = vmatprep.subr.bf16.mxu0 0
          %5758 = vmatpush1.bf16.msra.mxu0 0
          %5759 = vmatprep.subr.bf16.mxu0 0
          %5760 = vmatpush1.bf16.msra.mxu0 0
          %5761 = vmatprep.mubr.bf16.mxu0 0
          %5762 = vmatmul.mubr.bf16.gmra.mrb[0].mxu0 %v5679
          %v5763 = vpop.f32.mrb[0].mxu0
          %v5764 = vadd.f32 0.0, %v5763
          %v5765 = vpop.f32.mrb[0].mxu0
          %v5766 = vpop.f32.mrb[0].mxu0
          %v5767 = vadd.f32 0.0, %v5766
          %v5768 = vpop.f32.mrb[0].mxu0
          %5769 = vmatprep.mubr.bf16.mxu0 0
          %5770 = vmatmul.mubr.bf16.gmra.mrb[0].mxu0 %v5680
          %v5771 = vpop.f32.mrb[0].mxu0
          %v5772 = vadd.f32 0.0, %v5771
          %v5773 = vpop.f32.mrb[0].mxu0
          %v5774 = vpop.f32.mrb[0].mxu0
          %v5775 = vpop.f32.mrb[0].mxu0
          %5776 = vdwg.mxu0
          %v5777 = vadd.f32 %v5419, %v5764
          %v5778 = vadd.f32 %v5420, %v5767
          %v5779 = vadd.f32 %v5421, %v5772
          %v5780 = vld [vmem:[%s1391] sm:$0x1]
          %v5782 = vlaneseq
          %v5783 = vshrl.u32 %v5782, 7
          %v5784 = vsub.s32 0, %v5783
          %v5785 = vrot.slane %v5780, %v5784
          %v5787 = vadd.f32 %v5777, %v5785
          %v5788 = vadd.f32 %v5778, %v5785
          %v5789 = vadd.f32 %v5779, %v5785
          %5790 = vst [vmem:[#allocation2] sm:$0xff] %v5787
          %5791 = vst [vmem:[#allocation2 + $0x8] sm:$0xff] %v5788
          %5792 = vst [vmem:[#allocation2 + $0x10] sm:$0xff] %v5789
          %v5793 = vpack.c.bf16 %v5788, %v5787
          %v5794 = vpack.c.bf16 %v5789, %v5789
          %v5797 = vunpack.c.l.b16 %v5793
          %v5798 = vunpack.c.h.b16 %v5793
          %v5799 = vunpack.c.l.b16 %v5794
          %v5800 = vpack.c.b16 %v5797, %v5797
          %v5801 = vpack.c.b16 %v5798, %v5798
          %v5802 = vpack.c.b16 %v5799, %v5799
          %5806 = vst [vmem:[#allocation3] sm:$0xf] %v5800
          %5807 = vst [vmem:[#allocation3 + $0x4] sm:$0xf] %v5801
          %5808 = vst [vmem:[#allocation3 + $0x8] sm:$0xf] %v5802
          %5809 = vst [vmem:[#allocation4] sm:$0xff] %v5449
          %5810 = vst [vmem:[#allocation4 + $0x8] sm:$0xff] %v5450
          %5811 = vst [vmem:[#allocation4 + $0x10] sm:$0xff] %v5451
          %p5812 = scmp.eq.s32.totalorder %s79, 1
          // Predicated region
          $region213: #{tpu_custom_call.1} parent=211 // pred_check
            %p5813 = pneg %p5812
          $region214: #{tpu_custom_call.1} parent=211 // pred_check_branch
            %5815 = sbr.rel (%p5813) target = $region216
          $region215: #{tpu_custom_call.1} parent=211 // pred_region
            %v5816 = vld [vmem:[#allocation22] sm:$0xf]
            %v5817 = vld [vmem:[#allocation22 + $0x4] sm:$0xf]
            %v5818 = vld [vmem:[#allocation22 + $0x8] sm:$0xf]
            %v5819 = vld [vmem:[#allocation22 + $0xc] sm:$0xf]
            %v5820 = vld [vmem:[#allocation22 + $0x10] sm:$0xf]
            %v5821 = vld [vmem:[#allocation22 + $0x14] sm:$0xf]
            %v5822 = vld [vmem:[#allocation22 + $0x18] sm:$0xf]
            %v5823 = vld [vmem:[#allocation22 + $0x1c] sm:$0xf]
            %v5824 = vld [vmem:[#allocation22 + $0x20] sm:$0xf]
            %v5825 = vld [vmem:[#allocation22 + $0x24] sm:$0xf]
            %v5826 = vld [vmem:[#allocation22 + $0x28] sm:$0xf]
            %v5827 = vld [vmem:[#allocation22 + $0x2c] sm:$0xf]
            %v5828 = vld [vmem:[#allocation22 + $0x30] sm:$0xf]
            %v5829 = vld [vmem:[#allocation22 + $0x34] sm:$0xf]
            %v5830 = vld [vmem:[#allocation22 + $0x38] sm:$0xf]
            %v5831 = vld [vmem:[#allocation22 + $0x3c] sm:$0xf]
            %v5832 = vld [vmem:[%s49] sm:$0x1]
            %v5834 = vlaneseq
            %v5835 = vshrl.u32 %v5834, 7
            %v5836 = vsub.s32 0, %v5835
            %v5837 = vrot.slane %v5832, %v5836
            %v5855 = vunpack.c.l.b16 %v5816
            %v5856 = vunpack.c.l.b16 %v5817
            %v5857 = vunpack.c.l.b16 %v5818
            %v5858 = vunpack.c.l.b16 %v5819
            %v5859 = vunpack.c.l.b16 %v5820
            %v5860 = vunpack.c.l.b16 %v5821
            %v5861 = vunpack.c.l.b16 %v5822
            %v5862 = vunpack.c.l.b16 %v5823
            %v5863 = vunpack.c.l.b16 %v5824
            %v5864 = vunpack.c.l.b16 %v5825
            %v5865 = vunpack.c.l.b16 %v5826
            %v5866 = vunpack.c.l.b16 %v5827
            %v5867 = vunpack.c.l.b16 %v5828
            %v5868 = vunpack.c.l.b16 %v5829
            %v5869 = vunpack.c.l.b16 %v5830
            %v5870 = vunpack.c.l.b16 %v5831
            %v5871 = vpack.c.b16 %v5856, %v5855
            %v5872 = vpack.c.b16 %v5858, %v5857
            %v5873 = vpack.c.b16 %v5860, %v5859
            %v5874 = vpack.c.b16 %v5862, %v5861
            %v5875 = vpack.c.b16 %v5864, %v5863
            %v5876 = vpack.c.b16 %v5866, %v5865
            %v5877 = vpack.c.b16 %v5868, %v5867
            %v5878 = vpack.c.b16 %v5870, %v5869
            %5887 = vmatprep.subr.bf16.mxu0 0
            %5888 = vmatpush1.bf16.msra.mxu0 %v5871
            %5889 = vmatprep.subr.bf16.mxu0 0
            %5890 = vmatpush1.bf16.msra.mxu0 %v5872
            %5891 = vmatprep.subr.bf16.mxu0 0
            %5892 = vmatpush1.bf16.msra.mxu0 %v5873
            %5893 = vmatprep.subr.bf16.mxu0 0
            %5894 = vmatpush1.bf16.msra.mxu0 %v5874
            %5895 = vmatprep.subr.bf16.mxu0 0
            %5896 = vmatpush1.bf16.msra.mxu0 %v5875
            %5897 = vmatprep.subr.bf16.mxu0 0
            %5898 = vmatpush1.bf16.msra.mxu0 %v5876
            %5899 = vmatprep.subr.bf16.mxu0 0
            %5900 = vmatpush1.bf16.msra.mxu0 %v5877
            %5901 = vmatprep.subr.bf16.mxu0 0
            %5902 = vmatpush1.bf16.msra.mxu0 %v5878
            %5903 = vmatprep.subr.bf16.mxu0 0
            %5904 = vmatpush1.bf16.msra.mxu0 0
            %5905 = vmatprep.subr.bf16.mxu0 0
            %5906 = vmatpush1.bf16.msra.mxu0 0
            %5907 = vmatprep.subr.bf16.mxu0 0
            %5908 = vmatpush1.bf16.msra.mxu0 0
            %5909 = vmatprep.subr.bf16.mxu0 0
            %5910 = vmatpush1.bf16.msra.mxu0 0
            %5911 = vmatprep.subr.bf16.mxu0 0
            %5912 = vmatpush1.bf16.msra.mxu0 0
            %5913 = vmatprep.subr.bf16.mxu0 0
            %5914 = vmatpush1.bf16.msra.mxu0 0
            %5915 = vmatprep.subr.bf16.mxu0 0
            %5916 = vmatpush1.bf16.msra.mxu0 0
            %5917 = vmatprep.subr.bf16.mxu0 0
            %5918 = vmatpush1.bf16.msra.mxu0 0
            %5919 = vmatprep.mubr.bf16.mxu0 0
            %5920 = vmatmul.mubr.bf16.gmra.mrb[0].mxu0 %v5793
            %v5921 = vpop.f32.mrb[0].mxu0
            %v5922 = vadd.f32 %v5837, %v5921
            %v5923 = vpop.f32.mrb[0].mxu0
            %v5924 = vpop.f32.mrb[0].mxu0
            %v5925 = vadd.f32 %v5837, %v5924
            %v5926 = vpop.f32.mrb[0].mxu0
            %5927 = vmatprep.mubr.bf16.mxu0 0
            %5928 = vmatmul.mubr.bf16.gmra.mrb[0].mxu0 %v5794
            %v5929 = vpop.f32.mrb[0].mxu0
            %v5930 = vadd.f32 %v5837, %v5929
            %v5931 = vpop.f32.mrb[0].mxu0
            %v5932 = vpop.f32.mrb[0].mxu0
            %v5933 = vpop.f32.mrb[0].mxu0
            %5934 = vdwg.mxu0
            %v5935 = vld [vmem:[%s11] sm:$0x3]
            %v5937 = vsel %vm1736, %v5935, 0
            %5939 = vmatprep.subr.mxu0 0.0
            %5940 = vmatpush1.msra.mxu0 %v5922
            %5941 = vmatprep.subr.mxu0 0.0
            %5942 = vmatpush1.msra.mxu0 %v5925
            %5943 = vmatprep.subr.mxu0 0.0
            %5944 = vmatpush1.msra.mxu0 %v5930
            %5945 = vmatprep.subr.mxu0 0.0
            %5946 = vmatpush1.msra.mxu0 0.0
            %5947 = vmatprep.subr.mxu0 0.0
            %5948 = vmatpush1.msra.mxu0 0.0
            %5949 = vmatprep.subr.mxu0 0.0
            %5950 = vmatpush1.msra.mxu0 0.0
            %5951 = vmatprep.subr.mxu0 0.0
            %5952 = vmatpush1.msra.mxu0 0.0
            %5953 = vmatprep.subr.mxu0 0.0
            %5954 = vmatpush1.msra.mxu0 0.0
            %5955 = vmatprep.subr.mxu0 0.0
            %5956 = vmatpush1.msra.mxu0 0.0
            %5957 = vmatprep.subr.mxu0 0.0
            %5958 = vmatpush1.msra.mxu0 0.0
            %5959 = vmatprep.subr.mxu0 0.0
            %5960 = vmatpush1.msra.mxu0 0.0
            %5961 = vmatprep.subr.mxu0 0.0
            %5962 = vmatpush1.msra.mxu0 0.0
            %5963 = vmatprep.subr.mxu0 0.0
            %5964 = vmatpush1.msra.mxu0 0.0
            %5965 = vmatprep.subr.mxu0 0.0
            %5966 = vmatpush1.msra.mxu0 0.0
            %5967 = vmatprep.subr.mxu0 0.0
            %5968 = vmatpush1.msra.mxu0 0.0
            %5969 = vmatprep.subr.mxu0 0.0
            %5970 = vmatpush1.msra.mxu0 0.0
            %5971 = vmatprep.subr.mxu0 0.0
            %5972 = vmatpush1.msra.mxu0 0.0
            %5973 = vmatprep.subr.mxu0 0.0
            %5974 = vmatpush1.msra.mxu0 0.0
            %5975 = vmatprep.subr.mxu0 0.0
            %5976 = vmatpush1.msra.mxu0 0.0
            %5977 = vmatprep.subr.mxu0 0.0
            %5978 = vmatpush1.msra.mxu0 0.0
            %5979 = vmatprep.subr.mxu0 0.0
            %5980 = vmatpush1.msra.mxu0 0.0
            %5981 = vmatprep.subr.mxu0 0.0
            %5982 = vmatpush1.msra.mxu0 0.0
            %5983 = vmatprep.subr.mxu0 0.0
            %5984 = vmatpush1.msra.mxu0 0.0
            %5985 = vmatprep.subr.mxu0 0.0
            %5986 = vmatpush1.msra.mxu0 0.0
            %5987 = vmatprep.subr.mxu0 0.0
            %5988 = vmatpush1.msra.mxu0 0.0
            %5989 = vmatprep.subr.mxu0 0.0
            %5990 = vmatpush1.msra.mxu0 0.0
            %5991 = vmatprep.subr.mxu0 0.0
            %5992 = vmatpush1.msra.mxu0 0.0
            %5993 = vmatprep.subr.mxu0 0.0
            %5994 = vmatpush1.msra.mxu0 0.0
            %5995 = vmatprep.subr.mxu0 0.0
            %5996 = vmatpush1.msra.mxu0 0.0
            %5997 = vmatprep.subr.mxu0 0.0
            %5998 = vmatpush1.msra.mxu0 0.0
            %5999 = vmatprep.subr.mxu0 0.0
            %6000 = vmatpush1.msra.mxu0 0.0
            %6001 = vmatprep.subr.mxu0 0.0
            %6002 = vmatpush1.msra.mxu0 0.0
            %6003 = vmatprep.mubr.f32.mxu0 0.0
            %6004 = vmatmul.mubr.f32.gmra.mrb[0].mxu0 %v5937
            %v6005 = vpop.f32.mrb[0].mxu0
            %v6006 = vadd.f32 0.0, %v6005
            %v6007 = vpop.f32.mrb[0].mxu0
            %6008 = vdwg.mxu0
            %v6009 = vld [vmem:[%s13] sm:$0x3]
            %6011 = vset.pattern.permute.xlu0 0
            %6012 = vperm.xlu0 %6011, %v6009
            %v6013 = vpop.permute.xlu0 %6012
            %v6015 = vmul.f32 %v6006, %v6013
            %v6016 = vld [vmem:[#allocation24] sm:$0xf]
            %v6017 = vld [vmem:[#allocation24 + $0x4] sm:$0xf]
            %v6018 = vld [vmem:[#allocation24 + $0x8] sm:$0xf]
            %v6019 = vld [vmem:[#allocation24 + $0xc] sm:$0xf]
            %v6020 = vld [vmem:[#allocation24 + $0x10] sm:$0xf]
            %v6021 = vld [vmem:[#allocation24 + $0x14] sm:$0xf]
            %v6022 = vld [vmem:[#allocation24 + $0x18] sm:$0xf]
            %v6023 = vld [vmem:[#allocation24 + $0x1c] sm:$0xf]
            %v6024 = vld [vmem:[#allocation24 + $0x20] sm:$0xf]
            %v6025 = vld [vmem:[#allocation24 + $0x24] sm:$0xf]
            %v6026 = vld [vmem:[#allocation24 + $0x28] sm:$0xf]
            %v6027 = vld [vmem:[#allocation24 + $0x2c] sm:$0xf]
            %v6028 = vld [vmem:[#allocation24 + $0x30] sm:$0xf]
            %v6029 = vld [vmem:[#allocation24 + $0x34] sm:$0xf]
            %v6030 = vld [vmem:[#allocation24 + $0x38] sm:$0xf]
            %v6031 = vld [vmem:[#allocation24 + $0x3c] sm:$0xf]
            %v6032 = vpack.c.bf16 %v6015, %v6015
            %v6033 = vld [vmem:[%s53] sm:$0x1]
            %v6035 = vlaneseq
            %v6036 = vshrl.u32 %v6035, 7
            %v6037 = vsub.s32 0, %v6036
            %v6038 = vrot.slane %v6033, %v6037
            %v6056 = vunpack.c.l.b16 %v6016
            %v6057 = vunpack.c.l.b16 %v6017
            %v6058 = vunpack.c.l.b16 %v6018
            %v6059 = vunpack.c.l.b16 %v6019
            %v6060 = vunpack.c.l.b16 %v6020
            %v6061 = vunpack.c.l.b16 %v6021
            %v6062 = vunpack.c.l.b16 %v6022
            %v6063 = vunpack.c.l.b16 %v6023
            %v6064 = vunpack.c.l.b16 %v6024
            %v6065 = vunpack.c.l.b16 %v6025
            %v6066 = vunpack.c.l.b16 %v6026
            %v6067 = vunpack.c.l.b16 %v6027
            %v6068 = vunpack.c.l.b16 %v6028
            %v6069 = vunpack.c.l.b16 %v6029
            %v6070 = vunpack.c.l.b16 %v6030
            %v6071 = vunpack.c.l.b16 %v6031
            %v6072 = vpack.c.b16 %v6057, %v6056
            %v6073 = vpack.c.b16 %v6059, %v6058
            %v6074 = vpack.c.b16 %v6061, %v6060
            %v6075 = vpack.c.b16 %v6063, %v6062
            %v6076 = vpack.c.b16 %v6065, %v6064
            %v6077 = vpack.c.b16 %v6067, %v6066
            %v6078 = vpack.c.b16 %v6069, %v6068
            %v6079 = vpack.c.b16 %v6071, %v6070
            %6088 = vmatprep.subr.bf16.mxu0 0
            %6089 = vmatpush1.bf16.msra.mxu0 %v6072
            %6090 = vmatprep.subr.bf16.mxu0 0
            %6091 = vmatpush1.bf16.msra.mxu0 %v6073
            %6092 = vmatprep.subr.bf16.mxu0 0
            %6093 = vmatpush1.bf16.msra.mxu0 %v6074
            %6094 = vmatprep.subr.bf16.mxu0 0
            %6095 = vmatpush1.bf16.msra.mxu0 %v6075
            %6096 = vmatprep.subr.bf16.mxu0 0
            %6097 = vmatpush1.bf16.msra.mxu0 %v6076
            %6098 = vmatprep.subr.bf16.mxu0 0
            %6099 = vmatpush1.bf16.msra.mxu0 %v6077
            %6100 = vmatprep.subr.bf16.mxu0 0
            %6101 = vmatpush1.bf16.msra.mxu0 %v6078
            %6102 = vmatprep.subr.bf16.mxu0 0
            %6103 = vmatpush1.bf16.msra.mxu0 %v6079
            %6104 = vmatprep.subr.bf16.mxu0 0
            %6105 = vmatpush1.bf16.msra.mxu0 0
            %6106 = vmatprep.subr.bf16.mxu0 0
            %6107 = vmatpush1.bf16.msra.mxu0 0
            %6108 = vmatprep.subr.bf16.mxu0 0
            %6109 = vmatpush1.bf16.msra.mxu0 0
            %6110 = vmatprep.subr.bf16.mxu0 0
            %6111 = vmatpush1.bf16.msra.mxu0 0
            %6112 = vmatprep.subr.bf16.mxu0 0
            %6113 = vmatpush1.bf16.msra.mxu0 0
            %6114 = vmatprep.subr.bf16.mxu0 0
            %6115 = vmatpush1.bf16.msra.mxu0 0
            %6116 = vmatprep.subr.bf16.mxu0 0
            %6117 = vmatpush1.bf16.msra.mxu0 0
            %6118 = vmatprep.subr.bf16.mxu0 0
            %6119 = vmatpush1.bf16.msra.mxu0 0
            %6120 = vmatprep.mubr.bf16.mxu0 0
            %6121 = vmatmul.mubr.bf16.gmra.mrb[0].mxu0 %v6032
            %v6122 = vpop.f32.mrb[0].mxu0
            %v6123 = vadd.f32 %v6038, %v6122
            %v6124 = vpop.f32.mrb[0].mxu0
            %v6125 = vpop.f32.mrb[0].mxu0
            %v6126 = vpop.f32.mrb[0].mxu0
            %6127 = vdwg.mxu0
            %v6128 = vmax.f32 %v6123, 0.0
            %v6129 = vld [vmem:[#allocation25] sm:$0xf]
            %v6130 = vld [vmem:[#allocation25 + $0x4] sm:$0xf]
            %v6131 = vld [vmem:[#allocation25 + $0x8] sm:$0xf]
            %v6132 = vld [vmem:[#allocation25 + $0xc] sm:$0xf]
            %v6133 = vld [vmem:[#allocation25 + $0x10] sm:$0xf]
            %v6134 = vld [vmem:[#allocation25 + $0x14] sm:$0xf]
            %v6135 = vld [vmem:[#allocation25 + $0x18] sm:$0xf]
            %v6136 = vld [vmem:[#allocation25 + $0x1c] sm:$0xf]
            %v6137 = vld [vmem:[#allocation25 + $0x20] sm:$0xf]
            %v6138 = vld [vmem:[#allocation25 + $0x24] sm:$0xf]
            %v6139 = vld [vmem:[#allocation25 + $0x28] sm:$0xf]
            %v6140 = vld [vmem:[#allocation25 + $0x2c] sm:$0xf]
            %v6141 = vld [vmem:[#allocation25 + $0x30] sm:$0xf]
            %v6142 = vld [vmem:[#allocation25 + $0x34] sm:$0xf]
            %v6143 = vld [vmem:[#allocation25 + $0x38] sm:$0xf]
            %v6144 = vld [vmem:[#allocation25 + $0x3c] sm:$0xf]
            %v6145 = vpack.c.bf16 %v6128, %v6128
            %v6146 = vld [vmem:[%s57] sm:$0x1]
            %v6148 = vlaneseq
            %v6149 = vshrl.u32 %v6148, 7
            %v6150 = vsub.s32 0, %v6149
            %v6151 = vrot.slane %v6146, %v6150
            %v6169 = vunpack.c.l.b16 %v6129
            %v6170 = vunpack.c.l.b16 %v6130
            %v6171 = vunpack.c.l.b16 %v6131
            %v6172 = vunpack.c.l.b16 %v6132
            %v6173 = vunpack.c.l.b16 %v6133
            %v6174 = vunpack.c.l.b16 %v6134
            %v6175 = vunpack.c.l.b16 %v6135
            %v6176 = vunpack.c.l.b16 %v6136
            %v6177 = vunpack.c.l.b16 %v6137
            %v6178 = vunpack.c.l.b16 %v6138
            %v6179 = vunpack.c.l.b16 %v6139
            %v6180 = vunpack.c.l.b16 %v6140
            %v6181 = vunpack.c.l.b16 %v6141
            %v6182 = vunpack.c.l.b16 %v6142
            %v6183 = vunpack.c.l.b16 %v6143
            %v6184 = vunpack.c.l.b16 %v6144
            %v6185 = vpack.c.b16 %v6170, %v6169
            %v6186 = vpack.c.b16 %v6172, %v6171
            %v6187 = vpack.c.b16 %v6174, %v6173
            %v6188 = vpack.c.b16 %v6176, %v6175
            %v6189 = vpack.c.b16 %v6178, %v6177
            %v6190 = vpack.c.b16 %v6180, %v6179
            %v6191 = vpack.c.b16 %v6182, %v6181
            %v6192 = vpack.c.b16 %v6184, %v6183
            %6201 = vmatprep.subr.bf16.mxu0 0
            %6202 = vmatpush1.bf16.msra.mxu0 %v6185
            %6203 = vmatprep.subr.bf16.mxu0 0
            %6204 = vmatpush1.bf16.msra.mxu0 %v6186
            %6205 = vmatprep.subr.bf16.mxu0 0
            %6206 = vmatpush1.bf16.msra.mxu0 %v6187
            %6207 = vmatprep.subr.bf16.mxu0 0
            %6208 = vmatpush1.bf16.msra.mxu0 %v6188
            %6209 = vmatprep.subr.bf16.mxu0 0
            %6210 = vmatpush1.bf16.msra.mxu0 %v6189
            %6211 = vmatprep.subr.bf16.mxu0 0
            %6212 = vmatpush1.bf16.msra.mxu0 %v6190
            %6213 = vmatprep.subr.bf16.mxu0 0
            %6214 = vmatpush1.bf16.msra.mxu0 %v6191
            %6215 = vmatprep.subr.bf16.mxu0 0
            %6216 = vmatpush1.bf16.msra.mxu0 %v6192
            %6217 = vmatprep.subr.bf16.mxu0 0
            %6218 = vmatpush1.bf16.msra.mxu0 0
            %6219 = vmatprep.subr.bf16.mxu0 0
            %6220 = vmatpush1.bf16.msra.mxu0 0
            %6221 = vmatprep.subr.bf16.mxu0 0
            %6222 = vmatpush1.bf16.msra.mxu0 0
            %6223 = vmatprep.subr.bf16.mxu0 0
            %6224 = vmatpush1.bf16.msra.mxu0 0
            %6225 = vmatprep.subr.bf16.mxu0 0
            %6226 = vmatpush1.bf16.msra.mxu0 0
            %6227 = vmatprep.subr.bf16.mxu0 0
            %6228 = vmatpush1.bf16.msra.mxu0 0
            %6229 = vmatprep.subr.bf16.mxu0 0
            %6230 = vmatpush1.bf16.msra.mxu0 0
            %6231 = vmatprep.subr.bf16.mxu0 0
            %6232 = vmatpush1.bf16.msra.mxu0 0
            %6233 = vmatprep.mubr.bf16.mxu0 0
            %6234 = vmatmul.mubr.bf16.gmra.mrb[0].mxu0 %v6145
            %v6235 = vpop.f32.mrb[0].mxu0
            %v6236 = vadd.f32 %v6151, %v6235
            %v6237 = vpop.f32.mrb[0].mxu0
            %v6238 = vpop.f32.mrb[0].mxu0
            %v6239 = vpop.f32.mrb[0].mxu0
            %6240 = vdwg.mxu0
            %6241 = vst [vmem:[#allocation27] sm:$0x3] %v6236
          $region216: #{tpu_custom_call.1} parent=211 // pred_fallthru
            _
        $region212: #{tpu_custom_call.1} parent=135 // pred_fallthru
          _
        // Predicated region
        $region217: #{tpu_custom_call.1} parent=135 // pred_check
          %p6242 = pneg %p789
        $region218: #{tpu_custom_call.1} parent=135 // pred_check_branch
          %6244 = sbr.rel (%p6242) target = $region220
        $region219: #{tpu_custom_call.1} parent=135 // pred_region
          %s6246 = ssub.s32 32, 32
          %6247 = vsyncadd [#allocation9], %s6246
          %s6249 = sshll.u32 [#allocation27], 4
          %s6250 = int_to_ptr.vmem [resolvable:$true] %s6249
          %6252 = dma.vmem_to_hbm [thread:$0]  %s6250, 32, %s59, [#allocation9]
        $region220: #{tpu_custom_call.1} parent=135 // pred_fallthru
          _
        // Predicated region
        $region221: #{tpu_custom_call.1} parent=135 // pred_check
          %p6253 = pneg %p789
        $region222: #{tpu_custom_call.1} parent=135 // pred_check_branch
          %6255 = sbr.rel (%p6253) target = $region224
        $region223: #{tpu_custom_call.1} parent=135 // pred_region
          %6256 = dma.done [#allocation9], 32
        $region224: #{tpu_custom_call.1} parent=135 // pred_fallthru
          _
      $region136: #{tpu_custom_call.1} parent=5 // pred_fallthru
        _
      %p6257 = scmp.le.s32.totalorder 2, %s70
      // Predicated region
      $region225: #{tpu_custom_call.1} parent=5 // pred_check
        %p6258 = pneg %p6257
      $region226: #{tpu_custom_call.1} parent=5 // pred_check_branch
        %6260 = sbr.rel (%p6258) target = $region228
      $region227: #{tpu_custom_call.1} parent=5 // pred_region
        %s6261 = ssub.s32 %s70, 2
      $region228: #{tpu_custom_call.1} parent=5 // pred_fallthru
        _
    $region6: #{tpu_custom_call.1} parent=1 // loop_footer
      %s74 = sadd.s32 1, %s70
    $region7: #{tpu_custom_call.1} parent=1 // loop_footer_branch
      %69 = sbr.rel target = $region3
    $region8: #{tpu_custom_call.1} parent=1 // loop_exit
      _
    %6262 = vsyncpa [#allocation8], 1
    %s6263 = scalar_lea.sflag [#allocation8], 1
    %6264 = vsyncpa %s6263, 1
    %6265 = vsyncpa [#allocation11], 1
    %6266 = vsyncpa [#allocation23], 1
    %6267 = vsyncpa [#allocation26], 1
    %6268 = vsyncpa [#allocation9], 1
    %s6269 = scalar_lea.sflag [#allocation9], 1
    %6270 = vsyncpa %s6269, 1

</llo_original>
